<compile_context>
chip_gen: v6e
topology: v6e:2x2x1
jax: 0.10.0
libtpu: 0.0.40
codegen_flags: <defaults>
</compile_context>

<pallas_src>
import jax
import jax.numpy as jnp
from jax.experimental import pallas as pl
from jax.experimental.pallas import tpu as pltpu

HIDDEN = 4096  # cs_ct_ci_diff hidden width (from the PyTorch spec)


# ----------------------------------------------------------------------------
# Packed-slab layout (shared by the packer and the kernel)
# ----------------------------------------------------------------------------
def make_layout(nc):
    w_names = (["fe1", "fe2", "ee1", "ee2", "c3"]
               + [f"m1_{c}" for c in range(nc)]
               + [f"m2_{c}" for c in range(nc)]
               + ["esd1", "fd1", "esd2", "fd2", "etd1", "etd2", "ci1", "ci2"])
    b_names = (["fe1", "fe2", "ee1", "ee2", "c3"]
               + [f"m1_{c}" for c in range(nc)]
               + ["m2", "esd1", "fd1", "esd2", "fd2", "etd1", "etd2", "ci1", "ci2"])
    W = {n: i for i, n in enumerate(w_names)}
    Bi = {n: i for i, n in enumerate(b_names)}
    return W, Bi, w_names, b_names


# ----------------------------------------------------------------------------
# Fused kernel: the whole CGG_MLP_w_Features forward in one Pallas call.
# ----------------------------------------------------------------------------
def _make_kernel(nc, W, Bi):
    bf16 = jnp.bfloat16

    def kernel(adj_ref, feat_ref, csctcd_ref, w_ref, b_ref,
               adj_src_ref, adj_tgt_ref, feat_pred_ref, pred_ct_ref):
        bt, D = adj_ref.shape

        def dense(x, wn, bn):
            # bf16 MXU matmul from the packed slab, f32 accumulation, f32 bias.
            return (jnp.dot(x.astype(bf16), w_ref[W[wn]],
                            preferred_element_type=jnp.float32)
                    + b_ref[Bi[bn]:Bi[bn] + 1, :])

        def relu(v):
            return jnp.maximum(v, 0.0)

        adj = adj_ref[...]
        feat = feat_ref[...]
        csctcd = csctcd_ref[...]            # (bt, D): [cs|ct|ci_diff] zero-padded

        # ---------------- encoders ----------------
        feat_enc = relu(dense(relu(dense(feat, "fe1", "fe1")), "fe2", "fe2"))
        edge_enc = relu(dense(relu(dense(adj, "ee1", "ee1")), "ee2", "ee2"))
        z = edge_enc + feat_enc

        # --- 3x (13,13) branches fused as one zero-padded block-diag matmul ---
        b3 = relu(dense(csctcd, "c3", "c3")).astype(bf16)   # (bt, D)

        # --- mixing MLP Linear(39,4096)->ReLU->Linear(4096,D)->ReLU,
        #     chunked over the 4096 hidden dim (chunk = D, exact per-unit ReLU)
        acc = jnp.zeros((bt, D), jnp.float32)
        for c in range(nc):
            hcol = relu(jnp.dot(b3, w_ref[W[f"m1_{c}"]],
                                preferred_element_type=jnp.float32)
                        + b_ref[Bi[f"m1_{c}"]:Bi[f"m1_{c}"] + 1, :])
            acc = acc + jnp.dot(hcol.astype(bf16), w_ref[W[f"m2_{c}"]],
                                preferred_element_type=jnp.float32)
        mix = relu(acc + b_ref[Bi["m2"]:Bi["m2"] + 1, :])
        z_and = z * mix

        # ---------------- decoders ----------------
        adj_src = jax.nn.sigmoid(dense(relu(dense(z, "esd1", "esd1")),
                                       "esd2", "esd2"))
        feat_pred = relu(dense(relu(dense(z, "fd1", "fd1")), "fd2", "fd2"))
        adj_tgt = jax.nn.sigmoid(dense(relu(dense(z_and, "etd1", "etd1")),
                                       "etd2", "etd2"))

        # --- ci_predictor (mn / n_idx dims zero-padded to D lanes) ---
        pred_ct = dense(relu(dense(adj_tgt, "ci1", "ci1")), "ci2", "ci2")

        adj_src_ref[...] = adj_src.astype(adj_src_ref.dtype)
        adj_tgt_ref[...] = adj_tgt.astype(adj_tgt_ref.dtype)
        feat_pred_ref[...] = feat_pred.astype(feat_pred_ref.dtype)
        pred_ct_ref[...] = pred_ct.astype(pred_ct_ref.dtype)

    return kernel


# ----------------------------------------------------------------------------
# Forward wrapper
# ----------------------------------------------------------------------------
def _round_up(x, m):
    return ((x + m - 1) // m) * m


def _pick_bt(B):
    # v2-v5: 128-wide MXU rows -> M=128 already fills a systolic tile.
    # v6e / v7x: 2x256^2 MXU -> prefer M=256 tiles.
    kind = jax.devices()[0].device_kind.lower()
    bt_pref = 128 if any(v in kind for v in ("v2", "v3", "v4", "v5")) else 256
    if B <= bt_pref:
        return max(8, _round_up(B, 8))       # single-program grid, >=8 f32 sublanes
    return bt_pref


def cgg_mlp_forward(w_slab, b_slab, adj_matrix, feature_matrix, ci_diff, cs, ct):
    B = adj_matrix.shape[0]
    mm = adj_matrix.shape[1] * adj_matrix.shape[2]
    D = mm
    n_idx = cs.shape[1]
    assert D % 128 == 0 and HIDDEN % D == 0
    nc = HIDDEN // D
    assert w_slab.shape == (13 + 2 * nc, D, D)

    adj = adj_matrix.reshape(B, mm).astype(jnp.float32)
    feat = feature_matrix.reshape(B, mm).astype(jnp.float32)
    # concat order mirrors torch.concat([cs, ct, ci_diff], dim=1); pad to D lanes
    # (extra lanes hit zero weight rows, so the padding is exact).
    csctcd = jnp.concatenate([cs, ct, ci_diff], axis=1).astype(jnp.float32)
    csctcd = jnp.pad(csctcd, ((0, 0), (0, D - 3 * n_idx)))

    # Always pad-and-tile the batch; never a single bt=B mega block.
    bt = _pick_bt(B)
    B_pad = _round_up(B, bt)
    if B_pad != B:
        pad = ((0, B_pad - B), (0, 0))
        adj = jnp.pad(adj, pad)
        feat = jnp.pad(feat, pad)
        csctcd = jnp.pad(csctcd, pad)
    grid = (B_pad // bt,)

    W, Bi, _, _ = make_layout(nc)
    kernel = _make_kernel(nc, W, Bi)

    def act_spec():
        return pl.BlockSpec((bt, D), lambda i: (i, 0))

    # Whole-array VMEM residency: fetched once, single-buffered, shared across
    # all grid steps (no per-step weight re-DMA).
    w_spec = pl.BlockSpec(memory_space=pltpu.MemorySpace.VMEM)

    flops = 2 * B_pad * (13 * D * D + 2 * D * HIDDEN)
    bytes_accessed = (w_slab.size * 2 + b_slab.size * 4
                      + 3 * B_pad * D * 4 + 4 * B_pad * D * 4)
    cost = pl.CostEstimate(flops=flops,
                           transcendentals=2 * B_pad * D,
                           bytes_accessed=bytes_accessed)

    out_shape = tuple(jax.ShapeDtypeStruct((B_pad, D), jnp.float32)
                      for _ in range(4))

    adj_src, adj_tgt, feat_pred, pred_ct = pl.pallas_call(
        kernel,
        grid=grid,
        out_shape=out_shape,
        in_specs=[act_spec(), act_spec(), act_spec(), w_spec, w_spec],
        out_specs=tuple(act_spec() for _ in range(4)),
        compiler_params=pltpu.CompilerParams(
            dimension_semantics=("parallel",),   # megacore sharding when grid >= 2
            vmem_limit_bytes=32 * 1024 * 1024,
        ),
        cost_estimate=cost,
    )(adj, feat, csctcd, w_slab, b_slab)

    return (adj_src[:B], adj_tgt[:B], feat_pred[:B], pred_ct[:B, :n_idx])


# ----------------------------------------------------------------------------
# Parameter init (PyTorch-Linear-style uniform bounds, weights pre-transposed)
# ----------------------------------------------------------------------------
def init_linear(key, fin, fout):
    kw, kb = jax.random.split(key)
    bound = 1.0 / float(fin) ** 0.5
    w = jax.random.uniform(kw, (fin, fout), jnp.float32, -bound, bound)
    b = jax.random.uniform(kb, (1, fout), jnp.float32, -bound, bound)
    return w, b


def init_params(key, mn, n_idx):
    mm = mn * mn
    spec = {
        "feature_encoder": [(mm, mm), (mm, mm)],
        "feature_decoder": [(mm, mm), (mm, mm)],
        "edge_encoder": [(mm, mm), (mm, mm)],
        "edge_source_decoder": [(mm, mm), (mm, mm)],
        "edge_target_decoder": [(mm, mm), (mm, mm)],
        "cs_linear": [(n_idx, n_idx)],
        "ct_linear": [(n_idx, n_idx)],
        "ci_diff_linear": [(n_idx, n_idx)],
        "cs_ct_ci_diff": [(3 * n_idx, HIDDEN), (HIDDEN, mm)],
        # TODO(synk): checkpointed ci_predictor (torch.load) replaced with
        # in-script random init of the same Linear(mm,mn)->ReLU->Linear(mn,n_idx).
        "ci_predictor": [(mm, mn), (mn, n_idx)],
    }
    params = {}
    for name, dims in spec.items():
        layers = []
        for fin, fout in dims:
            key, sub = jax.random.split(key)
            layers.append(init_linear(sub, fin, fout))
        params[name] = layers
    return params


def fuse_params(params, weight_dtype=jnp.bfloat16):
    """Pack every weight into one (13+2*NC, D, D) bf16 slab and every bias
    into one (14+NC, D) f32 slab (2 DMAs total)."""
    D = params["feature_encoder"][0][0].shape[0]          # mm
    n_idx = params["cs_linear"][0][0].shape[0]
    nc = HIDDEN // D
    W, Bi, w_names, b_names = make_layout(nc)

    def padw(w, fin, fout):
        out = jnp.zeros((fin, fout), jnp.float32)
        return out.at[:w.shape[0], :w.shape[1]].set(w)

    def padb(b, fout):
        out = jnp.zeros((1, fout), jnp.float32)
        return out.at[:, :b.shape[1]].set(b)

    # block-diagonal merge of the three 13x13 linears, ordered [cs, ct, ci_diff]
    c3_w = jnp.zeros((D, D), jnp.float32)
    for k, name in enumerate(["cs_linear", "ct_linear", "ci_diff_linear"]):
        blk = params[name][0][0]
        c3_w = c3_w.at[k * n_idx:(k + 1) * n_idx,
                       k * n_idx:(k + 1) * n_idx].set(blk)
    c3_b = padb(jnp.concatenate([params["cs_linear"][0][1],
                                 params["ct_linear"][0][1],
                                 params["ci_diff_linear"][0][1]], axis=1), D)

    mix_w1 = padw(params["cs_ct_ci_diff"][0][0], D, HIDDEN)   # (D, 4096)
    mix_b1 = params["cs_ct_ci_diff"][0][1]                    # (1, 4096)
    mix_w2 = params["cs_ct_ci_diff"][1][0]                    # (4096, D)
    mix_b2 = params["cs_ct_ci_diff"][1][1]                    # (1, D)

    wd, bd = {}, {}
    wd["fe1"], bd["fe1"] = params["feature_encoder"][0]
    wd["fe2"], bd["fe2"] = params["feature_encoder"][1]
    wd["ee1"], bd["ee1"] = params["edge_encoder"][0]
    wd["ee2"], bd["ee2"] = params["edge_encoder"][1]
    wd["c3"], bd["c3"] = c3_w, c3_b
    for c in range(nc):
        wd[f"m1_{c}"] = mix_w1[:, c * D:(c + 1) * D]
        bd[f"m1_{c}"] = mix_b1[:, c * D:(c + 1) * D]
        wd[f"m2_{c}"] = mix_w2[c * D:(c + 1) * D, :]
    bd["m2"] = mix_b2
    wd["esd1"], bd["esd1"] = params["edge_source_decoder"][0]
    wd["fd1"], bd["fd1"] = params["feature_decoder"][0]
    wd["esd2"], bd["esd2"] = params["edge_source_decoder"][1]
    wd["fd2"], bd["fd2"] = params["feature_decoder"][1]
    wd["etd1"], bd["etd1"] = params["edge_target_decoder"][0]
    wd["etd2"], bd["etd2"] = params["edge_target_decoder"][1]
    wd["ci1"] = padw(params["ci_predictor"][0][0], D, D)
    bd["ci1"] = padb(params["ci_predictor"][0][1], D)
    wd["ci2"] = padw(params["ci_predictor"][1][0], D, D)
    bd["ci2"] = padb(params["ci_predictor"][1][1], D)

    w_slab = jnp.stack([wd[n] for n in w_names], axis=0).astype(weight_dtype)
    b_slab = jnp.concatenate([bd[n] for n in b_names], axis=0).astype(jnp.float32)
    return w_slab, b_slab


# ----------------------------------------------------------------------------
# Pure-JAX f32 reference (mirrors the PyTorch forward) for tolerance checks.
# ----------------------------------------------------------------------------
def cgg_ref(params, adj_matrix, feature_matrix, ci_diff, cs, ct):
    def seq(x, layers, acts):
        for (w, b), act in zip(layers, acts):
            x = x @ w + b
            if act == "relu":
                x = jnp.maximum(x, 0.0)
            elif act == "sigmoid":
                x = jax.nn.sigmoid(x)
        return x

    B = adj_matrix.shape[0]
    adj = adj_matrix.reshape(B, -1)
    feat = feature_matrix.reshape(B, -1)
    feat_enc = seq(feat, params["feature_encoder"], ["relu", "relu"])
    z = seq(adj, params["edge_encoder"], ["relu", "relu"]) + feat_enc
    cs_o = seq(cs, params["cs_linear"], ["relu"])
    ct_o = seq(ct, params["ct_linear"], ["relu"])
    cd_o = seq(ci_diff, params["ci_diff_linear"], ["relu"])
    mix = seq(jnp.concatenate([cs_o, ct_o, cd_o], axis=1),
              params["cs_ct_ci_diff"], ["relu", "relu"])
    z_and = z * mix
    adj_src = seq(z, params["edge_source_decoder"], ["relu", "sigmoid"])
    adj_tgt = seq(z_and, params["edge_target_decoder"], ["relu", "sigmoid"])
    feat_pred = seq(z, params["feature_decoder"], ["relu", "relu"])
    pred_ct = seq(adj_tgt, params["ci_predictor"], ["relu", "none"])
    return adj_src, adj_tgt, feat_pred, pred_ct


# ----------------------------------------------------------------------------
if __name__ == "__main__":
    B = 2            # batch
    mn = 16          # max_num_nodes  -> mm = 256
    n_idx = 13       # number_of_indices

    key = jax.random.PRNGKey(0)
    kp, ka, kf, kd, kcs, kct = jax.random.split(key, 6)

    params = init_params(kp, mn, n_idx)
    w_slab, b_slab = fuse_params(params)

    adj_matrix = (jax.random.uniform(ka, (B, mn, mn)) > 0.5).astype(jnp.float32)
    feature_matrix = jax.random.normal(kf, (B, mn, mn), jnp.float32)
    ci_diff = jax.random.normal(kd, (B, n_idx), jnp.float32)
    cs = jax.random.normal(kcs, (B, n_idx), jnp.float32)
    ct = jax.random.normal(kct, (B, n_idx), jnp.float32)

    fwd = jax.jit(cgg_mlp_forward)
    outs = fwd(w_slab, b_slab, adj_matrix, feature_matrix, ci_diff, cs, ct)
    outs = jax.block_until_ready(outs)

    adj_src_pred, adj_tgt_pred, feature_pred, pred_ct = outs
    assert adj_src_pred.shape == (B, mn * mn)
    assert adj_tgt_pred.shape == (B, mn * mn)
    assert feature_pred.shape == (B, mn * mn)
    assert pred_ct.shape == (B, n_idx)
    assert all(bool(jnp.isfinite(o).all()) for o in outs)

    # Tolerance check vs. pure-JAX f32 reference (bf16 weights -> small drift).
    refs = cgg_ref(params, adj_matrix, feature_matrix, ci_diff, cs, ct)
    for name, o, r in zip(["adj_src", "adj_tgt", "feat_pred", "pred_ct"], outs, refs):
        err = float(jnp.abs(o - r).max())
        assert bool(jnp.allclose(o, r, atol=5e-2, rtol=5e-2)), (name, err)

    print("KERNEL_OK")
</pallas_src>

<mosaic_0001>
module attributes {stable_mosaic.version = 11 : i64} {
  func.func @kernel(%arg0: i32, %arg1: memref<8x256xf32, #tpu.memory_space<vmem>>, %arg2: memref<8x256xf32, #tpu.memory_space<vmem>>, %arg3: memref<8x256xf32, #tpu.memory_space<vmem>>, %arg4: memref<45x256x256xbf16, #tpu.memory_space<vmem>>, %arg5: memref<30x256xf32, #tpu.memory_space<vmem>>, %arg6: memref<8x256xf32, #tpu.memory_space<vmem>>, %arg7: memref<8x256xf32, #tpu.memory_space<vmem>>, %arg8: memref<8x256xf32, #tpu.memory_space<vmem>>, %arg9: memref<8x256xf32, #tpu.memory_space<vmem>>) attributes {dimension_semantics = [#tpu.dimension_semantics<parallel>], iteration_bounds = array<i64: 1>, scalar_prefetch = 0 : i64, scratch_operands = 0 : i64, tpu.core_type = #tpu.core_type<tc>, window_params = [{transform_indices = @transform_0, window_bounds = array<i64: 8, 256>}, {transform_indices = @transform_1, window_bounds = array<i64: 8, 256>}, {transform_indices = @transform_2, window_bounds = array<i64: 8, 256>}, {pipeline_mode = #tpu.pipeline_mode<synchronous>, transform_indices = @transform_3, window_bounds = array<i64: 45, 256, 256>}, {pipeline_mode = #tpu.pipeline_mode<synchronous>, transform_indices = @transform_4, window_bounds = array<i64: 30, 256>}, {transform_indices = @transform_5, window_bounds = array<i64: 8, 256>}, {transform_indices = @transform_6, window_bounds = array<i64: 8, 256>}, {transform_indices = @transform_7, window_bounds = array<i64: 8, 256>}, {transform_indices = @transform_8, window_bounds = array<i64: 8, 256>}]} {
    %c0 = arith.constant 0 : index
    %c0_0 = arith.constant 0 : index
    %0 = vector.load %arg1[%c0, %c0_0] : memref<8x256xf32, #tpu.memory_space<vmem>>, vector<8x256xf32>
    %c0_1 = arith.constant 0 : index
    %c0_2 = arith.constant 0 : index
    %1 = vector.load %arg2[%c0_1, %c0_2] : memref<8x256xf32, #tpu.memory_space<vmem>>, vector<8x256xf32>
    %c0_3 = arith.constant 0 : index
    %c0_4 = arith.constant 0 : index
    %2 = vector.load %arg3[%c0_3, %c0_4] : memref<8x256xf32, #tpu.memory_space<vmem>>, vector<8x256xf32>
    %3 = arith.truncf %1 : vector<8x256xf32> to vector<8x256xbf16>
    %c0_5 = arith.constant 0 : index
    %c0_6 = arith.constant 0 : index
    %c0_7 = arith.constant 0 : index
    %4 = vector.load %arg4[%c0_5, %c0_6, %c0_7] : memref<45x256x256xbf16, #tpu.memory_space<vmem>>, vector<1x256x256xbf16>
    %5 = vector.shape_cast %4 : vector<1x256x256xbf16> to vector<256x256xbf16>
    %cst = arith.constant dense<0.000000e+00> : vector<8x256xf32>
    %6 = tpu.matmul %3, %5, %cst {dimension_numbers = #tpu.dot_dimension_numbers<[1], [0], [0], [1], [0, 0, 1, 1], [], []>} : vector<8x256xbf16>, vector<256x256xbf16>, vector<8x256xf32> -> vector<8x256xf32>
    %c0_8 = arith.constant 0 : index
    %c0_9 = arith.constant 0 : index
    %7 = vector.load %arg5[%c0_8, %c0_9] : memref<30x256xf32, #tpu.memory_space<vmem>>, vector<1x256xf32>
    %8 = vector.broadcast %7 : vector<1x256xf32> to vector<8x256xf32>
    %9 = arith.addf %6, %8 : vector<8x256xf32>
    %cst_10 = arith.constant 0.000000e+00 : f32
    %10 = vector.broadcast %cst_10 : f32 to vector<8x256xf32>
    %11 = arith.maximumf %9, %10 : vector<8x256xf32>
    %12 = arith.truncf %11 : vector<8x256xf32> to vector<8x256xbf16>
    %c1 = arith.constant 1 : index
    %c0_11 = arith.constant 0 : index
    %c0_12 = arith.constant 0 : index
    %13 = vector.load %arg4[%c1, %c0_11, %c0_12] : memref<45x256x256xbf16, #tpu.memory_space<vmem>>, vector<1x256x256xbf16>
    %14 = vector.shape_cast %13 : vector<1x256x256xbf16> to vector<256x256xbf16>
    %cst_13 = arith.constant dense<0.000000e+00> : vector<8x256xf32>
    %15 = tpu.matmul %12, %14, %cst_13 {dimension_numbers = #tpu.dot_dimension_numbers<[1], [0], [0], [1], [0, 0, 1, 1], [], []>} : vector<8x256xbf16>, vector<256x256xbf16>, vector<8x256xf32> -> vector<8x256xf32>
    %c1_14 = arith.constant 1 : index
    %c0_15 = arith.constant 0 : index
    %16 = vector.load %arg5[%c1_14, %c0_15] : memref<30x256xf32, #tpu.memory_space<vmem>>, vector<1x256xf32>
    %17 = vector.broadcast %16 : vector<1x256xf32> to vector<8x256xf32>
    %18 = arith.addf %15, %17 : vector<8x256xf32>
    %cst_16 = arith.constant 0.000000e+00 : f32
    %19 = vector.broadcast %cst_16 : f32 to vector<8x256xf32>
    %20 = arith.maximumf %18, %19 : vector<8x256xf32>
    %21 = arith.truncf %0 : vector<8x256xf32> to vector<8x256xbf16>
    %c2 = arith.constant 2 : index
    %c0_17 = arith.constant 0 : index
    %c0_18 = arith.constant 0 : index
    %22 = vector.load %arg4[%c2, %c0_17, %c0_18] : memref<45x256x256xbf16, #tpu.memory_space<vmem>>, vector<1x256x256xbf16>
    %23 = vector.shape_cast %22 : vector<1x256x256xbf16> to vector<256x256xbf16>
    %cst_19 = arith.constant dense<0.000000e+00> : vector<8x256xf32>
    %24 = tpu.matmul %21, %23, %cst_19 {dimension_numbers = #tpu.dot_dimension_numbers<[1], [0], [0], [1], [0, 0, 1, 1], [], []>} : vector<8x256xbf16>, vector<256x256xbf16>, vector<8x256xf32> -> vector<8x256xf32>
    %c2_20 = arith.constant 2 : index
    %c0_21 = arith.constant 0 : index
    %25 = vector.load %arg5[%c2_20, %c0_21] : memref<30x256xf32, #tpu.memory_space<vmem>>, vector<1x256xf32>
    %26 = vector.broadcast %25 : vector<1x256xf32> to vector<8x256xf32>
    %27 = arith.addf %24, %26 : vector<8x256xf32>
    %cst_22 = arith.constant 0.000000e+00 : f32
    %28 = vector.broadcast %cst_22 : f32 to vector<8x256xf32>
    %29 = arith.maximumf %27, %28 : vector<8x256xf32>
    %30 = arith.truncf %29 : vector<8x256xf32> to vector<8x256xbf16>
    %c3 = arith.constant 3 : index
    %c0_23 = arith.constant 0 : index
    %c0_24 = arith.constant 0 : index
    %31 = vector.load %arg4[%c3, %c0_23, %c0_24] : memref<45x256x256xbf16, #tpu.memory_space<vmem>>, vector<1x256x256xbf16>
    %32 = vector.shape_cast %31 : vector<1x256x256xbf16> to vector<256x256xbf16>
    %cst_25 = arith.constant dense<0.000000e+00> : vector<8x256xf32>
    %33 = tpu.matmul %30, %32, %cst_25 {dimension_numbers = #tpu.dot_dimension_numbers<[1], [0], [0], [1], [0, 0, 1, 1], [], []>} : vector<8x256xbf16>, vector<256x256xbf16>, vector<8x256xf32> -> vector<8x256xf32>
    %c3_26 = arith.constant 3 : index
    %c0_27 = arith.constant 0 : index
    %34 = vector.load %arg5[%c3_26, %c0_27] : memref<30x256xf32, #tpu.memory_space<vmem>>, vector<1x256xf32>
    %35 = vector.broadcast %34 : vector<1x256xf32> to vector<8x256xf32>
    %36 = arith.addf %33, %35 : vector<8x256xf32>
    %cst_28 = arith.constant 0.000000e+00 : f32
    %37 = vector.broadcast %cst_28 : f32 to vector<8x256xf32>
    %38 = arith.maximumf %36, %37 : vector<8x256xf32>
    %39 = arith.addf %38, %20 : vector<8x256xf32>
    %40 = arith.truncf %2 : vector<8x256xf32> to vector<8x256xbf16>
    %c4 = arith.constant 4 : index
    %c0_29 = arith.constant 0 : index
    %c0_30 = arith.constant 0 : index
    %41 = vector.load %arg4[%c4, %c0_29, %c0_30] : memref<45x256x256xbf16, #tpu.memory_space<vmem>>, vector<1x256x256xbf16>
    %42 = vector.shape_cast %41 : vector<1x256x256xbf16> to vector<256x256xbf16>
    %cst_31 = arith.constant dense<0.000000e+00> : vector<8x256xf32>
    %43 = tpu.matmul %40, %42, %cst_31 {dimension_numbers = #tpu.dot_dimension_numbers<[1], [0], [0], [1], [0, 0, 1, 1], [], []>} : vector<8x256xbf16>, vector<256x256xbf16>, vector<8x256xf32> -> vector<8x256xf32>
    %c4_32 = arith.constant 4 : index
    %c0_33 = arith.constant 0 : index
    %44 = vector.load %arg5[%c4_32, %c0_33] : memref<30x256xf32, #tpu.memory_space<vmem>>, vector<1x256xf32>
    %45 = vector.broadcast %44 : vector<1x256xf32> to vector<8x256xf32>
    %46 = arith.addf %43, %45 : vector<8x256xf32>
    %cst_34 = arith.constant 0.000000e+00 : f32
    %47 = vector.broadcast %cst_34 : f32 to vector<8x256xf32>
    %48 = arith.maximumf %46, %47 : vector<8x256xf32>
    %49 = arith.truncf %48 : vector<8x256xf32> to vector<8x256xbf16>
    %cst_35 = arith.constant 0.000000e+00 : f32
    %50 = vector.broadcast %cst_35 : f32 to vector<8x256xf32>
    %c5 = arith.constant 5 : index
    %c0_36 = arith.constant 0 : index
    %c0_37 = arith.constant 0 : index
    %51 = vector.load %arg4[%c5, %c0_36, %c0_37] : memref<45x256x256xbf16, #tpu.memory_space<vmem>>, vector<1x256x256xbf16>
    %52 = vector.shape_cast %51 : vector<1x256x256xbf16> to vector<256x256xbf16>
    %cst_38 = arith.constant dense<0.000000e+00> : vector<8x256xf32>
    %53 = tpu.matmul %49, %52, %cst_38 {dimension_numbers = #tpu.dot_dimension_numbers<[1], [0], [0], [1], [0, 0, 1, 1], [], []>} : vector<8x256xbf16>, vector<256x256xbf16>, vector<8x256xf32> -> vector<8x256xf32>
    %c5_39 = arith.constant 5 : index
    %c0_40 = arith.constant 0 : index
    %54 = vector.load %arg5[%c5_39, %c0_40] : memref<30x256xf32, #tpu.memory_space<vmem>>, vector<1x256xf32>
    %55 = vector.broadcast %54 : vector<1x256xf32> to vector<8x256xf32>
    %56 = arith.addf %53, %55 : vector<8x256xf32>
    %cst_41 = arith.constant 0.000000e+00 : f32
    %57 = vector.broadcast %cst_41 : f32 to vector<8x256xf32>
    %58 = arith.maximumf %56, %57 : vector<8x256xf32>
    %59 = arith.truncf %58 : vector<8x256xf32> to vector<8x256xbf16>
    %c21 = arith.constant 21 : index
    %c0_42 = arith.constant 0 : index
    %c0_43 = arith.constant 0 : index
    %60 = vector.load %arg4[%c21, %c0_42, %c0_43] : memref<45x256x256xbf16, #tpu.memory_space<vmem>>, vector<1x256x256xbf16>
    %61 = vector.shape_cast %60 : vector<1x256x256xbf16> to vector<256x256xbf16>
    %cst_44 = arith.constant dense<0.000000e+00> : vector<8x256xf32>
    %62 = tpu.matmul %59, %61, %cst_44 {dimension_numbers = #tpu.dot_dimension_numbers<[1], [0], [0], [1], [0, 0, 1, 1], [], []>} : vector<8x256xbf16>, vector<256x256xbf16>, vector<8x256xf32> -> vector<8x256xf32>
    %63 = arith.addf %50, %62 : vector<8x256xf32>
    %c6 = arith.constant 6 : index
    %c0_45 = arith.constant 0 : index
    %c0_46 = arith.constant 0 : index
    %64 = vector.load %arg4[%c6, %c0_45, %c0_46] : memref<45x256x256xbf16, #tpu.memory_space<vmem>>, vector<1x256x256xbf16>
    %65 = vector.shape_cast %64 : vector<1x256x256xbf16> to vector<256x256xbf16>
    %cst_47 = arith.constant dense<0.000000e+00> : vector<8x256xf32>
    %66 = tpu.matmul %49, %65, %cst_47 {dimension_numbers = #tpu.dot_dimension_numbers<[1], [0], [0], [1], [0, 0, 1, 1], [], []>} : vector<8x256xbf16>, vector<256x256xbf16>, vector<8x256xf32> -> vector<8x256xf32>
    %c6_48 = arith.constant 6 : index
    %c0_49 = arith.constant 0 : index
    %67 = vector.load %arg5[%c6_48, %c0_49] : memref<30x256xf32, #tpu.memory_space<vmem>>, vector<1x256xf32>
    %68 = vector.broadcast %67 : vector<1x256xf32> to vector<8x256xf32>
    %69 = arith.addf %66, %68 : vector<8x256xf32>
    %cst_50 = arith.constant 0.000000e+00 : f32
    %70 = vector.broadcast %cst_50 : f32 to vector<8x256xf32>
    %71 = arith.maximumf %69, %70 : vector<8x256xf32>
    %72 = arith.truncf %71 : vector<8x256xf32> to vector<8x256xbf16>
    %c22 = arith.constant 22 : index
    %c0_51 = arith.constant 0 : index
    %c0_52 = arith.constant 0 : index
    %73 = vector.load %arg4[%c22, %c0_51, %c0_52] : memref<45x256x256xbf16, #tpu.memory_space<vmem>>, vector<1x256x256xbf16>
    %74 = vector.shape_cast %73 : vector<1x256x256xbf16> to vector<256x256xbf16>
    %cst_53 = arith.constant dense<0.000000e+00> : vector<8x256xf32>
    %75 = tpu.matmul %72, %74, %cst_53 {dimension_numbers = #tpu.dot_dimension_numbers<[1], [0], [0], [1], [0, 0, 1, 1], [], []>} : vector<8x256xbf16>, vector<256x256xbf16>, vector<8x256xf32> -> vector<8x256xf32>
    %76 = arith.addf %63, %75 : vector<8x256xf32>
    %c7 = arith.constant 7 : index
    %c0_54 = arith.constant 0 : index
    %c0_55 = arith.constant 0 : index
    %77 = vector.load %arg4[%c7, %c0_54, %c0_55] : memref<45x256x256xbf16, #tpu.memory_space<vmem>>, vector<1x256x256xbf16>
    %78 = vector.shape_cast %77 : vector<1x256x256xbf16> to vector<256x256xbf16>
    %cst_56 = arith.constant dense<0.000000e+00> : vector<8x256xf32>
    %79 = tpu.matmul %49, %78, %cst_56 {dimension_numbers = #tpu.dot_dimension_numbers<[1], [0], [0], [1], [0, 0, 1, 1], [], []>} : vector<8x256xbf16>, vector<256x256xbf16>, vector<8x256xf32> -> vector<8x256xf32>
    %c7_57 = arith.constant 7 : index
    %c0_58 = arith.constant 0 : index
    %80 = vector.load %arg5[%c7_57, %c0_58] : memref<30x256xf32, #tpu.memory_space<vmem>>, vector<1x256xf32>
    %81 = vector.broadcast %80 : vector<1x256xf32> to vector<8x256xf32>
    %82 = arith.addf %79, %81 : vector<8x256xf32>
    %cst_59 = arith.constant 0.000000e+00 : f32
    %83 = vector.broadcast %cst_59 : f32 to vector<8x256xf32>
    %84 = arith.maximumf %82, %83 : vector<8x256xf32>
    %85 = arith.truncf %84 : vector<8x256xf32> to vector<8x256xbf16>
    %c23 = arith.constant 23 : index
    %c0_60 = arith.constant 0 : index
    %c0_61 = arith.constant 0 : index
    %86 = vector.load %arg4[%c23, %c0_60, %c0_61] : memref<45x256x256xbf16, #tpu.memory_space<vmem>>, vector<1x256x256xbf16>
    %87 = vector.shape_cast %86 : vector<1x256x256xbf16> to vector<256x256xbf16>
    %cst_62 = arith.constant dense<0.000000e+00> : vector<8x256xf32>
    %88 = tpu.matmul %85, %87, %cst_62 {dimension_numbers = #tpu.dot_dimension_numbers<[1], [0], [0], [1], [0, 0, 1, 1], [], []>} : vector<8x256xbf16>, vector<256x256xbf16>, vector<8x256xf32> -> vector<8x256xf32>
    %89 = arith.addf %76, %88 : vector<8x256xf32>
    %c8 = arith.constant 8 : index
    %c0_63 = arith.constant 0 : index
    %c0_64 = arith.constant 0 : index
    %90 = vector.load %arg4[%c8, %c0_63, %c0_64] : memref<45x256x256xbf16, #tpu.memory_space<vmem>>, vector<1x256x256xbf16>
    %91 = vector.shape_cast %90 : vector<1x256x256xbf16> to vector<256x256xbf16>
    %cst_65 = arith.constant dense<0.000000e+00> : vector<8x256xf32>
    %92 = tpu.matmul %49, %91, %cst_65 {dimension_numbers = #tpu.dot_dimension_numbers<[1], [0], [0], [1], [0, 0, 1, 1], [], []>} : vector<8x256xbf16>, vector<256x256xbf16>, vector<8x256xf32> -> vector<8x256xf32>
    %c8_66 = arith.constant 8 : index
    %c0_67 = arith.constant 0 : index
    %93 = vector.load %arg5[%c8_66, %c0_67] : memref<30x256xf32, #tpu.memory_space<vmem>>, vector<1x256xf32>
    %94 = vector.broadcast %93 : vector<1x256xf32> to vector<8x256xf32>
    %95 = arith.addf %92, %94 : vector<8x256xf32>
    %cst_68 = arith.constant 0.000000e+00 : f32
    %96 = vector.broadcast %cst_68 : f32 to vector<8x256xf32>
    %97 = arith.maximumf %95, %96 : vector<8x256xf32>
    %98 = arith.truncf %97 : vector<8x256xf32> to vector<8x256xbf16>
    %c24 = arith.constant 24 : index
    %c0_69 = arith.constant 0 : index
    %c0_70 = arith.constant 0 : index
    %99 = vector.load %arg4[%c24, %c0_69, %c0_70] : memref<45x256x256xbf16, #tpu.memory_space<vmem>>, vector<1x256x256xbf16>
    %100 = vector.shape_cast %99 : vector<1x256x256xbf16> to vector<256x256xbf16>
    %cst_71 = arith.constant dense<0.000000e+00> : vector<8x256xf32>
    %101 = tpu.matmul %98, %100, %cst_71 {dimension_numbers = #tpu.dot_dimension_numbers<[1], [0], [0], [1], [0, 0, 1, 1], [], []>} : vector<8x256xbf16>, vector<256x256xbf16>, vector<8x256xf32> -> vector<8x256xf32>
    %102 = arith.addf %89, %101 : vector<8x256xf32>
    %c9 = arith.constant 9 : index
    %c0_72 = arith.constant 0 : index
    %c0_73 = arith.constant 0 : index
    %103 = vector.load %arg4[%c9, %c0_72, %c0_73] : memref<45x256x256xbf16, #tpu.memory_space<vmem>>, vector<1x256x256xbf16>
    %104 = vector.shape_cast %103 : vector<1x256x256xbf16> to vector<256x256xbf16>
    %cst_74 = arith.constant dense<0.000000e+00> : vector<8x256xf32>
    %105 = tpu.matmul %49, %104, %cst_74 {dimension_numbers = #tpu.dot_dimension_numbers<[1], [0], [0], [1], [0, 0, 1, 1], [], []>} : vector<8x256xbf16>, vector<256x256xbf16>, vector<8x256xf32> -> vector<8x256xf32>
    %c9_75 = arith.constant 9 : index
    %c0_76 = arith.constant 0 : index
    %106 = vector.load %arg5[%c9_75, %c0_76] : memref<30x256xf32, #tpu.memory_space<vmem>>, vector<1x256xf32>
    %107 = vector.broadcast %106 : vector<1x256xf32> to vector<8x256xf32>
    %108 = arith.addf %105, %107 : vector<8x256xf32>
    %cst_77 = arith.constant 0.000000e+00 : f32
    %109 = vector.broadcast %cst_77 : f32 to vector<8x256xf32>
    %110 = arith.maximumf %108, %109 : vector<8x256xf32>
    %111 = arith.truncf %110 : vector<8x256xf32> to vector<8x256xbf16>
    %c25 = arith.constant 25 : index
    %c0_78 = arith.constant 0 : index
    %c0_79 = arith.constant 0 : index
    %112 = vector.load %arg4[%c25, %c0_78, %c0_79] : memref<45x256x256xbf16, #tpu.memory_space<vmem>>, vector<1x256x256xbf16>
    %113 = vector.shape_cast %112 : vector<1x256x256xbf16> to vector<256x256xbf16>
    %cst_80 = arith.constant dense<0.000000e+00> : vector<8x256xf32>
    %114 = tpu.matmul %111, %113, %cst_80 {dimension_numbers = #tpu.dot_dimension_numbers<[1], [0], [0], [1], [0, 0, 1, 1], [], []>} : vector<8x256xbf16>, vector<256x256xbf16>, vector<8x256xf32> -> vector<8x256xf32>
    %115 = arith.addf %102, %114 : vector<8x256xf32>
    %c10 = arith.constant 10 : index
    %c0_81 = arith.constant 0 : index
    %c0_82 = arith.constant 0 : index
    %116 = vector.load %arg4[%c10, %c0_81, %c0_82] : memref<45x256x256xbf16, #tpu.memory_space<vmem>>, vector<1x256x256xbf16>
    %117 = vector.shape_cast %116 : vector<1x256x256xbf16> to vector<256x256xbf16>
    %cst_83 = arith.constant dense<0.000000e+00> : vector<8x256xf32>
    %118 = tpu.matmul %49, %117, %cst_83 {dimension_numbers = #tpu.dot_dimension_numbers<[1], [0], [0], [1], [0, 0, 1, 1], [], []>} : vector<8x256xbf16>, vector<256x256xbf16>, vector<8x256xf32> -> vector<8x256xf32>
    %c10_84 = arith.constant 10 : index
    %c0_85 = arith.constant 0 : index
    %119 = vector.load %arg5[%c10_84, %c0_85] : memref<30x256xf32, #tpu.memory_space<vmem>>, vector<1x256xf32>
    %120 = vector.broadcast %119 : vector<1x256xf32> to vector<8x256xf32>
    %121 = arith.addf %118, %120 : vector<8x256xf32>
    %cst_86 = arith.constant 0.000000e+00 : f32
    %122 = vector.broadcast %cst_86 : f32 to vector<8x256xf32>
    %123 = arith.maximumf %121, %122 : vector<8x256xf32>
    %124 = arith.truncf %123 : vector<8x256xf32> to vector<8x256xbf16>
    %c26 = arith.constant 26 : index
    %c0_87 = arith.constant 0 : index
    %c0_88 = arith.constant 0 : index
    %125 = vector.load %arg4[%c26, %c0_87, %c0_88] : memref<45x256x256xbf16, #tpu.memory_space<vmem>>, vector<1x256x256xbf16>
    %126 = vector.shape_cast %125 : vector<1x256x256xbf16> to vector<256x256xbf16>
    %cst_89 = arith.constant dense<0.000000e+00> : vector<8x256xf32>
    %127 = tpu.matmul %124, %126, %cst_89 {dimension_numbers = #tpu.dot_dimension_numbers<[1], [0], [0], [1], [0, 0, 1, 1], [], []>} : vector<8x256xbf16>, vector<256x256xbf16>, vector<8x256xf32> -> vector<8x256xf32>
    %128 = arith.addf %115, %127 : vector<8x256xf32>
    %c11 = arith.constant 11 : index
    %c0_90 = arith.constant 0 : index
    %c0_91 = arith.constant 0 : index
    %129 = vector.load %arg4[%c11, %c0_90, %c0_91] : memref<45x256x256xbf16, #tpu.memory_space<vmem>>, vector<1x256x256xbf16>
    %130 = vector.shape_cast %129 : vector<1x256x256xbf16> to vector<256x256xbf16>
    %cst_92 = arith.constant dense<0.000000e+00> : vector<8x256xf32>
    %131 = tpu.matmul %49, %130, %cst_92 {dimension_numbers = #tpu.dot_dimension_numbers<[1], [0], [0], [1], [0, 0, 1, 1], [], []>} : vector<8x256xbf16>, vector<256x256xbf16>, vector<8x256xf32> -> vector<8x256xf32>
    %c11_93 = arith.constant 11 : index
    %c0_94 = arith.constant 0 : index
    %132 = vector.load %arg5[%c11_93, %c0_94] : memref<30x256xf32, #tpu.memory_space<vmem>>, vector<1x256xf32>
    %133 = vector.broadcast %132 : vector<1x256xf32> to vector<8x256xf32>
    %134 = arith.addf %131, %133 : vector<8x256xf32>
    %cst_95 = arith.constant 0.000000e+00 : f32
    %135 = vector.broadcast %cst_95 : f32 to vector<8x256xf32>
    %136 = arith.maximumf %134, %135 : vector<8x256xf32>
    %137 = arith.truncf %136 : vector<8x256xf32> to vector<8x256xbf16>
    %c27 = arith.constant 27 : index
    %c0_96 = arith.constant 0 : index
    %c0_97 = arith.constant 0 : index
    %138 = vector.load %arg4[%c27, %c0_96, %c0_97] : memref<45x256x256xbf16, #tpu.memory_space<vmem>>, vector<1x256x256xbf16>
    %139 = vector.shape_cast %138 : vector<1x256x256xbf16> to vector<256x256xbf16>
    %cst_98 = arith.constant dense<0.000000e+00> : vector<8x256xf32>
    %140 = tpu.matmul %137, %139, %cst_98 {dimension_numbers = #tpu.dot_dimension_numbers<[1], [0], [0], [1], [0, 0, 1, 1], [], []>} : vector<8x256xbf16>, vector<256x256xbf16>, vector<8x256xf32> -> vector<8x256xf32>
    %141 = arith.addf %128, %140 : vector<8x256xf32>
    %c12 = arith.constant 12 : index
    %c0_99 = arith.constant 0 : index
    %c0_100 = arith.constant 0 : index
    %142 = vector.load %arg4[%c12, %c0_99, %c0_100] : memref<45x256x256xbf16, #tpu.memory_space<vmem>>, vector<1x256x256xbf16>
    %143 = vector.shape_cast %142 : vector<1x256x256xbf16> to vector<256x256xbf16>
    %cst_101 = arith.constant dense<0.000000e+00> : vector<8x256xf32>
    %144 = tpu.matmul %49, %143, %cst_101 {dimension_numbers = #tpu.dot_dimension_numbers<[1], [0], [0], [1], [0, 0, 1, 1], [], []>} : vector<8x256xbf16>, vector<256x256xbf16>, vector<8x256xf32> -> vector<8x256xf32>
    %c12_102 = arith.constant 12 : index
    %c0_103 = arith.constant 0 : index
    %145 = vector.load %arg5[%c12_102, %c0_103] : memref<30x256xf32, #tpu.memory_space<vmem>>, vector<1x256xf32>
    %146 = vector.broadcast %145 : vector<1x256xf32> to vector<8x256xf32>
    %147 = arith.addf %144, %146 : vector<8x256xf32>
    %cst_104 = arith.constant 0.000000e+00 : f32
    %148 = vector.broadcast %cst_104 : f32 to vector<8x256xf32>
    %149 = arith.maximumf %147, %148 : vector<8x256xf32>
    %150 = arith.truncf %149 : vector<8x256xf32> to vector<8x256xbf16>
    %c28 = arith.constant 28 : index
    %c0_105 = arith.constant 0 : index
    %c0_106 = arith.constant 0 : index
    %151 = vector.load %arg4[%c28, %c0_105, %c0_106] : memref<45x256x256xbf16, #tpu.memory_space<vmem>>, vector<1x256x256xbf16>
    %152 = vector.shape_cast %151 : vector<1x256x256xbf16> to vector<256x256xbf16>
    %cst_107 = arith.constant dense<0.000000e+00> : vector<8x256xf32>
    %153 = tpu.matmul %150, %152, %cst_107 {dimension_numbers = #tpu.dot_dimension_numbers<[1], [0], [0], [1], [0, 0, 1, 1], [], []>} : vector<8x256xbf16>, vector<256x256xbf16>, vector<8x256xf32> -> vector<8x256xf32>
    %154 = arith.addf %141, %153 : vector<8x256xf32>
    %c13 = arith.constant 13 : index
    %c0_108 = arith.constant 0 : index
    %c0_109 = arith.constant 0 : index
    %155 = vector.load %arg4[%c13, %c0_108, %c0_109] : memref<45x256x256xbf16, #tpu.memory_space<vmem>>, vector<1x256x256xbf16>
    %156 = vector.shape_cast %155 : vector<1x256x256xbf16> to vector<256x256xbf16>
    %cst_110 = arith.constant dense<0.000000e+00> : vector<8x256xf32>
    %157 = tpu.matmul %49, %156, %cst_110 {dimension_numbers = #tpu.dot_dimension_numbers<[1], [0], [0], [1], [0, 0, 1, 1], [], []>} : vector<8x256xbf16>, vector<256x256xbf16>, vector<8x256xf32> -> vector<8x256xf32>
    %c13_111 = arith.constant 13 : index
    %c0_112 = arith.constant 0 : index
    %158 = vector.load %arg5[%c13_111, %c0_112] : memref<30x256xf32, #tpu.memory_space<vmem>>, vector<1x256xf32>
    %159 = vector.broadcast %158 : vector<1x256xf32> to vector<8x256xf32>
    %160 = arith.addf %157, %159 : vector<8x256xf32>
    %cst_113 = arith.constant 0.000000e+00 : f32
    %161 = vector.broadcast %cst_113 : f32 to vector<8x256xf32>
    %162 = arith.maximumf %160, %161 : vector<8x256xf32>
    %163 = arith.truncf %162 : vector<8x256xf32> to vector<8x256xbf16>
    %c29 = arith.constant 29 : index
    %c0_114 = arith.constant 0 : index
    %c0_115 = arith.constant 0 : index
    %164 = vector.load %arg4[%c29, %c0_114, %c0_115] : memref<45x256x256xbf16, #tpu.memory_space<vmem>>, vector<1x256x256xbf16>
    %165 = vector.shape_cast %164 : vector<1x256x256xbf16> to vector<256x256xbf16>
    %cst_116 = arith.constant dense<0.000000e+00> : vector<8x256xf32>
    %166 = tpu.matmul %163, %165, %cst_116 {dimension_numbers = #tpu.dot_dimension_numbers<[1], [0], [0], [1], [0, 0, 1, 1], [], []>} : vector<8x256xbf16>, vector<256x256xbf16>, vector<8x256xf32> -> vector<8x256xf32>
    %167 = arith.addf %154, %166 : vector<8x256xf32>
    %c14 = arith.constant 14 : index
    %c0_117 = arith.constant 0 : index
    %c0_118 = arith.constant 0 : index
    %168 = vector.load %arg4[%c14, %c0_117, %c0_118] : memref<45x256x256xbf16, #tpu.memory_space<vmem>>, vector<1x256x256xbf16>
    %169 = vector.shape_cast %168 : vector<1x256x256xbf16> to vector<256x256xbf16>
    %cst_119 = arith.constant dense<0.000000e+00> : vector<8x256xf32>
    %170 = tpu.matmul %49, %169, %cst_119 {dimension_numbers = #tpu.dot_dimension_numbers<[1], [0], [0], [1], [0, 0, 1, 1], [], []>} : vector<8x256xbf16>, vector<256x256xbf16>, vector<8x256xf32> -> vector<8x256xf32>
    %c14_120 = arith.constant 14 : index
    %c0_121 = arith.constant 0 : index
    %171 = vector.load %arg5[%c14_120, %c0_121] : memref<30x256xf32, #tpu.memory_space<vmem>>, vector<1x256xf32>
    %172 = vector.broadcast %171 : vector<1x256xf32> to vector<8x256xf32>
    %173 = arith.addf %170, %172 : vector<8x256xf32>
    %cst_122 = arith.constant 0.000000e+00 : f32
    %174 = vector.broadcast %cst_122 : f32 to vector<8x256xf32>
    %175 = arith.maximumf %173, %174 : vector<8x256xf32>
    %176 = arith.truncf %175 : vector<8x256xf32> to vector<8x256xbf16>
    %c30 = arith.constant 30 : index
    %c0_123 = arith.constant 0 : index
    %c0_124 = arith.constant 0 : index
    %177 = vector.load %arg4[%c30, %c0_123, %c0_124] : memref<45x256x256xbf16, #tpu.memory_space<vmem>>, vector<1x256x256xbf16>
    %178 = vector.shape_cast %177 : vector<1x256x256xbf16> to vector<256x256xbf16>
    %cst_125 = arith.constant dense<0.000000e+00> : vector<8x256xf32>
    %179 = tpu.matmul %176, %178, %cst_125 {dimension_numbers = #tpu.dot_dimension_numbers<[1], [0], [0], [1], [0, 0, 1, 1], [], []>} : vector<8x256xbf16>, vector<256x256xbf16>, vector<8x256xf32> -> vector<8x256xf32>
    %180 = arith.addf %167, %179 : vector<8x256xf32>
    %c15 = arith.constant 15 : index
    %c0_126 = arith.constant 0 : index
    %c0_127 = arith.constant 0 : index
    %181 = vector.load %arg4[%c15, %c0_126, %c0_127] : memref<45x256x256xbf16, #tpu.memory_space<vmem>>, vector<1x256x256xbf16>
    %182 = vector.shape_cast %181 : vector<1x256x256xbf16> to vector<256x256xbf16>
    %cst_128 = arith.constant dense<0.000000e+00> : vector<8x256xf32>
    %183 = tpu.matmul %49, %182, %cst_128 {dimension_numbers = #tpu.dot_dimension_numbers<[1], [0], [0], [1], [0, 0, 1, 1], [], []>} : vector<8x256xbf16>, vector<256x256xbf16>, vector<8x256xf32> -> vector<8x256xf32>
    %c15_129 = arith.constant 15 : index
    %c0_130 = arith.constant 0 : index
    %184 = vector.load %arg5[%c15_129, %c0_130] : memref<30x256xf32, #tpu.memory_space<vmem>>, vector<1x256xf32>
    %185 = vector.broadcast %184 : vector<1x256xf32> to vector<8x256xf32>
    %186 = arith.addf %183, %185 : vector<8x256xf32>
    %cst_131 = arith.constant 0.000000e+00 : f32
    %187 = vector.broadcast %cst_131 : f32 to vector<8x256xf32>
    %188 = arith.maximumf %186, %187 : vector<8x256xf32>
    %189 = arith.truncf %188 : vector<8x256xf32> to vector<8x256xbf16>
    %c31 = arith.constant 31 : index
    %c0_132 = arith.constant 0 : index
    %c0_133 = arith.constant 0 : index
    %190 = vector.load %arg4[%c31, %c0_132, %c0_133] : memref<45x256x256xbf16, #tpu.memory_space<vmem>>, vector<1x256x256xbf16>
    %191 = vector.shape_cast %190 : vector<1x256x256xbf16> to vector<256x256xbf16>
    %cst_134 = arith.constant dense<0.000000e+00> : vector<8x256xf32>
    %192 = tpu.matmul %189, %191, %cst_134 {dimension_numbers = #tpu.dot_dimension_numbers<[1], [0], [0], [1], [0, 0, 1, 1], [], []>} : vector<8x256xbf16>, vector<256x256xbf16>, vector<8x256xf32> -> vector<8x256xf32>
    %193 = arith.addf %180, %192 : vector<8x256xf32>
    %c16 = arith.constant 16 : index
    %c0_135 = arith.constant 0 : index
    %c0_136 = arith.constant 0 : index
    %194 = vector.load %arg4[%c16, %c0_135, %c0_136] : memref<45x256x256xbf16, #tpu.memory_space<vmem>>, vector<1x256x256xbf16>
    %195 = vector.shape_cast %194 : vector<1x256x256xbf16> to vector<256x256xbf16>
    %cst_137 = arith.constant dense<0.000000e+00> : vector<8x256xf32>
    %196 = tpu.matmul %49, %195, %cst_137 {dimension_numbers = #tpu.dot_dimension_numbers<[1], [0], [0], [1], [0, 0, 1, 1], [], []>} : vector<8x256xbf16>, vector<256x256xbf16>, vector<8x256xf32> -> vector<8x256xf32>
    %c16_138 = arith.constant 16 : index
    %c0_139 = arith.constant 0 : index
    %197 = vector.load %arg5[%c16_138, %c0_139] : memref<30x256xf32, #tpu.memory_space<vmem>>, vector<1x256xf32>
    %198 = vector.broadcast %197 : vector<1x256xf32> to vector<8x256xf32>
    %199 = arith.addf %196, %198 : vector<8x256xf32>
    %cst_140 = arith.constant 0.000000e+00 : f32
    %200 = vector.broadcast %cst_140 : f32 to vector<8x256xf32>
    %201 = arith.maximumf %199, %200 : vector<8x256xf32>
    %202 = arith.truncf %201 : vector<8x256xf32> to vector<8x256xbf16>
    %c32 = arith.constant 32 : index
    %c0_141 = arith.constant 0 : index
    %c0_142 = arith.constant 0 : index
    %203 = vector.load %arg4[%c32, %c0_141, %c0_142] : memref<45x256x256xbf16, #tpu.memory_space<vmem>>, vector<1x256x256xbf16>
    %204 = vector.shape_cast %203 : vector<1x256x256xbf16> to vector<256x256xbf16>
    %cst_143 = arith.constant dense<0.000000e+00> : vector<8x256xf32>
    %205 = tpu.matmul %202, %204, %cst_143 {dimension_numbers = #tpu.dot_dimension_numbers<[1], [0], [0], [1], [0, 0, 1, 1], [], []>} : vector<8x256xbf16>, vector<256x256xbf16>, vector<8x256xf32> -> vector<8x256xf32>
    %206 = arith.addf %193, %205 : vector<8x256xf32>
    %c17 = arith.constant 17 : index
    %c0_144 = arith.constant 0 : index
    %c0_145 = arith.constant 0 : index
    %207 = vector.load %arg4[%c17, %c0_144, %c0_145] : memref<45x256x256xbf16, #tpu.memory_space<vmem>>, vector<1x256x256xbf16>
    %208 = vector.shape_cast %207 : vector<1x256x256xbf16> to vector<256x256xbf16>
    %cst_146 = arith.constant dense<0.000000e+00> : vector<8x256xf32>
    %209 = tpu.matmul %49, %208, %cst_146 {dimension_numbers = #tpu.dot_dimension_numbers<[1], [0], [0], [1], [0, 0, 1, 1], [], []>} : vector<8x256xbf16>, vector<256x256xbf16>, vector<8x256xf32> -> vector<8x256xf32>
    %c17_147 = arith.constant 17 : index
    %c0_148 = arith.constant 0 : index
    %210 = vector.load %arg5[%c17_147, %c0_148] : memref<30x256xf32, #tpu.memory_space<vmem>>, vector<1x256xf32>
    %211 = vector.broadcast %210 : vector<1x256xf32> to vector<8x256xf32>
    %212 = arith.addf %209, %211 : vector<8x256xf32>
    %cst_149 = arith.constant 0.000000e+00 : f32
    %213 = vector.broadcast %cst_149 : f32 to vector<8x256xf32>
    %214 = arith.maximumf %212, %213 : vector<8x256xf32>
    %215 = arith.truncf %214 : vector<8x256xf32> to vector<8x256xbf16>
    %c33 = arith.constant 33 : index
    %c0_150 = arith.constant 0 : index
    %c0_151 = arith.constant 0 : index
    %216 = vector.load %arg4[%c33, %c0_150, %c0_151] : memref<45x256x256xbf16, #tpu.memory_space<vmem>>, vector<1x256x256xbf16>
    %217 = vector.shape_cast %216 : vector<1x256x256xbf16> to vector<256x256xbf16>
    %cst_152 = arith.constant dense<0.000000e+00> : vector<8x256xf32>
    %218 = tpu.matmul %215, %217, %cst_152 {dimension_numbers = #tpu.dot_dimension_numbers<[1], [0], [0], [1], [0, 0, 1, 1], [], []>} : vector<8x256xbf16>, vector<256x256xbf16>, vector<8x256xf32> -> vector<8x256xf32>
    %219 = arith.addf %206, %218 : vector<8x256xf32>
    %c18 = arith.constant 18 : index
    %c0_153 = arith.constant 0 : index
    %c0_154 = arith.constant 0 : index
    %220 = vector.load %arg4[%c18, %c0_153, %c0_154] : memref<45x256x256xbf16, #tpu.memory_space<vmem>>, vector<1x256x256xbf16>
    %221 = vector.shape_cast %220 : vector<1x256x256xbf16> to vector<256x256xbf16>
    %cst_155 = arith.constant dense<0.000000e+00> : vector<8x256xf32>
    %222 = tpu.matmul %49, %221, %cst_155 {dimension_numbers = #tpu.dot_dimension_numbers<[1], [0], [0], [1], [0, 0, 1, 1], [], []>} : vector<8x256xbf16>, vector<256x256xbf16>, vector<8x256xf32> -> vector<8x256xf32>
    %c18_156 = arith.constant 18 : index
    %c0_157 = arith.constant 0 : index
    %223 = vector.load %arg5[%c18_156, %c0_157] : memref<30x256xf32, #tpu.memory_space<vmem>>, vector<1x256xf32>
    %224 = vector.broadcast %223 : vector<1x256xf32> to vector<8x256xf32>
    %225 = arith.addf %222, %224 : vector<8x256xf32>
    %cst_158 = arith.constant 0.000000e+00 : f32
    %226 = vector.broadcast %cst_158 : f32 to vector<8x256xf32>
    %227 = arith.maximumf %225, %226 : vector<8x256xf32>
    %228 = arith.truncf %227 : vector<8x256xf32> to vector<8x256xbf16>
    %c34 = arith.constant 34 : index
    %c0_159 = arith.constant 0 : index
    %c0_160 = arith.constant 0 : index
    %229 = vector.load %arg4[%c34, %c0_159, %c0_160] : memref<45x256x256xbf16, #tpu.memory_space<vmem>>, vector<1x256x256xbf16>
    %230 = vector.shape_cast %229 : vector<1x256x256xbf16> to vector<256x256xbf16>
    %cst_161 = arith.constant dense<0.000000e+00> : vector<8x256xf32>
    %231 = tpu.matmul %228, %230, %cst_161 {dimension_numbers = #tpu.dot_dimension_numbers<[1], [0], [0], [1], [0, 0, 1, 1], [], []>} : vector<8x256xbf16>, vector<256x256xbf16>, vector<8x256xf32> -> vector<8x256xf32>
    %232 = arith.addf %219, %231 : vector<8x256xf32>
    %c19 = arith.constant 19 : index
    %c0_162 = arith.constant 0 : index
    %c0_163 = arith.constant 0 : index
    %233 = vector.load %arg4[%c19, %c0_162, %c0_163] : memref<45x256x256xbf16, #tpu.memory_space<vmem>>, vector<1x256x256xbf16>
    %234 = vector.shape_cast %233 : vector<1x256x256xbf16> to vector<256x256xbf16>
    %cst_164 = arith.constant dense<0.000000e+00> : vector<8x256xf32>
    %235 = tpu.matmul %49, %234, %cst_164 {dimension_numbers = #tpu.dot_dimension_numbers<[1], [0], [0], [1], [0, 0, 1, 1], [], []>} : vector<8x256xbf16>, vector<256x256xbf16>, vector<8x256xf32> -> vector<8x256xf32>
    %c19_165 = arith.constant 19 : index
    %c0_166 = arith.constant 0 : index
    %236 = vector.load %arg5[%c19_165, %c0_166] : memref<30x256xf32, #tpu.memory_space<vmem>>, vector<1x256xf32>
    %237 = vector.broadcast %236 : vector<1x256xf32> to vector<8x256xf32>
    %238 = arith.addf %235, %237 : vector<8x256xf32>
    %cst_167 = arith.constant 0.000000e+00 : f32
    %239 = vector.broadcast %cst_167 : f32 to vector<8x256xf32>
    %240 = arith.maximumf %238, %239 : vector<8x256xf32>
    %241 = arith.truncf %240 : vector<8x256xf32> to vector<8x256xbf16>
    %c35 = arith.constant 35 : index
    %c0_168 = arith.constant 0 : index
    %c0_169 = arith.constant 0 : index
    %242 = vector.load %arg4[%c35, %c0_168, %c0_169] : memref<45x256x256xbf16, #tpu.memory_space<vmem>>, vector<1x256x256xbf16>
    %243 = vector.shape_cast %242 : vector<1x256x256xbf16> to vector<256x256xbf16>
    %cst_170 = arith.constant dense<0.000000e+00> : vector<8x256xf32>
    %244 = tpu.matmul %241, %243, %cst_170 {dimension_numbers = #tpu.dot_dimension_numbers<[1], [0], [0], [1], [0, 0, 1, 1], [], []>} : vector<8x256xbf16>, vector<256x256xbf16>, vector<8x256xf32> -> vector<8x256xf32>
    %245 = arith.addf %232, %244 : vector<8x256xf32>
    %c20 = arith.constant 20 : index
    %c0_171 = arith.constant 0 : index
    %c0_172 = arith.constant 0 : index
    %246 = vector.load %arg4[%c20, %c0_171, %c0_172] : memref<45x256x256xbf16, #tpu.memory_space<vmem>>, vector<1x256x256xbf16>
    %247 = vector.shape_cast %246 : vector<1x256x256xbf16> to vector<256x256xbf16>
    %cst_173 = arith.constant dense<0.000000e+00> : vector<8x256xf32>
    %248 = tpu.matmul %49, %247, %cst_173 {dimension_numbers = #tpu.dot_dimension_numbers<[1], [0], [0], [1], [0, 0, 1, 1], [], []>} : vector<8x256xbf16>, vector<256x256xbf16>, vector<8x256xf32> -> vector<8x256xf32>
    %c20_174 = arith.constant 20 : index
    %c0_175 = arith.constant 0 : index
    %249 = vector.load %arg5[%c20_174, %c0_175] : memref<30x256xf32, #tpu.memory_space<vmem>>, vector<1x256xf32>
    %250 = vector.broadcast %249 : vector<1x256xf32> to vector<8x256xf32>
    %251 = arith.addf %248, %250 : vector<8x256xf32>
    %cst_176 = arith.constant 0.000000e+00 : f32
    %252 = vector.broadcast %cst_176 : f32 to vector<8x256xf32>
    %253 = arith.maximumf %251, %252 : vector<8x256xf32>
    %254 = arith.truncf %253 : vector<8x256xf32> to vector<8x256xbf16>
    %c36 = arith.constant 36 : index
    %c0_177 = arith.constant 0 : index
    %c0_178 = arith.constant 0 : index
    %255 = vector.load %arg4[%c36, %c0_177, %c0_178] : memref<45x256x256xbf16, #tpu.memory_space<vmem>>, vector<1x256x256xbf16>
    %256 = vector.shape_cast %255 : vector<1x256x256xbf16> to vector<256x256xbf16>
    %cst_179 = arith.constant dense<0.000000e+00> : vector<8x256xf32>
    %257 = tpu.matmul %254, %256, %cst_179 {dimension_numbers = #tpu.dot_dimension_numbers<[1], [0], [0], [1], [0, 0, 1, 1], [], []>} : vector<8x256xbf16>, vector<256x256xbf16>, vector<8x256xf32> -> vector<8x256xf32>
    %258 = arith.addf %245, %257 : vector<8x256xf32>
    %c21_180 = arith.constant 21 : index
    %c0_181 = arith.constant 0 : index
    %259 = vector.load %arg5[%c21_180, %c0_181] : memref<30x256xf32, #tpu.memory_space<vmem>>, vector<1x256xf32>
    %260 = vector.broadcast %259 : vector<1x256xf32> to vector<8x256xf32>
    %261 = arith.addf %258, %260 : vector<8x256xf32>
    %cst_182 = arith.constant 0.000000e+00 : f32
    %262 = vector.broadcast %cst_182 : f32 to vector<8x256xf32>
    %263 = arith.maximumf %261, %262 : vector<8x256xf32>
    %264 = arith.mulf %39, %263 : vector<8x256xf32>
    %265 = arith.truncf %39 : vector<8x256xf32> to vector<8x256xbf16>
    %c37 = arith.constant 37 : index
    %c0_183 = arith.constant 0 : index
    %c0_184 = arith.constant 0 : index
    %266 = vector.load %arg4[%c37, %c0_183, %c0_184] : memref<45x256x256xbf16, #tpu.memory_space<vmem>>, vector<1x256x256xbf16>
    %267 = vector.shape_cast %266 : vector<1x256x256xbf16> to vector<256x256xbf16>
    %cst_185 = arith.constant dense<0.000000e+00> : vector<8x256xf32>
    %268 = tpu.matmul %265, %267, %cst_185 {dimension_numbers = #tpu.dot_dimension_numbers<[1], [0], [0], [1], [0, 0, 1, 1], [], []>} : vector<8x256xbf16>, vector<256x256xbf16>, vector<8x256xf32> -> vector<8x256xf32>
    %c22_186 = arith.constant 22 : index
    %c0_187 = arith.constant 0 : index
    %269 = vector.load %arg5[%c22_186, %c0_187] : memref<30x256xf32, #tpu.memory_space<vmem>>, vector<1x256xf32>
    %270 = vector.broadcast %269 : vector<1x256xf32> to vector<8x256xf32>
    %271 = arith.addf %268, %270 : vector<8x256xf32>
    %cst_188 = arith.constant 0.000000e+00 : f32
    %272 = vector.broadcast %cst_188 : f32 to vector<8x256xf32>
    %273 = arith.maximumf %271, %272 : vector<8x256xf32>
    %274 = arith.truncf %273 : vector<8x256xf32> to vector<8x256xbf16>
    %c39 = arith.constant 39 : index
    %c0_189 = arith.constant 0 : index
    %c0_190 = arith.constant 0 : index
    %275 = vector.load %arg4[%c39, %c0_189, %c0_190] : memref<45x256x256xbf16, #tpu.memory_space<vmem>>, vector<1x256x256xbf16>
    %276 = vector.shape_cast %275 : vector<1x256x256xbf16> to vector<256x256xbf16>
    %cst_191 = arith.constant dense<0.000000e+00> : vector<8x256xf32>
    %277 = tpu.matmul %274, %276, %cst_191 {dimension_numbers = #tpu.dot_dimension_numbers<[1], [0], [0], [1], [0, 0, 1, 1], [], []>} : vector<8x256xbf16>, vector<256x256xbf16>, vector<8x256xf32> -> vector<8x256xf32>
    %c24_192 = arith.constant 24 : index
    %c0_193 = arith.constant 0 : index
    %278 = vector.load %arg5[%c24_192, %c0_193] : memref<30x256xf32, #tpu.memory_space<vmem>>, vector<1x256xf32>
    %279 = vector.broadcast %278 : vector<1x256xf32> to vector<8x256xf32>
    %280 = arith.addf %277, %279 : vector<8x256xf32>
    %281 = arith.negf %280 : vector<8x256xf32>
    %282 = math.exp %281 : vector<8x256xf32>
    %cst_194 = arith.constant 1.000000e+00 : f32
    %283 = vector.broadcast %cst_194 : f32 to vector<8x256xf32>
    %284 = arith.addf %283, %282 : vector<8x256xf32>
    %285 = arith.divf %283, %284 : vector<8x256xf32>
    %286 = arith.truncf %39 : vector<8x256xf32> to vector<8x256xbf16>
    %c38 = arith.constant 38 : index
    %c0_195 = arith.constant 0 : index
    %c0_196 = arith.constant 0 : index
    %287 = vector.load %arg4[%c38, %c0_195, %c0_196] : memref<45x256x256xbf16, #tpu.memory_space<vmem>>, vector<1x256x256xbf16>
    %288 = vector.shape_cast %287 : vector<1x256x256xbf16> to vector<256x256xbf16>
    %cst_197 = arith.constant dense<0.000000e+00> : vector<8x256xf32>
    %289 = tpu.matmul %286, %288, %cst_197 {dimension_numbers = #tpu.dot_dimension_numbers<[1], [0], [0], [1], [0, 0, 1, 1], [], []>} : vector<8x256xbf16>, vector<256x256xbf16>, vector<8x256xf32> -> vector<8x256xf32>
    %c23_198 = arith.constant 23 : index
    %c0_199 = arith.constant 0 : index
    %290 = vector.load %arg5[%c23_198, %c0_199] : memref<30x256xf32, #tpu.memory_space<vmem>>, vector<1x256xf32>
    %291 = vector.broadcast %290 : vector<1x256xf32> to vector<8x256xf32>
    %292 = arith.addf %289, %291 : vector<8x256xf32>
    %cst_200 = arith.constant 0.000000e+00 : f32
    %293 = vector.broadcast %cst_200 : f32 to vector<8x256xf32>
    %294 = arith.maximumf %292, %293 : vector<8x256xf32>
    %295 = arith.truncf %294 : vector<8x256xf32> to vector<8x256xbf16>
    %c40 = arith.constant 40 : index
    %c0_201 = arith.constant 0 : index
    %c0_202 = arith.constant 0 : index
    %296 = vector.load %arg4[%c40, %c0_201, %c0_202] : memref<45x256x256xbf16, #tpu.memory_space<vmem>>, vector<1x256x256xbf16>
    %297 = vector.shape_cast %296 : vector<1x256x256xbf16> to vector<256x256xbf16>
    %cst_203 = arith.constant dense<0.000000e+00> : vector<8x256xf32>
    %298 = tpu.matmul %295, %297, %cst_203 {dimension_numbers = #tpu.dot_dimension_numbers<[1], [0], [0], [1], [0, 0, 1, 1], [], []>} : vector<8x256xbf16>, vector<256x256xbf16>, vector<8x256xf32> -> vector<8x256xf32>
    %c25_204 = arith.constant 25 : index
    %c0_205 = arith.constant 0 : index
    %299 = vector.load %arg5[%c25_204, %c0_205] : memref<30x256xf32, #tpu.memory_space<vmem>>, vector<1x256xf32>
    %300 = vector.broadcast %299 : vector<1x256xf32> to vector<8x256xf32>
    %301 = arith.addf %298, %300 : vector<8x256xf32>
    %cst_206 = arith.constant 0.000000e+00 : f32
    %302 = vector.broadcast %cst_206 : f32 to vector<8x256xf32>
    %303 = arith.maximumf %301, %302 : vector<8x256xf32>
    %304 = arith.truncf %264 : vector<8x256xf32> to vector<8x256xbf16>
    %c41 = arith.constant 41 : index
    %c0_207 = arith.constant 0 : index
    %c0_208 = arith.constant 0 : index
    %305 = vector.load %arg4[%c41, %c0_207, %c0_208] : memref<45x256x256xbf16, #tpu.memory_space<vmem>>, vector<1x256x256xbf16>
    %306 = vector.shape_cast %305 : vector<1x256x256xbf16> to vector<256x256xbf16>
    %cst_209 = arith.constant dense<0.000000e+00> : vector<8x256xf32>
    %307 = tpu.matmul %304, %306, %cst_209 {dimension_numbers = #tpu.dot_dimension_numbers<[1], [0], [0], [1], [0, 0, 1, 1], [], []>} : vector<8x256xbf16>, vector<256x256xbf16>, vector<8x256xf32> -> vector<8x256xf32>
    %c26_210 = arith.constant 26 : index
    %c0_211 = arith.constant 0 : index
    %308 = vector.load %arg5[%c26_210, %c0_211] : memref<30x256xf32, #tpu.memory_space<vmem>>, vector<1x256xf32>
    %309 = vector.broadcast %308 : vector<1x256xf32> to vector<8x256xf32>
    %310 = arith.addf %307, %309 : vector<8x256xf32>
    %cst_212 = arith.constant 0.000000e+00 : f32
    %311 = vector.broadcast %cst_212 : f32 to vector<8x256xf32>
    %312 = arith.maximumf %310, %311 : vector<8x256xf32>
    %313 = arith.truncf %312 : vector<8x256xf32> to vector<8x256xbf16>
    %c42 = arith.constant 42 : index
    %c0_213 = arith.constant 0 : index
    %c0_214 = arith.constant 0 : index
    %314 = vector.load %arg4[%c42, %c0_213, %c0_214] : memref<45x256x256xbf16, #tpu.memory_space<vmem>>, vector<1x256x256xbf16>
    %315 = vector.shape_cast %314 : vector<1x256x256xbf16> to vector<256x256xbf16>
    %cst_215 = arith.constant dense<0.000000e+00> : vector<8x256xf32>
    %316 = tpu.matmul %313, %315, %cst_215 {dimension_numbers = #tpu.dot_dimension_numbers<[1], [0], [0], [1], [0, 0, 1, 1], [], []>} : vector<8x256xbf16>, vector<256x256xbf16>, vector<8x256xf32> -> vector<8x256xf32>
    %c27_216 = arith.constant 27 : index
    %c0_217 = arith.constant 0 : index
    %317 = vector.load %arg5[%c27_216, %c0_217] : memref<30x256xf32, #tpu.memory_space<vmem>>, vector<1x256xf32>
    %318 = vector.broadcast %317 : vector<1x256xf32> to vector<8x256xf32>
    %319 = arith.addf %316, %318 : vector<8x256xf32>
    %320 = arith.negf %319 : vector<8x256xf32>
    %321 = math.exp %320 : vector<8x256xf32>
    %cst_218 = arith.constant 1.000000e+00 : f32
    %322 = vector.broadcast %cst_218 : f32 to vector<8x256xf32>
    %323 = arith.addf %322, %321 : vector<8x256xf32>
    %324 = arith.divf %322, %323 : vector<8x256xf32>
    %325 = arith.truncf %324 : vector<8x256xf32> to vector<8x256xbf16>
    %c43 = arith.constant 43 : index
    %c0_219 = arith.constant 0 : index
    %c0_220 = arith.constant 0 : index
    %326 = vector.load %arg4[%c43, %c0_219, %c0_220] : memref<45x256x256xbf16, #tpu.memory_space<vmem>>, vector<1x256x256xbf16>
    %327 = vector.shape_cast %326 : vector<1x256x256xbf16> to vector<256x256xbf16>
    %cst_221 = arith.constant dense<0.000000e+00> : vector<8x256xf32>
    %328 = tpu.matmul %325, %327, %cst_221 {dimension_numbers = #tpu.dot_dimension_numbers<[1], [0], [0], [1], [0, 0, 1, 1], [], []>} : vector<8x256xbf16>, vector<256x256xbf16>, vector<8x256xf32> -> vector<8x256xf32>
    %c28_222 = arith.constant 28 : index
    %c0_223 = arith.constant 0 : index
    %329 = vector.load %arg5[%c28_222, %c0_223] : memref<30x256xf32, #tpu.memory_space<vmem>>, vector<1x256xf32>
    %330 = vector.broadcast %329 : vector<1x256xf32> to vector<8x256xf32>
    %331 = arith.addf %328, %330 : vector<8x256xf32>
    %cst_224 = arith.constant 0.000000e+00 : f32
    %332 = vector.broadcast %cst_224 : f32 to vector<8x256xf32>
    %333 = arith.maximumf %331, %332 : vector<8x256xf32>
    %334 = arith.truncf %333 : vector<8x256xf32> to vector<8x256xbf16>
    %c44 = arith.constant 44 : index
    %c0_225 = arith.constant 0 : index
    %c0_226 = arith.constant 0 : index
    %335 = vector.load %arg4[%c44, %c0_225, %c0_226] : memref<45x256x256xbf16, #tpu.memory_space<vmem>>, vector<1x256x256xbf16>
    %336 = vector.shape_cast %335 : vector<1x256x256xbf16> to vector<256x256xbf16>
    %cst_227 = arith.constant dense<0.000000e+00> : vector<8x256xf32>
    %337 = tpu.matmul %334, %336, %cst_227 {dimension_numbers = #tpu.dot_dimension_numbers<[1], [0], [0], [1], [0, 0, 1, 1], [], []>} : vector<8x256xbf16>, vector<256x256xbf16>, vector<8x256xf32> -> vector<8x256xf32>
    %c29_228 = arith.constant 29 : index
    %c0_229 = arith.constant 0 : index
    %338 = vector.load %arg5[%c29_228, %c0_229] : memref<30x256xf32, #tpu.memory_space<vmem>>, vector<1x256xf32>
    %339 = vector.broadcast %338 : vector<1x256xf32> to vector<8x256xf32>
    %340 = arith.addf %337, %339 : vector<8x256xf32>
    %c0_230 = arith.constant 0 : index
    %c0_231 = arith.constant 0 : index
    %341 = vector.load %arg6[%c0_230, %c0_231] : memref<8x256xf32, #tpu.memory_space<vmem>>, vector<8x256xf32>
    tpu.vector_store %arg6[%c0_230, %c0_231], %285 {strides = array<i32>} : memref<8x256xf32, #tpu.memory_space<vmem>>, vector<8x256xf32>,
    %c0_232 = arith.constant 0 : index
    %c0_233 = arith.constant 0 : index
    %342 = vector.load %arg7[%c0_232, %c0_233] : memref<8x256xf32, #tpu.memory_space<vmem>>, vector<8x256xf32>
    tpu.vector_store %arg7[%c0_232, %c0_233], %324 {strides = array<i32>} : memref<8x256xf32, #tpu.memory_space<vmem>>, vector<8x256xf32>,
    %c0_234 = arith.constant 0 : index
    %c0_235 = arith.constant 0 : index
    %343 = vector.load %arg8[%c0_234, %c0_235] : memref<8x256xf32, #tpu.memory_space<vmem>>, vector<8x256xf32>
    tpu.vector_store %arg8[%c0_234, %c0_235], %303 {strides = array<i32>} : memref<8x256xf32, #tpu.memory_space<vmem>>, vector<8x256xf32>,
    %c0_236 = arith.constant 0 : index
    %c0_237 = arith.constant 0 : index
    %344 = vector.load %arg9[%c0_236, %c0_237] : memref<8x256xf32, #tpu.memory_space<vmem>>, vector<8x256xf32>
    tpu.vector_store %arg9[%c0_236, %c0_237], %340 {strides = array<i32>} : memref<8x256xf32, #tpu.memory_space<vmem>>, vector<8x256xf32>,
    return
  }
  func.func @transform_0(%arg0: i32) -> (i32, i32) {
    %c0_i32 = arith.constant 0 : i32
    %c0_i32_0 = arith.constant 0 : i32
    return %arg0, %c0_i32 : i32, i32
  }
  func.func @transform_1(%arg0: i32) -> (i32, i32) {
    %c0_i32 = arith.constant 0 : i32
    %c0_i32_0 = arith.constant 0 : i32
    return %arg0, %c0_i32 : i32, i32
  }
  func.func @transform_2(%arg0: i32) -> (i32, i32) {
    %c0_i32 = arith.constant 0 : i32
    %c0_i32_0 = arith.constant 0 : i32
    return %arg0, %c0_i32 : i32, i32
  }
  func.func @transform_3(%arg0: i32) -> (i32, i32, i32) {
    %c0_i32 = arith.constant 0 : i32
    %c0_i32_0 = arith.constant 0 : i32
    %c0_i32_1 = arith.constant 0 : i32
    %c0_i32_2 = arith.constant 0 : i32
    return %c0_i32, %c0_i32_0, %c0_i32_1 : i32, i32, i32
  }
  func.func @transform_4(%arg0: i32) -> (i32, i32) {
    %c0_i32 = arith.constant 0 : i32
    %c0_i32_0 = arith.constant 0 : i32
    %c0_i32_1 = arith.constant 0 : i32
    return %c0_i32, %c0_i32_0 : i32, i32
  }
  func.func @transform_5(%arg0: i32) -> (i32, i32) {
    %c0_i32 = arith.constant 0 : i32
    %c0_i32_0 = arith.constant 0 : i32
    return %arg0, %c0_i32 : i32, i32
  }
  func.func @transform_6(%arg0: i32) -> (i32, i32) {
    %c0_i32 = arith.constant 0 : i32
    %c0_i32_0 = arith.constant 0 : i32
    return %arg0, %c0_i32 : i32, i32
  }
  func.func @transform_7(%arg0: i32) -> (i32, i32) {
    %c0_i32 = arith.constant 0 : i32
    %c0_i32_0 = arith.constant 0 : i32
    return %arg0, %c0_i32 : i32, i32
  }
  func.func @transform_8(%arg0: i32) -> (i32, i32) {
    %c0_i32 = arith.constant 0 : i32
    %c0_i32_0 = arith.constant 0 : i32
    return %arg0, %c0_i32 : i32, i32
  }
}

</mosaic_0001>

<llo_original>
// kernel: cgg_mlp_forward.1
$region0: #{cgg_mlp_forward.1}
  #allocation0 [shape = 'u32[]', space=smem, size = 0x4, offset = 0x4, fixed_abs, tag = 'smem constant byte address 0x4 - core index']
  #allocation1 [shape = 'u32[144,128]{1,0:T(1,128)}', space=vmem, size = 0x12000, scoped, tag = 'internal scratch']
  %s0 = inlined_call_operand.vmem [shape: f32[8,256], index: 0, kind: input, shape index: {}]
  %s1 = inlined_call_operand.vmem [shape: f32[8,256], index: 1, kind: input, shape index: {}]
  %s2 = inlined_call_operand.vmem [shape: f32[8,256], index: 2, kind: input, shape index: {}]
  %s3 = inlined_call_operand.hbm [shape: bf16[45,256,256], index: 3, kind: input, shape index: {}]
  %s4 = inlined_call_operand.hbm [shape: f32[30,256], index: 4, kind: input, shape index: {}]
  %s5 = inlined_call_operand.vmem [shape: f32[8,256], index: 5, kind: output, shape index: {0}]
  %s6 = inlined_call_operand.vmem [shape: f32[8,256], index: 6, kind: output, shape index: {1}]
  %s7 = inlined_call_operand.vmem [shape: f32[8,256], index: 7, kind: output, shape index: {2}]
  %s8 = inlined_call_operand.vmem [shape: f32[8,256], index: 8, kind: output, shape index: {3}]
  %9 = xla_tuple %s5, %s6, %s7, %s8
  %s10 = sld [smem:[#allocation0]]
  $region62: #{cgg_mlp_forward.1} parent=0
    _
  %s12 = ssub.s32 1, %s10
  %s13 = scalar_select 0, %s12, %s10
  $region1: #{cgg_mlp_forward.1} parent=0
    #allocation2 [shape = 'u8[5898240]{0}', space=vmem, size = 0x5a0000, scoped, tag = 'input window, operand 3, single buffered']
    #allocation3 [shape = 's32[1]{0}', space=sflag, size = 0x4, scoped, tag = 'scoped memory for cgg_mlp_forward.1']
    #allocation4 [shape = 'u8[32768]{0}', space=vmem, size = 0x8000, scoped, tag = 'input window, operand 4, single buffered']
    #allocation5 [shape = 's32[1]{0}', space=sflag, size = 0x4, scoped, tag = 'scoped memory for cgg_mlp_forward.1']
    %14 = vsyncpa [#allocation3], 0
    %15 = vsyncpa [#allocation5], 0
    // Predicated region
    $region2: #{cgg_mlp_forward.1} parent=1 // pred_check
      _
    $region3: #{cgg_mlp_forward.1} parent=1 // pred_check_branch
      %17 = sbr.rel (0) target = $region5
    $region4: #{cgg_mlp_forward.1} parent=1 // pred_region
      _
    $region5: #{cgg_mlp_forward.1} parent=1 // pred_fallthru
      _
    // Predicated region
    $region6: #{cgg_mlp_forward.1} parent=1 // pred_check
      _
    $region7: #{cgg_mlp_forward.1} parent=1 // pred_check_branch
      %19 = sbr.rel (0) target = $region9
    $region8: #{cgg_mlp_forward.1} parent=1 // pred_region
      _
    $region9: #{cgg_mlp_forward.1} parent=1 // pred_fallthru
      _
    // Predicated region
    $region10: #{cgg_mlp_forward.1} parent=1 // pred_check
      _
    $region11: #{cgg_mlp_forward.1} parent=1 // pred_check_branch
      %21 = sbr.rel (0) target = $region13
    $region12: #{cgg_mlp_forward.1} parent=1 // pred_region
      _
    $region13: #{cgg_mlp_forward.1} parent=1 // pred_fallthru
      _
    // Predicated region
    $region14: #{cgg_mlp_forward.1} parent=1 // pred_check
      _
    $region15: #{cgg_mlp_forward.1} parent=1 // pred_check_branch
      %23 = sbr.rel (0) target = $region17
    $region16: #{cgg_mlp_forward.1} parent=1 // pred_region
      %s25 = ssub.s32 184320, 184320
      %26 = vsyncadd [#allocation3], %s25
      %s27 = sshll.u32 [#allocation2], 4
      %s28 = int_to_ptr.vmem [resolvable:$true] %s27
      %33 = dma.hbm_to_vmem [thread:$0]  %s3, 184320, %s28, [#allocation3], 128, 128, 8
    $region17: #{cgg_mlp_forward.1} parent=1 // pred_fallthru
      _
    // Predicated region
    $region18: #{cgg_mlp_forward.1} parent=1 // pred_check
      _
    $region19: #{cgg_mlp_forward.1} parent=1 // pred_check_branch
      %35 = sbr.rel (0) target = $region21
    $region20: #{cgg_mlp_forward.1} parent=1 // pred_region
      %s37 = ssub.s32 1024, 1024
      %38 = vsyncadd [#allocation5], %s37
      %s39 = sshll.u32 [#allocation4], 4
      %s40 = int_to_ptr.vmem [resolvable:$true] %s39
      %45 = dma.hbm_to_vmem [thread:$0]  %s4, 1024, %s40, [#allocation5], 256, 256, 16
    $region21: #{cgg_mlp_forward.1} parent=1 // pred_fallthru
      _
    // Predicated region
    $region22: #{cgg_mlp_forward.1} parent=1 // pred_check
      _
    $region23: #{cgg_mlp_forward.1} parent=1 // pred_check_branch
      %47 = sbr.rel (0) target = $region25
    $region24: #{cgg_mlp_forward.1} parent=1 // pred_region
      %48 = dma.done [#allocation3], 184320
    $region25: #{cgg_mlp_forward.1} parent=1 // pred_fallthru
      _
    // Predicated region
    $region26: #{cgg_mlp_forward.1} parent=1 // pred_check
      _
    $region27: #{cgg_mlp_forward.1} parent=1 // pred_check_branch
      %50 = sbr.rel (0) target = $region29
    $region28: #{cgg_mlp_forward.1} parent=1 // pred_region
      %51 = dma.done [#allocation5], 1024
    $region29: #{cgg_mlp_forward.1} parent=1 // pred_fallthru
      _
    %v52 = vld [vmem:[%s0] sm:$0xff]
    %v53 = vld [vmem:[%s0 + $0x8] sm:$0xff]
    %v54 = vld [vmem:[%s1] sm:$0xff]
    %v55 = vld [vmem:[%s1 + $0x8] sm:$0xff]
    %v56 = vld [vmem:[%s2] sm:$0xff]
    %v57 = vld [vmem:[%s2 + $0x8] sm:$0xff]
    %v58 = vpack.c.bf16 %v54, %v54
    %v59 = vpack.c.bf16 %v55, %v55
    %v60 = vld [vmem:[#allocation2] sm:$0xff]
    %v61 = vld [vmem:[#allocation2 + $0x8] sm:$0xff]
    %v62 = vld [vmem:[#allocation2 + $0x10] sm:$0xff]
    %v63 = vld [vmem:[#allocation2 + $0x18] sm:$0xff]
    %v64 = vld [vmem:[#allocation2 + $0x20] sm:$0xff]
    %v65 = vld [vmem:[#allocation2 + $0x28] sm:$0xff]
    %v66 = vld [vmem:[#allocation2 + $0x30] sm:$0xff]
    %v67 = vld [vmem:[#allocation2 + $0x38] sm:$0xff]
    %v68 = vld [vmem:[#allocation2 + $0x40] sm:$0xff]
    %v69 = vld [vmem:[#allocation2 + $0x48] sm:$0xff]
    %v70 = vld [vmem:[#allocation2 + $0x50] sm:$0xff]
    %v71 = vld [vmem:[#allocation2 + $0x58] sm:$0xff]
    %v72 = vld [vmem:[#allocation2 + $0x60] sm:$0xff]
    %v73 = vld [vmem:[#allocation2 + $0x68] sm:$0xff]
    %v74 = vld [vmem:[#allocation2 + $0x70] sm:$0xff]
    %v75 = vld [vmem:[#allocation2 + $0x78] sm:$0xff]
    %v76 = vld [vmem:[#allocation2 + $0x80] sm:$0xff]
    %v77 = vld [vmem:[#allocation2 + $0x88] sm:$0xff]
    %v78 = vld [vmem:[#allocation2 + $0x90] sm:$0xff]
    %v79 = vld [vmem:[#allocation2 + $0x98] sm:$0xff]
    %v80 = vld [vmem:[#allocation2 + $0xa0] sm:$0xff]
    %v81 = vld [vmem:[#allocation2 + $0xa8] sm:$0xff]
    %v82 = vld [vmem:[#allocation2 + $0xb0] sm:$0xff]
    %v83 = vld [vmem:[#allocation2 + $0xb8] sm:$0xff]
    %v84 = vld [vmem:[#allocation2 + $0xc0] sm:$0xff]
    %v85 = vld [vmem:[#allocation2 + $0xc8] sm:$0xff]
    %v86 = vld [vmem:[#allocation2 + $0xd0] sm:$0xff]
    %v87 = vld [vmem:[#allocation2 + $0xd8] sm:$0xff]
    %v88 = vld [vmem:[#allocation2 + $0xe0] sm:$0xff]
    %v89 = vld [vmem:[#allocation2 + $0xe8] sm:$0xff]
    %v90 = vld [vmem:[#allocation2 + $0xf0] sm:$0xff]
    %v91 = vld [vmem:[#allocation2 + $0xf8] sm:$0xff]
    %v92 = vld [vmem:[#allocation4] ss:$8 sm:$0x3]
    %v94 = vlaneseq
    %v95 = vshrl.u32 %v94, 7
    %v96 = vsub.s32 0, %v95
    %v97 = vrot.slane %v92, %v96
    %v98 = vlaneseq
    %v99 = vshrl.u32 %v98, 7
    %v100 = vsub.s32 1, %v99
    %v101 = vrot.slane %v92, %v100
    %v136 = vunpack.c.l.b16 %v60
    %v137 = vunpack.c.h.b16 %v60
    %v138 = vunpack.c.l.b16 %v61
    %v139 = vunpack.c.h.b16 %v61
    %v140 = vunpack.c.l.b16 %v62
    %v141 = vunpack.c.h.b16 %v62
    %v142 = vunpack.c.l.b16 %v63
    %v143 = vunpack.c.h.b16 %v63
    %v144 = vunpack.c.l.b16 %v64
    %v145 = vunpack.c.h.b16 %v64
    %v146 = vunpack.c.l.b16 %v65
    %v147 = vunpack.c.h.b16 %v65
    %v148 = vunpack.c.l.b16 %v66
    %v149 = vunpack.c.h.b16 %v66
    %v150 = vunpack.c.l.b16 %v67
    %v151 = vunpack.c.h.b16 %v67
    %v152 = vunpack.c.l.b16 %v68
    %v153 = vunpack.c.h.b16 %v68
    %v154 = vunpack.c.l.b16 %v69
    %v155 = vunpack.c.h.b16 %v69
    %v156 = vunpack.c.l.b16 %v70
    %v157 = vunpack.c.h.b16 %v70
    %v158 = vunpack.c.l.b16 %v71
    %v159 = vunpack.c.h.b16 %v71
    %v160 = vunpack.c.l.b16 %v72
    %v161 = vunpack.c.h.b16 %v72
    %v162 = vunpack.c.l.b16 %v73
    %v163 = vunpack.c.h.b16 %v73
    %v164 = vunpack.c.l.b16 %v74
    %v165 = vunpack.c.h.b16 %v74
    %v166 = vunpack.c.l.b16 %v75
    %v167 = vunpack.c.h.b16 %v75
    %v168 = vunpack.c.l.b16 %v76
    %v169 = vunpack.c.h.b16 %v76
    %v170 = vunpack.c.l.b16 %v77
    %v171 = vunpack.c.h.b16 %v77
    %v172 = vunpack.c.l.b16 %v78
    %v173 = vunpack.c.h.b16 %v78
    %v174 = vunpack.c.l.b16 %v79
    %v175 = vunpack.c.h.b16 %v79
    %v176 = vunpack.c.l.b16 %v80
    %v177 = vunpack.c.h.b16 %v80
    %v178 = vunpack.c.l.b16 %v81
    %v179 = vunpack.c.h.b16 %v81
    %v180 = vunpack.c.l.b16 %v82
    %v181 = vunpack.c.h.b16 %v82
    %v182 = vunpack.c.l.b16 %v83
    %v183 = vunpack.c.h.b16 %v83
    %v184 = vunpack.c.l.b16 %v84
    %v185 = vunpack.c.h.b16 %v84
    %v186 = vunpack.c.l.b16 %v85
    %v187 = vunpack.c.h.b16 %v85
    %v188 = vunpack.c.l.b16 %v86
    %v189 = vunpack.c.h.b16 %v86
    %v190 = vunpack.c.l.b16 %v87
    %v191 = vunpack.c.h.b16 %v87
    %v192 = vunpack.c.l.b16 %v88
    %v193 = vunpack.c.h.b16 %v88
    %v194 = vunpack.c.l.b16 %v89
    %v195 = vunpack.c.h.b16 %v89
    %v196 = vunpack.c.l.b16 %v90
    %v197 = vunpack.c.h.b16 %v90
    %v198 = vunpack.c.l.b16 %v91
    %v199 = vunpack.c.h.b16 %v91
    %v200 = vpack.c.b16 %v138, %v136
    %v201 = vpack.c.b16 %v139, %v137
    %v202 = vpack.c.b16 %v142, %v140
    %v203 = vpack.c.b16 %v143, %v141
    %v204 = vpack.c.b16 %v146, %v144
    %v205 = vpack.c.b16 %v147, %v145
    %v206 = vpack.c.b16 %v150, %v148
    %v207 = vpack.c.b16 %v151, %v149
    %v208 = vpack.c.b16 %v154, %v152
    %v209 = vpack.c.b16 %v155, %v153
    %v210 = vpack.c.b16 %v158, %v156
    %v211 = vpack.c.b16 %v159, %v157
    %v212 = vpack.c.b16 %v162, %v160
    %v213 = vpack.c.b16 %v163, %v161
    %v214 = vpack.c.b16 %v166, %v164
    %v215 = vpack.c.b16 %v167, %v165
    %v216 = vpack.c.b16 %v170, %v168
    %v217 = vpack.c.b16 %v171, %v169
    %v218 = vpack.c.b16 %v174, %v172
    %v219 = vpack.c.b16 %v175, %v173
    %v220 = vpack.c.b16 %v178, %v176
    %v221 = vpack.c.b16 %v179, %v177
    %v222 = vpack.c.b16 %v182, %v180
    %v223 = vpack.c.b16 %v183, %v181
    %v224 = vpack.c.b16 %v186, %v184
    %v225 = vpack.c.b16 %v187, %v185
    %v226 = vpack.c.b16 %v190, %v188
    %v227 = vpack.c.b16 %v191, %v189
    %v228 = vpack.c.b16 %v194, %v192
    %v229 = vpack.c.b16 %v195, %v193
    %v230 = vpack.c.b16 %v198, %v196
    %v231 = vpack.c.b16 %v199, %v197
    %264 = vmatprep.subr.bf16.mxu0 %v215
    %265 = vmatpush1.bf16.msra.mxu0 %v214
    %266 = vmatprep.subr.bf16.mxu0 %v213
    %267 = vmatpush1.bf16.msra.mxu0 %v212
    %268 = vmatprep.subr.bf16.mxu0 %v211
    %269 = vmatpush1.bf16.msra.mxu0 %v210
    %270 = vmatprep.subr.bf16.mxu0 %v209
    %271 = vmatpush1.bf16.msra.mxu0 %v208
    %272 = vmatprep.subr.bf16.mxu0 %v207
    %273 = vmatpush1.bf16.msra.mxu0 %v206
    %274 = vmatprep.subr.bf16.mxu0 %v205
    %275 = vmatpush1.bf16.msra.mxu0 %v204
    %276 = vmatprep.subr.bf16.mxu0 %v203
    %277 = vmatpush1.bf16.msra.mxu0 %v202
    %278 = vmatprep.subr.bf16.mxu0 %v201
    %279 = vmatpush1.bf16.msra.mxu0 %v200
    %280 = vmatprep.subr.bf16.mxu0 %v231
    %281 = vmatpush2.bf16.msra.mxu0 %v230
    %282 = vmatprep.subr.bf16.mxu0 %v229
    %283 = vmatpush2.bf16.msra.mxu0 %v228
    %284 = vmatprep.subr.bf16.mxu0 %v227
    %285 = vmatpush2.bf16.msra.mxu0 %v226
    %286 = vmatprep.subr.bf16.mxu0 %v225
    %287 = vmatpush2.bf16.msra.mxu0 %v224
    %288 = vmatprep.subr.bf16.mxu0 %v223
    %289 = vmatpush2.bf16.msra.mxu0 %v222
    %290 = vmatprep.subr.bf16.mxu0 %v221
    %291 = vmatpush2.bf16.msra.mxu0 %v220
    %292 = vmatprep.subr.bf16.mxu0 %v219
    %293 = vmatpush2.bf16.msra.mxu0 %v218
    %294 = vmatprep.subr.bf16.mxu0 %v217
    %295 = vmatpush2.bf16.msra.mxu0 %v216
    %296 = vmatprep.mubr.bf16.mxu0 %v59
    %297 = vmatmul.mubr.bf16.gmra.mxu0 %v58
    %v298 = vpop.f32.mrf.mxu0
    %v299 = vadd.f32 %v97, %v298
    %v300 = vpop.f32.mrf.mxu0
    %v301 = vadd.f32 %v101, %v300
    %v302 = vpop.f32.mrf.mxu0
    %v303 = vpop.f32.mrf.mxu0
    %304 = vdwg.mxu0
    %v305 = vmax.f32 %v299, 0.0
    %v306 = vmax.f32 %v301, 0.0
    %v307 = vpack.c.bf16 %v305, %v305
    %v308 = vpack.c.bf16 %v306, %v306
    %s309 = scalar_lea.vmem [#allocation2], 256
    %v310 = vld [vmem:[%s309] sm:$0xff]
    %v311 = vld [vmem:[%s309 + $0x8] sm:$0xff]
    %v312 = vld [vmem:[%s309 + $0x10] sm:$0xff]
    %v313 = vld [vmem:[%s309 + $0x18] sm:$0xff]
    %v314 = vld [vmem:[%s309 + $0x20] sm:$0xff]
    %v315 = vld [vmem:[%s309 + $0x28] sm:$0xff]
    %v316 = vld [vmem:[%s309 + $0x30] sm:$0xff]
    %v317 = vld [vmem:[%s309 + $0x38] sm:$0xff]
    %v318 = vld [vmem:[%s309 + $0x40] sm:$0xff]
    %v319 = vld [vmem:[%s309 + $0x48] sm:$0xff]
    %v320 = vld [vmem:[%s309 + $0x50] sm:$0xff]
    %v321 = vld [vmem:[%s309 + $0x58] sm:$0xff]
    %v322 = vld [vmem:[%s309 + $0x60] sm:$0xff]
    %v323 = vld [vmem:[%s309 + $0x68] sm:$0xff]
    %v324 = vld [vmem:[%s309 + $0x70] sm:$0xff]
    %v325 = vld [vmem:[%s309 + $0x78] sm:$0xff]
    %v326 = vld [vmem:[%s309 + $0x80] sm:$0xff]
    %v327 = vld [vmem:[%s309 + $0x88] sm:$0xff]
    %v328 = vld [vmem:[%s309 + $0x90] sm:$0xff]
    %v329 = vld [vmem:[%s309 + $0x98] sm:$0xff]
    %v330 = vld [vmem:[%s309 + $0xa0] sm:$0xff]
    %v331 = vld [vmem:[%s309 + $0xa8] sm:$0xff]
    %v332 = vld [vmem:[%s309 + $0xb0] sm:$0xff]
    %v333 = vld [vmem:[%s309 + $0xb8] sm:$0xff]
    %v334 = vld [vmem:[%s309 + $0xc0] sm:$0xff]
    %v335 = vld [vmem:[%s309 + $0xc8] sm:$0xff]
    %v336 = vld [vmem:[%s309 + $0xd0] sm:$0xff]
    %v337 = vld [vmem:[%s309 + $0xd8] sm:$0xff]
    %v338 = vld [vmem:[%s309 + $0xe0] sm:$0xff]
    %v339 = vld [vmem:[%s309 + $0xe8] sm:$0xff]
    %v340 = vld [vmem:[%s309 + $0xf0] sm:$0xff]
    %v341 = vld [vmem:[%s309 + $0xf8] sm:$0xff]
    %s342 = scalar_lea.vmem [#allocation4], 1
    %v343 = vld [vmem:[%s342] ss:$8 sm:$0x3]
    %v345 = vlaneseq
    %v346 = vshrl.u32 %v345, 7
    %v347 = vsub.s32 0, %v346
    %v348 = vrot.slane %v343, %v347
    %v349 = vlaneseq
    %v350 = vshrl.u32 %v349, 7
    %v351 = vsub.s32 1, %v350
    %v352 = vrot.slane %v343, %v351
    %v387 = vunpack.c.l.b16 %v310
    %v388 = vunpack.c.h.b16 %v310
    %v389 = vunpack.c.l.b16 %v311
    %v390 = vunpack.c.h.b16 %v311
    %v391 = vunpack.c.l.b16 %v312
    %v392 = vunpack.c.h.b16 %v312
    %v393 = vunpack.c.l.b16 %v313
    %v394 = vunpack.c.h.b16 %v313
    %v395 = vunpack.c.l.b16 %v314
    %v396 = vunpack.c.h.b16 %v314
    %v397 = vunpack.c.l.b16 %v315
    %v398 = vunpack.c.h.b16 %v315
    %v399 = vunpack.c.l.b16 %v316
    %v400 = vunpack.c.h.b16 %v316
    %v401 = vunpack.c.l.b16 %v317
    %v402 = vunpack.c.h.b16 %v317
    %v403 = vunpack.c.l.b16 %v318
    %v404 = vunpack.c.h.b16 %v318
    %v405 = vunpack.c.l.b16 %v319
    %v406 = vunpack.c.h.b16 %v319
    %v407 = vunpack.c.l.b16 %v320
    %v408 = vunpack.c.h.b16 %v320
    %v409 = vunpack.c.l.b16 %v321
    %v410 = vunpack.c.h.b16 %v321
    %v411 = vunpack.c.l.b16 %v322
    %v412 = vunpack.c.h.b16 %v322
    %v413 = vunpack.c.l.b16 %v323
    %v414 = vunpack.c.h.b16 %v323
    %v415 = vunpack.c.l.b16 %v324
    %v416 = vunpack.c.h.b16 %v324
    %v417 = vunpack.c.l.b16 %v325
    %v418 = vunpack.c.h.b16 %v325
    %v419 = vunpack.c.l.b16 %v326
    %v420 = vunpack.c.h.b16 %v326
    %v421 = vunpack.c.l.b16 %v327
    %v422 = vunpack.c.h.b16 %v327
    %v423 = vunpack.c.l.b16 %v328
    %v424 = vunpack.c.h.b16 %v328
    %v425 = vunpack.c.l.b16 %v329
    %v426 = vunpack.c.h.b16 %v329
    %v427 = vunpack.c.l.b16 %v330
    %v428 = vunpack.c.h.b16 %v330
    %v429 = vunpack.c.l.b16 %v331
    %v430 = vunpack.c.h.b16 %v331
    %v431 = vunpack.c.l.b16 %v332
    %v432 = vunpack.c.h.b16 %v332
    %v433 = vunpack.c.l.b16 %v333
    %v434 = vunpack.c.h.b16 %v333
    %v435 = vunpack.c.l.b16 %v334
    %v436 = vunpack.c.h.b16 %v334
    %v437 = vunpack.c.l.b16 %v335
    %v438 = vunpack.c.h.b16 %v335
    %v439 = vunpack.c.l.b16 %v336
    %v440 = vunpack.c.h.b16 %v336
    %v441 = vunpack.c.l.b16 %v337
    %v442 = vunpack.c.h.b16 %v337
    %v443 = vunpack.c.l.b16 %v338
    %v444 = vunpack.c.h.b16 %v338
    %v445 = vunpack.c.l.b16 %v339
    %v446 = vunpack.c.h.b16 %v339
    %v447 = vunpack.c.l.b16 %v340
    %v448 = vunpack.c.h.b16 %v340
    %v449 = vunpack.c.l.b16 %v341
    %v450 = vunpack.c.h.b16 %v341
    %v451 = vpack.c.b16 %v389, %v387
    %v452 = vpack.c.b16 %v390, %v388
    %v453 = vpack.c.b16 %v393, %v391
    %v454 = vpack.c.b16 %v394, %v392
    %v455 = vpack.c.b16 %v397, %v395
    %v456 = vpack.c.b16 %v398, %v396
    %v457 = vpack.c.b16 %v401, %v399
    %v458 = vpack.c.b16 %v402, %v400
    %v459 = vpack.c.b16 %v405, %v403
    %v460 = vpack.c.b16 %v406, %v404
    %v461 = vpack.c.b16 %v409, %v407
    %v462 = vpack.c.b16 %v410, %v408
    %v463 = vpack.c.b16 %v413, %v411
    %v464 = vpack.c.b16 %v414, %v412
    %v465 = vpack.c.b16 %v417, %v415
    %v466 = vpack.c.b16 %v418, %v416
    %v467 = vpack.c.b16 %v421, %v419
    %v468 = vpack.c.b16 %v422, %v420
    %v469 = vpack.c.b16 %v425, %v423
    %v470 = vpack.c.b16 %v426, %v424
    %v471 = vpack.c.b16 %v429, %v427
    %v472 = vpack.c.b16 %v430, %v428
    %v473 = vpack.c.b16 %v433, %v431
    %v474 = vpack.c.b16 %v434, %v432
    %v475 = vpack.c.b16 %v437, %v435
    %v476 = vpack.c.b16 %v438, %v436
    %v477 = vpack.c.b16 %v441, %v439
    %v478 = vpack.c.b16 %v442, %v440
    %v479 = vpack.c.b16 %v445, %v443
    %v480 = vpack.c.b16 %v446, %v444
    %v481 = vpack.c.b16 %v449, %v447
    %v482 = vpack.c.b16 %v450, %v448
    %515 = vmatprep.subr.bf16.mxu0 %v466
    %516 = vmatpush1.bf16.msra.mxu0 %v465
    %517 = vmatprep.subr.bf16.mxu0 %v464
    %518 = vmatpush1.bf16.msra.mxu0 %v463
    %519 = vmatprep.subr.bf16.mxu0 %v462
    %520 = vmatpush1.bf16.msra.mxu0 %v461
    %521 = vmatprep.subr.bf16.mxu0 %v460
    %522 = vmatpush1.bf16.msra.mxu0 %v459
    %523 = vmatprep.subr.bf16.mxu0 %v458
    %524 = vmatpush1.bf16.msra.mxu0 %v457
    %525 = vmatprep.subr.bf16.mxu0 %v456
    %526 = vmatpush1.bf16.msra.mxu0 %v455
    %527 = vmatprep.subr.bf16.mxu0 %v454
    %528 = vmatpush1.bf16.msra.mxu0 %v453
    %529 = vmatprep.subr.bf16.mxu0 %v452
    %530 = vmatpush1.bf16.msra.mxu0 %v451
    %531 = vmatprep.subr.bf16.mxu0 %v482
    %532 = vmatpush2.bf16.msra.mxu0 %v481
    %533 = vmatprep.subr.bf16.mxu0 %v480
    %534 = vmatpush2.bf16.msra.mxu0 %v479
    %535 = vmatprep.subr.bf16.mxu0 %v478
    %536 = vmatpush2.bf16.msra.mxu0 %v477
    %537 = vmatprep.subr.bf16.mxu0 %v476
    %538 = vmatpush2.bf16.msra.mxu0 %v475
    %539 = vmatprep.subr.bf16.mxu0 %v474
    %540 = vmatpush2.bf16.msra.mxu0 %v473
    %541 = vmatprep.subr.bf16.mxu0 %v472
    %542 = vmatpush2.bf16.msra.mxu0 %v471
    %543 = vmatprep.subr.bf16.mxu0 %v470
    %544 = vmatpush2.bf16.msra.mxu0 %v469
    %545 = vmatprep.subr.bf16.mxu0 %v468
    %546 = vmatpush2.bf16.msra.mxu0 %v467
    %547 = vmatprep.mubr.bf16.mxu0 %v308
    %548 = vmatmul.mubr.bf16.gmra.mxu0 %v307
    %v549 = vpop.f32.mrf.mxu0
    %v550 = vadd.f32 %v348, %v549
    %v551 = vpop.f32.mrf.mxu0
    %v552 = vadd.f32 %v352, %v551
    %v553 = vpop.f32.mrf.mxu0
    %v554 = vpop.f32.mrf.mxu0
    %555 = vdwg.mxu0
    %v556 = vmax.f32 %v550, 0.0
    %v557 = vmax.f32 %v552, 0.0
    %v558 = vpack.c.bf16 %v52, %v52
    %v559 = vpack.c.bf16 %v53, %v53
    %s560 = scalar_lea.vmem [#allocation2], 512
    %v561 = vld [vmem:[%s560] sm:$0xff]
    %v562 = vld [vmem:[%s560 + $0x8] sm:$0xff]
    %v563 = vld [vmem:[%s560 + $0x10] sm:$0xff]
    %v564 = vld [vmem:[%s560 + $0x18] sm:$0xff]
    %v565 = vld [vmem:[%s560 + $0x20] sm:$0xff]
    %v566 = vld [vmem:[%s560 + $0x28] sm:$0xff]
    %v567 = vld [vmem:[%s560 + $0x30] sm:$0xff]
    %v568 = vld [vmem:[%s560 + $0x38] sm:$0xff]
    %v569 = vld [vmem:[%s560 + $0x40] sm:$0xff]
    %v570 = vld [vmem:[%s560 + $0x48] sm:$0xff]
    %v571 = vld [vmem:[%s560 + $0x50] sm:$0xff]
    %v572 = vld [vmem:[%s560 + $0x58] sm:$0xff]
    %v573 = vld [vmem:[%s560 + $0x60] sm:$0xff]
    %v574 = vld [vmem:[%s560 + $0x68] sm:$0xff]
    %v575 = vld [vmem:[%s560 + $0x70] sm:$0xff]
    %v576 = vld [vmem:[%s560 + $0x78] sm:$0xff]
    %v577 = vld [vmem:[%s560 + $0x80] sm:$0xff]
    %v578 = vld [vmem:[%s560 + $0x88] sm:$0xff]
    %v579 = vld [vmem:[%s560 + $0x90] sm:$0xff]
    %v580 = vld [vmem:[%s560 + $0x98] sm:$0xff]
    %v581 = vld [vmem:[%s560 + $0xa0] sm:$0xff]
    %v582 = vld [vmem:[%s560 + $0xa8] sm:$0xff]
    %v583 = vld [vmem:[%s560 + $0xb0] sm:$0xff]
    %v584 = vld [vmem:[%s560 + $0xb8] sm:$0xff]
    %v585 = vld [vmem:[%s560 + $0xc0] sm:$0xff]
    %v586 = vld [vmem:[%s560 + $0xc8] sm:$0xff]
    %v587 = vld [vmem:[%s560 + $0xd0] sm:$0xff]
    %v588 = vld [vmem:[%s560 + $0xd8] sm:$0xff]
    %v589 = vld [vmem:[%s560 + $0xe0] sm:$0xff]
    %v590 = vld [vmem:[%s560 + $0xe8] sm:$0xff]
    %v591 = vld [vmem:[%s560 + $0xf0] sm:$0xff]
    %v592 = vld [vmem:[%s560 + $0xf8] sm:$0xff]
    %s593 = scalar_lea.vmem [#allocation4], 2
    %v594 = vld [vmem:[%s593] ss:$8 sm:$0x3]
    %v596 = vlaneseq
    %v597 = vshrl.u32 %v596, 7
    %v598 = vsub.s32 0, %v597
    %v599 = vrot.slane %v594, %v598
    %v600 = vlaneseq
    %v601 = vshrl.u32 %v600, 7
    %v602 = vsub.s32 1, %v601
    %v603 = vrot.slane %v594, %v602
    %v638 = vunpack.c.l.b16 %v561
    %v639 = vunpack.c.h.b16 %v561
    %v640 = vunpack.c.l.b16 %v562
    %v641 = vunpack.c.h.b16 %v562
    %v642 = vunpack.c.l.b16 %v563
    %v643 = vunpack.c.h.b16 %v563
    %v644 = vunpack.c.l.b16 %v564
    %v645 = vunpack.c.h.b16 %v564
    %v646 = vunpack.c.l.b16 %v565
    %v647 = vunpack.c.h.b16 %v565
    %v648 = vunpack.c.l.b16 %v566
    %v649 = vunpack.c.h.b16 %v566
    %v650 = vunpack.c.l.b16 %v567
    %v651 = vunpack.c.h.b16 %v567
    %v652 = vunpack.c.l.b16 %v568
    %v653 = vunpack.c.h.b16 %v568
    %v654 = vunpack.c.l.b16 %v569
    %v655 = vunpack.c.h.b16 %v569
    %v656 = vunpack.c.l.b16 %v570
    %v657 = vunpack.c.h.b16 %v570
    %v658 = vunpack.c.l.b16 %v571
    %v659 = vunpack.c.h.b16 %v571
    %v660 = vunpack.c.l.b16 %v572
    %v661 = vunpack.c.h.b16 %v572
    %v662 = vunpack.c.l.b16 %v573
    %v663 = vunpack.c.h.b16 %v573
    %v664 = vunpack.c.l.b16 %v574
    %v665 = vunpack.c.h.b16 %v574
    %v666 = vunpack.c.l.b16 %v575
    %v667 = vunpack.c.h.b16 %v575
    %v668 = vunpack.c.l.b16 %v576
    %v669 = vunpack.c.h.b16 %v576
    %v670 = vunpack.c.l.b16 %v577
    %v671 = vunpack.c.h.b16 %v577
    %v672 = vunpack.c.l.b16 %v578
    %v673 = vunpack.c.h.b16 %v578
    %v674 = vunpack.c.l.b16 %v579
    %v675 = vunpack.c.h.b16 %v579
    %v676 = vunpack.c.l.b16 %v580
    %v677 = vunpack.c.h.b16 %v580
    %v678 = vunpack.c.l.b16 %v581
    %v679 = vunpack.c.h.b16 %v581
    %v680 = vunpack.c.l.b16 %v582
    %v681 = vunpack.c.h.b16 %v582
    %v682 = vunpack.c.l.b16 %v583
    %v683 = vunpack.c.h.b16 %v583
    %v684 = vunpack.c.l.b16 %v584
    %v685 = vunpack.c.h.b16 %v584
    %v686 = vunpack.c.l.b16 %v585
    %v687 = vunpack.c.h.b16 %v585
    %v688 = vunpack.c.l.b16 %v586
    %v689 = vunpack.c.h.b16 %v586
    %v690 = vunpack.c.l.b16 %v587
    %v691 = vunpack.c.h.b16 %v587
    %v692 = vunpack.c.l.b16 %v588
    %v693 = vunpack.c.h.b16 %v588
    %v694 = vunpack.c.l.b16 %v589
    %v695 = vunpack.c.h.b16 %v589
    %v696 = vunpack.c.l.b16 %v590
    %v697 = vunpack.c.h.b16 %v590
    %v698 = vunpack.c.l.b16 %v591
    %v699 = vunpack.c.h.b16 %v591
    %v700 = vunpack.c.l.b16 %v592
    %v701 = vunpack.c.h.b16 %v592
    %v702 = vpack.c.b16 %v640, %v638
    %v703 = vpack.c.b16 %v641, %v639
    %v704 = vpack.c.b16 %v644, %v642
    %v705 = vpack.c.b16 %v645, %v643
    %v706 = vpack.c.b16 %v648, %v646
    %v707 = vpack.c.b16 %v649, %v647
    %v708 = vpack.c.b16 %v652, %v650
    %v709 = vpack.c.b16 %v653, %v651
    %v710 = vpack.c.b16 %v656, %v654
    %v711 = vpack.c.b16 %v657, %v655
    %v712 = vpack.c.b16 %v660, %v658
    %v713 = vpack.c.b16 %v661, %v659
    %v714 = vpack.c.b16 %v664, %v662
    %v715 = vpack.c.b16 %v665, %v663
    %v716 = vpack.c.b16 %v668, %v666
    %v717 = vpack.c.b16 %v669, %v667
    %v718 = vpack.c.b16 %v672, %v670
    %v719 = vpack.c.b16 %v673, %v671
    %v720 = vpack.c.b16 %v676, %v674
    %v721 = vpack.c.b16 %v677, %v675
    %v722 = vpack.c.b16 %v680, %v678
    %v723 = vpack.c.b16 %v681, %v679
    %v724 = vpack.c.b16 %v684, %v682
    %v725 = vpack.c.b16 %v685, %v683
    %v726 = vpack.c.b16 %v688, %v686
    %v727 = vpack.c.b16 %v689, %v687
    %v728 = vpack.c.b16 %v692, %v690
    %v729 = vpack.c.b16 %v693, %v691
    %v730 = vpack.c.b16 %v696, %v694
    %v731 = vpack.c.b16 %v697, %v695
    %v732 = vpack.c.b16 %v700, %v698
    %v733 = vpack.c.b16 %v701, %v699
    %766 = vmatprep.subr.bf16.mxu0 %v717
    %767 = vmatpush1.bf16.msra.mxu0 %v716
    %768 = vmatprep.subr.bf16.mxu0 %v715
    %769 = vmatpush1.bf16.msra.mxu0 %v714
    %770 = vmatprep.subr.bf16.mxu0 %v713
    %771 = vmatpush1.bf16.msra.mxu0 %v712
    %772 = vmatprep.subr.bf16.mxu0 %v711
    %773 = vmatpush1.bf16.msra.mxu0 %v710
    %774 = vmatprep.subr.bf16.mxu0 %v709
    %775 = vmatpush1.bf16.msra.mxu0 %v708
    %776 = vmatprep.subr.bf16.mxu0 %v707
    %777 = vmatpush1.bf16.msra.mxu0 %v706
    %778 = vmatprep.subr.bf16.mxu0 %v705
    %779 = vmatpush1.bf16.msra.mxu0 %v704
    %780 = vmatprep.subr.bf16.mxu0 %v703
    %781 = vmatpush1.bf16.msra.mxu0 %v702
    %782 = vmatprep.subr.bf16.mxu0 %v733
    %783 = vmatpush2.bf16.msra.mxu0 %v732
    %784 = vmatprep.subr.bf16.mxu0 %v731
    %785 = vmatpush2.bf16.msra.mxu0 %v730
    %786 = vmatprep.subr.bf16.mxu0 %v729
    %787 = vmatpush2.bf16.msra.mxu0 %v728
    %788 = vmatprep.subr.bf16.mxu0 %v727
    %789 = vmatpush2.bf16.msra.mxu0 %v726
    %790 = vmatprep.subr.bf16.mxu0 %v725
    %791 = vmatpush2.bf16.msra.mxu0 %v724
    %792 = vmatprep.subr.bf16.mxu0 %v723
    %793 = vmatpush2.bf16.msra.mxu0 %v722
    %794 = vmatprep.subr.bf16.mxu0 %v721
    %795 = vmatpush2.bf16.msra.mxu0 %v720
    %796 = vmatprep.subr.bf16.mxu0 %v719
    %797 = vmatpush2.bf16.msra.mxu0 %v718
    %798 = vmatprep.mubr.bf16.mxu0 %v559
    %799 = vmatmul.mubr.bf16.gmra.mxu0 %v558
    %v800 = vpop.f32.mrf.mxu0
    %v801 = vadd.f32 %v599, %v800
    %v802 = vpop.f32.mrf.mxu0
    %v803 = vadd.f32 %v603, %v802
    %v804 = vpop.f32.mrf.mxu0
    %v805 = vpop.f32.mrf.mxu0
    %806 = vdwg.mxu0
    %v807 = vmax.f32 %v801, 0.0
    %v808 = vmax.f32 %v803, 0.0
    %v809 = vpack.c.bf16 %v807, %v807
    %v810 = vpack.c.bf16 %v808, %v808
    %s811 = scalar_lea.vmem [#allocation2], 768
    %v812 = vld [vmem:[%s811] sm:$0xff]
    %v813 = vld [vmem:[%s811 + $0x8] sm:$0xff]
    %v814 = vld [vmem:[%s811 + $0x10] sm:$0xff]
    %v815 = vld [vmem:[%s811 + $0x18] sm:$0xff]
    %v816 = vld [vmem:[%s811 + $0x20] sm:$0xff]
    %v817 = vld [vmem:[%s811 + $0x28] sm:$0xff]
    %v818 = vld [vmem:[%s811 + $0x30] sm:$0xff]
    %v819 = vld [vmem:[%s811 + $0x38] sm:$0xff]
    %v820 = vld [vmem:[%s811 + $0x40] sm:$0xff]
    %v821 = vld [vmem:[%s811 + $0x48] sm:$0xff]
    %v822 = vld [vmem:[%s811 + $0x50] sm:$0xff]
    %v823 = vld [vmem:[%s811 + $0x58] sm:$0xff]
    %v824 = vld [vmem:[%s811 + $0x60] sm:$0xff]
    %v825 = vld [vmem:[%s811 + $0x68] sm:$0xff]
    %v826 = vld [vmem:[%s811 + $0x70] sm:$0xff]
    %v827 = vld [vmem:[%s811 + $0x78] sm:$0xff]
    %v828 = vld [vmem:[%s811 + $0x80] sm:$0xff]
    %v829 = vld [vmem:[%s811 + $0x88] sm:$0xff]
    %v830 = vld [vmem:[%s811 + $0x90] sm:$0xff]
    %v831 = vld [vmem:[%s811 + $0x98] sm:$0xff]
    %v832 = vld [vmem:[%s811 + $0xa0] sm:$0xff]
    %v833 = vld [vmem:[%s811 + $0xa8] sm:$0xff]
    %v834 = vld [vmem:[%s811 + $0xb0] sm:$0xff]
    %v835 = vld [vmem:[%s811 + $0xb8] sm:$0xff]
    %v836 = vld [vmem:[%s811 + $0xc0] sm:$0xff]
    %v837 = vld [vmem:[%s811 + $0xc8] sm:$0xff]
    %v838 = vld [vmem:[%s811 + $0xd0] sm:$0xff]
    %v839 = vld [vmem:[%s811 + $0xd8] sm:$0xff]
    %v840 = vld [vmem:[%s811 + $0xe0] sm:$0xff]
    %v841 = vld [vmem:[%s811 + $0xe8] sm:$0xff]
    %v842 = vld [vmem:[%s811 + $0xf0] sm:$0xff]
    %v843 = vld [vmem:[%s811 + $0xf8] sm:$0xff]
    %s844 = scalar_lea.vmem [#allocation4], 3
    %v845 = vld [vmem:[%s844] ss:$8 sm:$0x3]
    %v847 = vlaneseq
    %v848 = vshrl.u32 %v847, 7
    %v849 = vsub.s32 0, %v848
    %v850 = vrot.slane %v845, %v849
    %v851 = vlaneseq
    %v852 = vshrl.u32 %v851, 7
    %v853 = vsub.s32 1, %v852
    %v854 = vrot.slane %v845, %v853
    %v889 = vunpack.c.l.b16 %v812
    %v890 = vunpack.c.h.b16 %v812
    %v891 = vunpack.c.l.b16 %v813
    %v892 = vunpack.c.h.b16 %v813
    %v893 = vunpack.c.l.b16 %v814
    %v894 = vunpack.c.h.b16 %v814
    %v895 = vunpack.c.l.b16 %v815
    %v896 = vunpack.c.h.b16 %v815
    %v897 = vunpack.c.l.b16 %v816
    %v898 = vunpack.c.h.b16 %v816
    %v899 = vunpack.c.l.b16 %v817
    %v900 = vunpack.c.h.b16 %v817
    %v901 = vunpack.c.l.b16 %v818
    %v902 = vunpack.c.h.b16 %v818
    %v903 = vunpack.c.l.b16 %v819
    %v904 = vunpack.c.h.b16 %v819
    %v905 = vunpack.c.l.b16 %v820
    %v906 = vunpack.c.h.b16 %v820
    %v907 = vunpack.c.l.b16 %v821
    %v908 = vunpack.c.h.b16 %v821
    %v909 = vunpack.c.l.b16 %v822
    %v910 = vunpack.c.h.b16 %v822
    %v911 = vunpack.c.l.b16 %v823
    %v912 = vunpack.c.h.b16 %v823
    %v913 = vunpack.c.l.b16 %v824
    %v914 = vunpack.c.h.b16 %v824
    %v915 = vunpack.c.l.b16 %v825
    %v916 = vunpack.c.h.b16 %v825
    %v917 = vunpack.c.l.b16 %v826
    %v918 = vunpack.c.h.b16 %v826
    %v919 = vunpack.c.l.b16 %v827
    %v920 = vunpack.c.h.b16 %v827
    %v921 = vunpack.c.l.b16 %v828
    %v922 = vunpack.c.h.b16 %v828
    %v923 = vunpack.c.l.b16 %v829
    %v924 = vunpack.c.h.b16 %v829
    %v925 = vunpack.c.l.b16 %v830
    %v926 = vunpack.c.h.b16 %v830
    %v927 = vunpack.c.l.b16 %v831
    %v928 = vunpack.c.h.b16 %v831
    %v929 = vunpack.c.l.b16 %v832
    %v930 = vunpack.c.h.b16 %v832
    %v931 = vunpack.c.l.b16 %v833
    %v932 = vunpack.c.h.b16 %v833
    %v933 = vunpack.c.l.b16 %v834
    %v934 = vunpack.c.h.b16 %v834
    %v935 = vunpack.c.l.b16 %v835
    %v936 = vunpack.c.h.b16 %v835
    %v937 = vunpack.c.l.b16 %v836
    %v938 = vunpack.c.h.b16 %v836
    %v939 = vunpack.c.l.b16 %v837
    %v940 = vunpack.c.h.b16 %v837
    %v941 = vunpack.c.l.b16 %v838
    %v942 = vunpack.c.h.b16 %v838
    %v943 = vunpack.c.l.b16 %v839
    %v944 = vunpack.c.h.b16 %v839
    %v945 = vunpack.c.l.b16 %v840
    %v946 = vunpack.c.h.b16 %v840
    %v947 = vunpack.c.l.b16 %v841
    %v948 = vunpack.c.h.b16 %v841
    %v949 = vunpack.c.l.b16 %v842
    %v950 = vunpack.c.h.b16 %v842
    %v951 = vunpack.c.l.b16 %v843
    %v952 = vunpack.c.h.b16 %v843
    %v953 = vpack.c.b16 %v891, %v889
    %v954 = vpack.c.b16 %v892, %v890
    %v955 = vpack.c.b16 %v895, %v893
    %v956 = vpack.c.b16 %v896, %v894
    %v957 = vpack.c.b16 %v899, %v897
    %v958 = vpack.c.b16 %v900, %v898
    %v959 = vpack.c.b16 %v903, %v901
    %v960 = vpack.c.b16 %v904, %v902
    %v961 = vpack.c.b16 %v907, %v905
    %v962 = vpack.c.b16 %v908, %v906
    %v963 = vpack.c.b16 %v911, %v909
    %v964 = vpack.c.b16 %v912, %v910
    %v965 = vpack.c.b16 %v915, %v913
    %v966 = vpack.c.b16 %v916, %v914
    %v967 = vpack.c.b16 %v919, %v917
    %v968 = vpack.c.b16 %v920, %v918
    %v969 = vpack.c.b16 %v923, %v921
    %v970 = vpack.c.b16 %v924, %v922
    %v971 = vpack.c.b16 %v927, %v925
    %v972 = vpack.c.b16 %v928, %v926
    %v973 = vpack.c.b16 %v931, %v929
    %v974 = vpack.c.b16 %v932, %v930
    %v975 = vpack.c.b16 %v935, %v933
    %v976 = vpack.c.b16 %v936, %v934
    %v977 = vpack.c.b16 %v939, %v937
    %v978 = vpack.c.b16 %v940, %v938
    %v979 = vpack.c.b16 %v943, %v941
    %v980 = vpack.c.b16 %v944, %v942
    %v981 = vpack.c.b16 %v947, %v945
    %v982 = vpack.c.b16 %v948, %v946
    %v983 = vpack.c.b16 %v951, %v949
    %v984 = vpack.c.b16 %v952, %v950
    %1017 = vmatprep.subr.bf16.mxu0 %v968
    %1018 = vmatpush1.bf16.msra.mxu0 %v967
    %1019 = vmatprep.subr.bf16.mxu0 %v966
    %1020 = vmatpush1.bf16.msra.mxu0 %v965
    %1021 = vmatprep.subr.bf16.mxu0 %v964
    %1022 = vmatpush1.bf16.msra.mxu0 %v963
    %1023 = vmatprep.subr.bf16.mxu0 %v962
    %1024 = vmatpush1.bf16.msra.mxu0 %v961
    %1025 = vmatprep.subr.bf16.mxu0 %v960
    %1026 = vmatpush1.bf16.msra.mxu0 %v959
    %1027 = vmatprep.subr.bf16.mxu0 %v958
    %1028 = vmatpush1.bf16.msra.mxu0 %v957
    %1029 = vmatprep.subr.bf16.mxu0 %v956
    %1030 = vmatpush1.bf16.msra.mxu0 %v955
    %1031 = vmatprep.subr.bf16.mxu0 %v954
    %1032 = vmatpush1.bf16.msra.mxu0 %v953
    %1033 = vmatprep.subr.bf16.mxu0 %v984
    %1034 = vmatpush2.bf16.msra.mxu0 %v983
    %1035 = vmatprep.subr.bf16.mxu0 %v982
    %1036 = vmatpush2.bf16.msra.mxu0 %v981
    %1037 = vmatprep.subr.bf16.mxu0 %v980
    %1038 = vmatpush2.bf16.msra.mxu0 %v979
    %1039 = vmatprep.subr.bf16.mxu0 %v978
    %1040 = vmatpush2.bf16.msra.mxu0 %v977
    %1041 = vmatprep.subr.bf16.mxu0 %v976
    %1042 = vmatpush2.bf16.msra.mxu0 %v975
    %1043 = vmatprep.subr.bf16.mxu0 %v974
    %1044 = vmatpush2.bf16.msra.mxu0 %v973
    %1045 = vmatprep.subr.bf16.mxu0 %v972
    %1046 = vmatpush2.bf16.msra.mxu0 %v971
    %1047 = vmatprep.subr.bf16.mxu0 %v970
    %1048 = vmatpush2.bf16.msra.mxu0 %v969
    %1049 = vmatprep.mubr.bf16.mxu0 %v810
    %1050 = vmatmul.mubr.bf16.gmra.mxu0 %v809
    %v1051 = vpop.f32.mrf.mxu0
    %v1052 = vadd.f32 %v850, %v1051
    %v1053 = vpop.f32.mrf.mxu0
    %v1054 = vadd.f32 %v854, %v1053
    %v1055 = vpop.f32.mrf.mxu0
    %v1056 = vpop.f32.mrf.mxu0
    %1057 = vdwg.mxu0
    %v1058 = vmax.f32 %v1052, 0.0
    %v1059 = vmax.f32 %v1054, 0.0
    %v1060 = vadd.f32 %v1058, %v556
    %v1061 = vadd.f32 %v1059, %v557
    %v1062 = vpack.c.bf16 %v56, %v56
    %v1063 = vpack.c.bf16 %v57, %v57
    %s1064 = scalar_lea.vmem [#allocation2], 1024
    %v1065 = vld [vmem:[%s1064] sm:$0xff]
    %v1066 = vld [vmem:[%s1064 + $0x8] sm:$0xff]
    %v1067 = vld [vmem:[%s1064 + $0x10] sm:$0xff]
    %v1068 = vld [vmem:[%s1064 + $0x18] sm:$0xff]
    %v1069 = vld [vmem:[%s1064 + $0x20] sm:$0xff]
    %v1070 = vld [vmem:[%s1064 + $0x28] sm:$0xff]
    %v1071 = vld [vmem:[%s1064 + $0x30] sm:$0xff]
    %v1072 = vld [vmem:[%s1064 + $0x38] sm:$0xff]
    %v1073 = vld [vmem:[%s1064 + $0x40] sm:$0xff]
    %v1074 = vld [vmem:[%s1064 + $0x48] sm:$0xff]
    %v1075 = vld [vmem:[%s1064 + $0x50] sm:$0xff]
    %v1076 = vld [vmem:[%s1064 + $0x58] sm:$0xff]
    %v1077 = vld [vmem:[%s1064 + $0x60] sm:$0xff]
    %v1078 = vld [vmem:[%s1064 + $0x68] sm:$0xff]
    %v1079 = vld [vmem:[%s1064 + $0x70] sm:$0xff]
    %v1080 = vld [vmem:[%s1064 + $0x78] sm:$0xff]
    %v1081 = vld [vmem:[%s1064 + $0x80] sm:$0xff]
    %v1082 = vld [vmem:[%s1064 + $0x88] sm:$0xff]
    %v1083 = vld [vmem:[%s1064 + $0x90] sm:$0xff]
    %v1084 = vld [vmem:[%s1064 + $0x98] sm:$0xff]
    %v1085 = vld [vmem:[%s1064 + $0xa0] sm:$0xff]
    %v1086 = vld [vmem:[%s1064 + $0xa8] sm:$0xff]
    %v1087 = vld [vmem:[%s1064 + $0xb0] sm:$0xff]
    %v1088 = vld [vmem:[%s1064 + $0xb8] sm:$0xff]
    %v1089 = vld [vmem:[%s1064 + $0xc0] sm:$0xff]
    %v1090 = vld [vmem:[%s1064 + $0xc8] sm:$0xff]
    %v1091 = vld [vmem:[%s1064 + $0xd0] sm:$0xff]
    %v1092 = vld [vmem:[%s1064 + $0xd8] sm:$0xff]
    %v1093 = vld [vmem:[%s1064 + $0xe0] sm:$0xff]
    %v1094 = vld [vmem:[%s1064 + $0xe8] sm:$0xff]
    %v1095 = vld [vmem:[%s1064 + $0xf0] sm:$0xff]
    %v1096 = vld [vmem:[%s1064 + $0xf8] sm:$0xff]
    %s1097 = scalar_lea.vmem [#allocation4], 4
    %v1098 = vld [vmem:[%s1097] ss:$8 sm:$0x3]
    %v1100 = vlaneseq
    %v1101 = vshrl.u32 %v1100, 7
    %v1102 = vsub.s32 0, %v1101
    %v1103 = vrot.slane %v1098, %v1102
    %v1104 = vlaneseq
    %v1105 = vshrl.u32 %v1104, 7
    %v1106 = vsub.s32 1, %v1105
    %v1107 = vrot.slane %v1098, %v1106
    %v1142 = vunpack.c.l.b16 %v1065
    %v1143 = vunpack.c.h.b16 %v1065
    %v1144 = vunpack.c.l.b16 %v1066
    %v1145 = vunpack.c.h.b16 %v1066
    %v1146 = vunpack.c.l.b16 %v1067
    %v1147 = vunpack.c.h.b16 %v1067
    %v1148 = vunpack.c.l.b16 %v1068
    %v1149 = vunpack.c.h.b16 %v1068
    %v1150 = vunpack.c.l.b16 %v1069
    %v1151 = vunpack.c.h.b16 %v1069
    %v1152 = vunpack.c.l.b16 %v1070
    %v1153 = vunpack.c.h.b16 %v1070
    %v1154 = vunpack.c.l.b16 %v1071
    %v1155 = vunpack.c.h.b16 %v1071
    %v1156 = vunpack.c.l.b16 %v1072
    %v1157 = vunpack.c.h.b16 %v1072
    %v1158 = vunpack.c.l.b16 %v1073
    %v1159 = vunpack.c.h.b16 %v1073
    %v1160 = vunpack.c.l.b16 %v1074
    %v1161 = vunpack.c.h.b16 %v1074
    %v1162 = vunpack.c.l.b16 %v1075
    %v1163 = vunpack.c.h.b16 %v1075
    %v1164 = vunpack.c.l.b16 %v1076
    %v1165 = vunpack.c.h.b16 %v1076
    %v1166 = vunpack.c.l.b16 %v1077
    %v1167 = vunpack.c.h.b16 %v1077
    %v1168 = vunpack.c.l.b16 %v1078
    %v1169 = vunpack.c.h.b16 %v1078
    %v1170 = vunpack.c.l.b16 %v1079
    %v1171 = vunpack.c.h.b16 %v1079
    %v1172 = vunpack.c.l.b16 %v1080
    %v1173 = vunpack.c.h.b16 %v1080
    %v1174 = vunpack.c.l.b16 %v1081
    %v1175 = vunpack.c.h.b16 %v1081
    %v1176 = vunpack.c.l.b16 %v1082
    %v1177 = vunpack.c.h.b16 %v1082
    %v1178 = vunpack.c.l.b16 %v1083
    %v1179 = vunpack.c.h.b16 %v1083
    %v1180 = vunpack.c.l.b16 %v1084
    %v1181 = vunpack.c.h.b16 %v1084
    %v1182 = vunpack.c.l.b16 %v1085
    %v1183 = vunpack.c.h.b16 %v1085
    %v1184 = vunpack.c.l.b16 %v1086
    %v1185 = vunpack.c.h.b16 %v1086
    %v1186 = vunpack.c.l.b16 %v1087
    %v1187 = vunpack.c.h.b16 %v1087
    %v1188 = vunpack.c.l.b16 %v1088
    %v1189 = vunpack.c.h.b16 %v1088
    %v1190 = vunpack.c.l.b16 %v1089
    %v1191 = vunpack.c.h.b16 %v1089
    %v1192 = vunpack.c.l.b16 %v1090
    %v1193 = vunpack.c.h.b16 %v1090
    %v1194 = vunpack.c.l.b16 %v1091
    %v1195 = vunpack.c.h.b16 %v1091
    %v1196 = vunpack.c.l.b16 %v1092
    %v1197 = vunpack.c.h.b16 %v1092
    %v1198 = vunpack.c.l.b16 %v1093
    %v1199 = vunpack.c.h.b16 %v1093
    %v1200 = vunpack.c.l.b16 %v1094
    %v1201 = vunpack.c.h.b16 %v1094
    %v1202 = vunpack.c.l.b16 %v1095
    %v1203 = vunpack.c.h.b16 %v1095
    %v1204 = vunpack.c.l.b16 %v1096
    %v1205 = vunpack.c.h.b16 %v1096
    %v1206 = vpack.c.b16 %v1144, %v1142
    %v1207 = vpack.c.b16 %v1145, %v1143
    %v1208 = vpack.c.b16 %v1148, %v1146
    %v1209 = vpack.c.b16 %v1149, %v1147
    %v1210 = vpack.c.b16 %v1152, %v1150
    %v1211 = vpack.c.b16 %v1153, %v1151
    %v1212 = vpack.c.b16 %v1156, %v1154
    %v1213 = vpack.c.b16 %v1157, %v1155
    %v1214 = vpack.c.b16 %v1160, %v1158
    %v1215 = vpack.c.b16 %v1161, %v1159
    %v1216 = vpack.c.b16 %v1164, %v1162
    %v1217 = vpack.c.b16 %v1165, %v1163
    %v1218 = vpack.c.b16 %v1168, %v1166
    %v1219 = vpack.c.b16 %v1169, %v1167
    %v1220 = vpack.c.b16 %v1172, %v1170
    %v1221 = vpack.c.b16 %v1173, %v1171
    %v1222 = vpack.c.b16 %v1176, %v1174
    %v1223 = vpack.c.b16 %v1177, %v1175
    %v1224 = vpack.c.b16 %v1180, %v1178
    %v1225 = vpack.c.b16 %v1181, %v1179
    %v1226 = vpack.c.b16 %v1184, %v1182
    %v1227 = vpack.c.b16 %v1185, %v1183
    %v1228 = vpack.c.b16 %v1188, %v1186
    %v1229 = vpack.c.b16 %v1189, %v1187
    %v1230 = vpack.c.b16 %v1192, %v1190
    %v1231 = vpack.c.b16 %v1193, %v1191
    %v1232 = vpack.c.b16 %v1196, %v1194
    %v1233 = vpack.c.b16 %v1197, %v1195
    %v1234 = vpack.c.b16 %v1200, %v1198
    %v1235 = vpack.c.b16 %v1201, %v1199
    %v1236 = vpack.c.b16 %v1204, %v1202
    %v1237 = vpack.c.b16 %v1205, %v1203
    %1270 = vmatprep.subr.bf16.mxu0 %v1221
    %1271 = vmatpush1.bf16.msra.mxu0 %v1220
    %1272 = vmatprep.subr.bf16.mxu0 %v1219
    %1273 = vmatpush1.bf16.msra.mxu0 %v1218
    %1274 = vmatprep.subr.bf16.mxu0 %v1217
    %1275 = vmatpush1.bf16.msra.mxu0 %v1216
    %1276 = vmatprep.subr.bf16.mxu0 %v1215
    %1277 = vmatpush1.bf16.msra.mxu0 %v1214
    %1278 = vmatprep.subr.bf16.mxu0 %v1213
    %1279 = vmatpush1.bf16.msra.mxu0 %v1212
    %1280 = vmatprep.subr.bf16.mxu0 %v1211
    %1281 = vmatpush1.bf16.msra.mxu0 %v1210
    %1282 = vmatprep.subr.bf16.mxu0 %v1209
    %1283 = vmatpush1.bf16.msra.mxu0 %v1208
    %1284 = vmatprep.subr.bf16.mxu0 %v1207
    %1285 = vmatpush1.bf16.msra.mxu0 %v1206
    %1286 = vmatprep.subr.bf16.mxu0 %v1237
    %1287 = vmatpush2.bf16.msra.mxu0 %v1236
    %1288 = vmatprep.subr.bf16.mxu0 %v1235
    %1289 = vmatpush2.bf16.msra.mxu0 %v1234
    %1290 = vmatprep.subr.bf16.mxu0 %v1233
    %1291 = vmatpush2.bf16.msra.mxu0 %v1232
    %1292 = vmatprep.subr.bf16.mxu0 %v1231
    %1293 = vmatpush2.bf16.msra.mxu0 %v1230
    %1294 = vmatprep.subr.bf16.mxu0 %v1229
    %1295 = vmatpush2.bf16.msra.mxu0 %v1228
    %1296 = vmatprep.subr.bf16.mxu0 %v1227
    %1297 = vmatpush2.bf16.msra.mxu0 %v1226
    %1298 = vmatprep.subr.bf16.mxu0 %v1225
    %1299 = vmatpush2.bf16.msra.mxu0 %v1224
    %1300 = vmatprep.subr.bf16.mxu0 %v1223
    %1301 = vmatpush2.bf16.msra.mxu0 %v1222
    %1302 = vmatprep.mubr.bf16.mxu0 %v1063
    %1303 = vmatmul.mubr.bf16.gmra.mxu0 %v1062
    %v1304 = vpop.f32.mrf.mxu0
    %v1305 = vadd.f32 %v1103, %v1304
    %v1306 = vpop.f32.mrf.mxu0
    %v1307 = vadd.f32 %v1107, %v1306
    %v1308 = vpop.f32.mrf.mxu0
    %v1309 = vpop.f32.mrf.mxu0
    %1310 = vdwg.mxu0
    %v1311 = vmax.f32 %v1305, 0.0
    %v1312 = vmax.f32 %v1307, 0.0
    %v1313 = vpack.c.bf16 %v1311, %v1311
    %v1314 = vpack.c.bf16 %v1312, %v1312
    %s1315 = scalar_lea.vmem [#allocation2], 1280
    %v1316 = vld [vmem:[%s1315] sm:$0xff]
    %v1317 = vld [vmem:[%s1315 + $0x8] sm:$0xff]
    %v1318 = vld [vmem:[%s1315 + $0x10] sm:$0xff]
    %v1319 = vld [vmem:[%s1315 + $0x18] sm:$0xff]
    %v1320 = vld [vmem:[%s1315 + $0x20] sm:$0xff]
    %v1321 = vld [vmem:[%s1315 + $0x28] sm:$0xff]
    %v1322 = vld [vmem:[%s1315 + $0x30] sm:$0xff]
    %v1323 = vld [vmem:[%s1315 + $0x38] sm:$0xff]
    %v1324 = vld [vmem:[%s1315 + $0x40] sm:$0xff]
    %v1325 = vld [vmem:[%s1315 + $0x48] sm:$0xff]
    %v1326 = vld [vmem:[%s1315 + $0x50] sm:$0xff]
    %v1327 = vld [vmem:[%s1315 + $0x58] sm:$0xff]
    %v1328 = vld [vmem:[%s1315 + $0x60] sm:$0xff]
    %v1329 = vld [vmem:[%s1315 + $0x68] sm:$0xff]
    %v1330 = vld [vmem:[%s1315 + $0x70] sm:$0xff]
    %v1331 = vld [vmem:[%s1315 + $0x78] sm:$0xff]
    %v1332 = vld [vmem:[%s1315 + $0x80] sm:$0xff]
    %v1333 = vld [vmem:[%s1315 + $0x88] sm:$0xff]
    %v1334 = vld [vmem:[%s1315 + $0x90] sm:$0xff]
    %v1335 = vld [vmem:[%s1315 + $0x98] sm:$0xff]
    %v1336 = vld [vmem:[%s1315 + $0xa0] sm:$0xff]
    %v1337 = vld [vmem:[%s1315 + $0xa8] sm:$0xff]
    %v1338 = vld [vmem:[%s1315 + $0xb0] sm:$0xff]
    %v1339 = vld [vmem:[%s1315 + $0xb8] sm:$0xff]
    %v1340 = vld [vmem:[%s1315 + $0xc0] sm:$0xff]
    %v1341 = vld [vmem:[%s1315 + $0xc8] sm:$0xff]
    %v1342 = vld [vmem:[%s1315 + $0xd0] sm:$0xff]
    %v1343 = vld [vmem:[%s1315 + $0xd8] sm:$0xff]
    %v1344 = vld [vmem:[%s1315 + $0xe0] sm:$0xff]
    %v1345 = vld [vmem:[%s1315 + $0xe8] sm:$0xff]
    %v1346 = vld [vmem:[%s1315 + $0xf0] sm:$0xff]
    %v1347 = vld [vmem:[%s1315 + $0xf8] sm:$0xff]
    %s1348 = scalar_lea.vmem [#allocation4], 5
    %v1349 = vld [vmem:[%s1348] ss:$8 sm:$0x3]
    %v1351 = vlaneseq
    %v1352 = vshrl.u32 %v1351, 7
    %v1353 = vsub.s32 0, %v1352
    %v1354 = vrot.slane %v1349, %v1353
    %v1355 = vlaneseq
    %v1356 = vshrl.u32 %v1355, 7
    %v1357 = vsub.s32 1, %v1356
    %v1358 = vrot.slane %v1349, %v1357
    %v1393 = vunpack.c.l.b16 %v1316
    %v1394 = vunpack.c.h.b16 %v1316
    %v1395 = vunpack.c.l.b16 %v1317
    %v1396 = vunpack.c.h.b16 %v1317
    %v1397 = vunpack.c.l.b16 %v1318
    %v1398 = vunpack.c.h.b16 %v1318
    %v1399 = vunpack.c.l.b16 %v1319
    %v1400 = vunpack.c.h.b16 %v1319
    %v1401 = vunpack.c.l.b16 %v1320
    %v1402 = vunpack.c.h.b16 %v1320
    %v1403 = vunpack.c.l.b16 %v1321
    %v1404 = vunpack.c.h.b16 %v1321
    %v1405 = vunpack.c.l.b16 %v1322
    %v1406 = vunpack.c.h.b16 %v1322
    %v1407 = vunpack.c.l.b16 %v1323
    %v1408 = vunpack.c.h.b16 %v1323
    %v1409 = vunpack.c.l.b16 %v1324
    %v1410 = vunpack.c.h.b16 %v1324
    %v1411 = vunpack.c.l.b16 %v1325
    %v1412 = vunpack.c.h.b16 %v1325
    %v1413 = vunpack.c.l.b16 %v1326
    %v1414 = vunpack.c.h.b16 %v1326
    %v1415 = vunpack.c.l.b16 %v1327
    %v1416 = vunpack.c.h.b16 %v1327
    %v1417 = vunpack.c.l.b16 %v1328
    %v1418 = vunpack.c.h.b16 %v1328
    %v1419 = vunpack.c.l.b16 %v1329
    %v1420 = vunpack.c.h.b16 %v1329
    %v1421 = vunpack.c.l.b16 %v1330
    %v1422 = vunpack.c.h.b16 %v1330
    %v1423 = vunpack.c.l.b16 %v1331
    %v1424 = vunpack.c.h.b16 %v1331
    %v1425 = vunpack.c.l.b16 %v1332
    %v1426 = vunpack.c.h.b16 %v1332
    %v1427 = vunpack.c.l.b16 %v1333
    %v1428 = vunpack.c.h.b16 %v1333
    %v1429 = vunpack.c.l.b16 %v1334
    %v1430 = vunpack.c.h.b16 %v1334
    %v1431 = vunpack.c.l.b16 %v1335
    %v1432 = vunpack.c.h.b16 %v1335
    %v1433 = vunpack.c.l.b16 %v1336
    %v1434 = vunpack.c.h.b16 %v1336
    %v1435 = vunpack.c.l.b16 %v1337
    %v1436 = vunpack.c.h.b16 %v1337
    %v1437 = vunpack.c.l.b16 %v1338
    %v1438 = vunpack.c.h.b16 %v1338
    %v1439 = vunpack.c.l.b16 %v1339
    %v1440 = vunpack.c.h.b16 %v1339
    %v1441 = vunpack.c.l.b16 %v1340
    %v1442 = vunpack.c.h.b16 %v1340
    %v1443 = vunpack.c.l.b16 %v1341
    %v1444 = vunpack.c.h.b16 %v1341
    %v1445 = vunpack.c.l.b16 %v1342
    %v1446 = vunpack.c.h.b16 %v1342
    %v1447 = vunpack.c.l.b16 %v1343
    %v1448 = vunpack.c.h.b16 %v1343
    %v1449 = vunpack.c.l.b16 %v1344
    %v1450 = vunpack.c.h.b16 %v1344
    %v1451 = vunpack.c.l.b16 %v1345
    %v1452 = vunpack.c.h.b16 %v1345
    %v1453 = vunpack.c.l.b16 %v1346
    %v1454 = vunpack.c.h.b16 %v1346
    %v1455 = vunpack.c.l.b16 %v1347
    %v1456 = vunpack.c.h.b16 %v1347
    %v1457 = vpack.c.b16 %v1395, %v1393
    %v1458 = vpack.c.b16 %v1396, %v1394
    %v1459 = vpack.c.b16 %v1399, %v1397
    %v1460 = vpack.c.b16 %v1400, %v1398
    %v1461 = vpack.c.b16 %v1403, %v1401
    %v1462 = vpack.c.b16 %v1404, %v1402
    %v1463 = vpack.c.b16 %v1407, %v1405
    %v1464 = vpack.c.b16 %v1408, %v1406
    %v1465 = vpack.c.b16 %v1411, %v1409
    %v1466 = vpack.c.b16 %v1412, %v1410
    %v1467 = vpack.c.b16 %v1415, %v1413
    %v1468 = vpack.c.b16 %v1416, %v1414
    %v1469 = vpack.c.b16 %v1419, %v1417
    %v1470 = vpack.c.b16 %v1420, %v1418
    %v1471 = vpack.c.b16 %v1423, %v1421
    %v1472 = vpack.c.b16 %v1424, %v1422
    %v1473 = vpack.c.b16 %v1427, %v1425
    %v1474 = vpack.c.b16 %v1428, %v1426
    %v1475 = vpack.c.b16 %v1431, %v1429
    %v1476 = vpack.c.b16 %v1432, %v1430
    %v1477 = vpack.c.b16 %v1435, %v1433
    %v1478 = vpack.c.b16 %v1436, %v1434
    %v1479 = vpack.c.b16 %v1439, %v1437
    %v1480 = vpack.c.b16 %v1440, %v1438
    %v1481 = vpack.c.b16 %v1443, %v1441
    %v1482 = vpack.c.b16 %v1444, %v1442
    %v1483 = vpack.c.b16 %v1447, %v1445
    %v1484 = vpack.c.b16 %v1448, %v1446
    %v1485 = vpack.c.b16 %v1451, %v1449
    %v1486 = vpack.c.b16 %v1452, %v1450
    %v1487 = vpack.c.b16 %v1455, %v1453
    %v1488 = vpack.c.b16 %v1456, %v1454
    %1521 = vmatprep.subr.bf16.mxu0 %v1472
    %1522 = vmatpush1.bf16.msra.mxu0 %v1471
    %1523 = vmatprep.subr.bf16.mxu0 %v1470
    %1524 = vmatpush1.bf16.msra.mxu0 %v1469
    %1525 = vmatprep.subr.bf16.mxu0 %v1468
    %1526 = vmatpush1.bf16.msra.mxu0 %v1467
    %1527 = vmatprep.subr.bf16.mxu0 %v1466
    %1528 = vmatpush1.bf16.msra.mxu0 %v1465
    %1529 = vmatprep.subr.bf16.mxu0 %v1464
    %1530 = vmatpush1.bf16.msra.mxu0 %v1463
    %1531 = vmatprep.subr.bf16.mxu0 %v1462
    %1532 = vmatpush1.bf16.msra.mxu0 %v1461
    %1533 = vmatprep.subr.bf16.mxu0 %v1460
    %1534 = vmatpush1.bf16.msra.mxu0 %v1459
    %1535 = vmatprep.subr.bf16.mxu0 %v1458
    %1536 = vmatpush1.bf16.msra.mxu0 %v1457
    %1537 = vmatprep.subr.bf16.mxu0 %v1488
    %1538 = vmatpush2.bf16.msra.mxu0 %v1487
    %1539 = vmatprep.subr.bf16.mxu0 %v1486
    %1540 = vmatpush2.bf16.msra.mxu0 %v1485
    %1541 = vmatprep.subr.bf16.mxu0 %v1484
    %1542 = vmatpush2.bf16.msra.mxu0 %v1483
    %1543 = vmatprep.subr.bf16.mxu0 %v1482
    %1544 = vmatpush2.bf16.msra.mxu0 %v1481
    %1545 = vmatprep.subr.bf16.mxu0 %v1480
    %1546 = vmatpush2.bf16.msra.mxu0 %v1479
    %1547 = vmatprep.subr.bf16.mxu0 %v1478
    %1548 = vmatpush2.bf16.msra.mxu0 %v1477
    %1549 = vmatprep.subr.bf16.mxu0 %v1476
    %1550 = vmatpush2.bf16.msra.mxu0 %v1475
    %1551 = vmatprep.subr.bf16.mxu0 %v1474
    %1552 = vmatpush2.bf16.msra.mxu0 %v1473
    %1553 = vmatprep.mubr.bf16.mxu0 %v1314
    %1554 = vmatmul.mubr.bf16.gmra.mxu0 %v1313
    %v1555 = vpop.f32.mrf.mxu0
    %v1556 = vadd.f32 %v1354, %v1555
    %v1557 = vpop.f32.mrf.mxu0
    %v1558 = vadd.f32 %v1358, %v1557
    %v1559 = vpop.f32.mrf.mxu0
    %v1560 = vpop.f32.mrf.mxu0
    %1561 = vdwg.mxu0
    %v1562 = vmax.f32 %v1556, 0.0
    %v1563 = vmax.f32 %v1558, 0.0
    %v1564 = vpack.c.bf16 %v1562, %v1562
    %v1565 = vpack.c.bf16 %v1563, %v1563
    %s1566 = scalar_lea.vmem [#allocation2], 5376
    %v1567 = vld [vmem:[%s1566] sm:$0xff]
    %v1568 = vld [vmem:[%s1566 + $0x8] sm:$0xff]
    %v1569 = vld [vmem:[%s1566 + $0x10] sm:$0xff]
    %v1570 = vld [vmem:[%s1566 + $0x18] sm:$0xff]
    %v1571 = vld [vmem:[%s1566 + $0x20] sm:$0xff]
    %v1572 = vld [vmem:[%s1566 + $0x28] sm:$0xff]
    %v1573 = vld [vmem:[%s1566 + $0x30] sm:$0xff]
    %v1574 = vld [vmem:[%s1566 + $0x38] sm:$0xff]
    %v1575 = vld [vmem:[%s1566 + $0x40] sm:$0xff]
    %v1576 = vld [vmem:[%s1566 + $0x48] sm:$0xff]
    %v1577 = vld [vmem:[%s1566 + $0x50] sm:$0xff]
    %v1578 = vld [vmem:[%s1566 + $0x58] sm:$0xff]
    %v1579 = vld [vmem:[%s1566 + $0x60] sm:$0xff]
    %v1580 = vld [vmem:[%s1566 + $0x68] sm:$0xff]
    %v1581 = vld [vmem:[%s1566 + $0x70] sm:$0xff]
    %v1582 = vld [vmem:[%s1566 + $0x78] sm:$0xff]
    %v1583 = vld [vmem:[%s1566 + $0x80] sm:$0xff]
    %v1584 = vld [vmem:[%s1566 + $0x88] sm:$0xff]
    %v1585 = vld [vmem:[%s1566 + $0x90] sm:$0xff]
    %v1586 = vld [vmem:[%s1566 + $0x98] sm:$0xff]
    %v1587 = vld [vmem:[%s1566 + $0xa0] sm:$0xff]
    %v1588 = vld [vmem:[%s1566 + $0xa8] sm:$0xff]
    %v1589 = vld [vmem:[%s1566 + $0xb0] sm:$0xff]
    %v1590 = vld [vmem:[%s1566 + $0xb8] sm:$0xff]
    %v1591 = vld [vmem:[%s1566 + $0xc0] sm:$0xff]
    %v1592 = vld [vmem:[%s1566 + $0xc8] sm:$0xff]
    %v1593 = vld [vmem:[%s1566 + $0xd0] sm:$0xff]
    %v1594 = vld [vmem:[%s1566 + $0xd8] sm:$0xff]
    %v1595 = vld [vmem:[%s1566 + $0xe0] sm:$0xff]
    %v1596 = vld [vmem:[%s1566 + $0xe8] sm:$0xff]
    %v1597 = vld [vmem:[%s1566 + $0xf0] sm:$0xff]
    %v1598 = vld [vmem:[%s1566 + $0xf8] sm:$0xff]
    %s1599 = scalar_lea.vmem [#allocation2], 1536
    %v1600 = vld [vmem:[%s1599] sm:$0xff]
    %v1601 = vld [vmem:[%s1599 + $0x8] sm:$0xff]
    %v1602 = vld [vmem:[%s1599 + $0x10] sm:$0xff]
    %v1603 = vld [vmem:[%s1599 + $0x18] sm:$0xff]
    %v1604 = vld [vmem:[%s1599 + $0x20] sm:$0xff]
    %v1605 = vld [vmem:[%s1599 + $0x28] sm:$0xff]
    %v1606 = vld [vmem:[%s1599 + $0x30] sm:$0xff]
    %v1607 = vld [vmem:[%s1599 + $0x38] sm:$0xff]
    %v1608 = vld [vmem:[%s1599 + $0x40] sm:$0xff]
    %v1609 = vld [vmem:[%s1599 + $0x48] sm:$0xff]
    %v1610 = vld [vmem:[%s1599 + $0x50] sm:$0xff]
    %v1611 = vld [vmem:[%s1599 + $0x58] sm:$0xff]
    %v1612 = vld [vmem:[%s1599 + $0x60] sm:$0xff]
    %v1613 = vld [vmem:[%s1599 + $0x68] sm:$0xff]
    %v1614 = vld [vmem:[%s1599 + $0x70] sm:$0xff]
    %v1615 = vld [vmem:[%s1599 + $0x78] sm:$0xff]
    %v1616 = vld [vmem:[%s1599 + $0x80] sm:$0xff]
    %v1617 = vld [vmem:[%s1599 + $0x88] sm:$0xff]
    %v1618 = vld [vmem:[%s1599 + $0x90] sm:$0xff]
    %v1619 = vld [vmem:[%s1599 + $0x98] sm:$0xff]
    %v1620 = vld [vmem:[%s1599 + $0xa0] sm:$0xff]
    %v1621 = vld [vmem:[%s1599 + $0xa8] sm:$0xff]
    %v1622 = vld [vmem:[%s1599 + $0xb0] sm:$0xff]
    %v1623 = vld [vmem:[%s1599 + $0xb8] sm:$0xff]
    %v1624 = vld [vmem:[%s1599 + $0xc0] sm:$0xff]
    %v1625 = vld [vmem:[%s1599 + $0xc8] sm:$0xff]
    %v1626 = vld [vmem:[%s1599 + $0xd0] sm:$0xff]
    %v1627 = vld [vmem:[%s1599 + $0xd8] sm:$0xff]
    %v1628 = vld [vmem:[%s1599 + $0xe0] sm:$0xff]
    %v1629 = vld [vmem:[%s1599 + $0xe8] sm:$0xff]
    %v1630 = vld [vmem:[%s1599 + $0xf0] sm:$0xff]
    %v1631 = vld [vmem:[%s1599 + $0xf8] sm:$0xff]
    %s1632 = scalar_lea.vmem [#allocation4], 6
    %v1633 = vld [vmem:[%s1632] ss:$8 sm:$0x3]
    %v1635 = vlaneseq
    %v1636 = vshrl.u32 %v1635, 7
    %v1637 = vsub.s32 0, %v1636
    %v1638 = vrot.slane %v1633, %v1637
    %v1639 = vlaneseq
    %v1640 = vshrl.u32 %v1639, 7
    %v1641 = vsub.s32 1, %v1640
    %v1642 = vrot.slane %v1633, %v1641
    %v1677 = vunpack.c.l.b16 %v1600
    %v1678 = vunpack.c.h.b16 %v1600
    %v1679 = vunpack.c.l.b16 %v1601
    %v1680 = vunpack.c.h.b16 %v1601
    %v1681 = vunpack.c.l.b16 %v1602
    %v1682 = vunpack.c.h.b16 %v1602
    %v1683 = vunpack.c.l.b16 %v1603
    %v1684 = vunpack.c.h.b16 %v1603
    %v1685 = vunpack.c.l.b16 %v1604
    %v1686 = vunpack.c.h.b16 %v1604
    %v1687 = vunpack.c.l.b16 %v1605
    %v1688 = vunpack.c.h.b16 %v1605
    %v1689 = vunpack.c.l.b16 %v1606
    %v1690 = vunpack.c.h.b16 %v1606
    %v1691 = vunpack.c.l.b16 %v1607
    %v1692 = vunpack.c.h.b16 %v1607
    %v1693 = vunpack.c.l.b16 %v1608
    %v1694 = vunpack.c.h.b16 %v1608
    %v1695 = vunpack.c.l.b16 %v1609
    %v1696 = vunpack.c.h.b16 %v1609
    %v1697 = vunpack.c.l.b16 %v1610
    %v1698 = vunpack.c.h.b16 %v1610
    %v1699 = vunpack.c.l.b16 %v1611
    %v1700 = vunpack.c.h.b16 %v1611
    %v1701 = vunpack.c.l.b16 %v1612
    %v1702 = vunpack.c.h.b16 %v1612
    %v1703 = vunpack.c.l.b16 %v1613
    %v1704 = vunpack.c.h.b16 %v1613
    %v1705 = vunpack.c.l.b16 %v1614
    %v1706 = vunpack.c.h.b16 %v1614
    %v1707 = vunpack.c.l.b16 %v1615
    %v1708 = vunpack.c.h.b16 %v1615
    %v1709 = vunpack.c.l.b16 %v1616
    %v1710 = vunpack.c.h.b16 %v1616
    %v1711 = vunpack.c.l.b16 %v1617
    %v1712 = vunpack.c.h.b16 %v1617
    %v1713 = vunpack.c.l.b16 %v1618
    %v1714 = vunpack.c.h.b16 %v1618
    %v1715 = vunpack.c.l.b16 %v1619
    %v1716 = vunpack.c.h.b16 %v1619
    %v1717 = vunpack.c.l.b16 %v1620
    %v1718 = vunpack.c.h.b16 %v1620
    %v1719 = vunpack.c.l.b16 %v1621
    %v1720 = vunpack.c.h.b16 %v1621
    %v1721 = vunpack.c.l.b16 %v1622
    %v1722 = vunpack.c.h.b16 %v1622
    %v1723 = vunpack.c.l.b16 %v1623
    %v1724 = vunpack.c.h.b16 %v1623
    %v1725 = vunpack.c.l.b16 %v1624
    %v1726 = vunpack.c.h.b16 %v1624
    %v1727 = vunpack.c.l.b16 %v1625
    %v1728 = vunpack.c.h.b16 %v1625
    %v1729 = vunpack.c.l.b16 %v1626
    %v1730 = vunpack.c.h.b16 %v1626
    %v1731 = vunpack.c.l.b16 %v1627
    %v1732 = vunpack.c.h.b16 %v1627
    %v1733 = vunpack.c.l.b16 %v1628
    %v1734 = vunpack.c.h.b16 %v1628
    %v1735 = vunpack.c.l.b16 %v1629
    %v1736 = vunpack.c.h.b16 %v1629
    %v1737 = vunpack.c.l.b16 %v1630
    %v1738 = vunpack.c.h.b16 %v1630
    %v1739 = vunpack.c.l.b16 %v1631
    %v1740 = vunpack.c.h.b16 %v1631
    %v1741 = vpack.c.b16 %v1679, %v1677
    %v1742 = vpack.c.b16 %v1680, %v1678
    %v1743 = vpack.c.b16 %v1683, %v1681
    %v1744 = vpack.c.b16 %v1684, %v1682
    %v1745 = vpack.c.b16 %v1687, %v1685
    %v1746 = vpack.c.b16 %v1688, %v1686
    %v1747 = vpack.c.b16 %v1691, %v1689
    %v1748 = vpack.c.b16 %v1692, %v1690
    %v1749 = vpack.c.b16 %v1695, %v1693
    %v1750 = vpack.c.b16 %v1696, %v1694
    %v1751 = vpack.c.b16 %v1699, %v1697
    %v1752 = vpack.c.b16 %v1700, %v1698
    %v1753 = vpack.c.b16 %v1703, %v1701
    %v1754 = vpack.c.b16 %v1704, %v1702
    %v1755 = vpack.c.b16 %v1707, %v1705
    %v1756 = vpack.c.b16 %v1708, %v1706
    %v1757 = vpack.c.b16 %v1711, %v1709
    %v1758 = vpack.c.b16 %v1712, %v1710
    %v1759 = vpack.c.b16 %v1715, %v1713
    %v1760 = vpack.c.b16 %v1716, %v1714
    %v1761 = vpack.c.b16 %v1719, %v1717
    %v1762 = vpack.c.b16 %v1720, %v1718
    %v1763 = vpack.c.b16 %v1723, %v1721
    %v1764 = vpack.c.b16 %v1724, %v1722
    %v1765 = vpack.c.b16 %v1727, %v1725
    %v1766 = vpack.c.b16 %v1728, %v1726
    %v1767 = vpack.c.b16 %v1731, %v1729
    %v1768 = vpack.c.b16 %v1732, %v1730
    %v1769 = vpack.c.b16 %v1735, %v1733
    %v1770 = vpack.c.b16 %v1736, %v1734
    %v1771 = vpack.c.b16 %v1739, %v1737
    %v1772 = vpack.c.b16 %v1740, %v1738
    %1805 = vmatprep.subr.bf16.mxu0 %v1756
    %1806 = vmatpush1.bf16.msra.mxu0 %v1755
    %1807 = vmatprep.subr.bf16.mxu0 %v1754
    %1808 = vmatpush1.bf16.msra.mxu0 %v1753
    %1809 = vmatprep.subr.bf16.mxu0 %v1752
    %1810 = vmatpush1.bf16.msra.mxu0 %v1751
    %1811 = vmatprep.subr.bf16.mxu0 %v1750
    %1812 = vmatpush1.bf16.msra.mxu0 %v1749
    %1813 = vmatprep.subr.bf16.mxu0 %v1748
    %1814 = vmatpush1.bf16.msra.mxu0 %v1747
    %1815 = vmatprep.subr.bf16.mxu0 %v1746
    %1816 = vmatpush1.bf16.msra.mxu0 %v1745
    %1817 = vmatprep.subr.bf16.mxu0 %v1744
    %1818 = vmatpush1.bf16.msra.mxu0 %v1743
    %1819 = vmatprep.subr.bf16.mxu0 %v1742
    %1820 = vmatpush1.bf16.msra.mxu0 %v1741
    %1821 = vmatprep.subr.bf16.mxu0 %v1772
    %1822 = vmatpush2.bf16.msra.mxu0 %v1771
    %1823 = vmatprep.subr.bf16.mxu0 %v1770
    %1824 = vmatpush2.bf16.msra.mxu0 %v1769
    %1825 = vmatprep.subr.bf16.mxu0 %v1768
    %1826 = vmatpush2.bf16.msra.mxu0 %v1767
    %1827 = vmatprep.subr.bf16.mxu0 %v1766
    %1828 = vmatpush2.bf16.msra.mxu0 %v1765
    %1829 = vmatprep.subr.bf16.mxu0 %v1764
    %1830 = vmatpush2.bf16.msra.mxu0 %v1763
    %1831 = vmatprep.subr.bf16.mxu0 %v1762
    %1832 = vmatpush2.bf16.msra.mxu0 %v1761
    %1833 = vmatprep.subr.bf16.mxu0 %v1760
    %1834 = vmatpush2.bf16.msra.mxu0 %v1759
    %1835 = vmatprep.subr.bf16.mxu0 %v1758
    %1836 = vmatpush2.bf16.msra.mxu0 %v1757
    %1837 = vmatprep.mubr.bf16.mxu0 %v1314
    %1838 = vmatmul.mubr.bf16.gmra.mxu0 %v1313
    %v1839 = vpop.f32.mrf.mxu0
    %v1840 = vadd.f32 %v1638, %v1839
    %v1841 = vpop.f32.mrf.mxu0
    %v1842 = vadd.f32 %v1642, %v1841
    %v1843 = vpop.f32.mrf.mxu0
    %v1844 = vpop.f32.mrf.mxu0
    %1845 = vdwg.mxu0
    %v1846 = vmax.f32 %v1840, 0.0
    %v1847 = vmax.f32 %v1842, 0.0
    %v1848 = vpack.c.bf16 %v1846, %v1846
    %v1849 = vpack.c.bf16 %v1847, %v1847
    %s1850 = scalar_lea.vmem [#allocation2], 5632
    %v1851 = vld [vmem:[%s1850] sm:$0xff]
    %v1852 = vld [vmem:[%s1850 + $0x8] sm:$0xff]
    %v1853 = vld [vmem:[%s1850 + $0x10] sm:$0xff]
    %v1854 = vld [vmem:[%s1850 + $0x18] sm:$0xff]
    %v1855 = vld [vmem:[%s1850 + $0x20] sm:$0xff]
    %v1856 = vld [vmem:[%s1850 + $0x28] sm:$0xff]
    %v1857 = vld [vmem:[%s1850 + $0x30] sm:$0xff]
    %v1858 = vld [vmem:[%s1850 + $0x38] sm:$0xff]
    %v1859 = vld [vmem:[%s1850 + $0x40] sm:$0xff]
    %v1860 = vld [vmem:[%s1850 + $0x48] sm:$0xff]
    %v1861 = vld [vmem:[%s1850 + $0x50] sm:$0xff]
    %v1862 = vld [vmem:[%s1850 + $0x58] sm:$0xff]
    %v1863 = vld [vmem:[%s1850 + $0x60] sm:$0xff]
    %v1864 = vld [vmem:[%s1850 + $0x68] sm:$0xff]
    %v1865 = vld [vmem:[%s1850 + $0x70] sm:$0xff]
    %v1866 = vld [vmem:[%s1850 + $0x78] sm:$0xff]
    %v1867 = vld [vmem:[%s1850 + $0x80] sm:$0xff]
    %v1868 = vld [vmem:[%s1850 + $0x88] sm:$0xff]
    %v1869 = vld [vmem:[%s1850 + $0x90] sm:$0xff]
    %v1870 = vld [vmem:[%s1850 + $0x98] sm:$0xff]
    %v1871 = vld [vmem:[%s1850 + $0xa0] sm:$0xff]
    %v1872 = vld [vmem:[%s1850 + $0xa8] sm:$0xff]
    %v1873 = vld [vmem:[%s1850 + $0xb0] sm:$0xff]
    %v1874 = vld [vmem:[%s1850 + $0xb8] sm:$0xff]
    %v1875 = vld [vmem:[%s1850 + $0xc0] sm:$0xff]
    %v1876 = vld [vmem:[%s1850 + $0xc8] sm:$0xff]
    %v1877 = vld [vmem:[%s1850 + $0xd0] sm:$0xff]
    %v1878 = vld [vmem:[%s1850 + $0xd8] sm:$0xff]
    %v1879 = vld [vmem:[%s1850 + $0xe0] sm:$0xff]
    %v1880 = vld [vmem:[%s1850 + $0xe8] sm:$0xff]
    %v1881 = vld [vmem:[%s1850 + $0xf0] sm:$0xff]
    %v1882 = vld [vmem:[%s1850 + $0xf8] sm:$0xff]
    %v1915 = vunpack.c.l.b16 %v1851
    %v1916 = vunpack.c.h.b16 %v1851
    %v1917 = vunpack.c.l.b16 %v1852
    %v1918 = vunpack.c.h.b16 %v1852
    %v1919 = vunpack.c.l.b16 %v1853
    %v1920 = vunpack.c.h.b16 %v1853
    %v1921 = vunpack.c.l.b16 %v1854
    %v1922 = vunpack.c.h.b16 %v1854
    %v1923 = vunpack.c.l.b16 %v1855
    %v1924 = vunpack.c.h.b16 %v1855
    %v1925 = vunpack.c.l.b16 %v1856
    %v1926 = vunpack.c.h.b16 %v1856
    %v1927 = vunpack.c.l.b16 %v1857
    %v1928 = vunpack.c.h.b16 %v1857
    %v1929 = vunpack.c.l.b16 %v1858
    %v1930 = vunpack.c.h.b16 %v1858
    %v1931 = vunpack.c.l.b16 %v1859
    %v1932 = vunpack.c.h.b16 %v1859
    %v1933 = vunpack.c.l.b16 %v1860
    %v1934 = vunpack.c.h.b16 %v1860
    %v1935 = vunpack.c.l.b16 %v1861
    %v1936 = vunpack.c.h.b16 %v1861
    %v1937 = vunpack.c.l.b16 %v1862
    %v1938 = vunpack.c.h.b16 %v1862
    %v1939 = vunpack.c.l.b16 %v1863
    %v1940 = vunpack.c.h.b16 %v1863
    %v1941 = vunpack.c.l.b16 %v1864
    %v1942 = vunpack.c.h.b16 %v1864
    %v1943 = vunpack.c.l.b16 %v1865
    %v1944 = vunpack.c.h.b16 %v1865
    %v1945 = vunpack.c.l.b16 %v1866
    %v1946 = vunpack.c.h.b16 %v1866
    %v1947 = vunpack.c.l.b16 %v1867
    %v1948 = vunpack.c.h.b16 %v1867
    %v1949 = vunpack.c.l.b16 %v1868
    %v1950 = vunpack.c.h.b16 %v1868
    %v1951 = vunpack.c.l.b16 %v1869
    %v1952 = vunpack.c.h.b16 %v1869
    %v1953 = vunpack.c.l.b16 %v1870
    %v1954 = vunpack.c.h.b16 %v1870
    %v1955 = vunpack.c.l.b16 %v1871
    %v1956 = vunpack.c.h.b16 %v1871
    %v1957 = vunpack.c.l.b16 %v1872
    %v1958 = vunpack.c.h.b16 %v1872
    %v1959 = vunpack.c.l.b16 %v1873
    %v1960 = vunpack.c.h.b16 %v1873
    %v1961 = vunpack.c.l.b16 %v1874
    %v1962 = vunpack.c.h.b16 %v1874
    %v1963 = vunpack.c.l.b16 %v1875
    %v1964 = vunpack.c.h.b16 %v1875
    %v1965 = vunpack.c.l.b16 %v1876
    %v1966 = vunpack.c.h.b16 %v1876
    %v1967 = vunpack.c.l.b16 %v1877
    %v1968 = vunpack.c.h.b16 %v1877
    %v1969 = vunpack.c.l.b16 %v1878
    %v1970 = vunpack.c.h.b16 %v1878
    %v1971 = vunpack.c.l.b16 %v1879
    %v1972 = vunpack.c.h.b16 %v1879
    %v1973 = vunpack.c.l.b16 %v1880
    %v1974 = vunpack.c.h.b16 %v1880
    %v1975 = vunpack.c.l.b16 %v1881
    %v1976 = vunpack.c.h.b16 %v1881
    %v1977 = vunpack.c.l.b16 %v1882
    %v1978 = vunpack.c.h.b16 %v1882
    %v1979 = vpack.c.b16 %v1917, %v1915
    %v1980 = vpack.c.b16 %v1918, %v1916
    %v1981 = vpack.c.b16 %v1921, %v1919
    %v1982 = vpack.c.b16 %v1922, %v1920
    %v1983 = vpack.c.b16 %v1925, %v1923
    %v1984 = vpack.c.b16 %v1926, %v1924
    %v1985 = vpack.c.b16 %v1929, %v1927
    %v1986 = vpack.c.b16 %v1930, %v1928
    %v1987 = vpack.c.b16 %v1933, %v1931
    %v1988 = vpack.c.b16 %v1934, %v1932
    %v1989 = vpack.c.b16 %v1937, %v1935
    %v1990 = vpack.c.b16 %v1938, %v1936
    %v1991 = vpack.c.b16 %v1941, %v1939
    %v1992 = vpack.c.b16 %v1942, %v1940
    %v1993 = vpack.c.b16 %v1945, %v1943
    %v1994 = vpack.c.b16 %v1946, %v1944
    %v1995 = vpack.c.b16 %v1949, %v1947
    %v1996 = vpack.c.b16 %v1950, %v1948
    %v1997 = vpack.c.b16 %v1953, %v1951
    %v1998 = vpack.c.b16 %v1954, %v1952
    %v1999 = vpack.c.b16 %v1957, %v1955
    %v2000 = vpack.c.b16 %v1958, %v1956
    %v2001 = vpack.c.b16 %v1961, %v1959
    %v2002 = vpack.c.b16 %v1962, %v1960
    %v2003 = vpack.c.b16 %v1965, %v1963
    %v2004 = vpack.c.b16 %v1966, %v1964
    %v2005 = vpack.c.b16 %v1969, %v1967
    %v2006 = vpack.c.b16 %v1970, %v1968
    %v2007 = vpack.c.b16 %v1973, %v1971
    %v2008 = vpack.c.b16 %v1974, %v1972
    %v2009 = vpack.c.b16 %v1977, %v1975
    %v2010 = vpack.c.b16 %v1978, %v1976
    %2043 = vmatprep.subr.bf16.mxu0 %v1994
    %2044 = vmatpush1.bf16.msra.mxu0 %v1993
    %2045 = vmatprep.subr.bf16.mxu0 %v1992
    %2046 = vmatpush1.bf16.msra.mxu0 %v1991
    %2047 = vmatprep.subr.bf16.mxu0 %v1990
    %2048 = vmatpush1.bf16.msra.mxu0 %v1989
    %2049 = vmatprep.subr.bf16.mxu0 %v1988
    %2050 = vmatpush1.bf16.msra.mxu0 %v1987
    %2051 = vmatprep.subr.bf16.mxu0 %v1986
    %2052 = vmatpush1.bf16.msra.mxu0 %v1985
    %2053 = vmatprep.subr.bf16.mxu0 %v1984
    %2054 = vmatpush1.bf16.msra.mxu0 %v1983
    %2055 = vmatprep.subr.bf16.mxu0 %v1982
    %2056 = vmatpush1.bf16.msra.mxu0 %v1981
    %2057 = vmatprep.subr.bf16.mxu0 %v1980
    %2058 = vmatpush1.bf16.msra.mxu0 %v1979
    %2059 = vmatprep.subr.bf16.mxu0 %v2010
    %2060 = vmatpush2.bf16.msra.mxu0 %v2009
    %2061 = vmatprep.subr.bf16.mxu0 %v2008
    %2062 = vmatpush2.bf16.msra.mxu0 %v2007
    %2063 = vmatprep.subr.bf16.mxu0 %v2006
    %2064 = vmatpush2.bf16.msra.mxu0 %v2005
    %2065 = vmatprep.subr.bf16.mxu0 %v2004
    %2066 = vmatpush2.bf16.msra.mxu0 %v2003
    %2067 = vmatprep.subr.bf16.mxu0 %v2002
    %2068 = vmatpush2.bf16.msra.mxu0 %v2001
    %2069 = vmatprep.subr.bf16.mxu0 %v2000
    %2070 = vmatpush2.bf16.msra.mxu0 %v1999
    %2071 = vmatprep.subr.bf16.mxu0 %v1998
    %2072 = vmatpush2.bf16.msra.mxu0 %v1997
    %2073 = vmatprep.subr.bf16.mxu0 %v1996
    %2074 = vmatpush2.bf16.msra.mxu0 %v1995
    %2075 = vmatprep.mubr.bf16.mxu0 %v1849
    %2076 = vmatmul.mubr.bf16.gmra.mxu0 %v1848
    %v2077 = vpop.f32.mrf.mxu0
    %v2078 = vadd.f32 0.0, %v2077
    %v2079 = vpop.f32.mrf.mxu0
    %v2080 = vadd.f32 0.0, %v2079
    %v2081 = vpop.f32.mrf.mxu0
    %v2082 = vpop.f32.mrf.mxu0
    %2083 = vdwg.mxu0
    %v2116 = vunpack.c.l.b16 %v1567
    %v2117 = vunpack.c.h.b16 %v1567
    %v2118 = vunpack.c.l.b16 %v1568
    %v2119 = vunpack.c.h.b16 %v1568
    %v2120 = vunpack.c.l.b16 %v1569
    %v2121 = vunpack.c.h.b16 %v1569
    %v2122 = vunpack.c.l.b16 %v1570
    %v2123 = vunpack.c.h.b16 %v1570
    %v2124 = vunpack.c.l.b16 %v1571
    %v2125 = vunpack.c.h.b16 %v1571
    %v2126 = vunpack.c.l.b16 %v1572
    %v2127 = vunpack.c.h.b16 %v1572
    %v2128 = vunpack.c.l.b16 %v1573
    %v2129 = vunpack.c.h.b16 %v1573
    %v2130 = vunpack.c.l.b16 %v1574
    %v2131 = vunpack.c.h.b16 %v1574
    %v2132 = vunpack.c.l.b16 %v1575
    %v2133 = vunpack.c.h.b16 %v1575
    %v2134 = vunpack.c.l.b16 %v1576
    %v2135 = vunpack.c.h.b16 %v1576
    %v2136 = vunpack.c.l.b16 %v1577
    %v2137 = vunpack.c.h.b16 %v1577
    %v2138 = vunpack.c.l.b16 %v1578
    %v2139 = vunpack.c.h.b16 %v1578
    %v2140 = vunpack.c.l.b16 %v1579
    %v2141 = vunpack.c.h.b16 %v1579
    %v2142 = vunpack.c.l.b16 %v1580
    %v2143 = vunpack.c.h.b16 %v1580
    %v2144 = vunpack.c.l.b16 %v1581
    %v2145 = vunpack.c.h.b16 %v1581
    %v2146 = vunpack.c.l.b16 %v1582
    %v2147 = vunpack.c.h.b16 %v1582
    %v2148 = vunpack.c.l.b16 %v1583
    %v2149 = vunpack.c.h.b16 %v1583
    %v2150 = vunpack.c.l.b16 %v1584
    %v2151 = vunpack.c.h.b16 %v1584
    %v2152 = vunpack.c.l.b16 %v1585
    %v2153 = vunpack.c.h.b16 %v1585
    %v2154 = vunpack.c.l.b16 %v1586
    %v2155 = vunpack.c.h.b16 %v1586
    %v2156 = vunpack.c.l.b16 %v1587
    %v2157 = vunpack.c.h.b16 %v1587
    %v2158 = vunpack.c.l.b16 %v1588
    %v2159 = vunpack.c.h.b16 %v1588
    %v2160 = vunpack.c.l.b16 %v1589
    %v2161 = vunpack.c.h.b16 %v1589
    %v2162 = vunpack.c.l.b16 %v1590
    %v2163 = vunpack.c.h.b16 %v1590
    %v2164 = vunpack.c.l.b16 %v1591
    %v2165 = vunpack.c.h.b16 %v1591
    %v2166 = vunpack.c.l.b16 %v1592
    %v2167 = vunpack.c.h.b16 %v1592
    %v2168 = vunpack.c.l.b16 %v1593
    %v2169 = vunpack.c.h.b16 %v1593
    %v2170 = vunpack.c.l.b16 %v1594
    %v2171 = vunpack.c.h.b16 %v1594
    %v2172 = vunpack.c.l.b16 %v1595
    %v2173 = vunpack.c.h.b16 %v1595
    %v2174 = vunpack.c.l.b16 %v1596
    %v2175 = vunpack.c.h.b16 %v1596
    %v2176 = vunpack.c.l.b16 %v1597
    %v2177 = vunpack.c.h.b16 %v1597
    %v2178 = vunpack.c.l.b16 %v1598
    %v2179 = vunpack.c.h.b16 %v1598
    %v2180 = vpack.c.b16 %v2118, %v2116
    %v2181 = vpack.c.b16 %v2119, %v2117
    %v2182 = vpack.c.b16 %v2122, %v2120
    %v2183 = vpack.c.b16 %v2123, %v2121
    %v2184 = vpack.c.b16 %v2126, %v2124
    %v2185 = vpack.c.b16 %v2127, %v2125
    %v2186 = vpack.c.b16 %v2130, %v2128
    %v2187 = vpack.c.b16 %v2131, %v2129
    %v2188 = vpack.c.b16 %v2134, %v2132
    %v2189 = vpack.c.b16 %v2135, %v2133
    %v2190 = vpack.c.b16 %v2138, %v2136
    %v2191 = vpack.c.b16 %v2139, %v2137
    %v2192 = vpack.c.b16 %v2142, %v2140
    %v2193 = vpack.c.b16 %v2143, %v2141
    %v2194 = vpack.c.b16 %v2146, %v2144
    %v2195 = vpack.c.b16 %v2147, %v2145
    %v2196 = vpack.c.b16 %v2150, %v2148
    %v2197 = vpack.c.b16 %v2151, %v2149
    %v2198 = vpack.c.b16 %v2154, %v2152
    %v2199 = vpack.c.b16 %v2155, %v2153
    %v2200 = vpack.c.b16 %v2158, %v2156
    %v2201 = vpack.c.b16 %v2159, %v2157
    %v2202 = vpack.c.b16 %v2162, %v2160
    %v2203 = vpack.c.b16 %v2163, %v2161
    %v2204 = vpack.c.b16 %v2166, %v2164
    %v2205 = vpack.c.b16 %v2167, %v2165
    %v2206 = vpack.c.b16 %v2170, %v2168
    %v2207 = vpack.c.b16 %v2171, %v2169
    %v2208 = vpack.c.b16 %v2174, %v2172
    %v2209 = vpack.c.b16 %v2175, %v2173
    %v2210 = vpack.c.b16 %v2178, %v2176
    %v2211 = vpack.c.b16 %v2179, %v2177
    %2244 = vmatprep.subr.bf16.mxu0 %v2195
    %2245 = vmatpush1.bf16.msra.mxu0 %v2194
    %2246 = vmatprep.subr.bf16.mxu0 %v2193
    %2247 = vmatpush1.bf16.msra.mxu0 %v2192
    %2248 = vmatprep.subr.bf16.mxu0 %v2191
    %2249 = vmatpush1.bf16.msra.mxu0 %v2190
    %2250 = vmatprep.subr.bf16.mxu0 %v2189
    %2251 = vmatpush1.bf16.msra.mxu0 %v2188
    %2252 = vmatprep.subr.bf16.mxu0 %v2187
    %2253 = vmatpush1.bf16.msra.mxu0 %v2186
    %2254 = vmatprep.subr.bf16.mxu0 %v2185
    %2255 = vmatpush1.bf16.msra.mxu0 %v2184
    %2256 = vmatprep.subr.bf16.mxu0 %v2183
    %2257 = vmatpush1.bf16.msra.mxu0 %v2182
    %2258 = vmatprep.subr.bf16.mxu0 %v2181
    %2259 = vmatpush1.bf16.msra.mxu0 %v2180
    %2260 = vmatprep.subr.bf16.mxu0 %v2211
    %2261 = vmatpush2.bf16.msra.mxu0 %v2210
    %2262 = vmatprep.subr.bf16.mxu0 %v2209
    %2263 = vmatpush2.bf16.msra.mxu0 %v2208
    %2264 = vmatprep.subr.bf16.mxu0 %v2207
    %2265 = vmatpush2.bf16.msra.mxu0 %v2206
    %2266 = vmatprep.subr.bf16.mxu0 %v2205
    %2267 = vmatpush2.bf16.msra.mxu0 %v2204
    %2268 = vmatprep.subr.bf16.mxu0 %v2203
    %2269 = vmatpush2.bf16.msra.mxu0 %v2202
    %2270 = vmatprep.subr.bf16.mxu0 %v2201
    %2271 = vmatpush2.bf16.msra.mxu0 %v2200
    %2272 = vmatprep.subr.bf16.mxu0 %v2199
    %2273 = vmatpush2.bf16.msra.mxu0 %v2198
    %2274 = vmatprep.subr.bf16.mxu0 %v2197
    %2275 = vmatpush2.bf16.msra.mxu0 %v2196
    %2276 = vmatprep.mubr.bf16.mxu0 %v1565
    %2277 = vmatmul.mubr.bf16.gmra.mxu0 %v1564
    %v2278 = vpop.f32.mrf.mxu0
    %v2279 = vadd.f32 %v2078, %v2278
    %v2280 = vpop.f32.mrf.mxu0
    %v2281 = vadd.f32 %v2080, %v2280
    %v2282 = vpop.f32.mrf.mxu0
    %v2283 = vpop.f32.mrf.mxu0
    %2284 = vdwg.mxu0
    %s2285 = scalar_lea.vmem [#allocation2], 1792
    %v2286 = vld [vmem:[%s2285] sm:$0xff]
    %v2287 = vld [vmem:[%s2285 + $0x8] sm:$0xff]
    %v2288 = vld [vmem:[%s2285 + $0x10] sm:$0xff]
    %v2289 = vld [vmem:[%s2285 + $0x18] sm:$0xff]
    %v2290 = vld [vmem:[%s2285 + $0x20] sm:$0xff]
    %v2291 = vld [vmem:[%s2285 + $0x28] sm:$0xff]
    %v2292 = vld [vmem:[%s2285 + $0x30] sm:$0xff]
    %v2293 = vld [vmem:[%s2285 + $0x38] sm:$0xff]
    %v2294 = vld [vmem:[%s2285 + $0x40] sm:$0xff]
    %v2295 = vld [vmem:[%s2285 + $0x48] sm:$0xff]
    %v2296 = vld [vmem:[%s2285 + $0x50] sm:$0xff]
    %v2297 = vld [vmem:[%s2285 + $0x58] sm:$0xff]
    %v2298 = vld [vmem:[%s2285 + $0x60] sm:$0xff]
    %v2299 = vld [vmem:[%s2285 + $0x68] sm:$0xff]
    %v2300 = vld [vmem:[%s2285 + $0x70] sm:$0xff]
    %v2301 = vld [vmem:[%s2285 + $0x78] sm:$0xff]
    %v2302 = vld [vmem:[%s2285 + $0x80] sm:$0xff]
    %v2303 = vld [vmem:[%s2285 + $0x88] sm:$0xff]
    %v2304 = vld [vmem:[%s2285 + $0x90] sm:$0xff]
    %v2305 = vld [vmem:[%s2285 + $0x98] sm:$0xff]
    %v2306 = vld [vmem:[%s2285 + $0xa0] sm:$0xff]
    %v2307 = vld [vmem:[%s2285 + $0xa8] sm:$0xff]
    %v2308 = vld [vmem:[%s2285 + $0xb0] sm:$0xff]
    %v2309 = vld [vmem:[%s2285 + $0xb8] sm:$0xff]
    %v2310 = vld [vmem:[%s2285 + $0xc0] sm:$0xff]
    %v2311 = vld [vmem:[%s2285 + $0xc8] sm:$0xff]
    %v2312 = vld [vmem:[%s2285 + $0xd0] sm:$0xff]
    %v2313 = vld [vmem:[%s2285 + $0xd8] sm:$0xff]
    %v2314 = vld [vmem:[%s2285 + $0xe0] sm:$0xff]
    %v2315 = vld [vmem:[%s2285 + $0xe8] sm:$0xff]
    %v2316 = vld [vmem:[%s2285 + $0xf0] sm:$0xff]
    %v2317 = vld [vmem:[%s2285 + $0xf8] sm:$0xff]
    %s2318 = scalar_lea.vmem [#allocation4], 7
    %v2319 = vld [vmem:[%s2318] ss:$8 sm:$0x3]
    %v2321 = vlaneseq
    %v2322 = vshrl.u32 %v2321, 7
    %v2323 = vsub.s32 0, %v2322
    %v2324 = vrot.slane %v2319, %v2323
    %v2325 = vlaneseq
    %v2326 = vshrl.u32 %v2325, 7
    %v2327 = vsub.s32 1, %v2326
    %v2328 = vrot.slane %v2319, %v2327
    %v2363 = vunpack.c.l.b16 %v2286
    %v2364 = vunpack.c.h.b16 %v2286
    %v2365 = vunpack.c.l.b16 %v2287
    %v2366 = vunpack.c.h.b16 %v2287
    %v2367 = vunpack.c.l.b16 %v2288
    %v2368 = vunpack.c.h.b16 %v2288
    %v2369 = vunpack.c.l.b16 %v2289
    %v2370 = vunpack.c.h.b16 %v2289
    %v2371 = vunpack.c.l.b16 %v2290
    %v2372 = vunpack.c.h.b16 %v2290
    %v2373 = vunpack.c.l.b16 %v2291
    %v2374 = vunpack.c.h.b16 %v2291
    %v2375 = vunpack.c.l.b16 %v2292
    %v2376 = vunpack.c.h.b16 %v2292
    %v2377 = vunpack.c.l.b16 %v2293
    %v2378 = vunpack.c.h.b16 %v2293
    %v2379 = vunpack.c.l.b16 %v2294
    %v2380 = vunpack.c.h.b16 %v2294
    %v2381 = vunpack.c.l.b16 %v2295
    %v2382 = vunpack.c.h.b16 %v2295
    %v2383 = vunpack.c.l.b16 %v2296
    %v2384 = vunpack.c.h.b16 %v2296
    %v2385 = vunpack.c.l.b16 %v2297
    %v2386 = vunpack.c.h.b16 %v2297
    %v2387 = vunpack.c.l.b16 %v2298
    %v2388 = vunpack.c.h.b16 %v2298
    %v2389 = vunpack.c.l.b16 %v2299
    %v2390 = vunpack.c.h.b16 %v2299
    %v2391 = vunpack.c.l.b16 %v2300
    %v2392 = vunpack.c.h.b16 %v2300
    %v2393 = vunpack.c.l.b16 %v2301
    %v2394 = vunpack.c.h.b16 %v2301
    %v2395 = vunpack.c.l.b16 %v2302
    %v2396 = vunpack.c.h.b16 %v2302
    %v2397 = vunpack.c.l.b16 %v2303
    %v2398 = vunpack.c.h.b16 %v2303
    %v2399 = vunpack.c.l.b16 %v2304
    %v2400 = vunpack.c.h.b16 %v2304
    %v2401 = vunpack.c.l.b16 %v2305
    %v2402 = vunpack.c.h.b16 %v2305
    %v2403 = vunpack.c.l.b16 %v2306
    %v2404 = vunpack.c.h.b16 %v2306
    %v2405 = vunpack.c.l.b16 %v2307
    %v2406 = vunpack.c.h.b16 %v2307
    %v2407 = vunpack.c.l.b16 %v2308
    %v2408 = vunpack.c.h.b16 %v2308
    %v2409 = vunpack.c.l.b16 %v2309
    %v2410 = vunpack.c.h.b16 %v2309
    %v2411 = vunpack.c.l.b16 %v2310
    %v2412 = vunpack.c.h.b16 %v2310
    %v2413 = vunpack.c.l.b16 %v2311
    %v2414 = vunpack.c.h.b16 %v2311
    %v2415 = vunpack.c.l.b16 %v2312
    %v2416 = vunpack.c.h.b16 %v2312
    %v2417 = vunpack.c.l.b16 %v2313
    %v2418 = vunpack.c.h.b16 %v2313
    %v2419 = vunpack.c.l.b16 %v2314
    %v2420 = vunpack.c.h.b16 %v2314
    %v2421 = vunpack.c.l.b16 %v2315
    %v2422 = vunpack.c.h.b16 %v2315
    %v2423 = vunpack.c.l.b16 %v2316
    %v2424 = vunpack.c.h.b16 %v2316
    %v2425 = vunpack.c.l.b16 %v2317
    %v2426 = vunpack.c.h.b16 %v2317
    %v2427 = vpack.c.b16 %v2365, %v2363
    %v2428 = vpack.c.b16 %v2366, %v2364
    %v2429 = vpack.c.b16 %v2369, %v2367
    %v2430 = vpack.c.b16 %v2370, %v2368
    %v2431 = vpack.c.b16 %v2373, %v2371
    %v2432 = vpack.c.b16 %v2374, %v2372
    %v2433 = vpack.c.b16 %v2377, %v2375
    %v2434 = vpack.c.b16 %v2378, %v2376
    %v2435 = vpack.c.b16 %v2381, %v2379
    %v2436 = vpack.c.b16 %v2382, %v2380
    %v2437 = vpack.c.b16 %v2385, %v2383
    %v2438 = vpack.c.b16 %v2386, %v2384
    %v2439 = vpack.c.b16 %v2389, %v2387
    %v2440 = vpack.c.b16 %v2390, %v2388
    %v2441 = vpack.c.b16 %v2393, %v2391
    %v2442 = vpack.c.b16 %v2394, %v2392
    %v2443 = vpack.c.b16 %v2397, %v2395
    %v2444 = vpack.c.b16 %v2398, %v2396
    %v2445 = vpack.c.b16 %v2401, %v2399
    %v2446 = vpack.c.b16 %v2402, %v2400
    %v2447 = vpack.c.b16 %v2405, %v2403
    %v2448 = vpack.c.b16 %v2406, %v2404
    %v2449 = vpack.c.b16 %v2409, %v2407
    %v2450 = vpack.c.b16 %v2410, %v2408
    %v2451 = vpack.c.b16 %v2413, %v2411
    %v2452 = vpack.c.b16 %v2414, %v2412
    %v2453 = vpack.c.b16 %v2417, %v2415
    %v2454 = vpack.c.b16 %v2418, %v2416
    %v2455 = vpack.c.b16 %v2421, %v2419
    %v2456 = vpack.c.b16 %v2422, %v2420
    %v2457 = vpack.c.b16 %v2425, %v2423
    %v2458 = vpack.c.b16 %v2426, %v2424
    %2491 = vmatprep.subr.bf16.mxu0 %v2442
    %2492 = vmatpush1.bf16.msra.mxu0 %v2441
    %2493 = vmatprep.subr.bf16.mxu0 %v2440
    %2494 = vmatpush1.bf16.msra.mxu0 %v2439
    %2495 = vmatprep.subr.bf16.mxu0 %v2438
    %2496 = vmatpush1.bf16.msra.mxu0 %v2437
    %2497 = vmatprep.subr.bf16.mxu0 %v2436
    %2498 = vmatpush1.bf16.msra.mxu0 %v2435
    %2499 = vmatprep.subr.bf16.mxu0 %v2434
    %2500 = vmatpush1.bf16.msra.mxu0 %v2433
    %2501 = vmatprep.subr.bf16.mxu0 %v2432
    %2502 = vmatpush1.bf16.msra.mxu0 %v2431
    %2503 = vmatprep.subr.bf16.mxu0 %v2430
    %2504 = vmatpush1.bf16.msra.mxu0 %v2429
    %2505 = vmatprep.subr.bf16.mxu0 %v2428
    %2506 = vmatpush1.bf16.msra.mxu0 %v2427
    %2507 = vmatprep.subr.bf16.mxu0 %v2458
    %2508 = vmatpush2.bf16.msra.mxu0 %v2457
    %2509 = vmatprep.subr.bf16.mxu0 %v2456
    %2510 = vmatpush2.bf16.msra.mxu0 %v2455
    %2511 = vmatprep.subr.bf16.mxu0 %v2454
    %2512 = vmatpush2.bf16.msra.mxu0 %v2453
    %2513 = vmatprep.subr.bf16.mxu0 %v2452
    %2514 = vmatpush2.bf16.msra.mxu0 %v2451
    %2515 = vmatprep.subr.bf16.mxu0 %v2450
    %2516 = vmatpush2.bf16.msra.mxu0 %v2449
    %2517 = vmatprep.subr.bf16.mxu0 %v2448
    %2518 = vmatpush2.bf16.msra.mxu0 %v2447
    %2519 = vmatprep.subr.bf16.mxu0 %v2446
    %2520 = vmatpush2.bf16.msra.mxu0 %v2445
    %2521 = vmatprep.subr.bf16.mxu0 %v2444
    %2522 = vmatpush2.bf16.msra.mxu0 %v2443
    %2523 = vmatprep.mubr.bf16.mxu0 %v1314
    %2524 = vmatmul.mubr.bf16.gmra.mxu0 %v1313
    %v2525 = vpop.f32.mrf.mxu0
    %v2526 = vadd.f32 %v2324, %v2525
    %v2527 = vpop.f32.mrf.mxu0
    %v2528 = vadd.f32 %v2328, %v2527
    %v2529 = vpop.f32.mrf.mxu0
    %v2530 = vpop.f32.mrf.mxu0
    %2531 = vdwg.mxu0
    %v2532 = vmax.f32 %v2526, 0.0
    %v2533 = vmax.f32 %v2528, 0.0
    %v2534 = vpack.c.bf16 %v2532, %v2532
    %v2535 = vpack.c.bf16 %v2533, %v2533
    %s2536 = scalar_lea.vmem [#allocation2], 5888
    %v2537 = vld [vmem:[%s2536] sm:$0xff]
    %v2538 = vld [vmem:[%s2536 + $0x8] sm:$0xff]
    %v2539 = vld [vmem:[%s2536 + $0x10] sm:$0xff]
    %v2540 = vld [vmem:[%s2536 + $0x18] sm:$0xff]
    %v2541 = vld [vmem:[%s2536 + $0x20] sm:$0xff]
    %v2542 = vld [vmem:[%s2536 + $0x28] sm:$0xff]
    %v2543 = vld [vmem:[%s2536 + $0x30] sm:$0xff]
    %v2544 = vld [vmem:[%s2536 + $0x38] sm:$0xff]
    %v2545 = vld [vmem:[%s2536 + $0x40] sm:$0xff]
    %v2546 = vld [vmem:[%s2536 + $0x48] sm:$0xff]
    %v2547 = vld [vmem:[%s2536 + $0x50] sm:$0xff]
    %v2548 = vld [vmem:[%s2536 + $0x58] sm:$0xff]
    %v2549 = vld [vmem:[%s2536 + $0x60] sm:$0xff]
    %v2550 = vld [vmem:[%s2536 + $0x68] sm:$0xff]
    %v2551 = vld [vmem:[%s2536 + $0x70] sm:$0xff]
    %v2552 = vld [vmem:[%s2536 + $0x78] sm:$0xff]
    %v2553 = vld [vmem:[%s2536 + $0x80] sm:$0xff]
    %v2554 = vld [vmem:[%s2536 + $0x88] sm:$0xff]
    %v2555 = vld [vmem:[%s2536 + $0x90] sm:$0xff]
    %v2556 = vld [vmem:[%s2536 + $0x98] sm:$0xff]
    %v2557 = vld [vmem:[%s2536 + $0xa0] sm:$0xff]
    %v2558 = vld [vmem:[%s2536 + $0xa8] sm:$0xff]
    %v2559 = vld [vmem:[%s2536 + $0xb0] sm:$0xff]
    %v2560 = vld [vmem:[%s2536 + $0xb8] sm:$0xff]
    %v2561 = vld [vmem:[%s2536 + $0xc0] sm:$0xff]
    %v2562 = vld [vmem:[%s2536 + $0xc8] sm:$0xff]
    %v2563 = vld [vmem:[%s2536 + $0xd0] sm:$0xff]
    %v2564 = vld [vmem:[%s2536 + $0xd8] sm:$0xff]
    %v2565 = vld [vmem:[%s2536 + $0xe0] sm:$0xff]
    %v2566 = vld [vmem:[%s2536 + $0xe8] sm:$0xff]
    %v2567 = vld [vmem:[%s2536 + $0xf0] sm:$0xff]
    %v2568 = vld [vmem:[%s2536 + $0xf8] sm:$0xff]
    %v2601 = vunpack.c.l.b16 %v2537
    %v2602 = vunpack.c.h.b16 %v2537
    %v2603 = vunpack.c.l.b16 %v2538
    %v2604 = vunpack.c.h.b16 %v2538
    %v2605 = vunpack.c.l.b16 %v2539
    %v2606 = vunpack.c.h.b16 %v2539
    %v2607 = vunpack.c.l.b16 %v2540
    %v2608 = vunpack.c.h.b16 %v2540
    %v2609 = vunpack.c.l.b16 %v2541
    %v2610 = vunpack.c.h.b16 %v2541
    %v2611 = vunpack.c.l.b16 %v2542
    %v2612 = vunpack.c.h.b16 %v2542
    %v2613 = vunpack.c.l.b16 %v2543
    %v2614 = vunpack.c.h.b16 %v2543
    %v2615 = vunpack.c.l.b16 %v2544
    %v2616 = vunpack.c.h.b16 %v2544
    %v2617 = vunpack.c.l.b16 %v2545
    %v2618 = vunpack.c.h.b16 %v2545
    %v2619 = vunpack.c.l.b16 %v2546
    %v2620 = vunpack.c.h.b16 %v2546
    %v2621 = vunpack.c.l.b16 %v2547
    %v2622 = vunpack.c.h.b16 %v2547
    %v2623 = vunpack.c.l.b16 %v2548
    %v2624 = vunpack.c.h.b16 %v2548
    %v2625 = vunpack.c.l.b16 %v2549
    %v2626 = vunpack.c.h.b16 %v2549
    %v2627 = vunpack.c.l.b16 %v2550
    %v2628 = vunpack.c.h.b16 %v2550
    %v2629 = vunpack.c.l.b16 %v2551
    %v2630 = vunpack.c.h.b16 %v2551
    %v2631 = vunpack.c.l.b16 %v2552
    %v2632 = vunpack.c.h.b16 %v2552
    %v2633 = vunpack.c.l.b16 %v2553
    %v2634 = vunpack.c.h.b16 %v2553
    %v2635 = vunpack.c.l.b16 %v2554
    %v2636 = vunpack.c.h.b16 %v2554
    %v2637 = vunpack.c.l.b16 %v2555
    %v2638 = vunpack.c.h.b16 %v2555
    %v2639 = vunpack.c.l.b16 %v2556
    %v2640 = vunpack.c.h.b16 %v2556
    %v2641 = vunpack.c.l.b16 %v2557
    %v2642 = vunpack.c.h.b16 %v2557
    %v2643 = vunpack.c.l.b16 %v2558
    %v2644 = vunpack.c.h.b16 %v2558
    %v2645 = vunpack.c.l.b16 %v2559
    %v2646 = vunpack.c.h.b16 %v2559
    %v2647 = vunpack.c.l.b16 %v2560
    %v2648 = vunpack.c.h.b16 %v2560
    %v2649 = vunpack.c.l.b16 %v2561
    %v2650 = vunpack.c.h.b16 %v2561
    %v2651 = vunpack.c.l.b16 %v2562
    %v2652 = vunpack.c.h.b16 %v2562
    %v2653 = vunpack.c.l.b16 %v2563
    %v2654 = vunpack.c.h.b16 %v2563
    %v2655 = vunpack.c.l.b16 %v2564
    %v2656 = vunpack.c.h.b16 %v2564
    %v2657 = vunpack.c.l.b16 %v2565
    %v2658 = vunpack.c.h.b16 %v2565
    %v2659 = vunpack.c.l.b16 %v2566
    %v2660 = vunpack.c.h.b16 %v2566
    %v2661 = vunpack.c.l.b16 %v2567
    %v2662 = vunpack.c.h.b16 %v2567
    %v2663 = vunpack.c.l.b16 %v2568
    %v2664 = vunpack.c.h.b16 %v2568
    %v2665 = vpack.c.b16 %v2603, %v2601
    %v2666 = vpack.c.b16 %v2604, %v2602
    %v2667 = vpack.c.b16 %v2607, %v2605
    %v2668 = vpack.c.b16 %v2608, %v2606
    %v2669 = vpack.c.b16 %v2611, %v2609
    %v2670 = vpack.c.b16 %v2612, %v2610
    %v2671 = vpack.c.b16 %v2615, %v2613
    %v2672 = vpack.c.b16 %v2616, %v2614
    %v2673 = vpack.c.b16 %v2619, %v2617
    %v2674 = vpack.c.b16 %v2620, %v2618
    %v2675 = vpack.c.b16 %v2623, %v2621
    %v2676 = vpack.c.b16 %v2624, %v2622
    %v2677 = vpack.c.b16 %v2627, %v2625
    %v2678 = vpack.c.b16 %v2628, %v2626
    %v2679 = vpack.c.b16 %v2631, %v2629
    %v2680 = vpack.c.b16 %v2632, %v2630
    %v2681 = vpack.c.b16 %v2635, %v2633
    %v2682 = vpack.c.b16 %v2636, %v2634
    %v2683 = vpack.c.b16 %v2639, %v2637
    %v2684 = vpack.c.b16 %v2640, %v2638
    %v2685 = vpack.c.b16 %v2643, %v2641
    %v2686 = vpack.c.b16 %v2644, %v2642
    %v2687 = vpack.c.b16 %v2647, %v2645
    %v2688 = vpack.c.b16 %v2648, %v2646
    %v2689 = vpack.c.b16 %v2651, %v2649
    %v2690 = vpack.c.b16 %v2652, %v2650
    %v2691 = vpack.c.b16 %v2655, %v2653
    %v2692 = vpack.c.b16 %v2656, %v2654
    %v2693 = vpack.c.b16 %v2659, %v2657
    %v2694 = vpack.c.b16 %v2660, %v2658
    %v2695 = vpack.c.b16 %v2663, %v2661
    %v2696 = vpack.c.b16 %v2664, %v2662
    %2729 = vmatprep.subr.bf16.mxu0 %v2680
    %2730 = vmatpush1.bf16.msra.mxu0 %v2679
    %2731 = vmatprep.subr.bf16.mxu0 %v2678
    %2732 = vmatpush1.bf16.msra.mxu0 %v2677
    %2733 = vmatprep.subr.bf16.mxu0 %v2676
    %2734 = vmatpush1.bf16.msra.mxu0 %v2675
    %2735 = vmatprep.subr.bf16.mxu0 %v2674
    %2736 = vmatpush1.bf16.msra.mxu0 %v2673
    %2737 = vmatprep.subr.bf16.mxu0 %v2672
    %2738 = vmatpush1.bf16.msra.mxu0 %v2671
    %2739 = vmatprep.subr.bf16.mxu0 %v2670
    %2740 = vmatpush1.bf16.msra.mxu0 %v2669
    %2741 = vmatprep.subr.bf16.mxu0 %v2668
    %2742 = vmatpush1.bf16.msra.mxu0 %v2667
    %2743 = vmatprep.subr.bf16.mxu0 %v2666
    %2744 = vmatpush1.bf16.msra.mxu0 %v2665
    %2745 = vmatprep.subr.bf16.mxu0 %v2696
    %2746 = vmatpush2.bf16.msra.mxu0 %v2695
    %2747 = vmatprep.subr.bf16.mxu0 %v2694
    %2748 = vmatpush2.bf16.msra.mxu0 %v2693
    %2749 = vmatprep.subr.bf16.mxu0 %v2692
    %2750 = vmatpush2.bf16.msra.mxu0 %v2691
    %2751 = vmatprep.subr.bf16.mxu0 %v2690
    %2752 = vmatpush2.bf16.msra.mxu0 %v2689
    %2753 = vmatprep.subr.bf16.mxu0 %v2688
    %2754 = vmatpush2.bf16.msra.mxu0 %v2687
    %2755 = vmatprep.subr.bf16.mxu0 %v2686
    %2756 = vmatpush2.bf16.msra.mxu0 %v2685
    %2757 = vmatprep.subr.bf16.mxu0 %v2684
    %2758 = vmatpush2.bf16.msra.mxu0 %v2683
    %2759 = vmatprep.subr.bf16.mxu0 %v2682
    %2760 = vmatpush2.bf16.msra.mxu0 %v2681
    %2761 = vmatprep.mubr.bf16.mxu0 %v2535
    %2762 = vmatmul.mubr.bf16.gmra.mxu0 %v2534
    %v2763 = vpop.f32.mrf.mxu0
    %v2764 = vadd.f32 0.0, %v2763
    %v2765 = vpop.f32.mrf.mxu0
    %v2766 = vadd.f32 0.0, %v2765
    %v2767 = vpop.f32.mrf.mxu0
    %v2768 = vpop.f32.mrf.mxu0
    %2769 = vdwg.mxu0
    %v2770 = vadd.f32 %v2279, %v2764
    %v2771 = vadd.f32 %v2281, %v2766
    %s2772 = scalar_lea.vmem [#allocation2], 2048
    %v2773 = vld [vmem:[%s2772] sm:$0xff]
    %v2774 = vld [vmem:[%s2772 + $0x8] sm:$0xff]
    %v2775 = vld [vmem:[%s2772 + $0x10] sm:$0xff]
    %v2776 = vld [vmem:[%s2772 + $0x18] sm:$0xff]
    %v2777 = vld [vmem:[%s2772 + $0x20] sm:$0xff]
    %v2778 = vld [vmem:[%s2772 + $0x28] sm:$0xff]
    %v2779 = vld [vmem:[%s2772 + $0x30] sm:$0xff]
    %v2780 = vld [vmem:[%s2772 + $0x38] sm:$0xff]
    %v2781 = vld [vmem:[%s2772 + $0x40] sm:$0xff]
    %v2782 = vld [vmem:[%s2772 + $0x48] sm:$0xff]
    %v2783 = vld [vmem:[%s2772 + $0x50] sm:$0xff]
    %v2784 = vld [vmem:[%s2772 + $0x58] sm:$0xff]
    %v2785 = vld [vmem:[%s2772 + $0x60] sm:$0xff]
    %v2786 = vld [vmem:[%s2772 + $0x68] sm:$0xff]
    %v2787 = vld [vmem:[%s2772 + $0x70] sm:$0xff]
    %v2788 = vld [vmem:[%s2772 + $0x78] sm:$0xff]
    %v2789 = vld [vmem:[%s2772 + $0x80] sm:$0xff]
    %v2790 = vld [vmem:[%s2772 + $0x88] sm:$0xff]
    %v2791 = vld [vmem:[%s2772 + $0x90] sm:$0xff]
    %v2792 = vld [vmem:[%s2772 + $0x98] sm:$0xff]
    %v2793 = vld [vmem:[%s2772 + $0xa0] sm:$0xff]
    %v2794 = vld [vmem:[%s2772 + $0xa8] sm:$0xff]
    %v2795 = vld [vmem:[%s2772 + $0xb0] sm:$0xff]
    %v2796 = vld [vmem:[%s2772 + $0xb8] sm:$0xff]
    %v2797 = vld [vmem:[%s2772 + $0xc0] sm:$0xff]
    %v2798 = vld [vmem:[%s2772 + $0xc8] sm:$0xff]
    %v2799 = vld [vmem:[%s2772 + $0xd0] sm:$0xff]
    %v2800 = vld [vmem:[%s2772 + $0xd8] sm:$0xff]
    %v2801 = vld [vmem:[%s2772 + $0xe0] sm:$0xff]
    %v2802 = vld [vmem:[%s2772 + $0xe8] sm:$0xff]
    %v2803 = vld [vmem:[%s2772 + $0xf0] sm:$0xff]
    %v2804 = vld [vmem:[%s2772 + $0xf8] sm:$0xff]
    %s2805 = scalar_lea.vmem [#allocation4], 16
    %v2806 = vld [vmem:[%s2805] ss:$8 sm:$0x3]
    %v2808 = vlaneseq
    %v2809 = vshrl.u32 %v2808, 7
    %v2810 = vsub.s32 0, %v2809
    %v2811 = vrot.slane %v2806, %v2810
    %v2812 = vlaneseq
    %v2813 = vshrl.u32 %v2812, 7
    %v2814 = vsub.s32 1, %v2813
    %v2815 = vrot.slane %v2806, %v2814
    %v2850 = vunpack.c.l.b16 %v2773
    %v2851 = vunpack.c.h.b16 %v2773
    %v2852 = vunpack.c.l.b16 %v2774
    %v2853 = vunpack.c.h.b16 %v2774
    %v2854 = vunpack.c.l.b16 %v2775
    %v2855 = vunpack.c.h.b16 %v2775
    %v2856 = vunpack.c.l.b16 %v2776
    %v2857 = vunpack.c.h.b16 %v2776
    %v2858 = vunpack.c.l.b16 %v2777
    %v2859 = vunpack.c.h.b16 %v2777
    %v2860 = vunpack.c.l.b16 %v2778
    %v2861 = vunpack.c.h.b16 %v2778
    %v2862 = vunpack.c.l.b16 %v2779
    %v2863 = vunpack.c.h.b16 %v2779
    %v2864 = vunpack.c.l.b16 %v2780
    %v2865 = vunpack.c.h.b16 %v2780
    %v2866 = vunpack.c.l.b16 %v2781
    %v2867 = vunpack.c.h.b16 %v2781
    %v2868 = vunpack.c.l.b16 %v2782
    %v2869 = vunpack.c.h.b16 %v2782
    %v2870 = vunpack.c.l.b16 %v2783
    %v2871 = vunpack.c.h.b16 %v2783
    %v2872 = vunpack.c.l.b16 %v2784
    %v2873 = vunpack.c.h.b16 %v2784
    %v2874 = vunpack.c.l.b16 %v2785
    %v2875 = vunpack.c.h.b16 %v2785
    %v2876 = vunpack.c.l.b16 %v2786
    %v2877 = vunpack.c.h.b16 %v2786
    %v2878 = vunpack.c.l.b16 %v2787
    %v2879 = vunpack.c.h.b16 %v2787
    %v2880 = vunpack.c.l.b16 %v2788
    %v2881 = vunpack.c.h.b16 %v2788
    %v2882 = vunpack.c.l.b16 %v2789
    %v2883 = vunpack.c.h.b16 %v2789
    %v2884 = vunpack.c.l.b16 %v2790
    %v2885 = vunpack.c.h.b16 %v2790
    %v2886 = vunpack.c.l.b16 %v2791
    %v2887 = vunpack.c.h.b16 %v2791
    %v2888 = vunpack.c.l.b16 %v2792
    %v2889 = vunpack.c.h.b16 %v2792
    %v2890 = vunpack.c.l.b16 %v2793
    %v2891 = vunpack.c.h.b16 %v2793
    %v2892 = vunpack.c.l.b16 %v2794
    %v2893 = vunpack.c.h.b16 %v2794
    %v2894 = vunpack.c.l.b16 %v2795
    %v2895 = vunpack.c.h.b16 %v2795
    %v2896 = vunpack.c.l.b16 %v2796
    %v2897 = vunpack.c.h.b16 %v2796
    %v2898 = vunpack.c.l.b16 %v2797
    %v2899 = vunpack.c.h.b16 %v2797
    %v2900 = vunpack.c.l.b16 %v2798
    %v2901 = vunpack.c.h.b16 %v2798
    %v2902 = vunpack.c.l.b16 %v2799
    %v2903 = vunpack.c.h.b16 %v2799
    %v2904 = vunpack.c.l.b16 %v2800
    %v2905 = vunpack.c.h.b16 %v2800
    %v2906 = vunpack.c.l.b16 %v2801
    %v2907 = vunpack.c.h.b16 %v2801
    %v2908 = vunpack.c.l.b16 %v2802
    %v2909 = vunpack.c.h.b16 %v2802
    %v2910 = vunpack.c.l.b16 %v2803
    %v2911 = vunpack.c.h.b16 %v2803
    %v2912 = vunpack.c.l.b16 %v2804
    %v2913 = vunpack.c.h.b16 %v2804
    %v2914 = vpack.c.b16 %v2852, %v2850
    %v2915 = vpack.c.b16 %v2853, %v2851
    %v2916 = vpack.c.b16 %v2856, %v2854
    %v2917 = vpack.c.b16 %v2857, %v2855
    %v2918 = vpack.c.b16 %v2860, %v2858
    %v2919 = vpack.c.b16 %v2861, %v2859
    %v2920 = vpack.c.b16 %v2864, %v2862
    %v2921 = vpack.c.b16 %v2865, %v2863
    %v2922 = vpack.c.b16 %v2868, %v2866
    %v2923 = vpack.c.b16 %v2869, %v2867
    %v2924 = vpack.c.b16 %v2872, %v2870
    %v2925 = vpack.c.b16 %v2873, %v2871
    %v2926 = vpack.c.b16 %v2876, %v2874
    %v2927 = vpack.c.b16 %v2877, %v2875
    %v2928 = vpack.c.b16 %v2880, %v2878
    %v2929 = vpack.c.b16 %v2881, %v2879
    %v2930 = vpack.c.b16 %v2884, %v2882
    %v2931 = vpack.c.b16 %v2885, %v2883
    %v2932 = vpack.c.b16 %v2888, %v2886
    %v2933 = vpack.c.b16 %v2889, %v2887
    %v2934 = vpack.c.b16 %v2892, %v2890
    %v2935 = vpack.c.b16 %v2893, %v2891
    %v2936 = vpack.c.b16 %v2896, %v2894
    %v2937 = vpack.c.b16 %v2897, %v2895
    %v2938 = vpack.c.b16 %v2900, %v2898
    %v2939 = vpack.c.b16 %v2901, %v2899
    %v2940 = vpack.c.b16 %v2904, %v2902
    %v2941 = vpack.c.b16 %v2905, %v2903
    %v2942 = vpack.c.b16 %v2908, %v2906
    %v2943 = vpack.c.b16 %v2909, %v2907
    %v2944 = vpack.c.b16 %v2912, %v2910
    %v2945 = vpack.c.b16 %v2913, %v2911
    %2978 = vmatprep.subr.bf16.mxu0 %v2929
    %2979 = vmatpush1.bf16.msra.mxu0 %v2928
    %2980 = vmatprep.subr.bf16.mxu0 %v2927
    %2981 = vmatpush1.bf16.msra.mxu0 %v2926
    %2982 = vmatprep.subr.bf16.mxu0 %v2925
    %2983 = vmatpush1.bf16.msra.mxu0 %v2924
    %2984 = vmatprep.subr.bf16.mxu0 %v2923
    %2985 = vmatpush1.bf16.msra.mxu0 %v2922
    %2986 = vmatprep.subr.bf16.mxu0 %v2921
    %2987 = vmatpush1.bf16.msra.mxu0 %v2920
    %2988 = vmatprep.subr.bf16.mxu0 %v2919
    %2989 = vmatpush1.bf16.msra.mxu0 %v2918
    %2990 = vmatprep.subr.bf16.mxu0 %v2917
    %2991 = vmatpush1.bf16.msra.mxu0 %v2916
    %2992 = vmatprep.subr.bf16.mxu0 %v2915
    %2993 = vmatpush1.bf16.msra.mxu0 %v2914
    %2994 = vmatprep.subr.bf16.mxu0 %v2945
    %2995 = vmatpush2.bf16.msra.mxu0 %v2944
    %2996 = vmatprep.subr.bf16.mxu0 %v2943
    %2997 = vmatpush2.bf16.msra.mxu0 %v2942
    %2998 = vmatprep.subr.bf16.mxu0 %v2941
    %2999 = vmatpush2.bf16.msra.mxu0 %v2940
    %3000 = vmatprep.subr.bf16.mxu0 %v2939
    %3001 = vmatpush2.bf16.msra.mxu0 %v2938
    %3002 = vmatprep.subr.bf16.mxu0 %v2937
    %3003 = vmatpush2.bf16.msra.mxu0 %v2936
    %3004 = vmatprep.subr.bf16.mxu0 %v2935
    %3005 = vmatpush2.bf16.msra.mxu0 %v2934
    %3006 = vmatprep.subr.bf16.mxu0 %v2933
    %3007 = vmatpush2.bf16.msra.mxu0 %v2932
    %3008 = vmatprep.subr.bf16.mxu0 %v2931
    %3009 = vmatpush2.bf16.msra.mxu0 %v2930
    %3010 = vmatprep.mubr.bf16.mxu0 %v1314
    %3011 = vmatmul.mubr.bf16.gmra.mxu0 %v1313
    %v3012 = vpop.f32.mrf.mxu0
    %v3013 = vadd.f32 %v2811, %v3012
    %v3014 = vpop.f32.mrf.mxu0
    %v3015 = vadd.f32 %v2815, %v3014
    %v3016 = vpop.f32.mrf.mxu0
    %v3017 = vpop.f32.mrf.mxu0
    %3018 = vdwg.mxu0
    %v3019 = vmax.f32 %v3013, 0.0
    %v3020 = vmax.f32 %v3015, 0.0
    %v3021 = vpack.c.bf16 %v3019, %v3019
    %v3022 = vpack.c.bf16 %v3020, %v3020
    %s3023 = scalar_lea.vmem [#allocation2], 6144
    %v3024 = vld [vmem:[%s3023] sm:$0xff]
    %v3025 = vld [vmem:[%s3023 + $0x8] sm:$0xff]
    %v3026 = vld [vmem:[%s3023 + $0x10] sm:$0xff]
    %v3027 = vld [vmem:[%s3023 + $0x18] sm:$0xff]
    %v3028 = vld [vmem:[%s3023 + $0x20] sm:$0xff]
    %v3029 = vld [vmem:[%s3023 + $0x28] sm:$0xff]
    %v3030 = vld [vmem:[%s3023 + $0x30] sm:$0xff]
    %v3031 = vld [vmem:[%s3023 + $0x38] sm:$0xff]
    %v3032 = vld [vmem:[%s3023 + $0x40] sm:$0xff]
    %v3033 = vld [vmem:[%s3023 + $0x48] sm:$0xff]
    %v3034 = vld [vmem:[%s3023 + $0x50] sm:$0xff]
    %v3035 = vld [vmem:[%s3023 + $0x58] sm:$0xff]
    %v3036 = vld [vmem:[%s3023 + $0x60] sm:$0xff]
    %v3037 = vld [vmem:[%s3023 + $0x68] sm:$0xff]
    %v3038 = vld [vmem:[%s3023 + $0x70] sm:$0xff]
    %v3039 = vld [vmem:[%s3023 + $0x78] sm:$0xff]
    %v3040 = vld [vmem:[%s3023 + $0x80] sm:$0xff]
    %v3041 = vld [vmem:[%s3023 + $0x88] sm:$0xff]
    %v3042 = vld [vmem:[%s3023 + $0x90] sm:$0xff]
    %v3043 = vld [vmem:[%s3023 + $0x98] sm:$0xff]
    %v3044 = vld [vmem:[%s3023 + $0xa0] sm:$0xff]
    %v3045 = vld [vmem:[%s3023 + $0xa8] sm:$0xff]
    %v3046 = vld [vmem:[%s3023 + $0xb0] sm:$0xff]
    %v3047 = vld [vmem:[%s3023 + $0xb8] sm:$0xff]
    %v3048 = vld [vmem:[%s3023 + $0xc0] sm:$0xff]
    %v3049 = vld [vmem:[%s3023 + $0xc8] sm:$0xff]
    %v3050 = vld [vmem:[%s3023 + $0xd0] sm:$0xff]
    %v3051 = vld [vmem:[%s3023 + $0xd8] sm:$0xff]
    %v3052 = vld [vmem:[%s3023 + $0xe0] sm:$0xff]
    %v3053 = vld [vmem:[%s3023 + $0xe8] sm:$0xff]
    %v3054 = vld [vmem:[%s3023 + $0xf0] sm:$0xff]
    %v3055 = vld [vmem:[%s3023 + $0xf8] sm:$0xff]
    %v3088 = vunpack.c.l.b16 %v3024
    %v3089 = vunpack.c.h.b16 %v3024
    %v3090 = vunpack.c.l.b16 %v3025
    %v3091 = vunpack.c.h.b16 %v3025
    %v3092 = vunpack.c.l.b16 %v3026
    %v3093 = vunpack.c.h.b16 %v3026
    %v3094 = vunpack.c.l.b16 %v3027
    %v3095 = vunpack.c.h.b16 %v3027
    %v3096 = vunpack.c.l.b16 %v3028
    %v3097 = vunpack.c.h.b16 %v3028
    %v3098 = vunpack.c.l.b16 %v3029
    %v3099 = vunpack.c.h.b16 %v3029
    %v3100 = vunpack.c.l.b16 %v3030
    %v3101 = vunpack.c.h.b16 %v3030
    %v3102 = vunpack.c.l.b16 %v3031
    %v3103 = vunpack.c.h.b16 %v3031
    %v3104 = vunpack.c.l.b16 %v3032
    %v3105 = vunpack.c.h.b16 %v3032
    %v3106 = vunpack.c.l.b16 %v3033
    %v3107 = vunpack.c.h.b16 %v3033
    %v3108 = vunpack.c.l.b16 %v3034
    %v3109 = vunpack.c.h.b16 %v3034
    %v3110 = vunpack.c.l.b16 %v3035
    %v3111 = vunpack.c.h.b16 %v3035
    %v3112 = vunpack.c.l.b16 %v3036
    %v3113 = vunpack.c.h.b16 %v3036
    %v3114 = vunpack.c.l.b16 %v3037
    %v3115 = vunpack.c.h.b16 %v3037
    %v3116 = vunpack.c.l.b16 %v3038
    %v3117 = vunpack.c.h.b16 %v3038
    %v3118 = vunpack.c.l.b16 %v3039
    %v3119 = vunpack.c.h.b16 %v3039
    %v3120 = vunpack.c.l.b16 %v3040
    %v3121 = vunpack.c.h.b16 %v3040
    %v3122 = vunpack.c.l.b16 %v3041
    %v3123 = vunpack.c.h.b16 %v3041
    %v3124 = vunpack.c.l.b16 %v3042
    %v3125 = vunpack.c.h.b16 %v3042
    %v3126 = vunpack.c.l.b16 %v3043
    %v3127 = vunpack.c.h.b16 %v3043
    %v3128 = vunpack.c.l.b16 %v3044
    %v3129 = vunpack.c.h.b16 %v3044
    %v3130 = vunpack.c.l.b16 %v3045
    %v3131 = vunpack.c.h.b16 %v3045
    %v3132 = vunpack.c.l.b16 %v3046
    %v3133 = vunpack.c.h.b16 %v3046
    %v3134 = vunpack.c.l.b16 %v3047
    %v3135 = vunpack.c.h.b16 %v3047
    %v3136 = vunpack.c.l.b16 %v3048
    %v3137 = vunpack.c.h.b16 %v3048
    %v3138 = vunpack.c.l.b16 %v3049
    %v3139 = vunpack.c.h.b16 %v3049
    %v3140 = vunpack.c.l.b16 %v3050
    %v3141 = vunpack.c.h.b16 %v3050
    %v3142 = vunpack.c.l.b16 %v3051
    %v3143 = vunpack.c.h.b16 %v3051
    %v3144 = vunpack.c.l.b16 %v3052
    %v3145 = vunpack.c.h.b16 %v3052
    %v3146 = vunpack.c.l.b16 %v3053
    %v3147 = vunpack.c.h.b16 %v3053
    %v3148 = vunpack.c.l.b16 %v3054
    %v3149 = vunpack.c.h.b16 %v3054
    %v3150 = vunpack.c.l.b16 %v3055
    %v3151 = vunpack.c.h.b16 %v3055
    %v3152 = vpack.c.b16 %v3090, %v3088
    %v3153 = vpack.c.b16 %v3091, %v3089
    %v3154 = vpack.c.b16 %v3094, %v3092
    %v3155 = vpack.c.b16 %v3095, %v3093
    %v3156 = vpack.c.b16 %v3098, %v3096
    %v3157 = vpack.c.b16 %v3099, %v3097
    %v3158 = vpack.c.b16 %v3102, %v3100
    %v3159 = vpack.c.b16 %v3103, %v3101
    %v3160 = vpack.c.b16 %v3106, %v3104
    %v3161 = vpack.c.b16 %v3107, %v3105
    %v3162 = vpack.c.b16 %v3110, %v3108
    %v3163 = vpack.c.b16 %v3111, %v3109
    %v3164 = vpack.c.b16 %v3114, %v3112
    %v3165 = vpack.c.b16 %v3115, %v3113
    %v3166 = vpack.c.b16 %v3118, %v3116
    %v3167 = vpack.c.b16 %v3119, %v3117
    %v3168 = vpack.c.b16 %v3122, %v3120
    %v3169 = vpack.c.b16 %v3123, %v3121
    %v3170 = vpack.c.b16 %v3126, %v3124
    %v3171 = vpack.c.b16 %v3127, %v3125
    %v3172 = vpack.c.b16 %v3130, %v3128
    %v3173 = vpack.c.b16 %v3131, %v3129
    %v3174 = vpack.c.b16 %v3134, %v3132
    %v3175 = vpack.c.b16 %v3135, %v3133
    %v3176 = vpack.c.b16 %v3138, %v3136
    %v3177 = vpack.c.b16 %v3139, %v3137
    %v3178 = vpack.c.b16 %v3142, %v3140
    %v3179 = vpack.c.b16 %v3143, %v3141
    %v3180 = vpack.c.b16 %v3146, %v3144
    %v3181 = vpack.c.b16 %v3147, %v3145
    %v3182 = vpack.c.b16 %v3150, %v3148
    %v3183 = vpack.c.b16 %v3151, %v3149
    %3216 = vmatprep.subr.bf16.mxu0 %v3167
    %3217 = vmatpush1.bf16.msra.mxu0 %v3166
    %3218 = vmatprep.subr.bf16.mxu0 %v3165
    %3219 = vmatpush1.bf16.msra.mxu0 %v3164
    %3220 = vmatprep.subr.bf16.mxu0 %v3163
    %3221 = vmatpush1.bf16.msra.mxu0 %v3162
    %3222 = vmatprep.subr.bf16.mxu0 %v3161
    %3223 = vmatpush1.bf16.msra.mxu0 %v3160
    %3224 = vmatprep.subr.bf16.mxu0 %v3159
    %3225 = vmatpush1.bf16.msra.mxu0 %v3158
    %3226 = vmatprep.subr.bf16.mxu0 %v3157
    %3227 = vmatpush1.bf16.msra.mxu0 %v3156
    %3228 = vmatprep.subr.bf16.mxu0 %v3155
    %3229 = vmatpush1.bf16.msra.mxu0 %v3154
    %3230 = vmatprep.subr.bf16.mxu0 %v3153
    %3231 = vmatpush1.bf16.msra.mxu0 %v3152
    %3232 = vmatprep.subr.bf16.mxu0 %v3183
    %3233 = vmatpush2.bf16.msra.mxu0 %v3182
    %3234 = vmatprep.subr.bf16.mxu0 %v3181
    %3235 = vmatpush2.bf16.msra.mxu0 %v3180
    %3236 = vmatprep.subr.bf16.mxu0 %v3179
    %3237 = vmatpush2.bf16.msra.mxu0 %v3178
    %3238 = vmatprep.subr.bf16.mxu0 %v3177
    %3239 = vmatpush2.bf16.msra.mxu0 %v3176
    %3240 = vmatprep.subr.bf16.mxu0 %v3175
    %3241 = vmatpush2.bf16.msra.mxu0 %v3174
    %3242 = vmatprep.subr.bf16.mxu0 %v3173
    %3243 = vmatpush2.bf16.msra.mxu0 %v3172
    %3244 = vmatprep.subr.bf16.mxu0 %v3171
    %3245 = vmatpush2.bf16.msra.mxu0 %v3170
    %3246 = vmatprep.subr.bf16.mxu0 %v3169
    %3247 = vmatpush2.bf16.msra.mxu0 %v3168
    %3248 = vmatprep.mubr.bf16.mxu0 %v3022
    %3249 = vmatmul.mubr.bf16.gmra.mxu0 %v3021
    %v3250 = vpop.f32.mrf.mxu0
    %v3251 = vadd.f32 0.0, %v3250
    %v3252 = vpop.f32.mrf.mxu0
    %v3253 = vadd.f32 0.0, %v3252
    %v3254 = vpop.f32.mrf.mxu0
    %v3255 = vpop.f32.mrf.mxu0
    %3256 = vdwg.mxu0
    %v3257 = vadd.f32 %v2770, %v3251
    %v3258 = vadd.f32 %v2771, %v3253
    %s3259 = scalar_lea.vmem [#allocation2], 2304
    %v3260 = vld [vmem:[%s3259] sm:$0xff]
    %v3261 = vld [vmem:[%s3259 + $0x8] sm:$0xff]
    %v3262 = vld [vmem:[%s3259 + $0x10] sm:$0xff]
    %v3263 = vld [vmem:[%s3259 + $0x18] sm:$0xff]
    %v3264 = vld [vmem:[%s3259 + $0x20] sm:$0xff]
    %v3265 = vld [vmem:[%s3259 + $0x28] sm:$0xff]
    %v3266 = vld [vmem:[%s3259 + $0x30] sm:$0xff]
    %v3267 = vld [vmem:[%s3259 + $0x38] sm:$0xff]
    %v3268 = vld [vmem:[%s3259 + $0x40] sm:$0xff]
    %v3269 = vld [vmem:[%s3259 + $0x48] sm:$0xff]
    %v3270 = vld [vmem:[%s3259 + $0x50] sm:$0xff]
    %v3271 = vld [vmem:[%s3259 + $0x58] sm:$0xff]
    %v3272 = vld [vmem:[%s3259 + $0x60] sm:$0xff]
    %v3273 = vld [vmem:[%s3259 + $0x68] sm:$0xff]
    %v3274 = vld [vmem:[%s3259 + $0x70] sm:$0xff]
    %v3275 = vld [vmem:[%s3259 + $0x78] sm:$0xff]
    %v3276 = vld [vmem:[%s3259 + $0x80] sm:$0xff]
    %v3277 = vld [vmem:[%s3259 + $0x88] sm:$0xff]
    %v3278 = vld [vmem:[%s3259 + $0x90] sm:$0xff]
    %v3279 = vld [vmem:[%s3259 + $0x98] sm:$0xff]
    %v3280 = vld [vmem:[%s3259 + $0xa0] sm:$0xff]
    %v3281 = vld [vmem:[%s3259 + $0xa8] sm:$0xff]
    %v3282 = vld [vmem:[%s3259 + $0xb0] sm:$0xff]
    %v3283 = vld [vmem:[%s3259 + $0xb8] sm:$0xff]
    %v3284 = vld [vmem:[%s3259 + $0xc0] sm:$0xff]
    %v3285 = vld [vmem:[%s3259 + $0xc8] sm:$0xff]
    %v3286 = vld [vmem:[%s3259 + $0xd0] sm:$0xff]
    %v3287 = vld [vmem:[%s3259 + $0xd8] sm:$0xff]
    %v3288 = vld [vmem:[%s3259 + $0xe0] sm:$0xff]
    %v3289 = vld [vmem:[%s3259 + $0xe8] sm:$0xff]
    %v3290 = vld [vmem:[%s3259 + $0xf0] sm:$0xff]
    %v3291 = vld [vmem:[%s3259 + $0xf8] sm:$0xff]
    %s3292 = scalar_lea.vmem [#allocation4], 17
    %v3293 = vld [vmem:[%s3292] ss:$8 sm:$0x3]
    %v3295 = vlaneseq
    %v3296 = vshrl.u32 %v3295, 7
    %v3297 = vsub.s32 0, %v3296
    %v3298 = vrot.slane %v3293, %v3297
    %v3299 = vlaneseq
    %v3300 = vshrl.u32 %v3299, 7
    %v3301 = vsub.s32 1, %v3300
    %v3302 = vrot.slane %v3293, %v3301
    %v3337 = vunpack.c.l.b16 %v3260
    %v3338 = vunpack.c.h.b16 %v3260
    %v3339 = vunpack.c.l.b16 %v3261
    %v3340 = vunpack.c.h.b16 %v3261
    %v3341 = vunpack.c.l.b16 %v3262
    %v3342 = vunpack.c.h.b16 %v3262
    %v3343 = vunpack.c.l.b16 %v3263
    %v3344 = vunpack.c.h.b16 %v3263
    %v3345 = vunpack.c.l.b16 %v3264
    %v3346 = vunpack.c.h.b16 %v3264
    %v3347 = vunpack.c.l.b16 %v3265
    %v3348 = vunpack.c.h.b16 %v3265
    %v3349 = vunpack.c.l.b16 %v3266
    %v3350 = vunpack.c.h.b16 %v3266
    %v3351 = vunpack.c.l.b16 %v3267
    %v3352 = vunpack.c.h.b16 %v3267
    %v3353 = vunpack.c.l.b16 %v3268
    %v3354 = vunpack.c.h.b16 %v3268
    %v3355 = vunpack.c.l.b16 %v3269
    %v3356 = vunpack.c.h.b16 %v3269
    %v3357 = vunpack.c.l.b16 %v3270
    %v3358 = vunpack.c.h.b16 %v3270
    %v3359 = vunpack.c.l.b16 %v3271
    %v3360 = vunpack.c.h.b16 %v3271
    %v3361 = vunpack.c.l.b16 %v3272
    %v3362 = vunpack.c.h.b16 %v3272
    %v3363 = vunpack.c.l.b16 %v3273
    %v3364 = vunpack.c.h.b16 %v3273
    %v3365 = vunpack.c.l.b16 %v3274
    %v3366 = vunpack.c.h.b16 %v3274
    %v3367 = vunpack.c.l.b16 %v3275
    %v3368 = vunpack.c.h.b16 %v3275
    %v3369 = vunpack.c.l.b16 %v3276
    %v3370 = vunpack.c.h.b16 %v3276
    %v3371 = vunpack.c.l.b16 %v3277
    %v3372 = vunpack.c.h.b16 %v3277
    %v3373 = vunpack.c.l.b16 %v3278
    %v3374 = vunpack.c.h.b16 %v3278
    %v3375 = vunpack.c.l.b16 %v3279
    %v3376 = vunpack.c.h.b16 %v3279
    %v3377 = vunpack.c.l.b16 %v3280
    %v3378 = vunpack.c.h.b16 %v3280
    %v3379 = vunpack.c.l.b16 %v3281
    %v3380 = vunpack.c.h.b16 %v3281
    %v3381 = vunpack.c.l.b16 %v3282
    %v3382 = vunpack.c.h.b16 %v3282
    %v3383 = vunpack.c.l.b16 %v3283
    %v3384 = vunpack.c.h.b16 %v3283
    %v3385 = vunpack.c.l.b16 %v3284
    %v3386 = vunpack.c.h.b16 %v3284
    %v3387 = vunpack.c.l.b16 %v3285
    %v3388 = vunpack.c.h.b16 %v3285
    %v3389 = vunpack.c.l.b16 %v3286
    %v3390 = vunpack.c.h.b16 %v3286
    %v3391 = vunpack.c.l.b16 %v3287
    %v3392 = vunpack.c.h.b16 %v3287
    %v3393 = vunpack.c.l.b16 %v3288
    %v3394 = vunpack.c.h.b16 %v3288
    %v3395 = vunpack.c.l.b16 %v3289
    %v3396 = vunpack.c.h.b16 %v3289
    %v3397 = vunpack.c.l.b16 %v3290
    %v3398 = vunpack.c.h.b16 %v3290
    %v3399 = vunpack.c.l.b16 %v3291
    %v3400 = vunpack.c.h.b16 %v3291
    %v3401 = vpack.c.b16 %v3339, %v3337
    %v3402 = vpack.c.b16 %v3340, %v3338
    %v3403 = vpack.c.b16 %v3343, %v3341
    %v3404 = vpack.c.b16 %v3344, %v3342
    %v3405 = vpack.c.b16 %v3347, %v3345
    %v3406 = vpack.c.b16 %v3348, %v3346
    %v3407 = vpack.c.b16 %v3351, %v3349
    %v3408 = vpack.c.b16 %v3352, %v3350
    %v3409 = vpack.c.b16 %v3355, %v3353
    %v3410 = vpack.c.b16 %v3356, %v3354
    %v3411 = vpack.c.b16 %v3359, %v3357
    %v3412 = vpack.c.b16 %v3360, %v3358
    %v3413 = vpack.c.b16 %v3363, %v3361
    %v3414 = vpack.c.b16 %v3364, %v3362
    %v3415 = vpack.c.b16 %v3367, %v3365
    %v3416 = vpack.c.b16 %v3368, %v3366
    %v3417 = vpack.c.b16 %v3371, %v3369
    %v3418 = vpack.c.b16 %v3372, %v3370
    %v3419 = vpack.c.b16 %v3375, %v3373
    %v3420 = vpack.c.b16 %v3376, %v3374
    %v3421 = vpack.c.b16 %v3379, %v3377
    %v3422 = vpack.c.b16 %v3380, %v3378
    %v3423 = vpack.c.b16 %v3383, %v3381
    %v3424 = vpack.c.b16 %v3384, %v3382
    %v3425 = vpack.c.b16 %v3387, %v3385
    %v3426 = vpack.c.b16 %v3388, %v3386
    %v3427 = vpack.c.b16 %v3391, %v3389
    %v3428 = vpack.c.b16 %v3392, %v3390
    %v3429 = vpack.c.b16 %v3395, %v3393
    %v3430 = vpack.c.b16 %v3396, %v3394
    %v3431 = vpack.c.b16 %v3399, %v3397
    %v3432 = vpack.c.b16 %v3400, %v3398
    %3465 = vmatprep.subr.bf16.mxu0 %v3416
    %3466 = vmatpush1.bf16.msra.mxu0 %v3415
    %3467 = vmatprep.subr.bf16.mxu0 %v3414
    %3468 = vmatpush1.bf16.msra.mxu0 %v3413
    %3469 = vmatprep.subr.bf16.mxu0 %v3412
    %3470 = vmatpush1.bf16.msra.mxu0 %v3411
    %3471 = vmatprep.subr.bf16.mxu0 %v3410
    %3472 = vmatpush1.bf16.msra.mxu0 %v3409
    %3473 = vmatprep.subr.bf16.mxu0 %v3408
    %3474 = vmatpush1.bf16.msra.mxu0 %v3407
    %3475 = vmatprep.subr.bf16.mxu0 %v3406
    %3476 = vmatpush1.bf16.msra.mxu0 %v3405
    %3477 = vmatprep.subr.bf16.mxu0 %v3404
    %3478 = vmatpush1.bf16.msra.mxu0 %v3403
    %3479 = vmatprep.subr.bf16.mxu0 %v3402
    %3480 = vmatpush1.bf16.msra.mxu0 %v3401
    %3481 = vmatprep.subr.bf16.mxu0 %v3432
    %3482 = vmatpush2.bf16.msra.mxu0 %v3431
    %3483 = vmatprep.subr.bf16.mxu0 %v3430
    %3484 = vmatpush2.bf16.msra.mxu0 %v3429
    %3485 = vmatprep.subr.bf16.mxu0 %v3428
    %3486 = vmatpush2.bf16.msra.mxu0 %v3427
    %3487 = vmatprep.subr.bf16.mxu0 %v3426
    %3488 = vmatpush2.bf16.msra.mxu0 %v3425
    %3489 = vmatprep.subr.bf16.mxu0 %v3424
    %3490 = vmatpush2.bf16.msra.mxu0 %v3423
    %3491 = vmatprep.subr.bf16.mxu0 %v3422
    %3492 = vmatpush2.bf16.msra.mxu0 %v3421
    %3493 = vmatprep.subr.bf16.mxu0 %v3420
    %3494 = vmatpush2.bf16.msra.mxu0 %v3419
    %3495 = vmatprep.subr.bf16.mxu0 %v3418
    %3496 = vmatpush2.bf16.msra.mxu0 %v3417
    %3497 = vmatprep.mubr.bf16.mxu0 %v1314
    %3498 = vmatmul.mubr.bf16.gmra.mxu0 %v1313
    %v3499 = vpop.f32.mrf.mxu0
    %v3500 = vadd.f32 %v3298, %v3499
    %v3501 = vpop.f32.mrf.mxu0
    %v3502 = vadd.f32 %v3302, %v3501
    %v3503 = vpop.f32.mrf.mxu0
    %v3504 = vpop.f32.mrf.mxu0
    %3505 = vdwg.mxu0
    %v3506 = vmax.f32 %v3500, 0.0
    %v3507 = vmax.f32 %v3502, 0.0
    %v3508 = vpack.c.bf16 %v3506, %v3506
    %v3509 = vpack.c.bf16 %v3507, %v3507
    %s3510 = scalar_lea.vmem [#allocation2], 6400
    %v3511 = vld [vmem:[%s3510] sm:$0xff]
    %v3512 = vld [vmem:[%s3510 + $0x8] sm:$0xff]
    %v3513 = vld [vmem:[%s3510 + $0x10] sm:$0xff]
    %v3514 = vld [vmem:[%s3510 + $0x18] sm:$0xff]
    %v3515 = vld [vmem:[%s3510 + $0x20] sm:$0xff]
    %v3516 = vld [vmem:[%s3510 + $0x28] sm:$0xff]
    %v3517 = vld [vmem:[%s3510 + $0x30] sm:$0xff]
    %v3518 = vld [vmem:[%s3510 + $0x38] sm:$0xff]
    %v3519 = vld [vmem:[%s3510 + $0x40] sm:$0xff]
    %v3520 = vld [vmem:[%s3510 + $0x48] sm:$0xff]
    %v3521 = vld [vmem:[%s3510 + $0x50] sm:$0xff]
    %v3522 = vld [vmem:[%s3510 + $0x58] sm:$0xff]
    %v3523 = vld [vmem:[%s3510 + $0x60] sm:$0xff]
    %v3524 = vld [vmem:[%s3510 + $0x68] sm:$0xff]
    %v3525 = vld [vmem:[%s3510 + $0x70] sm:$0xff]
    %v3526 = vld [vmem:[%s3510 + $0x78] sm:$0xff]
    %v3527 = vld [vmem:[%s3510 + $0x80] sm:$0xff]
    %v3528 = vld [vmem:[%s3510 + $0x88] sm:$0xff]
    %v3529 = vld [vmem:[%s3510 + $0x90] sm:$0xff]
    %v3530 = vld [vmem:[%s3510 + $0x98] sm:$0xff]
    %v3531 = vld [vmem:[%s3510 + $0xa0] sm:$0xff]
    %v3532 = vld [vmem:[%s3510 + $0xa8] sm:$0xff]
    %v3533 = vld [vmem:[%s3510 + $0xb0] sm:$0xff]
    %v3534 = vld [vmem:[%s3510 + $0xb8] sm:$0xff]
    %v3535 = vld [vmem:[%s3510 + $0xc0] sm:$0xff]
    %v3536 = vld [vmem:[%s3510 + $0xc8] sm:$0xff]
    %v3537 = vld [vmem:[%s3510 + $0xd0] sm:$0xff]
    %v3538 = vld [vmem:[%s3510 + $0xd8] sm:$0xff]
    %v3539 = vld [vmem:[%s3510 + $0xe0] sm:$0xff]
    %v3540 = vld [vmem:[%s3510 + $0xe8] sm:$0xff]
    %v3541 = vld [vmem:[%s3510 + $0xf0] sm:$0xff]
    %v3542 = vld [vmem:[%s3510 + $0xf8] sm:$0xff]
    %v3575 = vunpack.c.l.b16 %v3511
    %v3576 = vunpack.c.h.b16 %v3511
    %v3577 = vunpack.c.l.b16 %v3512
    %v3578 = vunpack.c.h.b16 %v3512
    %v3579 = vunpack.c.l.b16 %v3513
    %v3580 = vunpack.c.h.b16 %v3513
    %v3581 = vunpack.c.l.b16 %v3514
    %v3582 = vunpack.c.h.b16 %v3514
    %v3583 = vunpack.c.l.b16 %v3515
    %v3584 = vunpack.c.h.b16 %v3515
    %v3585 = vunpack.c.l.b16 %v3516
    %v3586 = vunpack.c.h.b16 %v3516
    %v3587 = vunpack.c.l.b16 %v3517
    %v3588 = vunpack.c.h.b16 %v3517
    %v3589 = vunpack.c.l.b16 %v3518
    %v3590 = vunpack.c.h.b16 %v3518
    %v3591 = vunpack.c.l.b16 %v3519
    %v3592 = vunpack.c.h.b16 %v3519
    %v3593 = vunpack.c.l.b16 %v3520
    %v3594 = vunpack.c.h.b16 %v3520
    %v3595 = vunpack.c.l.b16 %v3521
    %v3596 = vunpack.c.h.b16 %v3521
    %v3597 = vunpack.c.l.b16 %v3522
    %v3598 = vunpack.c.h.b16 %v3522
    %v3599 = vunpack.c.l.b16 %v3523
    %v3600 = vunpack.c.h.b16 %v3523
    %v3601 = vunpack.c.l.b16 %v3524
    %v3602 = vunpack.c.h.b16 %v3524
    %v3603 = vunpack.c.l.b16 %v3525
    %v3604 = vunpack.c.h.b16 %v3525
    %v3605 = vunpack.c.l.b16 %v3526
    %v3606 = vunpack.c.h.b16 %v3526
    %v3607 = vunpack.c.l.b16 %v3527
    %v3608 = vunpack.c.h.b16 %v3527
    %v3609 = vunpack.c.l.b16 %v3528
    %v3610 = vunpack.c.h.b16 %v3528
    %v3611 = vunpack.c.l.b16 %v3529
    %v3612 = vunpack.c.h.b16 %v3529
    %v3613 = vunpack.c.l.b16 %v3530
    %v3614 = vunpack.c.h.b16 %v3530
    %v3615 = vunpack.c.l.b16 %v3531
    %v3616 = vunpack.c.h.b16 %v3531
    %v3617 = vunpack.c.l.b16 %v3532
    %v3618 = vunpack.c.h.b16 %v3532
    %v3619 = vunpack.c.l.b16 %v3533
    %v3620 = vunpack.c.h.b16 %v3533
    %v3621 = vunpack.c.l.b16 %v3534
    %v3622 = vunpack.c.h.b16 %v3534
    %v3623 = vunpack.c.l.b16 %v3535
    %v3624 = vunpack.c.h.b16 %v3535
    %v3625 = vunpack.c.l.b16 %v3536
    %v3626 = vunpack.c.h.b16 %v3536
    %v3627 = vunpack.c.l.b16 %v3537
    %v3628 = vunpack.c.h.b16 %v3537
    %v3629 = vunpack.c.l.b16 %v3538
    %v3630 = vunpack.c.h.b16 %v3538
    %v3631 = vunpack.c.l.b16 %v3539
    %v3632 = vunpack.c.h.b16 %v3539
    %v3633 = vunpack.c.l.b16 %v3540
    %v3634 = vunpack.c.h.b16 %v3540
    %v3635 = vunpack.c.l.b16 %v3541
    %v3636 = vunpack.c.h.b16 %v3541
    %v3637 = vunpack.c.l.b16 %v3542
    %v3638 = vunpack.c.h.b16 %v3542
    %v3639 = vpack.c.b16 %v3577, %v3575
    %v3640 = vpack.c.b16 %v3578, %v3576
    %v3641 = vpack.c.b16 %v3581, %v3579
    %v3642 = vpack.c.b16 %v3582, %v3580
    %v3643 = vpack.c.b16 %v3585, %v3583
    %v3644 = vpack.c.b16 %v3586, %v3584
    %v3645 = vpack.c.b16 %v3589, %v3587
    %v3646 = vpack.c.b16 %v3590, %v3588
    %v3647 = vpack.c.b16 %v3593, %v3591
    %v3648 = vpack.c.b16 %v3594, %v3592
    %v3649 = vpack.c.b16 %v3597, %v3595
    %v3650 = vpack.c.b16 %v3598, %v3596
    %v3651 = vpack.c.b16 %v3601, %v3599
    %v3652 = vpack.c.b16 %v3602, %v3600
    %v3653 = vpack.c.b16 %v3605, %v3603
    %v3654 = vpack.c.b16 %v3606, %v3604
    %v3655 = vpack.c.b16 %v3609, %v3607
    %v3656 = vpack.c.b16 %v3610, %v3608
    %v3657 = vpack.c.b16 %v3613, %v3611
    %v3658 = vpack.c.b16 %v3614, %v3612
    %v3659 = vpack.c.b16 %v3617, %v3615
    %v3660 = vpack.c.b16 %v3618, %v3616
    %v3661 = vpack.c.b16 %v3621, %v3619
    %v3662 = vpack.c.b16 %v3622, %v3620
    %v3663 = vpack.c.b16 %v3625, %v3623
    %v3664 = vpack.c.b16 %v3626, %v3624
    %v3665 = vpack.c.b16 %v3629, %v3627
    %v3666 = vpack.c.b16 %v3630, %v3628
    %v3667 = vpack.c.b16 %v3633, %v3631
    %v3668 = vpack.c.b16 %v3634, %v3632
    %v3669 = vpack.c.b16 %v3637, %v3635
    %v3670 = vpack.c.b16 %v3638, %v3636
    %3703 = vmatprep.subr.bf16.mxu0 %v3654
    %3704 = vmatpush1.bf16.msra.mxu0 %v3653
    %3705 = vmatprep.subr.bf16.mxu0 %v3652
    %3706 = vmatpush1.bf16.msra.mxu0 %v3651
    %3707 = vmatprep.subr.bf16.mxu0 %v3650
    %3708 = vmatpush1.bf16.msra.mxu0 %v3649
    %3709 = vmatprep.subr.bf16.mxu0 %v3648
    %3710 = vmatpush1.bf16.msra.mxu0 %v3647
    %3711 = vmatprep.subr.bf16.mxu0 %v3646
    %3712 = vmatpush1.bf16.msra.mxu0 %v3645
    %3713 = vmatprep.subr.bf16.mxu0 %v3644
    %3714 = vmatpush1.bf16.msra.mxu0 %v3643
    %3715 = vmatprep.subr.bf16.mxu0 %v3642
    %3716 = vmatpush1.bf16.msra.mxu0 %v3641
    %3717 = vmatprep.subr.bf16.mxu0 %v3640
    %3718 = vmatpush1.bf16.msra.mxu0 %v3639
    %3719 = vmatprep.subr.bf16.mxu0 %v3670
    %3720 = vmatpush2.bf16.msra.mxu0 %v3669
    %3721 = vmatprep.subr.bf16.mxu0 %v3668
    %3722 = vmatpush2.bf16.msra.mxu0 %v3667
    %3723 = vmatprep.subr.bf16.mxu0 %v3666
    %3724 = vmatpush2.bf16.msra.mxu0 %v3665
    %3725 = vmatprep.subr.bf16.mxu0 %v3664
    %3726 = vmatpush2.bf16.msra.mxu0 %v3663
    %3727 = vmatprep.subr.bf16.mxu0 %v3662
    %3728 = vmatpush2.bf16.msra.mxu0 %v3661
    %3729 = vmatprep.subr.bf16.mxu0 %v3660
    %3730 = vmatpush2.bf16.msra.mxu0 %v3659
    %3731 = vmatprep.subr.bf16.mxu0 %v3658
    %3732 = vmatpush2.bf16.msra.mxu0 %v3657
    %3733 = vmatprep.subr.bf16.mxu0 %v3656
    %3734 = vmatpush2.bf16.msra.mxu0 %v3655
    %3735 = vmatprep.mubr.bf16.mxu0 %v3509
    %3736 = vmatmul.mubr.bf16.gmra.mxu0 %v3508
    %v3737 = vpop.f32.mrf.mxu0
    %v3738 = vadd.f32 0.0, %v3737
    %v3739 = vpop.f32.mrf.mxu0
    %v3740 = vadd.f32 0.0, %v3739
    %v3741 = vpop.f32.mrf.mxu0
    %v3742 = vpop.f32.mrf.mxu0
    %3743 = vdwg.mxu0
    %v3744 = vadd.f32 %v3257, %v3738
    %v3745 = vadd.f32 %v3258, %v3740
    %s3746 = scalar_lea.vmem [#allocation2], 2560
    %v3747 = vld [vmem:[%s3746] sm:$0xff]
    %v3748 = vld [vmem:[%s3746 + $0x8] sm:$0xff]
    %v3749 = vld [vmem:[%s3746 + $0x10] sm:$0xff]
    %v3750 = vld [vmem:[%s3746 + $0x18] sm:$0xff]
    %v3751 = vld [vmem:[%s3746 + $0x20] sm:$0xff]
    %v3752 = vld [vmem:[%s3746 + $0x28] sm:$0xff]
    %v3753 = vld [vmem:[%s3746 + $0x30] sm:$0xff]
    %v3754 = vld [vmem:[%s3746 + $0x38] sm:$0xff]
    %v3755 = vld [vmem:[%s3746 + $0x40] sm:$0xff]
    %v3756 = vld [vmem:[%s3746 + $0x48] sm:$0xff]
    %v3757 = vld [vmem:[%s3746 + $0x50] sm:$0xff]
    %v3758 = vld [vmem:[%s3746 + $0x58] sm:$0xff]
    %v3759 = vld [vmem:[%s3746 + $0x60] sm:$0xff]
    %v3760 = vld [vmem:[%s3746 + $0x68] sm:$0xff]
    %v3761 = vld [vmem:[%s3746 + $0x70] sm:$0xff]
    %v3762 = vld [vmem:[%s3746 + $0x78] sm:$0xff]
    %v3763 = vld [vmem:[%s3746 + $0x80] sm:$0xff]
    %v3764 = vld [vmem:[%s3746 + $0x88] sm:$0xff]
    %v3765 = vld [vmem:[%s3746 + $0x90] sm:$0xff]
    %v3766 = vld [vmem:[%s3746 + $0x98] sm:$0xff]
    %v3767 = vld [vmem:[%s3746 + $0xa0] sm:$0xff]
    %v3768 = vld [vmem:[%s3746 + $0xa8] sm:$0xff]
    %v3769 = vld [vmem:[%s3746 + $0xb0] sm:$0xff]
    %v3770 = vld [vmem:[%s3746 + $0xb8] sm:$0xff]
    %v3771 = vld [vmem:[%s3746 + $0xc0] sm:$0xff]
    %v3772 = vld [vmem:[%s3746 + $0xc8] sm:$0xff]
    %v3773 = vld [vmem:[%s3746 + $0xd0] sm:$0xff]
    %v3774 = vld [vmem:[%s3746 + $0xd8] sm:$0xff]
    %v3775 = vld [vmem:[%s3746 + $0xe0] sm:$0xff]
    %v3776 = vld [vmem:[%s3746 + $0xe8] sm:$0xff]
    %v3777 = vld [vmem:[%s3746 + $0xf0] sm:$0xff]
    %v3778 = vld [vmem:[%s3746 + $0xf8] sm:$0xff]
    %s3779 = scalar_lea.vmem [#allocation4], 18
    %v3780 = vld [vmem:[%s3779] ss:$8 sm:$0x3]
    %v3782 = vlaneseq
    %v3783 = vshrl.u32 %v3782, 7
    %v3784 = vsub.s32 0, %v3783
    %v3785 = vrot.slane %v3780, %v3784
    %v3786 = vlaneseq
    %v3787 = vshrl.u32 %v3786, 7
    %v3788 = vsub.s32 1, %v3787
    %v3789 = vrot.slane %v3780, %v3788
    %v3824 = vunpack.c.l.b16 %v3747
    %v3825 = vunpack.c.h.b16 %v3747
    %v3826 = vunpack.c.l.b16 %v3748
    %v3827 = vunpack.c.h.b16 %v3748
    %v3828 = vunpack.c.l.b16 %v3749
    %v3829 = vunpack.c.h.b16 %v3749
    %v3830 = vunpack.c.l.b16 %v3750
    %v3831 = vunpack.c.h.b16 %v3750
    %v3832 = vunpack.c.l.b16 %v3751
    %v3833 = vunpack.c.h.b16 %v3751
    %v3834 = vunpack.c.l.b16 %v3752
    %v3835 = vunpack.c.h.b16 %v3752
    %v3836 = vunpack.c.l.b16 %v3753
    %v3837 = vunpack.c.h.b16 %v3753
    %v3838 = vunpack.c.l.b16 %v3754
    %v3839 = vunpack.c.h.b16 %v3754
    %v3840 = vunpack.c.l.b16 %v3755
    %v3841 = vunpack.c.h.b16 %v3755
    %v3842 = vunpack.c.l.b16 %v3756
    %v3843 = vunpack.c.h.b16 %v3756
    %v3844 = vunpack.c.l.b16 %v3757
    %v3845 = vunpack.c.h.b16 %v3757
    %v3846 = vunpack.c.l.b16 %v3758
    %v3847 = vunpack.c.h.b16 %v3758
    %v3848 = vunpack.c.l.b16 %v3759
    %v3849 = vunpack.c.h.b16 %v3759
    %v3850 = vunpack.c.l.b16 %v3760
    %v3851 = vunpack.c.h.b16 %v3760
    %v3852 = vunpack.c.l.b16 %v3761
    %v3853 = vunpack.c.h.b16 %v3761
    %v3854 = vunpack.c.l.b16 %v3762
    %v3855 = vunpack.c.h.b16 %v3762
    %v3856 = vunpack.c.l.b16 %v3763
    %v3857 = vunpack.c.h.b16 %v3763
    %v3858 = vunpack.c.l.b16 %v3764
    %v3859 = vunpack.c.h.b16 %v3764
    %v3860 = vunpack.c.l.b16 %v3765
    %v3861 = vunpack.c.h.b16 %v3765
    %v3862 = vunpack.c.l.b16 %v3766
    %v3863 = vunpack.c.h.b16 %v3766
    %v3864 = vunpack.c.l.b16 %v3767
    %v3865 = vunpack.c.h.b16 %v3767
    %v3866 = vunpack.c.l.b16 %v3768
    %v3867 = vunpack.c.h.b16 %v3768
    %v3868 = vunpack.c.l.b16 %v3769
    %v3869 = vunpack.c.h.b16 %v3769
    %v3870 = vunpack.c.l.b16 %v3770
    %v3871 = vunpack.c.h.b16 %v3770
    %v3872 = vunpack.c.l.b16 %v3771
    %v3873 = vunpack.c.h.b16 %v3771
    %v3874 = vunpack.c.l.b16 %v3772
    %v3875 = vunpack.c.h.b16 %v3772
    %v3876 = vunpack.c.l.b16 %v3773
    %v3877 = vunpack.c.h.b16 %v3773
    %v3878 = vunpack.c.l.b16 %v3774
    %v3879 = vunpack.c.h.b16 %v3774
    %v3880 = vunpack.c.l.b16 %v3775
    %v3881 = vunpack.c.h.b16 %v3775
    %v3882 = vunpack.c.l.b16 %v3776
    %v3883 = vunpack.c.h.b16 %v3776
    %v3884 = vunpack.c.l.b16 %v3777
    %v3885 = vunpack.c.h.b16 %v3777
    %v3886 = vunpack.c.l.b16 %v3778
    %v3887 = vunpack.c.h.b16 %v3778
    %v3888 = vpack.c.b16 %v3826, %v3824
    %v3889 = vpack.c.b16 %v3827, %v3825
    %v3890 = vpack.c.b16 %v3830, %v3828
    %v3891 = vpack.c.b16 %v3831, %v3829
    %v3892 = vpack.c.b16 %v3834, %v3832
    %v3893 = vpack.c.b16 %v3835, %v3833
    %v3894 = vpack.c.b16 %v3838, %v3836
    %v3895 = vpack.c.b16 %v3839, %v3837
    %v3896 = vpack.c.b16 %v3842, %v3840
    %v3897 = vpack.c.b16 %v3843, %v3841
    %v3898 = vpack.c.b16 %v3846, %v3844
    %v3899 = vpack.c.b16 %v3847, %v3845
    %v3900 = vpack.c.b16 %v3850, %v3848
    %v3901 = vpack.c.b16 %v3851, %v3849
    %v3902 = vpack.c.b16 %v3854, %v3852
    %v3903 = vpack.c.b16 %v3855, %v3853
    %v3904 = vpack.c.b16 %v3858, %v3856
    %v3905 = vpack.c.b16 %v3859, %v3857
    %v3906 = vpack.c.b16 %v3862, %v3860
    %v3907 = vpack.c.b16 %v3863, %v3861
    %v3908 = vpack.c.b16 %v3866, %v3864
    %v3909 = vpack.c.b16 %v3867, %v3865
    %v3910 = vpack.c.b16 %v3870, %v3868
    %v3911 = vpack.c.b16 %v3871, %v3869
    %v3912 = vpack.c.b16 %v3874, %v3872
    %v3913 = vpack.c.b16 %v3875, %v3873
    %v3914 = vpack.c.b16 %v3878, %v3876
    %v3915 = vpack.c.b16 %v3879, %v3877
    %v3916 = vpack.c.b16 %v3882, %v3880
    %v3917 = vpack.c.b16 %v3883, %v3881
    %v3918 = vpack.c.b16 %v3886, %v3884
    %v3919 = vpack.c.b16 %v3887, %v3885
    %3952 = vmatprep.subr.bf16.mxu0 %v3903
    %3953 = vmatpush1.bf16.msra.mxu0 %v3902
    %3954 = vmatprep.subr.bf16.mxu0 %v3901
    %3955 = vmatpush1.bf16.msra.mxu0 %v3900
    %3956 = vmatprep.subr.bf16.mxu0 %v3899
    %3957 = vmatpush1.bf16.msra.mxu0 %v3898
    %3958 = vmatprep.subr.bf16.mxu0 %v3897
    %3959 = vmatpush1.bf16.msra.mxu0 %v3896
    %3960 = vmatprep.subr.bf16.mxu0 %v3895
    %3961 = vmatpush1.bf16.msra.mxu0 %v3894
    %3962 = vmatprep.subr.bf16.mxu0 %v3893
    %3963 = vmatpush1.bf16.msra.mxu0 %v3892
    %3964 = vmatprep.subr.bf16.mxu0 %v3891
    %3965 = vmatpush1.bf16.msra.mxu0 %v3890
    %3966 = vmatprep.subr.bf16.mxu0 %v3889
    %3967 = vmatpush1.bf16.msra.mxu0 %v3888
    %3968 = vmatprep.subr.bf16.mxu0 %v3919
    %3969 = vmatpush2.bf16.msra.mxu0 %v3918
    %3970 = vmatprep.subr.bf16.mxu0 %v3917
    %3971 = vmatpush2.bf16.msra.mxu0 %v3916
    %3972 = vmatprep.subr.bf16.mxu0 %v3915
    %3973 = vmatpush2.bf16.msra.mxu0 %v3914
    %3974 = vmatprep.subr.bf16.mxu0 %v3913
    %3975 = vmatpush2.bf16.msra.mxu0 %v3912
    %3976 = vmatprep.subr.bf16.mxu0 %v3911
    %3977 = vmatpush2.bf16.msra.mxu0 %v3910
    %3978 = vmatprep.subr.bf16.mxu0 %v3909
    %3979 = vmatpush2.bf16.msra.mxu0 %v3908
    %3980 = vmatprep.subr.bf16.mxu0 %v3907
    %3981 = vmatpush2.bf16.msra.mxu0 %v3906
    %3982 = vmatprep.subr.bf16.mxu0 %v3905
    %3983 = vmatpush2.bf16.msra.mxu0 %v3904
    %3984 = vmatprep.mubr.bf16.mxu0 %v1314
    %3985 = vmatmul.mubr.bf16.gmra.mxu0 %v1313
    %v3986 = vpop.f32.mrf.mxu0
    %v3987 = vadd.f32 %v3785, %v3986
    %v3988 = vpop.f32.mrf.mxu0
    %v3989 = vadd.f32 %v3789, %v3988
    %v3990 = vpop.f32.mrf.mxu0
    %v3991 = vpop.f32.mrf.mxu0
    %3992 = vdwg.mxu0
    %v3993 = vmax.f32 %v3987, 0.0
    %v3994 = vmax.f32 %v3989, 0.0
    %v3995 = vpack.c.bf16 %v3993, %v3993
    %v3996 = vpack.c.bf16 %v3994, %v3994
    %s3997 = scalar_lea.vmem [#allocation2], 6656
    %v3998 = vld [vmem:[%s3997] sm:$0xff]
    %v3999 = vld [vmem:[%s3997 + $0x8] sm:$0xff]
    %v4000 = vld [vmem:[%s3997 + $0x10] sm:$0xff]
    %v4001 = vld [vmem:[%s3997 + $0x18] sm:$0xff]
    %v4002 = vld [vmem:[%s3997 + $0x20] sm:$0xff]
    %v4003 = vld [vmem:[%s3997 + $0x28] sm:$0xff]
    %v4004 = vld [vmem:[%s3997 + $0x30] sm:$0xff]
    %v4005 = vld [vmem:[%s3997 + $0x38] sm:$0xff]
    %v4006 = vld [vmem:[%s3997 + $0x40] sm:$0xff]
    %v4007 = vld [vmem:[%s3997 + $0x48] sm:$0xff]
    %v4008 = vld [vmem:[%s3997 + $0x50] sm:$0xff]
    %v4009 = vld [vmem:[%s3997 + $0x58] sm:$0xff]
    %v4010 = vld [vmem:[%s3997 + $0x60] sm:$0xff]
    %v4011 = vld [vmem:[%s3997 + $0x68] sm:$0xff]
    %v4012 = vld [vmem:[%s3997 + $0x70] sm:$0xff]
    %v4013 = vld [vmem:[%s3997 + $0x78] sm:$0xff]
    %v4014 = vld [vmem:[%s3997 + $0x80] sm:$0xff]
    %v4015 = vld [vmem:[%s3997 + $0x88] sm:$0xff]
    %v4016 = vld [vmem:[%s3997 + $0x90] sm:$0xff]
    %v4017 = vld [vmem:[%s3997 + $0x98] sm:$0xff]
    %v4018 = vld [vmem:[%s3997 + $0xa0] sm:$0xff]
    %v4019 = vld [vmem:[%s3997 + $0xa8] sm:$0xff]
    %v4020 = vld [vmem:[%s3997 + $0xb0] sm:$0xff]
    %v4021 = vld [vmem:[%s3997 + $0xb8] sm:$0xff]
    %v4022 = vld [vmem:[%s3997 + $0xc0] sm:$0xff]
    %v4023 = vld [vmem:[%s3997 + $0xc8] sm:$0xff]
    %v4024 = vld [vmem:[%s3997 + $0xd0] sm:$0xff]
    %v4025 = vld [vmem:[%s3997 + $0xd8] sm:$0xff]
    %v4026 = vld [vmem:[%s3997 + $0xe0] sm:$0xff]
    %v4027 = vld [vmem:[%s3997 + $0xe8] sm:$0xff]
    %v4028 = vld [vmem:[%s3997 + $0xf0] sm:$0xff]
    %v4029 = vld [vmem:[%s3997 + $0xf8] sm:$0xff]
    %v4062 = vunpack.c.l.b16 %v3998
    %v4063 = vunpack.c.h.b16 %v3998
    %v4064 = vunpack.c.l.b16 %v3999
    %v4065 = vunpack.c.h.b16 %v3999
    %v4066 = vunpack.c.l.b16 %v4000
    %v4067 = vunpack.c.h.b16 %v4000
    %v4068 = vunpack.c.l.b16 %v4001
    %v4069 = vunpack.c.h.b16 %v4001
    %v4070 = vunpack.c.l.b16 %v4002
    %v4071 = vunpack.c.h.b16 %v4002
    %v4072 = vunpack.c.l.b16 %v4003
    %v4073 = vunpack.c.h.b16 %v4003
    %v4074 = vunpack.c.l.b16 %v4004
    %v4075 = vunpack.c.h.b16 %v4004
    %v4076 = vunpack.c.l.b16 %v4005
    %v4077 = vunpack.c.h.b16 %v4005
    %v4078 = vunpack.c.l.b16 %v4006
    %v4079 = vunpack.c.h.b16 %v4006
    %v4080 = vunpack.c.l.b16 %v4007
    %v4081 = vunpack.c.h.b16 %v4007
    %v4082 = vunpack.c.l.b16 %v4008
    %v4083 = vunpack.c.h.b16 %v4008
    %v4084 = vunpack.c.l.b16 %v4009
    %v4085 = vunpack.c.h.b16 %v4009
    %v4086 = vunpack.c.l.b16 %v4010
    %v4087 = vunpack.c.h.b16 %v4010
    %v4088 = vunpack.c.l.b16 %v4011
    %v4089 = vunpack.c.h.b16 %v4011
    %v4090 = vunpack.c.l.b16 %v4012
    %v4091 = vunpack.c.h.b16 %v4012
    %v4092 = vunpack.c.l.b16 %v4013
    %v4093 = vunpack.c.h.b16 %v4013
    %v4094 = vunpack.c.l.b16 %v4014
    %v4095 = vunpack.c.h.b16 %v4014
    %v4096 = vunpack.c.l.b16 %v4015
    %v4097 = vunpack.c.h.b16 %v4015
    %v4098 = vunpack.c.l.b16 %v4016
    %v4099 = vunpack.c.h.b16 %v4016
    %v4100 = vunpack.c.l.b16 %v4017
    %v4101 = vunpack.c.h.b16 %v4017
    %v4102 = vunpack.c.l.b16 %v4018
    %v4103 = vunpack.c.h.b16 %v4018
    %v4104 = vunpack.c.l.b16 %v4019
    %v4105 = vunpack.c.h.b16 %v4019
    %v4106 = vunpack.c.l.b16 %v4020
    %v4107 = vunpack.c.h.b16 %v4020
    %v4108 = vunpack.c.l.b16 %v4021
    %v4109 = vunpack.c.h.b16 %v4021
    %v4110 = vunpack.c.l.b16 %v4022
    %v4111 = vunpack.c.h.b16 %v4022
    %v4112 = vunpack.c.l.b16 %v4023
    %v4113 = vunpack.c.h.b16 %v4023
    %v4114 = vunpack.c.l.b16 %v4024
    %v4115 = vunpack.c.h.b16 %v4024
    %v4116 = vunpack.c.l.b16 %v4025
    %v4117 = vunpack.c.h.b16 %v4025
    %v4118 = vunpack.c.l.b16 %v4026
    %v4119 = vunpack.c.h.b16 %v4026
    %v4120 = vunpack.c.l.b16 %v4027
    %v4121 = vunpack.c.h.b16 %v4027
    %v4122 = vunpack.c.l.b16 %v4028
    %v4123 = vunpack.c.h.b16 %v4028
    %v4124 = vunpack.c.l.b16 %v4029
    %v4125 = vunpack.c.h.b16 %v4029
    %v4126 = vpack.c.b16 %v4064, %v4062
    %v4127 = vpack.c.b16 %v4065, %v4063
    %v4128 = vpack.c.b16 %v4068, %v4066
    %v4129 = vpack.c.b16 %v4069, %v4067
    %v4130 = vpack.c.b16 %v4072, %v4070
    %v4131 = vpack.c.b16 %v4073, %v4071
    %v4132 = vpack.c.b16 %v4076, %v4074
    %v4133 = vpack.c.b16 %v4077, %v4075
    %v4134 = vpack.c.b16 %v4080, %v4078
    %v4135 = vpack.c.b16 %v4081, %v4079
    %v4136 = vpack.c.b16 %v4084, %v4082
    %v4137 = vpack.c.b16 %v4085, %v4083
    %v4138 = vpack.c.b16 %v4088, %v4086
    %v4139 = vpack.c.b16 %v4089, %v4087
    %v4140 = vpack.c.b16 %v4092, %v4090
    %v4141 = vpack.c.b16 %v4093, %v4091
    %v4142 = vpack.c.b16 %v4096, %v4094
    %v4143 = vpack.c.b16 %v4097, %v4095
    %v4144 = vpack.c.b16 %v4100, %v4098
    %v4145 = vpack.c.b16 %v4101, %v4099
    %v4146 = vpack.c.b16 %v4104, %v4102
    %v4147 = vpack.c.b16 %v4105, %v4103
    %v4148 = vpack.c.b16 %v4108, %v4106
    %v4149 = vpack.c.b16 %v4109, %v4107
    %v4150 = vpack.c.b16 %v4112, %v4110
    %v4151 = vpack.c.b16 %v4113, %v4111
    %v4152 = vpack.c.b16 %v4116, %v4114
    %v4153 = vpack.c.b16 %v4117, %v4115
    %v4154 = vpack.c.b16 %v4120, %v4118
    %v4155 = vpack.c.b16 %v4121, %v4119
    %v4156 = vpack.c.b16 %v4124, %v4122
    %v4157 = vpack.c.b16 %v4125, %v4123
    %4190 = vmatprep.subr.bf16.mxu0 %v4141
    %4191 = vmatpush1.bf16.msra.mxu0 %v4140
    %4192 = vmatprep.subr.bf16.mxu0 %v4139
    %4193 = vmatpush1.bf16.msra.mxu0 %v4138
    %4194 = vmatprep.subr.bf16.mxu0 %v4137
    %4195 = vmatpush1.bf16.msra.mxu0 %v4136
    %4196 = vmatprep.subr.bf16.mxu0 %v4135
    %4197 = vmatpush1.bf16.msra.mxu0 %v4134
    %4198 = vmatprep.subr.bf16.mxu0 %v4133
    %4199 = vmatpush1.bf16.msra.mxu0 %v4132
    %4200 = vmatprep.subr.bf16.mxu0 %v4131
    %4201 = vmatpush1.bf16.msra.mxu0 %v4130
    %4202 = vmatprep.subr.bf16.mxu0 %v4129
    %4203 = vmatpush1.bf16.msra.mxu0 %v4128
    %4204 = vmatprep.subr.bf16.mxu0 %v4127
    %4205 = vmatpush1.bf16.msra.mxu0 %v4126
    %4206 = vmatprep.subr.bf16.mxu0 %v4157
    %4207 = vmatpush2.bf16.msra.mxu0 %v4156
    %4208 = vmatprep.subr.bf16.mxu0 %v4155
    %4209 = vmatpush2.bf16.msra.mxu0 %v4154
    %4210 = vmatprep.subr.bf16.mxu0 %v4153
    %4211 = vmatpush2.bf16.msra.mxu0 %v4152
    %4212 = vmatprep.subr.bf16.mxu0 %v4151
    %4213 = vmatpush2.bf16.msra.mxu0 %v4150
    %4214 = vmatprep.subr.bf16.mxu0 %v4149
    %4215 = vmatpush2.bf16.msra.mxu0 %v4148
    %4216 = vmatprep.subr.bf16.mxu0 %v4147
    %4217 = vmatpush2.bf16.msra.mxu0 %v4146
    %4218 = vmatprep.subr.bf16.mxu0 %v4145
    %4219 = vmatpush2.bf16.msra.mxu0 %v4144
    %4220 = vmatprep.subr.bf16.mxu0 %v4143
    %4221 = vmatpush2.bf16.msra.mxu0 %v4142
    %4222 = vmatprep.mubr.bf16.mxu0 %v3996
    %4223 = vmatmul.mubr.bf16.gmra.mxu0 %v3995
    %v4224 = vpop.f32.mrf.mxu0
    %v4225 = vadd.f32 0.0, %v4224
    %v4226 = vpop.f32.mrf.mxu0
    %v4227 = vadd.f32 0.0, %v4226
    %v4228 = vpop.f32.mrf.mxu0
    %v4229 = vpop.f32.mrf.mxu0
    %4230 = vdwg.mxu0
    %v4231 = vadd.f32 %v3744, %v4225
    %v4232 = vadd.f32 %v3745, %v4227
    %s4233 = scalar_lea.vmem [#allocation2], 2816
    %v4234 = vld [vmem:[%s4233] sm:$0xff]
    %v4235 = vld [vmem:[%s4233 + $0x8] sm:$0xff]
    %v4236 = vld [vmem:[%s4233 + $0x10] sm:$0xff]
    %v4237 = vld [vmem:[%s4233 + $0x18] sm:$0xff]
    %v4238 = vld [vmem:[%s4233 + $0x20] sm:$0xff]
    %v4239 = vld [vmem:[%s4233 + $0x28] sm:$0xff]
    %v4240 = vld [vmem:[%s4233 + $0x30] sm:$0xff]
    %v4241 = vld [vmem:[%s4233 + $0x38] sm:$0xff]
    %v4242 = vld [vmem:[%s4233 + $0x40] sm:$0xff]
    %v4243 = vld [vmem:[%s4233 + $0x48] sm:$0xff]
    %v4244 = vld [vmem:[%s4233 + $0x50] sm:$0xff]
    %v4245 = vld [vmem:[%s4233 + $0x58] sm:$0xff]
    %v4246 = vld [vmem:[%s4233 + $0x60] sm:$0xff]
    %v4247 = vld [vmem:[%s4233 + $0x68] sm:$0xff]
    %v4248 = vld [vmem:[%s4233 + $0x70] sm:$0xff]
    %v4249 = vld [vmem:[%s4233 + $0x78] sm:$0xff]
    %v4250 = vld [vmem:[%s4233 + $0x80] sm:$0xff]
    %v4251 = vld [vmem:[%s4233 + $0x88] sm:$0xff]
    %v4252 = vld [vmem:[%s4233 + $0x90] sm:$0xff]
    %v4253 = vld [vmem:[%s4233 + $0x98] sm:$0xff]
    %v4254 = vld [vmem:[%s4233 + $0xa0] sm:$0xff]
    %v4255 = vld [vmem:[%s4233 + $0xa8] sm:$0xff]
    %v4256 = vld [vmem:[%s4233 + $0xb0] sm:$0xff]
    %v4257 = vld [vmem:[%s4233 + $0xb8] sm:$0xff]
    %v4258 = vld [vmem:[%s4233 + $0xc0] sm:$0xff]
    %v4259 = vld [vmem:[%s4233 + $0xc8] sm:$0xff]
    %v4260 = vld [vmem:[%s4233 + $0xd0] sm:$0xff]
    %v4261 = vld [vmem:[%s4233 + $0xd8] sm:$0xff]
    %v4262 = vld [vmem:[%s4233 + $0xe0] sm:$0xff]
    %v4263 = vld [vmem:[%s4233 + $0xe8] sm:$0xff]
    %v4264 = vld [vmem:[%s4233 + $0xf0] sm:$0xff]
    %v4265 = vld [vmem:[%s4233 + $0xf8] sm:$0xff]
    %s4266 = scalar_lea.vmem [#allocation4], 19
    %v4267 = vld [vmem:[%s4266] ss:$8 sm:$0x3]
    %v4269 = vlaneseq
    %v4270 = vshrl.u32 %v4269, 7
    %v4271 = vsub.s32 0, %v4270
    %v4272 = vrot.slane %v4267, %v4271
    %v4273 = vlaneseq
    %v4274 = vshrl.u32 %v4273, 7
    %v4275 = vsub.s32 1, %v4274
    %v4276 = vrot.slane %v4267, %v4275
    %v4311 = vunpack.c.l.b16 %v4234
    %v4312 = vunpack.c.h.b16 %v4234
    %v4313 = vunpack.c.l.b16 %v4235
    %v4314 = vunpack.c.h.b16 %v4235
    %v4315 = vunpack.c.l.b16 %v4236
    %v4316 = vunpack.c.h.b16 %v4236
    %v4317 = vunpack.c.l.b16 %v4237
    %v4318 = vunpack.c.h.b16 %v4237
    %v4319 = vunpack.c.l.b16 %v4238
    %v4320 = vunpack.c.h.b16 %v4238
    %v4321 = vunpack.c.l.b16 %v4239
    %v4322 = vunpack.c.h.b16 %v4239
    %v4323 = vunpack.c.l.b16 %v4240
    %v4324 = vunpack.c.h.b16 %v4240
    %v4325 = vunpack.c.l.b16 %v4241
    %v4326 = vunpack.c.h.b16 %v4241
    %v4327 = vunpack.c.l.b16 %v4242
    %v4328 = vunpack.c.h.b16 %v4242
    %v4329 = vunpack.c.l.b16 %v4243
    %v4330 = vunpack.c.h.b16 %v4243
    %v4331 = vunpack.c.l.b16 %v4244
    %v4332 = vunpack.c.h.b16 %v4244
    %v4333 = vunpack.c.l.b16 %v4245
    %v4334 = vunpack.c.h.b16 %v4245
    %v4335 = vunpack.c.l.b16 %v4246
    %v4336 = vunpack.c.h.b16 %v4246
    %v4337 = vunpack.c.l.b16 %v4247
    %v4338 = vunpack.c.h.b16 %v4247
    %v4339 = vunpack.c.l.b16 %v4248
    %v4340 = vunpack.c.h.b16 %v4248
    %v4341 = vunpack.c.l.b16 %v4249
    %v4342 = vunpack.c.h.b16 %v4249
    %v4343 = vunpack.c.l.b16 %v4250
    %v4344 = vunpack.c.h.b16 %v4250
    %v4345 = vunpack.c.l.b16 %v4251
    %v4346 = vunpack.c.h.b16 %v4251
    %v4347 = vunpack.c.l.b16 %v4252
    %v4348 = vunpack.c.h.b16 %v4252
    %v4349 = vunpack.c.l.b16 %v4253
    %v4350 = vunpack.c.h.b16 %v4253
    %v4351 = vunpack.c.l.b16 %v4254
    %v4352 = vunpack.c.h.b16 %v4254
    %v4353 = vunpack.c.l.b16 %v4255
    %v4354 = vunpack.c.h.b16 %v4255
    %v4355 = vunpack.c.l.b16 %v4256
    %v4356 = vunpack.c.h.b16 %v4256
    %v4357 = vunpack.c.l.b16 %v4257
    %v4358 = vunpack.c.h.b16 %v4257
    %v4359 = vunpack.c.l.b16 %v4258
    %v4360 = vunpack.c.h.b16 %v4258
    %v4361 = vunpack.c.l.b16 %v4259
    %v4362 = vunpack.c.h.b16 %v4259
    %v4363 = vunpack.c.l.b16 %v4260
    %v4364 = vunpack.c.h.b16 %v4260
    %v4365 = vunpack.c.l.b16 %v4261
    %v4366 = vunpack.c.h.b16 %v4261
    %v4367 = vunpack.c.l.b16 %v4262
    %v4368 = vunpack.c.h.b16 %v4262
    %v4369 = vunpack.c.l.b16 %v4263
    %v4370 = vunpack.c.h.b16 %v4263
    %v4371 = vunpack.c.l.b16 %v4264
    %v4372 = vunpack.c.h.b16 %v4264
    %v4373 = vunpack.c.l.b16 %v4265
    %v4374 = vunpack.c.h.b16 %v4265
    %v4375 = vpack.c.b16 %v4313, %v4311
    %v4376 = vpack.c.b16 %v4314, %v4312
    %v4377 = vpack.c.b16 %v4317, %v4315
    %v4378 = vpack.c.b16 %v4318, %v4316
    %v4379 = vpack.c.b16 %v4321, %v4319
    %v4380 = vpack.c.b16 %v4322, %v4320
    %v4381 = vpack.c.b16 %v4325, %v4323
    %v4382 = vpack.c.b16 %v4326, %v4324
    %v4383 = vpack.c.b16 %v4329, %v4327
    %v4384 = vpack.c.b16 %v4330, %v4328
    %v4385 = vpack.c.b16 %v4333, %v4331
    %v4386 = vpack.c.b16 %v4334, %v4332
    %v4387 = vpack.c.b16 %v4337, %v4335
    %v4388 = vpack.c.b16 %v4338, %v4336
    %v4389 = vpack.c.b16 %v4341, %v4339
    %v4390 = vpack.c.b16 %v4342, %v4340
    %v4391 = vpack.c.b16 %v4345, %v4343
    %v4392 = vpack.c.b16 %v4346, %v4344
    %v4393 = vpack.c.b16 %v4349, %v4347
    %v4394 = vpack.c.b16 %v4350, %v4348
    %v4395 = vpack.c.b16 %v4353, %v4351
    %v4396 = vpack.c.b16 %v4354, %v4352
    %v4397 = vpack.c.b16 %v4357, %v4355
    %v4398 = vpack.c.b16 %v4358, %v4356
    %v4399 = vpack.c.b16 %v4361, %v4359
    %v4400 = vpack.c.b16 %v4362, %v4360
    %v4401 = vpack.c.b16 %v4365, %v4363
    %v4402 = vpack.c.b16 %v4366, %v4364
    %v4403 = vpack.c.b16 %v4369, %v4367
    %v4404 = vpack.c.b16 %v4370, %v4368
    %v4405 = vpack.c.b16 %v4373, %v4371
    %v4406 = vpack.c.b16 %v4374, %v4372
    %4439 = vmatprep.subr.bf16.mxu0 %v4390
    %4440 = vmatpush1.bf16.msra.mxu0 %v4389
    %4441 = vmatprep.subr.bf16.mxu0 %v4388
    %4442 = vmatpush1.bf16.msra.mxu0 %v4387
    %4443 = vmatprep.subr.bf16.mxu0 %v4386
    %4444 = vmatpush1.bf16.msra.mxu0 %v4385
    %4445 = vmatprep.subr.bf16.mxu0 %v4384
    %4446 = vmatpush1.bf16.msra.mxu0 %v4383
    %4447 = vmatprep.subr.bf16.mxu0 %v4382
    %4448 = vmatpush1.bf16.msra.mxu0 %v4381
    %4449 = vmatprep.subr.bf16.mxu0 %v4380
    %4450 = vmatpush1.bf16.msra.mxu0 %v4379
    %4451 = vmatprep.subr.bf16.mxu0 %v4378
    %4452 = vmatpush1.bf16.msra.mxu0 %v4377
    %4453 = vmatprep.subr.bf16.mxu0 %v4376
    %4454 = vmatpush1.bf16.msra.mxu0 %v4375
    %4455 = vmatprep.subr.bf16.mxu0 %v4406
    %4456 = vmatpush2.bf16.msra.mxu0 %v4405
    %4457 = vmatprep.subr.bf16.mxu0 %v4404
    %4458 = vmatpush2.bf16.msra.mxu0 %v4403
    %4459 = vmatprep.subr.bf16.mxu0 %v4402
    %4460 = vmatpush2.bf16.msra.mxu0 %v4401
    %4461 = vmatprep.subr.bf16.mxu0 %v4400
    %4462 = vmatpush2.bf16.msra.mxu0 %v4399
    %4463 = vmatprep.subr.bf16.mxu0 %v4398
    %4464 = vmatpush2.bf16.msra.mxu0 %v4397
    %4465 = vmatprep.subr.bf16.mxu0 %v4396
    %4466 = vmatpush2.bf16.msra.mxu0 %v4395
    %4467 = vmatprep.subr.bf16.mxu0 %v4394
    %4468 = vmatpush2.bf16.msra.mxu0 %v4393
    %4469 = vmatprep.subr.bf16.mxu0 %v4392
    %4470 = vmatpush2.bf16.msra.mxu0 %v4391
    %4471 = vmatprep.mubr.bf16.mxu0 %v1314
    %4472 = vmatmul.mubr.bf16.gmra.mxu0 %v1313
    %v4473 = vpop.f32.mrf.mxu0
    %v4474 = vadd.f32 %v4272, %v4473
    %v4475 = vpop.f32.mrf.mxu0
    %v4476 = vadd.f32 %v4276, %v4475
    %v4477 = vpop.f32.mrf.mxu0
    %v4478 = vpop.f32.mrf.mxu0
    %4479 = vdwg.mxu0
    %v4480 = vmax.f32 %v4474, 0.0
    %v4481 = vmax.f32 %v4476, 0.0
    %v4482 = vpack.c.bf16 %v4480, %v4480
    %v4483 = vpack.c.bf16 %v4481, %v4481
    %s4484 = scalar_lea.vmem [#allocation2], 6912
    %v4485 = vld [vmem:[%s4484] sm:$0xff]
    %v4486 = vld [vmem:[%s4484 + $0x8] sm:$0xff]
    %v4487 = vld [vmem:[%s4484 + $0x10] sm:$0xff]
    %v4488 = vld [vmem:[%s4484 + $0x18] sm:$0xff]
    %v4489 = vld [vmem:[%s4484 + $0x20] sm:$0xff]
    %v4490 = vld [vmem:[%s4484 + $0x28] sm:$0xff]
    %v4491 = vld [vmem:[%s4484 + $0x30] sm:$0xff]
    %v4492 = vld [vmem:[%s4484 + $0x38] sm:$0xff]
    %v4493 = vld [vmem:[%s4484 + $0x40] sm:$0xff]
    %v4494 = vld [vmem:[%s4484 + $0x48] sm:$0xff]
    %v4495 = vld [vmem:[%s4484 + $0x50] sm:$0xff]
    %v4496 = vld [vmem:[%s4484 + $0x58] sm:$0xff]
    %v4497 = vld [vmem:[%s4484 + $0x60] sm:$0xff]
    %v4498 = vld [vmem:[%s4484 + $0x68] sm:$0xff]
    %v4499 = vld [vmem:[%s4484 + $0x70] sm:$0xff]
    %v4500 = vld [vmem:[%s4484 + $0x78] sm:$0xff]
    %v4501 = vld [vmem:[%s4484 + $0x80] sm:$0xff]
    %v4502 = vld [vmem:[%s4484 + $0x88] sm:$0xff]
    %v4503 = vld [vmem:[%s4484 + $0x90] sm:$0xff]
    %v4504 = vld [vmem:[%s4484 + $0x98] sm:$0xff]
    %v4505 = vld [vmem:[%s4484 + $0xa0] sm:$0xff]
    %v4506 = vld [vmem:[%s4484 + $0xa8] sm:$0xff]
    %v4507 = vld [vmem:[%s4484 + $0xb0] sm:$0xff]
    %v4508 = vld [vmem:[%s4484 + $0xb8] sm:$0xff]
    %v4509 = vld [vmem:[%s4484 + $0xc0] sm:$0xff]
    %v4510 = vld [vmem:[%s4484 + $0xc8] sm:$0xff]
    %v4511 = vld [vmem:[%s4484 + $0xd0] sm:$0xff]
    %v4512 = vld [vmem:[%s4484 + $0xd8] sm:$0xff]
    %v4513 = vld [vmem:[%s4484 + $0xe0] sm:$0xff]
    %v4514 = vld [vmem:[%s4484 + $0xe8] sm:$0xff]
    %v4515 = vld [vmem:[%s4484 + $0xf0] sm:$0xff]
    %v4516 = vld [vmem:[%s4484 + $0xf8] sm:$0xff]
    %v4549 = vunpack.c.l.b16 %v4485
    %v4550 = vunpack.c.h.b16 %v4485
    %v4551 = vunpack.c.l.b16 %v4486
    %v4552 = vunpack.c.h.b16 %v4486
    %v4553 = vunpack.c.l.b16 %v4487
    %v4554 = vunpack.c.h.b16 %v4487
    %v4555 = vunpack.c.l.b16 %v4488
    %v4556 = vunpack.c.h.b16 %v4488
    %v4557 = vunpack.c.l.b16 %v4489
    %v4558 = vunpack.c.h.b16 %v4489
    %v4559 = vunpack.c.l.b16 %v4490
    %v4560 = vunpack.c.h.b16 %v4490
    %v4561 = vunpack.c.l.b16 %v4491
    %v4562 = vunpack.c.h.b16 %v4491
    %v4563 = vunpack.c.l.b16 %v4492
    %v4564 = vunpack.c.h.b16 %v4492
    %v4565 = vunpack.c.l.b16 %v4493
    %v4566 = vunpack.c.h.b16 %v4493
    %v4567 = vunpack.c.l.b16 %v4494
    %v4568 = vunpack.c.h.b16 %v4494
    %v4569 = vunpack.c.l.b16 %v4495
    %v4570 = vunpack.c.h.b16 %v4495
    %v4571 = vunpack.c.l.b16 %v4496
    %v4572 = vunpack.c.h.b16 %v4496
    %v4573 = vunpack.c.l.b16 %v4497
    %v4574 = vunpack.c.h.b16 %v4497
    %v4575 = vunpack.c.l.b16 %v4498
    %v4576 = vunpack.c.h.b16 %v4498
    %v4577 = vunpack.c.l.b16 %v4499
    %v4578 = vunpack.c.h.b16 %v4499
    %v4579 = vunpack.c.l.b16 %v4500
    %v4580 = vunpack.c.h.b16 %v4500
    %v4581 = vunpack.c.l.b16 %v4501
    %v4582 = vunpack.c.h.b16 %v4501
    %v4583 = vunpack.c.l.b16 %v4502
    %v4584 = vunpack.c.h.b16 %v4502
    %v4585 = vunpack.c.l.b16 %v4503
    %v4586 = vunpack.c.h.b16 %v4503
    %v4587 = vunpack.c.l.b16 %v4504
    %v4588 = vunpack.c.h.b16 %v4504
    %v4589 = vunpack.c.l.b16 %v4505
    %v4590 = vunpack.c.h.b16 %v4505
    %v4591 = vunpack.c.l.b16 %v4506
    %v4592 = vunpack.c.h.b16 %v4506
    %v4593 = vunpack.c.l.b16 %v4507
    %v4594 = vunpack.c.h.b16 %v4507
    %v4595 = vunpack.c.l.b16 %v4508
    %v4596 = vunpack.c.h.b16 %v4508
    %v4597 = vunpack.c.l.b16 %v4509
    %v4598 = vunpack.c.h.b16 %v4509
    %v4599 = vunpack.c.l.b16 %v4510
    %v4600 = vunpack.c.h.b16 %v4510
    %v4601 = vunpack.c.l.b16 %v4511
    %v4602 = vunpack.c.h.b16 %v4511
    %v4603 = vunpack.c.l.b16 %v4512
    %v4604 = vunpack.c.h.b16 %v4512
    %v4605 = vunpack.c.l.b16 %v4513
    %v4606 = vunpack.c.h.b16 %v4513
    %v4607 = vunpack.c.l.b16 %v4514
    %v4608 = vunpack.c.h.b16 %v4514
    %v4609 = vunpack.c.l.b16 %v4515
    %v4610 = vunpack.c.h.b16 %v4515
    %v4611 = vunpack.c.l.b16 %v4516
    %v4612 = vunpack.c.h.b16 %v4516
    %v4613 = vpack.c.b16 %v4551, %v4549
    %v4614 = vpack.c.b16 %v4552, %v4550
    %v4615 = vpack.c.b16 %v4555, %v4553
    %v4616 = vpack.c.b16 %v4556, %v4554
    %v4617 = vpack.c.b16 %v4559, %v4557
    %v4618 = vpack.c.b16 %v4560, %v4558
    %v4619 = vpack.c.b16 %v4563, %v4561
    %v4620 = vpack.c.b16 %v4564, %v4562
    %v4621 = vpack.c.b16 %v4567, %v4565
    %v4622 = vpack.c.b16 %v4568, %v4566
    %v4623 = vpack.c.b16 %v4571, %v4569
    %v4624 = vpack.c.b16 %v4572, %v4570
    %v4625 = vpack.c.b16 %v4575, %v4573
    %v4626 = vpack.c.b16 %v4576, %v4574
    %v4627 = vpack.c.b16 %v4579, %v4577
    %v4628 = vpack.c.b16 %v4580, %v4578
    %v4629 = vpack.c.b16 %v4583, %v4581
    %v4630 = vpack.c.b16 %v4584, %v4582
    %v4631 = vpack.c.b16 %v4587, %v4585
    %v4632 = vpack.c.b16 %v4588, %v4586
    %v4633 = vpack.c.b16 %v4591, %v4589
    %v4634 = vpack.c.b16 %v4592, %v4590
    %v4635 = vpack.c.b16 %v4595, %v4593
    %v4636 = vpack.c.b16 %v4596, %v4594
    %v4637 = vpack.c.b16 %v4599, %v4597
    %v4638 = vpack.c.b16 %v4600, %v4598
    %v4639 = vpack.c.b16 %v4603, %v4601
    %v4640 = vpack.c.b16 %v4604, %v4602
    %v4641 = vpack.c.b16 %v4607, %v4605
    %v4642 = vpack.c.b16 %v4608, %v4606
    %v4643 = vpack.c.b16 %v4611, %v4609
    %v4644 = vpack.c.b16 %v4612, %v4610
    %4677 = vmatprep.subr.bf16.mxu0 %v4628
    %4678 = vmatpush1.bf16.msra.mxu0 %v4627
    %4679 = vmatprep.subr.bf16.mxu0 %v4626
    %4680 = vmatpush1.bf16.msra.mxu0 %v4625
    %4681 = vmatprep.subr.bf16.mxu0 %v4624
    %4682 = vmatpush1.bf16.msra.mxu0 %v4623
    %4683 = vmatprep.subr.bf16.mxu0 %v4622
    %4684 = vmatpush1.bf16.msra.mxu0 %v4621
    %4685 = vmatprep.subr.bf16.mxu0 %v4620
    %4686 = vmatpush1.bf16.msra.mxu0 %v4619
    %4687 = vmatprep.subr.bf16.mxu0 %v4618
    %4688 = vmatpush1.bf16.msra.mxu0 %v4617
    %4689 = vmatprep.subr.bf16.mxu0 %v4616
    %4690 = vmatpush1.bf16.msra.mxu0 %v4615
    %4691 = vmatprep.subr.bf16.mxu0 %v4614
    %4692 = vmatpush1.bf16.msra.mxu0 %v4613
    %4693 = vmatprep.subr.bf16.mxu0 %v4644
    %4694 = vmatpush2.bf16.msra.mxu0 %v4643
    %4695 = vmatprep.subr.bf16.mxu0 %v4642
    %4696 = vmatpush2.bf16.msra.mxu0 %v4641
    %4697 = vmatprep.subr.bf16.mxu0 %v4640
    %4698 = vmatpush2.bf16.msra.mxu0 %v4639
    %4699 = vmatprep.subr.bf16.mxu0 %v4638
    %4700 = vmatpush2.bf16.msra.mxu0 %v4637
    %4701 = vmatprep.subr.bf16.mxu0 %v4636
    %4702 = vmatpush2.bf16.msra.mxu0 %v4635
    %4703 = vmatprep.subr.bf16.mxu0 %v4634
    %4704 = vmatpush2.bf16.msra.mxu0 %v4633
    %4705 = vmatprep.subr.bf16.mxu0 %v4632
    %4706 = vmatpush2.bf16.msra.mxu0 %v4631
    %4707 = vmatprep.subr.bf16.mxu0 %v4630
    %4708 = vmatpush2.bf16.msra.mxu0 %v4629
    %4709 = vmatprep.mubr.bf16.mxu0 %v4483
    %4710 = vmatmul.mubr.bf16.gmra.mxu0 %v4482
    %v4711 = vpop.f32.mrf.mxu0
    %v4712 = vadd.f32 0.0, %v4711
    %v4713 = vpop.f32.mrf.mxu0
    %v4714 = vadd.f32 0.0, %v4713
    %v4715 = vpop.f32.mrf.mxu0
    %v4716 = vpop.f32.mrf.mxu0
    %4717 = vdwg.mxu0
    %v4718 = vadd.f32 %v4231, %v4712
    %v4719 = vadd.f32 %v4232, %v4714
    %s4720 = scalar_lea.vmem [#allocation2], 3072
    %v4721 = vld [vmem:[%s4720] sm:$0xff]
    %v4722 = vld [vmem:[%s4720 + $0x8] sm:$0xff]
    %v4723 = vld [vmem:[%s4720 + $0x10] sm:$0xff]
    %v4724 = vld [vmem:[%s4720 + $0x18] sm:$0xff]
    %v4725 = vld [vmem:[%s4720 + $0x20] sm:$0xff]
    %v4726 = vld [vmem:[%s4720 + $0x28] sm:$0xff]
    %v4727 = vld [vmem:[%s4720 + $0x30] sm:$0xff]
    %v4728 = vld [vmem:[%s4720 + $0x38] sm:$0xff]
    %v4729 = vld [vmem:[%s4720 + $0x40] sm:$0xff]
    %v4730 = vld [vmem:[%s4720 + $0x48] sm:$0xff]
    %v4731 = vld [vmem:[%s4720 + $0x50] sm:$0xff]
    %v4732 = vld [vmem:[%s4720 + $0x58] sm:$0xff]
    %v4733 = vld [vmem:[%s4720 + $0x60] sm:$0xff]
    %v4734 = vld [vmem:[%s4720 + $0x68] sm:$0xff]
    %v4735 = vld [vmem:[%s4720 + $0x70] sm:$0xff]
    %v4736 = vld [vmem:[%s4720 + $0x78] sm:$0xff]
    %v4737 = vld [vmem:[%s4720 + $0x80] sm:$0xff]
    %v4738 = vld [vmem:[%s4720 + $0x88] sm:$0xff]
    %v4739 = vld [vmem:[%s4720 + $0x90] sm:$0xff]
    %v4740 = vld [vmem:[%s4720 + $0x98] sm:$0xff]
    %v4741 = vld [vmem:[%s4720 + $0xa0] sm:$0xff]
    %v4742 = vld [vmem:[%s4720 + $0xa8] sm:$0xff]
    %v4743 = vld [vmem:[%s4720 + $0xb0] sm:$0xff]
    %v4744 = vld [vmem:[%s4720 + $0xb8] sm:$0xff]
    %v4745 = vld [vmem:[%s4720 + $0xc0] sm:$0xff]
    %v4746 = vld [vmem:[%s4720 + $0xc8] sm:$0xff]
    %v4747 = vld [vmem:[%s4720 + $0xd0] sm:$0xff]
    %v4748 = vld [vmem:[%s4720 + $0xd8] sm:$0xff]
    %v4749 = vld [vmem:[%s4720 + $0xe0] sm:$0xff]
    %v4750 = vld [vmem:[%s4720 + $0xe8] sm:$0xff]
    %v4751 = vld [vmem:[%s4720 + $0xf0] sm:$0xff]
    %v4752 = vld [vmem:[%s4720 + $0xf8] sm:$0xff]
    %s4753 = scalar_lea.vmem [#allocation4], 20
    %v4754 = vld [vmem:[%s4753] ss:$8 sm:$0x3]
    %v4756 = vlaneseq
    %v4757 = vshrl.u32 %v4756, 7
    %v4758 = vsub.s32 0, %v4757
    %v4759 = vrot.slane %v4754, %v4758
    %v4760 = vlaneseq
    %v4761 = vshrl.u32 %v4760, 7
    %v4762 = vsub.s32 1, %v4761
    %v4763 = vrot.slane %v4754, %v4762
    %v4798 = vunpack.c.l.b16 %v4721
    %v4799 = vunpack.c.h.b16 %v4721
    %v4800 = vunpack.c.l.b16 %v4722
    %v4801 = vunpack.c.h.b16 %v4722
    %v4802 = vunpack.c.l.b16 %v4723
    %v4803 = vunpack.c.h.b16 %v4723
    %v4804 = vunpack.c.l.b16 %v4724
    %v4805 = vunpack.c.h.b16 %v4724
    %v4806 = vunpack.c.l.b16 %v4725
    %v4807 = vunpack.c.h.b16 %v4725
    %v4808 = vunpack.c.l.b16 %v4726
    %v4809 = vunpack.c.h.b16 %v4726
    %v4810 = vunpack.c.l.b16 %v4727
    %v4811 = vunpack.c.h.b16 %v4727
    %v4812 = vunpack.c.l.b16 %v4728
    %v4813 = vunpack.c.h.b16 %v4728
    %v4814 = vunpack.c.l.b16 %v4729
    %v4815 = vunpack.c.h.b16 %v4729
    %v4816 = vunpack.c.l.b16 %v4730
    %v4817 = vunpack.c.h.b16 %v4730
    %v4818 = vunpack.c.l.b16 %v4731
    %v4819 = vunpack.c.h.b16 %v4731
    %v4820 = vunpack.c.l.b16 %v4732
    %v4821 = vunpack.c.h.b16 %v4732
    %v4822 = vunpack.c.l.b16 %v4733
    %v4823 = vunpack.c.h.b16 %v4733
    %v4824 = vunpack.c.l.b16 %v4734
    %v4825 = vunpack.c.h.b16 %v4734
    %v4826 = vunpack.c.l.b16 %v4735
    %v4827 = vunpack.c.h.b16 %v4735
    %v4828 = vunpack.c.l.b16 %v4736
    %v4829 = vunpack.c.h.b16 %v4736
    %v4830 = vunpack.c.l.b16 %v4737
    %v4831 = vunpack.c.h.b16 %v4737
    %v4832 = vunpack.c.l.b16 %v4738
    %v4833 = vunpack.c.h.b16 %v4738
    %v4834 = vunpack.c.l.b16 %v4739
    %v4835 = vunpack.c.h.b16 %v4739
    %v4836 = vunpack.c.l.b16 %v4740
    %v4837 = vunpack.c.h.b16 %v4740
    %v4838 = vunpack.c.l.b16 %v4741
    %v4839 = vunpack.c.h.b16 %v4741
    %v4840 = vunpack.c.l.b16 %v4742
    %v4841 = vunpack.c.h.b16 %v4742
    %v4842 = vunpack.c.l.b16 %v4743
    %v4843 = vunpack.c.h.b16 %v4743
    %v4844 = vunpack.c.l.b16 %v4744
    %v4845 = vunpack.c.h.b16 %v4744
    %v4846 = vunpack.c.l.b16 %v4745
    %v4847 = vunpack.c.h.b16 %v4745
    %v4848 = vunpack.c.l.b16 %v4746
    %v4849 = vunpack.c.h.b16 %v4746
    %v4850 = vunpack.c.l.b16 %v4747
    %v4851 = vunpack.c.h.b16 %v4747
    %v4852 = vunpack.c.l.b16 %v4748
    %v4853 = vunpack.c.h.b16 %v4748
    %v4854 = vunpack.c.l.b16 %v4749
    %v4855 = vunpack.c.h.b16 %v4749
    %v4856 = vunpack.c.l.b16 %v4750
    %v4857 = vunpack.c.h.b16 %v4750
    %v4858 = vunpack.c.l.b16 %v4751
    %v4859 = vunpack.c.h.b16 %v4751
    %v4860 = vunpack.c.l.b16 %v4752
    %v4861 = vunpack.c.h.b16 %v4752
    %v4862 = vpack.c.b16 %v4800, %v4798
    %v4863 = vpack.c.b16 %v4801, %v4799
    %v4864 = vpack.c.b16 %v4804, %v4802
    %v4865 = vpack.c.b16 %v4805, %v4803
    %v4866 = vpack.c.b16 %v4808, %v4806
    %v4867 = vpack.c.b16 %v4809, %v4807
    %v4868 = vpack.c.b16 %v4812, %v4810
    %v4869 = vpack.c.b16 %v4813, %v4811
    %v4870 = vpack.c.b16 %v4816, %v4814
    %v4871 = vpack.c.b16 %v4817, %v4815
    %v4872 = vpack.c.b16 %v4820, %v4818
    %v4873 = vpack.c.b16 %v4821, %v4819
    %v4874 = vpack.c.b16 %v4824, %v4822
    %v4875 = vpack.c.b16 %v4825, %v4823
    %v4876 = vpack.c.b16 %v4828, %v4826
    %v4877 = vpack.c.b16 %v4829, %v4827
    %v4878 = vpack.c.b16 %v4832, %v4830
    %v4879 = vpack.c.b16 %v4833, %v4831
    %v4880 = vpack.c.b16 %v4836, %v4834
    %v4881 = vpack.c.b16 %v4837, %v4835
    %v4882 = vpack.c.b16 %v4840, %v4838
    %v4883 = vpack.c.b16 %v4841, %v4839
    %v4884 = vpack.c.b16 %v4844, %v4842
    %v4885 = vpack.c.b16 %v4845, %v4843
    %v4886 = vpack.c.b16 %v4848, %v4846
    %v4887 = vpack.c.b16 %v4849, %v4847
    %v4888 = vpack.c.b16 %v4852, %v4850
    %v4889 = vpack.c.b16 %v4853, %v4851
    %v4890 = vpack.c.b16 %v4856, %v4854
    %v4891 = vpack.c.b16 %v4857, %v4855
    %v4892 = vpack.c.b16 %v4860, %v4858
    %v4893 = vpack.c.b16 %v4861, %v4859
    %4926 = vmatprep.subr.bf16.mxu0 %v4877
    %4927 = vmatpush1.bf16.msra.mxu0 %v4876
    %4928 = vmatprep.subr.bf16.mxu0 %v4875
    %4929 = vmatpush1.bf16.msra.mxu0 %v4874
    %4930 = vmatprep.subr.bf16.mxu0 %v4873
    %4931 = vmatpush1.bf16.msra.mxu0 %v4872
    %4932 = vmatprep.subr.bf16.mxu0 %v4871
    %4933 = vmatpush1.bf16.msra.mxu0 %v4870
    %4934 = vmatprep.subr.bf16.mxu0 %v4869
    %4935 = vmatpush1.bf16.msra.mxu0 %v4868
    %4936 = vmatprep.subr.bf16.mxu0 %v4867
    %4937 = vmatpush1.bf16.msra.mxu0 %v4866
    %4938 = vmatprep.subr.bf16.mxu0 %v4865
    %4939 = vmatpush1.bf16.msra.mxu0 %v4864
    %4940 = vmatprep.subr.bf16.mxu0 %v4863
    %4941 = vmatpush1.bf16.msra.mxu0 %v4862
    %4942 = vmatprep.subr.bf16.mxu0 %v4893
    %4943 = vmatpush2.bf16.msra.mxu0 %v4892
    %4944 = vmatprep.subr.bf16.mxu0 %v4891
    %4945 = vmatpush2.bf16.msra.mxu0 %v4890
    %4946 = vmatprep.subr.bf16.mxu0 %v4889
    %4947 = vmatpush2.bf16.msra.mxu0 %v4888
    %4948 = vmatprep.subr.bf16.mxu0 %v4887
    %4949 = vmatpush2.bf16.msra.mxu0 %v4886
    %4950 = vmatprep.subr.bf16.mxu0 %v4885
    %4951 = vmatpush2.bf16.msra.mxu0 %v4884
    %4952 = vmatprep.subr.bf16.mxu0 %v4883
    %4953 = vmatpush2.bf16.msra.mxu0 %v4882
    %4954 = vmatprep.subr.bf16.mxu0 %v4881
    %4955 = vmatpush2.bf16.msra.mxu0 %v4880
    %4956 = vmatprep.subr.bf16.mxu0 %v4879
    %4957 = vmatpush2.bf16.msra.mxu0 %v4878
    %4958 = vmatprep.mubr.bf16.mxu0 %v1314
    %4959 = vmatmul.mubr.bf16.gmra.mxu0 %v1313
    %v4960 = vpop.f32.mrf.mxu0
    %v4961 = vadd.f32 %v4759, %v4960
    %v4962 = vpop.f32.mrf.mxu0
    %v4963 = vadd.f32 %v4763, %v4962
    %v4964 = vpop.f32.mrf.mxu0
    %v4965 = vpop.f32.mrf.mxu0
    %4966 = vdwg.mxu0
    %v4967 = vmax.f32 %v4961, 0.0
    %v4968 = vmax.f32 %v4963, 0.0
    %v4969 = vpack.c.bf16 %v4967, %v4967
    %v4970 = vpack.c.bf16 %v4968, %v4968
    %s4971 = scalar_lea.vmem [#allocation2], 7168
    %v4972 = vld [vmem:[%s4971] sm:$0xff]
    %v4973 = vld [vmem:[%s4971 + $0x8] sm:$0xff]
    %v4974 = vld [vmem:[%s4971 + $0x10] sm:$0xff]
    %v4975 = vld [vmem:[%s4971 + $0x18] sm:$0xff]
    %v4976 = vld [vmem:[%s4971 + $0x20] sm:$0xff]
    %v4977 = vld [vmem:[%s4971 + $0x28] sm:$0xff]
    %v4978 = vld [vmem:[%s4971 + $0x30] sm:$0xff]
    %v4979 = vld [vmem:[%s4971 + $0x38] sm:$0xff]
    %v4980 = vld [vmem:[%s4971 + $0x40] sm:$0xff]
    %v4981 = vld [vmem:[%s4971 + $0x48] sm:$0xff]
    %v4982 = vld [vmem:[%s4971 + $0x50] sm:$0xff]
    %v4983 = vld [vmem:[%s4971 + $0x58] sm:$0xff]
    %v4984 = vld [vmem:[%s4971 + $0x60] sm:$0xff]
    %v4985 = vld [vmem:[%s4971 + $0x68] sm:$0xff]
    %v4986 = vld [vmem:[%s4971 + $0x70] sm:$0xff]
    %v4987 = vld [vmem:[%s4971 + $0x78] sm:$0xff]
    %v4988 = vld [vmem:[%s4971 + $0x80] sm:$0xff]
    %v4989 = vld [vmem:[%s4971 + $0x88] sm:$0xff]
    %v4990 = vld [vmem:[%s4971 + $0x90] sm:$0xff]
    %v4991 = vld [vmem:[%s4971 + $0x98] sm:$0xff]
    %v4992 = vld [vmem:[%s4971 + $0xa0] sm:$0xff]
    %v4993 = vld [vmem:[%s4971 + $0xa8] sm:$0xff]
    %v4994 = vld [vmem:[%s4971 + $0xb0] sm:$0xff]
    %v4995 = vld [vmem:[%s4971 + $0xb8] sm:$0xff]
    %v4996 = vld [vmem:[%s4971 + $0xc0] sm:$0xff]
    %v4997 = vld [vmem:[%s4971 + $0xc8] sm:$0xff]
    %v4998 = vld [vmem:[%s4971 + $0xd0] sm:$0xff]
    %v4999 = vld [vmem:[%s4971 + $0xd8] sm:$0xff]
    %v5000 = vld [vmem:[%s4971 + $0xe0] sm:$0xff]
    %v5001 = vld [vmem:[%s4971 + $0xe8] sm:$0xff]
    %v5002 = vld [vmem:[%s4971 + $0xf0] sm:$0xff]
    %v5003 = vld [vmem:[%s4971 + $0xf8] sm:$0xff]
    %v5036 = vunpack.c.l.b16 %v4972
    %v5037 = vunpack.c.h.b16 %v4972
    %v5038 = vunpack.c.l.b16 %v4973
    %v5039 = vunpack.c.h.b16 %v4973
    %v5040 = vunpack.c.l.b16 %v4974
    %v5041 = vunpack.c.h.b16 %v4974
    %v5042 = vunpack.c.l.b16 %v4975
    %v5043 = vunpack.c.h.b16 %v4975
    %v5044 = vunpack.c.l.b16 %v4976
    %v5045 = vunpack.c.h.b16 %v4976
    %v5046 = vunpack.c.l.b16 %v4977
    %v5047 = vunpack.c.h.b16 %v4977
    %v5048 = vunpack.c.l.b16 %v4978
    %v5049 = vunpack.c.h.b16 %v4978
    %v5050 = vunpack.c.l.b16 %v4979
    %v5051 = vunpack.c.h.b16 %v4979
    %v5052 = vunpack.c.l.b16 %v4980
    %v5053 = vunpack.c.h.b16 %v4980
    %v5054 = vunpack.c.l.b16 %v4981
    %v5055 = vunpack.c.h.b16 %v4981
    %v5056 = vunpack.c.l.b16 %v4982
    %v5057 = vunpack.c.h.b16 %v4982
    %v5058 = vunpack.c.l.b16 %v4983
    %v5059 = vunpack.c.h.b16 %v4983
    %v5060 = vunpack.c.l.b16 %v4984
    %v5061 = vunpack.c.h.b16 %v4984
    %v5062 = vunpack.c.l.b16 %v4985
    %v5063 = vunpack.c.h.b16 %v4985
    %v5064 = vunpack.c.l.b16 %v4986
    %v5065 = vunpack.c.h.b16 %v4986
    %v5066 = vunpack.c.l.b16 %v4987
    %v5067 = vunpack.c.h.b16 %v4987
    %v5068 = vunpack.c.l.b16 %v4988
    %v5069 = vunpack.c.h.b16 %v4988
    %v5070 = vunpack.c.l.b16 %v4989
    %v5071 = vunpack.c.h.b16 %v4989
    %v5072 = vunpack.c.l.b16 %v4990
    %v5073 = vunpack.c.h.b16 %v4990
    %v5074 = vunpack.c.l.b16 %v4991
    %v5075 = vunpack.c.h.b16 %v4991
    %v5076 = vunpack.c.l.b16 %v4992
    %v5077 = vunpack.c.h.b16 %v4992
    %v5078 = vunpack.c.l.b16 %v4993
    %v5079 = vunpack.c.h.b16 %v4993
    %v5080 = vunpack.c.l.b16 %v4994
    %v5081 = vunpack.c.h.b16 %v4994
    %v5082 = vunpack.c.l.b16 %v4995
    %v5083 = vunpack.c.h.b16 %v4995
    %v5084 = vunpack.c.l.b16 %v4996
    %v5085 = vunpack.c.h.b16 %v4996
    %v5086 = vunpack.c.l.b16 %v4997
    %v5087 = vunpack.c.h.b16 %v4997
    %v5088 = vunpack.c.l.b16 %v4998
    %v5089 = vunpack.c.h.b16 %v4998
    %v5090 = vunpack.c.l.b16 %v4999
    %v5091 = vunpack.c.h.b16 %v4999
    %v5092 = vunpack.c.l.b16 %v5000
    %v5093 = vunpack.c.h.b16 %v5000
    %v5094 = vunpack.c.l.b16 %v5001
    %v5095 = vunpack.c.h.b16 %v5001
    %v5096 = vunpack.c.l.b16 %v5002
    %v5097 = vunpack.c.h.b16 %v5002
    %v5098 = vunpack.c.l.b16 %v5003
    %v5099 = vunpack.c.h.b16 %v5003
    %v5100 = vpack.c.b16 %v5038, %v5036
    %v5101 = vpack.c.b16 %v5039, %v5037
    %v5102 = vpack.c.b16 %v5042, %v5040
    %v5103 = vpack.c.b16 %v5043, %v5041
    %v5104 = vpack.c.b16 %v5046, %v5044
    %v5105 = vpack.c.b16 %v5047, %v5045
    %v5106 = vpack.c.b16 %v5050, %v5048
    %v5107 = vpack.c.b16 %v5051, %v5049
    %v5108 = vpack.c.b16 %v5054, %v5052
    %v5109 = vpack.c.b16 %v5055, %v5053
    %v5110 = vpack.c.b16 %v5058, %v5056
    %v5111 = vpack.c.b16 %v5059, %v5057
    %v5112 = vpack.c.b16 %v5062, %v5060
    %v5113 = vpack.c.b16 %v5063, %v5061
    %v5114 = vpack.c.b16 %v5066, %v5064
    %v5115 = vpack.c.b16 %v5067, %v5065
    %v5116 = vpack.c.b16 %v5070, %v5068
    %v5117 = vpack.c.b16 %v5071, %v5069
    %v5118 = vpack.c.b16 %v5074, %v5072
    %v5119 = vpack.c.b16 %v5075, %v5073
    %v5120 = vpack.c.b16 %v5078, %v5076
    %v5121 = vpack.c.b16 %v5079, %v5077
    %v5122 = vpack.c.b16 %v5082, %v5080
    %v5123 = vpack.c.b16 %v5083, %v5081
    %v5124 = vpack.c.b16 %v5086, %v5084
    %v5125 = vpack.c.b16 %v5087, %v5085
    %v5126 = vpack.c.b16 %v5090, %v5088
    %v5127 = vpack.c.b16 %v5091, %v5089
    %v5128 = vpack.c.b16 %v5094, %v5092
    %v5129 = vpack.c.b16 %v5095, %v5093
    %v5130 = vpack.c.b16 %v5098, %v5096
    %v5131 = vpack.c.b16 %v5099, %v5097
    %5164 = vmatprep.subr.bf16.mxu0 %v5115
    %5165 = vmatpush1.bf16.msra.mxu0 %v5114
    %5166 = vmatprep.subr.bf16.mxu0 %v5113
    %5167 = vmatpush1.bf16.msra.mxu0 %v5112
    %5168 = vmatprep.subr.bf16.mxu0 %v5111
    %5169 = vmatpush1.bf16.msra.mxu0 %v5110
    %5170 = vmatprep.subr.bf16.mxu0 %v5109
    %5171 = vmatpush1.bf16.msra.mxu0 %v5108
    %5172 = vmatprep.subr.bf16.mxu0 %v5107
    %5173 = vmatpush1.bf16.msra.mxu0 %v5106
    %5174 = vmatprep.subr.bf16.mxu0 %v5105
    %5175 = vmatpush1.bf16.msra.mxu0 %v5104
    %5176 = vmatprep.subr.bf16.mxu0 %v5103
    %5177 = vmatpush1.bf16.msra.mxu0 %v5102
    %5178 = vmatprep.subr.bf16.mxu0 %v5101
    %5179 = vmatpush1.bf16.msra.mxu0 %v5100
    %5180 = vmatprep.subr.bf16.mxu0 %v5131
    %5181 = vmatpush2.bf16.msra.mxu0 %v5130
    %5182 = vmatprep.subr.bf16.mxu0 %v5129
    %5183 = vmatpush2.bf16.msra.mxu0 %v5128
    %5184 = vmatprep.subr.bf16.mxu0 %v5127
    %5185 = vmatpush2.bf16.msra.mxu0 %v5126
    %5186 = vmatprep.subr.bf16.mxu0 %v5125
    %5187 = vmatpush2.bf16.msra.mxu0 %v5124
    %5188 = vmatprep.subr.bf16.mxu0 %v5123
    %5189 = vmatpush2.bf16.msra.mxu0 %v5122
    %5190 = vmatprep.subr.bf16.mxu0 %v5121
    %5191 = vmatpush2.bf16.msra.mxu0 %v5120
    %5192 = vmatprep.subr.bf16.mxu0 %v5119
    %5193 = vmatpush2.bf16.msra.mxu0 %v5118
    %5194 = vmatprep.subr.bf16.mxu0 %v5117
    %5195 = vmatpush2.bf16.msra.mxu0 %v5116
    %5196 = vmatprep.mubr.bf16.mxu0 %v4970
    %5197 = vmatmul.mubr.bf16.gmra.mxu0 %v4969
    %v5198 = vpop.f32.mrf.mxu0
    %v5199 = vadd.f32 0.0, %v5198
    %v5200 = vpop.f32.mrf.mxu0
    %v5201 = vadd.f32 0.0, %v5200
    %v5202 = vpop.f32.mrf.mxu0
    %v5203 = vpop.f32.mrf.mxu0
    %5204 = vdwg.mxu0
    %v5205 = vadd.f32 %v4718, %v5199
    %v5206 = vadd.f32 %v4719, %v5201
    %s5207 = scalar_lea.vmem [#allocation2], 3328
    %v5208 = vld [vmem:[%s5207] sm:$0xff]
    %v5209 = vld [vmem:[%s5207 + $0x8] sm:$0xff]
    %v5210 = vld [vmem:[%s5207 + $0x10] sm:$0xff]
    %v5211 = vld [vmem:[%s5207 + $0x18] sm:$0xff]
    %v5212 = vld [vmem:[%s5207 + $0x20] sm:$0xff]
    %v5213 = vld [vmem:[%s5207 + $0x28] sm:$0xff]
    %v5214 = vld [vmem:[%s5207 + $0x30] sm:$0xff]
    %v5215 = vld [vmem:[%s5207 + $0x38] sm:$0xff]
    %v5216 = vld [vmem:[%s5207 + $0x40] sm:$0xff]
    %v5217 = vld [vmem:[%s5207 + $0x48] sm:$0xff]
    %v5218 = vld [vmem:[%s5207 + $0x50] sm:$0xff]
    %v5219 = vld [vmem:[%s5207 + $0x58] sm:$0xff]
    %v5220 = vld [vmem:[%s5207 + $0x60] sm:$0xff]
    %v5221 = vld [vmem:[%s5207 + $0x68] sm:$0xff]
    %v5222 = vld [vmem:[%s5207 + $0x70] sm:$0xff]
    %v5223 = vld [vmem:[%s5207 + $0x78] sm:$0xff]
    %v5224 = vld [vmem:[%s5207 + $0x80] sm:$0xff]
    %v5225 = vld [vmem:[%s5207 + $0x88] sm:$0xff]
    %v5226 = vld [vmem:[%s5207 + $0x90] sm:$0xff]
    %v5227 = vld [vmem:[%s5207 + $0x98] sm:$0xff]
    %v5228 = vld [vmem:[%s5207 + $0xa0] sm:$0xff]
    %v5229 = vld [vmem:[%s5207 + $0xa8] sm:$0xff]
    %v5230 = vld [vmem:[%s5207 + $0xb0] sm:$0xff]
    %v5231 = vld [vmem:[%s5207 + $0xb8] sm:$0xff]
    %v5232 = vld [vmem:[%s5207 + $0xc0] sm:$0xff]
    %v5233 = vld [vmem:[%s5207 + $0xc8] sm:$0xff]
    %v5234 = vld [vmem:[%s5207 + $0xd0] sm:$0xff]
    %v5235 = vld [vmem:[%s5207 + $0xd8] sm:$0xff]
    %v5236 = vld [vmem:[%s5207 + $0xe0] sm:$0xff]
    %v5237 = vld [vmem:[%s5207 + $0xe8] sm:$0xff]
    %v5238 = vld [vmem:[%s5207 + $0xf0] sm:$0xff]
    %v5239 = vld [vmem:[%s5207 + $0xf8] sm:$0xff]
    %s5240 = scalar_lea.vmem [#allocation4], 21
    %v5241 = vld [vmem:[%s5240] ss:$8 sm:$0x3]
    %v5243 = vlaneseq
    %v5244 = vshrl.u32 %v5243, 7
    %v5245 = vsub.s32 0, %v5244
    %v5246 = vrot.slane %v5241, %v5245
    %v5247 = vlaneseq
    %v5248 = vshrl.u32 %v5247, 7
    %v5249 = vsub.s32 1, %v5248
    %v5250 = vrot.slane %v5241, %v5249
    %v5285 = vunpack.c.l.b16 %v5208
    %v5286 = vunpack.c.h.b16 %v5208
    %v5287 = vunpack.c.l.b16 %v5209
    %v5288 = vunpack.c.h.b16 %v5209
    %v5289 = vunpack.c.l.b16 %v5210
    %v5290 = vunpack.c.h.b16 %v5210
    %v5291 = vunpack.c.l.b16 %v5211
    %v5292 = vunpack.c.h.b16 %v5211
    %v5293 = vunpack.c.l.b16 %v5212
    %v5294 = vunpack.c.h.b16 %v5212
    %v5295 = vunpack.c.l.b16 %v5213
    %v5296 = vunpack.c.h.b16 %v5213
    %v5297 = vunpack.c.l.b16 %v5214
    %v5298 = vunpack.c.h.b16 %v5214
    %v5299 = vunpack.c.l.b16 %v5215
    %v5300 = vunpack.c.h.b16 %v5215
    %v5301 = vunpack.c.l.b16 %v5216
    %v5302 = vunpack.c.h.b16 %v5216
    %v5303 = vunpack.c.l.b16 %v5217
    %v5304 = vunpack.c.h.b16 %v5217
    %v5305 = vunpack.c.l.b16 %v5218
    %v5306 = vunpack.c.h.b16 %v5218
    %v5307 = vunpack.c.l.b16 %v5219
    %v5308 = vunpack.c.h.b16 %v5219
    %v5309 = vunpack.c.l.b16 %v5220
    %v5310 = vunpack.c.h.b16 %v5220
    %v5311 = vunpack.c.l.b16 %v5221
    %v5312 = vunpack.c.h.b16 %v5221
    %v5313 = vunpack.c.l.b16 %v5222
    %v5314 = vunpack.c.h.b16 %v5222
    %v5315 = vunpack.c.l.b16 %v5223
    %v5316 = vunpack.c.h.b16 %v5223
    %v5317 = vunpack.c.l.b16 %v5224
    %v5318 = vunpack.c.h.b16 %v5224
    %v5319 = vunpack.c.l.b16 %v5225
    %v5320 = vunpack.c.h.b16 %v5225
    %v5321 = vunpack.c.l.b16 %v5226
    %v5322 = vunpack.c.h.b16 %v5226
    %v5323 = vunpack.c.l.b16 %v5227
    %v5324 = vunpack.c.h.b16 %v5227
    %v5325 = vunpack.c.l.b16 %v5228
    %v5326 = vunpack.c.h.b16 %v5228
    %v5327 = vunpack.c.l.b16 %v5229
    %v5328 = vunpack.c.h.b16 %v5229
    %v5329 = vunpack.c.l.b16 %v5230
    %v5330 = vunpack.c.h.b16 %v5230
    %v5331 = vunpack.c.l.b16 %v5231
    %v5332 = vunpack.c.h.b16 %v5231
    %v5333 = vunpack.c.l.b16 %v5232
    %v5334 = vunpack.c.h.b16 %v5232
    %v5335 = vunpack.c.l.b16 %v5233
    %v5336 = vunpack.c.h.b16 %v5233
    %v5337 = vunpack.c.l.b16 %v5234
    %v5338 = vunpack.c.h.b16 %v5234
    %v5339 = vunpack.c.l.b16 %v5235
    %v5340 = vunpack.c.h.b16 %v5235
    %v5341 = vunpack.c.l.b16 %v5236
    %v5342 = vunpack.c.h.b16 %v5236
    %v5343 = vunpack.c.l.b16 %v5237
    %v5344 = vunpack.c.h.b16 %v5237
    %v5345 = vunpack.c.l.b16 %v5238
    %v5346 = vunpack.c.h.b16 %v5238
    %v5347 = vunpack.c.l.b16 %v5239
    %v5348 = vunpack.c.h.b16 %v5239
    %v5349 = vpack.c.b16 %v5287, %v5285
    %v5350 = vpack.c.b16 %v5288, %v5286
    %v5351 = vpack.c.b16 %v5291, %v5289
    %v5352 = vpack.c.b16 %v5292, %v5290
    %v5353 = vpack.c.b16 %v5295, %v5293
    %v5354 = vpack.c.b16 %v5296, %v5294
    %v5355 = vpack.c.b16 %v5299, %v5297
    %v5356 = vpack.c.b16 %v5300, %v5298
    %v5357 = vpack.c.b16 %v5303, %v5301
    %v5358 = vpack.c.b16 %v5304, %v5302
    %v5359 = vpack.c.b16 %v5307, %v5305
    %v5360 = vpack.c.b16 %v5308, %v5306
    %v5361 = vpack.c.b16 %v5311, %v5309
    %v5362 = vpack.c.b16 %v5312, %v5310
    %v5363 = vpack.c.b16 %v5315, %v5313
    %v5364 = vpack.c.b16 %v5316, %v5314
    %v5365 = vpack.c.b16 %v5319, %v5317
    %v5366 = vpack.c.b16 %v5320, %v5318
    %v5367 = vpack.c.b16 %v5323, %v5321
    %v5368 = vpack.c.b16 %v5324, %v5322
    %v5369 = vpack.c.b16 %v5327, %v5325
    %v5370 = vpack.c.b16 %v5328, %v5326
    %v5371 = vpack.c.b16 %v5331, %v5329
    %v5372 = vpack.c.b16 %v5332, %v5330
    %v5373 = vpack.c.b16 %v5335, %v5333
    %v5374 = vpack.c.b16 %v5336, %v5334
    %v5375 = vpack.c.b16 %v5339, %v5337
    %v5376 = vpack.c.b16 %v5340, %v5338
    %v5377 = vpack.c.b16 %v5343, %v5341
    %v5378 = vpack.c.b16 %v5344, %v5342
    %v5379 = vpack.c.b16 %v5347, %v5345
    %v5380 = vpack.c.b16 %v5348, %v5346
    %5413 = vmatprep.subr.bf16.mxu0 %v5364
    %5414 = vmatpush1.bf16.msra.mxu0 %v5363
    %5415 = vmatprep.subr.bf16.mxu0 %v5362
    %5416 = vmatpush1.bf16.msra.mxu0 %v5361
    %5417 = vmatprep.subr.bf16.mxu0 %v5360
    %5418 = vmatpush1.bf16.msra.mxu0 %v5359
    %5419 = vmatprep.subr.bf16.mxu0 %v5358
    %5420 = vmatpush1.bf16.msra.mxu0 %v5357
    %5421 = vmatprep.subr.bf16.mxu0 %v5356
    %5422 = vmatpush1.bf16.msra.mxu0 %v5355
    %5423 = vmatprep.subr.bf16.mxu0 %v5354
    %5424 = vmatpush1.bf16.msra.mxu0 %v5353
    %5425 = vmatprep.subr.bf16.mxu0 %v5352
    %5426 = vmatpush1.bf16.msra.mxu0 %v5351
    %5427 = vmatprep.subr.bf16.mxu0 %v5350
    %5428 = vmatpush1.bf16.msra.mxu0 %v5349
    %5429 = vmatprep.subr.bf16.mxu0 %v5380
    %5430 = vmatpush2.bf16.msra.mxu0 %v5379
    %5431 = vmatprep.subr.bf16.mxu0 %v5378
    %5432 = vmatpush2.bf16.msra.mxu0 %v5377
    %5433 = vmatprep.subr.bf16.mxu0 %v5376
    %5434 = vmatpush2.bf16.msra.mxu0 %v5375
    %5435 = vmatprep.subr.bf16.mxu0 %v5374
    %5436 = vmatpush2.bf16.msra.mxu0 %v5373
    %5437 = vmatprep.subr.bf16.mxu0 %v5372
    %5438 = vmatpush2.bf16.msra.mxu0 %v5371
    %5439 = vmatprep.subr.bf16.mxu0 %v5370
    %5440 = vmatpush2.bf16.msra.mxu0 %v5369
    %5441 = vmatprep.subr.bf16.mxu0 %v5368
    %5442 = vmatpush2.bf16.msra.mxu0 %v5367
    %5443 = vmatprep.subr.bf16.mxu0 %v5366
    %5444 = vmatpush2.bf16.msra.mxu0 %v5365
    %5445 = vmatprep.mubr.bf16.mxu0 %v1314
    %5446 = vmatmul.mubr.bf16.gmra.mxu0 %v1313
    %v5447 = vpop.f32.mrf.mxu0
    %v5448 = vadd.f32 %v5246, %v5447
    %v5449 = vpop.f32.mrf.mxu0
    %v5450 = vadd.f32 %v5250, %v5449
    %v5451 = vpop.f32.mrf.mxu0
    %v5452 = vpop.f32.mrf.mxu0
    %5453 = vdwg.mxu0
    %v5454 = vmax.f32 %v5448, 0.0
    %v5455 = vmax.f32 %v5450, 0.0
    %v5456 = vpack.c.bf16 %v5454, %v5454
    %v5457 = vpack.c.bf16 %v5455, %v5455
    %s5458 = scalar_lea.vmem [#allocation2], 7424
    %v5459 = vld [vmem:[%s5458] sm:$0xff]
    %v5460 = vld [vmem:[%s5458 + $0x8] sm:$0xff]
    %v5461 = vld [vmem:[%s5458 + $0x10] sm:$0xff]
    %v5462 = vld [vmem:[%s5458 + $0x18] sm:$0xff]
    %v5463 = vld [vmem:[%s5458 + $0x20] sm:$0xff]
    %v5464 = vld [vmem:[%s5458 + $0x28] sm:$0xff]
    %v5465 = vld [vmem:[%s5458 + $0x30] sm:$0xff]
    %v5466 = vld [vmem:[%s5458 + $0x38] sm:$0xff]
    %v5467 = vld [vmem:[%s5458 + $0x40] sm:$0xff]
    %v5468 = vld [vmem:[%s5458 + $0x48] sm:$0xff]
    %v5469 = vld [vmem:[%s5458 + $0x50] sm:$0xff]
    %v5470 = vld [vmem:[%s5458 + $0x58] sm:$0xff]
    %v5471 = vld [vmem:[%s5458 + $0x60] sm:$0xff]
    %v5472 = vld [vmem:[%s5458 + $0x68] sm:$0xff]
    %v5473 = vld [vmem:[%s5458 + $0x70] sm:$0xff]
    %v5474 = vld [vmem:[%s5458 + $0x78] sm:$0xff]
    %v5475 = vld [vmem:[%s5458 + $0x80] sm:$0xff]
    %v5476 = vld [vmem:[%s5458 + $0x88] sm:$0xff]
    %v5477 = vld [vmem:[%s5458 + $0x90] sm:$0xff]
    %v5478 = vld [vmem:[%s5458 + $0x98] sm:$0xff]
    %v5479 = vld [vmem:[%s5458 + $0xa0] sm:$0xff]
    %v5480 = vld [vmem:[%s5458 + $0xa8] sm:$0xff]
    %v5481 = vld [vmem:[%s5458 + $0xb0] sm:$0xff]
    %v5482 = vld [vmem:[%s5458 + $0xb8] sm:$0xff]
    %v5483 = vld [vmem:[%s5458 + $0xc0] sm:$0xff]
    %v5484 = vld [vmem:[%s5458 + $0xc8] sm:$0xff]
    %v5485 = vld [vmem:[%s5458 + $0xd0] sm:$0xff]
    %v5486 = vld [vmem:[%s5458 + $0xd8] sm:$0xff]
    %v5487 = vld [vmem:[%s5458 + $0xe0] sm:$0xff]
    %v5488 = vld [vmem:[%s5458 + $0xe8] sm:$0xff]
    %v5489 = vld [vmem:[%s5458 + $0xf0] sm:$0xff]
    %v5490 = vld [vmem:[%s5458 + $0xf8] sm:$0xff]
    %v5523 = vunpack.c.l.b16 %v5459
    %v5524 = vunpack.c.h.b16 %v5459
    %v5525 = vunpack.c.l.b16 %v5460
    %v5526 = vunpack.c.h.b16 %v5460
    %v5527 = vunpack.c.l.b16 %v5461
    %v5528 = vunpack.c.h.b16 %v5461
    %v5529 = vunpack.c.l.b16 %v5462
    %v5530 = vunpack.c.h.b16 %v5462
    %v5531 = vunpack.c.l.b16 %v5463
    %v5532 = vunpack.c.h.b16 %v5463
    %v5533 = vunpack.c.l.b16 %v5464
    %v5534 = vunpack.c.h.b16 %v5464
    %v5535 = vunpack.c.l.b16 %v5465
    %v5536 = vunpack.c.h.b16 %v5465
    %v5537 = vunpack.c.l.b16 %v5466
    %v5538 = vunpack.c.h.b16 %v5466
    %v5539 = vunpack.c.l.b16 %v5467
    %v5540 = vunpack.c.h.b16 %v5467
    %v5541 = vunpack.c.l.b16 %v5468
    %v5542 = vunpack.c.h.b16 %v5468
    %v5543 = vunpack.c.l.b16 %v5469
    %v5544 = vunpack.c.h.b16 %v5469
    %v5545 = vunpack.c.l.b16 %v5470
    %v5546 = vunpack.c.h.b16 %v5470
    %v5547 = vunpack.c.l.b16 %v5471
    %v5548 = vunpack.c.h.b16 %v5471
    %v5549 = vunpack.c.l.b16 %v5472
    %v5550 = vunpack.c.h.b16 %v5472
    %v5551 = vunpack.c.l.b16 %v5473
    %v5552 = vunpack.c.h.b16 %v5473
    %v5553 = vunpack.c.l.b16 %v5474
    %v5554 = vunpack.c.h.b16 %v5474
    %v5555 = vunpack.c.l.b16 %v5475
    %v5556 = vunpack.c.h.b16 %v5475
    %v5557 = vunpack.c.l.b16 %v5476
    %v5558 = vunpack.c.h.b16 %v5476
    %v5559 = vunpack.c.l.b16 %v5477
    %v5560 = vunpack.c.h.b16 %v5477
    %v5561 = vunpack.c.l.b16 %v5478
    %v5562 = vunpack.c.h.b16 %v5478
    %v5563 = vunpack.c.l.b16 %v5479
    %v5564 = vunpack.c.h.b16 %v5479
    %v5565 = vunpack.c.l.b16 %v5480
    %v5566 = vunpack.c.h.b16 %v5480
    %v5567 = vunpack.c.l.b16 %v5481
    %v5568 = vunpack.c.h.b16 %v5481
    %v5569 = vunpack.c.l.b16 %v5482
    %v5570 = vunpack.c.h.b16 %v5482
    %v5571 = vunpack.c.l.b16 %v5483
    %v5572 = vunpack.c.h.b16 %v5483
    %v5573 = vunpack.c.l.b16 %v5484
    %v5574 = vunpack.c.h.b16 %v5484
    %v5575 = vunpack.c.l.b16 %v5485
    %v5576 = vunpack.c.h.b16 %v5485
    %v5577 = vunpack.c.l.b16 %v5486
    %v5578 = vunpack.c.h.b16 %v5486
    %v5579 = vunpack.c.l.b16 %v5487
    %v5580 = vunpack.c.h.b16 %v5487
    %v5581 = vunpack.c.l.b16 %v5488
    %v5582 = vunpack.c.h.b16 %v5488
    %v5583 = vunpack.c.l.b16 %v5489
    %v5584 = vunpack.c.h.b16 %v5489
    %v5585 = vunpack.c.l.b16 %v5490
    %v5586 = vunpack.c.h.b16 %v5490
    %v5587 = vpack.c.b16 %v5525, %v5523
    %v5588 = vpack.c.b16 %v5526, %v5524
    %v5589 = vpack.c.b16 %v5529, %v5527
    %v5590 = vpack.c.b16 %v5530, %v5528
    %v5591 = vpack.c.b16 %v5533, %v5531
    %v5592 = vpack.c.b16 %v5534, %v5532
    %v5593 = vpack.c.b16 %v5537, %v5535
    %v5594 = vpack.c.b16 %v5538, %v5536
    %v5595 = vpack.c.b16 %v5541, %v5539
    %v5596 = vpack.c.b16 %v5542, %v5540
    %v5597 = vpack.c.b16 %v5545, %v5543
    %v5598 = vpack.c.b16 %v5546, %v5544
    %v5599 = vpack.c.b16 %v5549, %v5547
    %v5600 = vpack.c.b16 %v5550, %v5548
    %v5601 = vpack.c.b16 %v5553, %v5551
    %v5602 = vpack.c.b16 %v5554, %v5552
    %v5603 = vpack.c.b16 %v5557, %v5555
    %v5604 = vpack.c.b16 %v5558, %v5556
    %v5605 = vpack.c.b16 %v5561, %v5559
    %v5606 = vpack.c.b16 %v5562, %v5560
    %v5607 = vpack.c.b16 %v5565, %v5563
    %v5608 = vpack.c.b16 %v5566, %v5564
    %v5609 = vpack.c.b16 %v5569, %v5567
    %v5610 = vpack.c.b16 %v5570, %v5568
    %v5611 = vpack.c.b16 %v5573, %v5571
    %v5612 = vpack.c.b16 %v5574, %v5572
    %v5613 = vpack.c.b16 %v5577, %v5575
    %v5614 = vpack.c.b16 %v5578, %v5576
    %v5615 = vpack.c.b16 %v5581, %v5579
    %v5616 = vpack.c.b16 %v5582, %v5580
    %v5617 = vpack.c.b16 %v5585, %v5583
    %v5618 = vpack.c.b16 %v5586, %v5584
    %5651 = vmatprep.subr.bf16.mxu0 %v5602
    %5652 = vmatpush1.bf16.msra.mxu0 %v5601
    %5653 = vmatprep.subr.bf16.mxu0 %v5600
    %5654 = vmatpush1.bf16.msra.mxu0 %v5599
    %5655 = vmatprep.subr.bf16.mxu0 %v5598
    %5656 = vmatpush1.bf16.msra.mxu0 %v5597
    %5657 = vmatprep.subr.bf16.mxu0 %v5596
    %5658 = vmatpush1.bf16.msra.mxu0 %v5595
    %5659 = vmatprep.subr.bf16.mxu0 %v5594
    %5660 = vmatpush1.bf16.msra.mxu0 %v5593
    %5661 = vmatprep.subr.bf16.mxu0 %v5592
    %5662 = vmatpush1.bf16.msra.mxu0 %v5591
    %5663 = vmatprep.subr.bf16.mxu0 %v5590
    %5664 = vmatpush1.bf16.msra.mxu0 %v5589
    %5665 = vmatprep.subr.bf16.mxu0 %v5588
    %5666 = vmatpush1.bf16.msra.mxu0 %v5587
    %5667 = vmatprep.subr.bf16.mxu0 %v5618
    %5668 = vmatpush2.bf16.msra.mxu0 %v5617
    %5669 = vmatprep.subr.bf16.mxu0 %v5616
    %5670 = vmatpush2.bf16.msra.mxu0 %v5615
    %5671 = vmatprep.subr.bf16.mxu0 %v5614
    %5672 = vmatpush2.bf16.msra.mxu0 %v5613
    %5673 = vmatprep.subr.bf16.mxu0 %v5612
    %5674 = vmatpush2.bf16.msra.mxu0 %v5611
    %5675 = vmatprep.subr.bf16.mxu0 %v5610
    %5676 = vmatpush2.bf16.msra.mxu0 %v5609
    %5677 = vmatprep.subr.bf16.mxu0 %v5608
    %5678 = vmatpush2.bf16.msra.mxu0 %v5607
    %5679 = vmatprep.subr.bf16.mxu0 %v5606
    %5680 = vmatpush2.bf16.msra.mxu0 %v5605
    %5681 = vmatprep.subr.bf16.mxu0 %v5604
    %5682 = vmatpush2.bf16.msra.mxu0 %v5603
    %5683 = vmatprep.mubr.bf16.mxu0 %v5457
    %5684 = vmatmul.mubr.bf16.gmra.mxu0 %v5456
    %v5685 = vpop.f32.mrf.mxu0
    %v5686 = vadd.f32 0.0, %v5685
    %v5687 = vpop.f32.mrf.mxu0
    %v5688 = vadd.f32 0.0, %v5687
    %v5689 = vpop.f32.mrf.mxu0
    %v5690 = vpop.f32.mrf.mxu0
    %5691 = vdwg.mxu0
    %v5692 = vadd.f32 %v5205, %v5686
    %v5693 = vadd.f32 %v5206, %v5688
    %s5694 = scalar_lea.vmem [#allocation2], 3584
    %v5695 = vld [vmem:[%s5694] sm:$0xff]
    %v5696 = vld [vmem:[%s5694 + $0x8] sm:$0xff]
    %v5697 = vld [vmem:[%s5694 + $0x10] sm:$0xff]
    %v5698 = vld [vmem:[%s5694 + $0x18] sm:$0xff]
    %v5699 = vld [vmem:[%s5694 + $0x20] sm:$0xff]
    %v5700 = vld [vmem:[%s5694 + $0x28] sm:$0xff]
    %v5701 = vld [vmem:[%s5694 + $0x30] sm:$0xff]
    %v5702 = vld [vmem:[%s5694 + $0x38] sm:$0xff]
    %v5703 = vld [vmem:[%s5694 + $0x40] sm:$0xff]
    %v5704 = vld [vmem:[%s5694 + $0x48] sm:$0xff]
    %v5705 = vld [vmem:[%s5694 + $0x50] sm:$0xff]
    %v5706 = vld [vmem:[%s5694 + $0x58] sm:$0xff]
    %v5707 = vld [vmem:[%s5694 + $0x60] sm:$0xff]
    %v5708 = vld [vmem:[%s5694 + $0x68] sm:$0xff]
    %v5709 = vld [vmem:[%s5694 + $0x70] sm:$0xff]
    %v5710 = vld [vmem:[%s5694 + $0x78] sm:$0xff]
    %v5711 = vld [vmem:[%s5694 + $0x80] sm:$0xff]
    %v5712 = vld [vmem:[%s5694 + $0x88] sm:$0xff]
    %v5713 = vld [vmem:[%s5694 + $0x90] sm:$0xff]
    %v5714 = vld [vmem:[%s5694 + $0x98] sm:$0xff]
    %v5715 = vld [vmem:[%s5694 + $0xa0] sm:$0xff]
    %v5716 = vld [vmem:[%s5694 + $0xa8] sm:$0xff]
    %v5717 = vld [vmem:[%s5694 + $0xb0] sm:$0xff]
    %v5718 = vld [vmem:[%s5694 + $0xb8] sm:$0xff]
    %v5719 = vld [vmem:[%s5694 + $0xc0] sm:$0xff]
    %v5720 = vld [vmem:[%s5694 + $0xc8] sm:$0xff]
    %v5721 = vld [vmem:[%s5694 + $0xd0] sm:$0xff]
    %v5722 = vld [vmem:[%s5694 + $0xd8] sm:$0xff]
    %v5723 = vld [vmem:[%s5694 + $0xe0] sm:$0xff]
    %v5724 = vld [vmem:[%s5694 + $0xe8] sm:$0xff]
    %v5725 = vld [vmem:[%s5694 + $0xf0] sm:$0xff]
    %v5726 = vld [vmem:[%s5694 + $0xf8] sm:$0xff]
    %s5727 = scalar_lea.vmem [#allocation4], 22
    %v5728 = vld [vmem:[%s5727] ss:$8 sm:$0x3]
    %v5730 = vlaneseq
    %v5731 = vshrl.u32 %v5730, 7
    %v5732 = vsub.s32 0, %v5731
    %v5733 = vrot.slane %v5728, %v5732
    %v5734 = vlaneseq
    %v5735 = vshrl.u32 %v5734, 7
    %v5736 = vsub.s32 1, %v5735
    %v5737 = vrot.slane %v5728, %v5736
    %v5772 = vunpack.c.l.b16 %v5695
    %v5773 = vunpack.c.h.b16 %v5695
    %v5774 = vunpack.c.l.b16 %v5696
    %v5775 = vunpack.c.h.b16 %v5696
    %v5776 = vunpack.c.l.b16 %v5697
    %v5777 = vunpack.c.h.b16 %v5697
    %v5778 = vunpack.c.l.b16 %v5698
    %v5779 = vunpack.c.h.b16 %v5698
    %v5780 = vunpack.c.l.b16 %v5699
    %v5781 = vunpack.c.h.b16 %v5699
    %v5782 = vunpack.c.l.b16 %v5700
    %v5783 = vunpack.c.h.b16 %v5700
    %v5784 = vunpack.c.l.b16 %v5701
    %v5785 = vunpack.c.h.b16 %v5701
    %v5786 = vunpack.c.l.b16 %v5702
    %v5787 = vunpack.c.h.b16 %v5702
    %v5788 = vunpack.c.l.b16 %v5703
    %v5789 = vunpack.c.h.b16 %v5703
    %v5790 = vunpack.c.l.b16 %v5704
    %v5791 = vunpack.c.h.b16 %v5704
    %v5792 = vunpack.c.l.b16 %v5705
    %v5793 = vunpack.c.h.b16 %v5705
    %v5794 = vunpack.c.l.b16 %v5706
    %v5795 = vunpack.c.h.b16 %v5706
    %v5796 = vunpack.c.l.b16 %v5707
    %v5797 = vunpack.c.h.b16 %v5707
    %v5798 = vunpack.c.l.b16 %v5708
    %v5799 = vunpack.c.h.b16 %v5708
    %v5800 = vunpack.c.l.b16 %v5709
    %v5801 = vunpack.c.h.b16 %v5709
    %v5802 = vunpack.c.l.b16 %v5710
    %v5803 = vunpack.c.h.b16 %v5710
    %v5804 = vunpack.c.l.b16 %v5711
    %v5805 = vunpack.c.h.b16 %v5711
    %v5806 = vunpack.c.l.b16 %v5712
    %v5807 = vunpack.c.h.b16 %v5712
    %v5808 = vunpack.c.l.b16 %v5713
    %v5809 = vunpack.c.h.b16 %v5713
    %v5810 = vunpack.c.l.b16 %v5714
    %v5811 = vunpack.c.h.b16 %v5714
    %v5812 = vunpack.c.l.b16 %v5715
    %v5813 = vunpack.c.h.b16 %v5715
    %v5814 = vunpack.c.l.b16 %v5716
    %v5815 = vunpack.c.h.b16 %v5716
    %v5816 = vunpack.c.l.b16 %v5717
    %v5817 = vunpack.c.h.b16 %v5717
    %v5818 = vunpack.c.l.b16 %v5718
    %v5819 = vunpack.c.h.b16 %v5718
    %v5820 = vunpack.c.l.b16 %v5719
    %v5821 = vunpack.c.h.b16 %v5719
    %v5822 = vunpack.c.l.b16 %v5720
    %v5823 = vunpack.c.h.b16 %v5720
    %v5824 = vunpack.c.l.b16 %v5721
    %v5825 = vunpack.c.h.b16 %v5721
    %v5826 = vunpack.c.l.b16 %v5722
    %v5827 = vunpack.c.h.b16 %v5722
    %v5828 = vunpack.c.l.b16 %v5723
    %v5829 = vunpack.c.h.b16 %v5723
    %v5830 = vunpack.c.l.b16 %v5724
    %v5831 = vunpack.c.h.b16 %v5724
    %v5832 = vunpack.c.l.b16 %v5725
    %v5833 = vunpack.c.h.b16 %v5725
    %v5834 = vunpack.c.l.b16 %v5726
    %v5835 = vunpack.c.h.b16 %v5726
    %v5836 = vpack.c.b16 %v5774, %v5772
    %v5837 = vpack.c.b16 %v5775, %v5773
    %v5838 = vpack.c.b16 %v5778, %v5776
    %v5839 = vpack.c.b16 %v5779, %v5777
    %v5840 = vpack.c.b16 %v5782, %v5780
    %v5841 = vpack.c.b16 %v5783, %v5781
    %v5842 = vpack.c.b16 %v5786, %v5784
    %v5843 = vpack.c.b16 %v5787, %v5785
    %v5844 = vpack.c.b16 %v5790, %v5788
    %v5845 = vpack.c.b16 %v5791, %v5789
    %v5846 = vpack.c.b16 %v5794, %v5792
    %v5847 = vpack.c.b16 %v5795, %v5793
    %v5848 = vpack.c.b16 %v5798, %v5796
    %v5849 = vpack.c.b16 %v5799, %v5797
    %v5850 = vpack.c.b16 %v5802, %v5800
    %v5851 = vpack.c.b16 %v5803, %v5801
    %v5852 = vpack.c.b16 %v5806, %v5804
    %v5853 = vpack.c.b16 %v5807, %v5805
    %v5854 = vpack.c.b16 %v5810, %v5808
    %v5855 = vpack.c.b16 %v5811, %v5809
    %v5856 = vpack.c.b16 %v5814, %v5812
    %v5857 = vpack.c.b16 %v5815, %v5813
    %v5858 = vpack.c.b16 %v5818, %v5816
    %v5859 = vpack.c.b16 %v5819, %v5817
    %v5860 = vpack.c.b16 %v5822, %v5820
    %v5861 = vpack.c.b16 %v5823, %v5821
    %v5862 = vpack.c.b16 %v5826, %v5824
    %v5863 = vpack.c.b16 %v5827, %v5825
    %v5864 = vpack.c.b16 %v5830, %v5828
    %v5865 = vpack.c.b16 %v5831, %v5829
    %v5866 = vpack.c.b16 %v5834, %v5832
    %v5867 = vpack.c.b16 %v5835, %v5833
    %5900 = vmatprep.subr.bf16.mxu0 %v5851
    %5901 = vmatpush1.bf16.msra.mxu0 %v5850
    %5902 = vmatprep.subr.bf16.mxu0 %v5849
    %5903 = vmatpush1.bf16.msra.mxu0 %v5848
    %5904 = vmatprep.subr.bf16.mxu0 %v5847
    %5905 = vmatpush1.bf16.msra.mxu0 %v5846
    %5906 = vmatprep.subr.bf16.mxu0 %v5845
    %5907 = vmatpush1.bf16.msra.mxu0 %v5844
    %5908 = vmatprep.subr.bf16.mxu0 %v5843
    %5909 = vmatpush1.bf16.msra.mxu0 %v5842
    %5910 = vmatprep.subr.bf16.mxu0 %v5841
    %5911 = vmatpush1.bf16.msra.mxu0 %v5840
    %5912 = vmatprep.subr.bf16.mxu0 %v5839
    %5913 = vmatpush1.bf16.msra.mxu0 %v5838
    %5914 = vmatprep.subr.bf16.mxu0 %v5837
    %5915 = vmatpush1.bf16.msra.mxu0 %v5836
    %5916 = vmatprep.subr.bf16.mxu0 %v5867
    %5917 = vmatpush2.bf16.msra.mxu0 %v5866
    %5918 = vmatprep.subr.bf16.mxu0 %v5865
    %5919 = vmatpush2.bf16.msra.mxu0 %v5864
    %5920 = vmatprep.subr.bf16.mxu0 %v5863
    %5921 = vmatpush2.bf16.msra.mxu0 %v5862
    %5922 = vmatprep.subr.bf16.mxu0 %v5861
    %5923 = vmatpush2.bf16.msra.mxu0 %v5860
    %5924 = vmatprep.subr.bf16.mxu0 %v5859
    %5925 = vmatpush2.bf16.msra.mxu0 %v5858
    %5926 = vmatprep.subr.bf16.mxu0 %v5857
    %5927 = vmatpush2.bf16.msra.mxu0 %v5856
    %5928 = vmatprep.subr.bf16.mxu0 %v5855
    %5929 = vmatpush2.bf16.msra.mxu0 %v5854
    %5930 = vmatprep.subr.bf16.mxu0 %v5853
    %5931 = vmatpush2.bf16.msra.mxu0 %v5852
    %5932 = vmatprep.mubr.bf16.mxu0 %v1314
    %5933 = vmatmul.mubr.bf16.gmra.mxu0 %v1313
    %v5934 = vpop.f32.mrf.mxu0
    %v5935 = vadd.f32 %v5733, %v5934
    %v5936 = vpop.f32.mrf.mxu0
    %v5937 = vadd.f32 %v5737, %v5936
    %v5938 = vpop.f32.mrf.mxu0
    %v5939 = vpop.f32.mrf.mxu0
    %5940 = vdwg.mxu0
    %v5941 = vmax.f32 %v5935, 0.0
    %v5942 = vmax.f32 %v5937, 0.0
    %v5943 = vpack.c.bf16 %v5941, %v5941
    %v5944 = vpack.c.bf16 %v5942, %v5942
    %s5945 = scalar_lea.vmem [#allocation2], 7680
    %v5946 = vld [vmem:[%s5945] sm:$0xff]
    %v5947 = vld [vmem:[%s5945 + $0x8] sm:$0xff]
    %v5948 = vld [vmem:[%s5945 + $0x10] sm:$0xff]
    %v5949 = vld [vmem:[%s5945 + $0x18] sm:$0xff]
    %v5950 = vld [vmem:[%s5945 + $0x20] sm:$0xff]
    %v5951 = vld [vmem:[%s5945 + $0x28] sm:$0xff]
    %v5952 = vld [vmem:[%s5945 + $0x30] sm:$0xff]
    %v5953 = vld [vmem:[%s5945 + $0x38] sm:$0xff]
    %v5954 = vld [vmem:[%s5945 + $0x40] sm:$0xff]
    %v5955 = vld [vmem:[%s5945 + $0x48] sm:$0xff]
    %v5956 = vld [vmem:[%s5945 + $0x50] sm:$0xff]
    %v5957 = vld [vmem:[%s5945 + $0x58] sm:$0xff]
    %v5958 = vld [vmem:[%s5945 + $0x60] sm:$0xff]
    %v5959 = vld [vmem:[%s5945 + $0x68] sm:$0xff]
    %v5960 = vld [vmem:[%s5945 + $0x70] sm:$0xff]
    %v5961 = vld [vmem:[%s5945 + $0x78] sm:$0xff]
    %v5962 = vld [vmem:[%s5945 + $0x80] sm:$0xff]
    %v5963 = vld [vmem:[%s5945 + $0x88] sm:$0xff]
    %v5964 = vld [vmem:[%s5945 + $0x90] sm:$0xff]
    %v5965 = vld [vmem:[%s5945 + $0x98] sm:$0xff]
    %v5966 = vld [vmem:[%s5945 + $0xa0] sm:$0xff]
    %v5967 = vld [vmem:[%s5945 + $0xa8] sm:$0xff]
    %v5968 = vld [vmem:[%s5945 + $0xb0] sm:$0xff]
    %v5969 = vld [vmem:[%s5945 + $0xb8] sm:$0xff]
    %v5970 = vld [vmem:[%s5945 + $0xc0] sm:$0xff]
    %v5971 = vld [vmem:[%s5945 + $0xc8] sm:$0xff]
    %v5972 = vld [vmem:[%s5945 + $0xd0] sm:$0xff]
    %v5973 = vld [vmem:[%s5945 + $0xd8] sm:$0xff]
    %v5974 = vld [vmem:[%s5945 + $0xe0] sm:$0xff]
    %v5975 = vld [vmem:[%s5945 + $0xe8] sm:$0xff]
    %v5976 = vld [vmem:[%s5945 + $0xf0] sm:$0xff]
    %v5977 = vld [vmem:[%s5945 + $0xf8] sm:$0xff]
    %v6010 = vunpack.c.l.b16 %v5946
    %v6011 = vunpack.c.h.b16 %v5946
    %v6012 = vunpack.c.l.b16 %v5947
    %v6013 = vunpack.c.h.b16 %v5947
    %v6014 = vunpack.c.l.b16 %v5948
    %v6015 = vunpack.c.h.b16 %v5948
    %v6016 = vunpack.c.l.b16 %v5949
    %v6017 = vunpack.c.h.b16 %v5949
    %v6018 = vunpack.c.l.b16 %v5950
    %v6019 = vunpack.c.h.b16 %v5950
    %v6020 = vunpack.c.l.b16 %v5951
    %v6021 = vunpack.c.h.b16 %v5951
    %v6022 = vunpack.c.l.b16 %v5952
    %v6023 = vunpack.c.h.b16 %v5952
    %v6024 = vunpack.c.l.b16 %v5953
    %v6025 = vunpack.c.h.b16 %v5953
    %v6026 = vunpack.c.l.b16 %v5954
    %v6027 = vunpack.c.h.b16 %v5954
    %v6028 = vunpack.c.l.b16 %v5955
    %v6029 = vunpack.c.h.b16 %v5955
    %v6030 = vunpack.c.l.b16 %v5956
    %v6031 = vunpack.c.h.b16 %v5956
    %v6032 = vunpack.c.l.b16 %v5957
    %v6033 = vunpack.c.h.b16 %v5957
    %v6034 = vunpack.c.l.b16 %v5958
    %v6035 = vunpack.c.h.b16 %v5958
    %v6036 = vunpack.c.l.b16 %v5959
    %v6037 = vunpack.c.h.b16 %v5959
    %v6038 = vunpack.c.l.b16 %v5960
    %v6039 = vunpack.c.h.b16 %v5960
    %v6040 = vunpack.c.l.b16 %v5961
    %v6041 = vunpack.c.h.b16 %v5961
    %v6042 = vunpack.c.l.b16 %v5962
    %v6043 = vunpack.c.h.b16 %v5962
    %v6044 = vunpack.c.l.b16 %v5963
    %v6045 = vunpack.c.h.b16 %v5963
    %v6046 = vunpack.c.l.b16 %v5964
    %v6047 = vunpack.c.h.b16 %v5964
    %v6048 = vunpack.c.l.b16 %v5965
    %v6049 = vunpack.c.h.b16 %v5965
    %v6050 = vunpack.c.l.b16 %v5966
    %v6051 = vunpack.c.h.b16 %v5966
    %v6052 = vunpack.c.l.b16 %v5967
    %v6053 = vunpack.c.h.b16 %v5967
    %v6054 = vunpack.c.l.b16 %v5968
    %v6055 = vunpack.c.h.b16 %v5968
    %v6056 = vunpack.c.l.b16 %v5969
    %v6057 = vunpack.c.h.b16 %v5969
    %v6058 = vunpack.c.l.b16 %v5970
    %v6059 = vunpack.c.h.b16 %v5970
    %v6060 = vunpack.c.l.b16 %v5971
    %v6061 = vunpack.c.h.b16 %v5971
    %v6062 = vunpack.c.l.b16 %v5972
    %v6063 = vunpack.c.h.b16 %v5972
    %v6064 = vunpack.c.l.b16 %v5973
    %v6065 = vunpack.c.h.b16 %v5973
    %v6066 = vunpack.c.l.b16 %v5974
    %v6067 = vunpack.c.h.b16 %v5974
    %v6068 = vunpack.c.l.b16 %v5975
    %v6069 = vunpack.c.h.b16 %v5975
    %v6070 = vunpack.c.l.b16 %v5976
    %v6071 = vunpack.c.h.b16 %v5976
    %v6072 = vunpack.c.l.b16 %v5977
    %v6073 = vunpack.c.h.b16 %v5977
    %v6074 = vpack.c.b16 %v6012, %v6010
    %v6075 = vpack.c.b16 %v6013, %v6011
    %v6076 = vpack.c.b16 %v6016, %v6014
    %v6077 = vpack.c.b16 %v6017, %v6015
    %v6078 = vpack.c.b16 %v6020, %v6018
    %v6079 = vpack.c.b16 %v6021, %v6019
    %v6080 = vpack.c.b16 %v6024, %v6022
    %v6081 = vpack.c.b16 %v6025, %v6023
    %v6082 = vpack.c.b16 %v6028, %v6026
    %v6083 = vpack.c.b16 %v6029, %v6027
    %v6084 = vpack.c.b16 %v6032, %v6030
    %v6085 = vpack.c.b16 %v6033, %v6031
    %v6086 = vpack.c.b16 %v6036, %v6034
    %v6087 = vpack.c.b16 %v6037, %v6035
    %v6088 = vpack.c.b16 %v6040, %v6038
    %v6089 = vpack.c.b16 %v6041, %v6039
    %v6090 = vpack.c.b16 %v6044, %v6042
    %v6091 = vpack.c.b16 %v6045, %v6043
    %v6092 = vpack.c.b16 %v6048, %v6046
    %v6093 = vpack.c.b16 %v6049, %v6047
    %v6094 = vpack.c.b16 %v6052, %v6050
    %v6095 = vpack.c.b16 %v6053, %v6051
    %v6096 = vpack.c.b16 %v6056, %v6054
    %v6097 = vpack.c.b16 %v6057, %v6055
    %v6098 = vpack.c.b16 %v6060, %v6058
    %v6099 = vpack.c.b16 %v6061, %v6059
    %v6100 = vpack.c.b16 %v6064, %v6062
    %v6101 = vpack.c.b16 %v6065, %v6063
    %v6102 = vpack.c.b16 %v6068, %v6066
    %v6103 = vpack.c.b16 %v6069, %v6067
    %v6104 = vpack.c.b16 %v6072, %v6070
    %v6105 = vpack.c.b16 %v6073, %v6071
    %6138 = vmatprep.subr.bf16.mxu0 %v6089
    %6139 = vmatpush1.bf16.msra.mxu0 %v6088
    %6140 = vmatprep.subr.bf16.mxu0 %v6087
    %6141 = vmatpush1.bf16.msra.mxu0 %v6086
    %6142 = vmatprep.subr.bf16.mxu0 %v6085
    %6143 = vmatpush1.bf16.msra.mxu0 %v6084
    %6144 = vmatprep.subr.bf16.mxu0 %v6083
    %6145 = vmatpush1.bf16.msra.mxu0 %v6082
    %6146 = vmatprep.subr.bf16.mxu0 %v6081
    %6147 = vmatpush1.bf16.msra.mxu0 %v6080
    %6148 = vmatprep.subr.bf16.mxu0 %v6079
    %6149 = vmatpush1.bf16.msra.mxu0 %v6078
    %6150 = vmatprep.subr.bf16.mxu0 %v6077
    %6151 = vmatpush1.bf16.msra.mxu0 %v6076
    %6152 = vmatprep.subr.bf16.mxu0 %v6075
    %6153 = vmatpush1.bf16.msra.mxu0 %v6074
    %6154 = vmatprep.subr.bf16.mxu0 %v6105
    %6155 = vmatpush2.bf16.msra.mxu0 %v6104
    %6156 = vmatprep.subr.bf16.mxu0 %v6103
    %6157 = vmatpush2.bf16.msra.mxu0 %v6102
    %6158 = vmatprep.subr.bf16.mxu0 %v6101
    %6159 = vmatpush2.bf16.msra.mxu0 %v6100
    %6160 = vmatprep.subr.bf16.mxu0 %v6099
    %6161 = vmatpush2.bf16.msra.mxu0 %v6098
    %6162 = vmatprep.subr.bf16.mxu0 %v6097
    %6163 = vmatpush2.bf16.msra.mxu0 %v6096
    %6164 = vmatprep.subr.bf16.mxu0 %v6095
    %6165 = vmatpush2.bf16.msra.mxu0 %v6094
    %6166 = vmatprep.subr.bf16.mxu0 %v6093
    %6167 = vmatpush2.bf16.msra.mxu0 %v6092
    %6168 = vmatprep.subr.bf16.mxu0 %v6091
    %6169 = vmatpush2.bf16.msra.mxu0 %v6090
    %6170 = vmatprep.mubr.bf16.mxu0 %v5944
    %6171 = vmatmul.mubr.bf16.gmra.mxu0 %v5943
    %v6172 = vpop.f32.mrf.mxu0
    %v6173 = vadd.f32 0.0, %v6172
    %v6174 = vpop.f32.mrf.mxu0
    %v6175 = vadd.f32 0.0, %v6174
    %v6176 = vpop.f32.mrf.mxu0
    %v6177 = vpop.f32.mrf.mxu0
    %6178 = vdwg.mxu0
    %v6179 = vadd.f32 %v5692, %v6173
    %v6180 = vadd.f32 %v5693, %v6175
    %s6181 = scalar_lea.vmem [#allocation2], 3840
    %v6182 = vld [vmem:[%s6181] sm:$0xff]
    %v6183 = vld [vmem:[%s6181 + $0x8] sm:$0xff]
    %v6184 = vld [vmem:[%s6181 + $0x10] sm:$0xff]
    %v6185 = vld [vmem:[%s6181 + $0x18] sm:$0xff]
    %v6186 = vld [vmem:[%s6181 + $0x20] sm:$0xff]
    %v6187 = vld [vmem:[%s6181 + $0x28] sm:$0xff]
    %v6188 = vld [vmem:[%s6181 + $0x30] sm:$0xff]
    %v6189 = vld [vmem:[%s6181 + $0x38] sm:$0xff]
    %v6190 = vld [vmem:[%s6181 + $0x40] sm:$0xff]
    %v6191 = vld [vmem:[%s6181 + $0x48] sm:$0xff]
    %v6192 = vld [vmem:[%s6181 + $0x50] sm:$0xff]
    %v6193 = vld [vmem:[%s6181 + $0x58] sm:$0xff]
    %v6194 = vld [vmem:[%s6181 + $0x60] sm:$0xff]
    %v6195 = vld [vmem:[%s6181 + $0x68] sm:$0xff]
    %v6196 = vld [vmem:[%s6181 + $0x70] sm:$0xff]
    %v6197 = vld [vmem:[%s6181 + $0x78] sm:$0xff]
    %v6198 = vld [vmem:[%s6181 + $0x80] sm:$0xff]
    %v6199 = vld [vmem:[%s6181 + $0x88] sm:$0xff]
    %v6200 = vld [vmem:[%s6181 + $0x90] sm:$0xff]
    %v6201 = vld [vmem:[%s6181 + $0x98] sm:$0xff]
    %v6202 = vld [vmem:[%s6181 + $0xa0] sm:$0xff]
    %v6203 = vld [vmem:[%s6181 + $0xa8] sm:$0xff]
    %v6204 = vld [vmem:[%s6181 + $0xb0] sm:$0xff]
    %v6205 = vld [vmem:[%s6181 + $0xb8] sm:$0xff]
    %v6206 = vld [vmem:[%s6181 + $0xc0] sm:$0xff]
    %v6207 = vld [vmem:[%s6181 + $0xc8] sm:$0xff]
    %v6208 = vld [vmem:[%s6181 + $0xd0] sm:$0xff]
    %v6209 = vld [vmem:[%s6181 + $0xd8] sm:$0xff]
    %v6210 = vld [vmem:[%s6181 + $0xe0] sm:$0xff]
    %v6211 = vld [vmem:[%s6181 + $0xe8] sm:$0xff]
    %v6212 = vld [vmem:[%s6181 + $0xf0] sm:$0xff]
    %v6213 = vld [vmem:[%s6181 + $0xf8] sm:$0xff]
    %s6214 = scalar_lea.vmem [#allocation4], 23
    %v6215 = vld [vmem:[%s6214] ss:$8 sm:$0x3]
    %v6217 = vlaneseq
    %v6218 = vshrl.u32 %v6217, 7
    %v6219 = vsub.s32 0, %v6218
    %v6220 = vrot.slane %v6215, %v6219
    %v6221 = vlaneseq
    %v6222 = vshrl.u32 %v6221, 7
    %v6223 = vsub.s32 1, %v6222
    %v6224 = vrot.slane %v6215, %v6223
    %v6259 = vunpack.c.l.b16 %v6182
    %v6260 = vunpack.c.h.b16 %v6182
    %v6261 = vunpack.c.l.b16 %v6183
    %v6262 = vunpack.c.h.b16 %v6183
    %v6263 = vunpack.c.l.b16 %v6184
    %v6264 = vunpack.c.h.b16 %v6184
    %v6265 = vunpack.c.l.b16 %v6185
    %v6266 = vunpack.c.h.b16 %v6185
    %v6267 = vunpack.c.l.b16 %v6186
    %v6268 = vunpack.c.h.b16 %v6186
    %v6269 = vunpack.c.l.b16 %v6187
    %v6270 = vunpack.c.h.b16 %v6187
    %v6271 = vunpack.c.l.b16 %v6188
    %v6272 = vunpack.c.h.b16 %v6188
    %v6273 = vunpack.c.l.b16 %v6189
    %v6274 = vunpack.c.h.b16 %v6189
    %v6275 = vunpack.c.l.b16 %v6190
    %v6276 = vunpack.c.h.b16 %v6190
    %v6277 = vunpack.c.l.b16 %v6191
    %v6278 = vunpack.c.h.b16 %v6191
    %v6279 = vunpack.c.l.b16 %v6192
    %v6280 = vunpack.c.h.b16 %v6192
    %v6281 = vunpack.c.l.b16 %v6193
    %v6282 = vunpack.c.h.b16 %v6193
    %v6283 = vunpack.c.l.b16 %v6194
    %v6284 = vunpack.c.h.b16 %v6194
    %v6285 = vunpack.c.l.b16 %v6195
    %v6286 = vunpack.c.h.b16 %v6195
    %v6287 = vunpack.c.l.b16 %v6196
    %v6288 = vunpack.c.h.b16 %v6196
    %v6289 = vunpack.c.l.b16 %v6197
    %v6290 = vunpack.c.h.b16 %v6197
    %v6291 = vunpack.c.l.b16 %v6198
    %v6292 = vunpack.c.h.b16 %v6198
    %v6293 = vunpack.c.l.b16 %v6199
    %v6294 = vunpack.c.h.b16 %v6199
    %v6295 = vunpack.c.l.b16 %v6200
    %v6296 = vunpack.c.h.b16 %v6200
    %v6297 = vunpack.c.l.b16 %v6201
    %v6298 = vunpack.c.h.b16 %v6201
    %v6299 = vunpack.c.l.b16 %v6202
    %v6300 = vunpack.c.h.b16 %v6202
    %v6301 = vunpack.c.l.b16 %v6203
    %v6302 = vunpack.c.h.b16 %v6203
    %v6303 = vunpack.c.l.b16 %v6204
    %v6304 = vunpack.c.h.b16 %v6204
    %v6305 = vunpack.c.l.b16 %v6205
    %v6306 = vunpack.c.h.b16 %v6205
    %v6307 = vunpack.c.l.b16 %v6206
    %v6308 = vunpack.c.h.b16 %v6206
    %v6309 = vunpack.c.l.b16 %v6207
    %v6310 = vunpack.c.h.b16 %v6207
    %v6311 = vunpack.c.l.b16 %v6208
    %v6312 = vunpack.c.h.b16 %v6208
    %v6313 = vunpack.c.l.b16 %v6209
    %v6314 = vunpack.c.h.b16 %v6209
    %v6315 = vunpack.c.l.b16 %v6210
    %v6316 = vunpack.c.h.b16 %v6210
    %v6317 = vunpack.c.l.b16 %v6211
    %v6318 = vunpack.c.h.b16 %v6211
    %v6319 = vunpack.c.l.b16 %v6212
    %v6320 = vunpack.c.h.b16 %v6212
    %v6321 = vunpack.c.l.b16 %v6213
    %v6322 = vunpack.c.h.b16 %v6213
    %v6323 = vpack.c.b16 %v6261, %v6259
    %v6324 = vpack.c.b16 %v6262, %v6260
    %v6325 = vpack.c.b16 %v6265, %v6263
    %v6326 = vpack.c.b16 %v6266, %v6264
    %v6327 = vpack.c.b16 %v6269, %v6267
    %v6328 = vpack.c.b16 %v6270, %v6268
    %v6329 = vpack.c.b16 %v6273, %v6271
    %v6330 = vpack.c.b16 %v6274, %v6272
    %v6331 = vpack.c.b16 %v6277, %v6275
    %v6332 = vpack.c.b16 %v6278, %v6276
    %v6333 = vpack.c.b16 %v6281, %v6279
    %v6334 = vpack.c.b16 %v6282, %v6280
    %v6335 = vpack.c.b16 %v6285, %v6283
    %v6336 = vpack.c.b16 %v6286, %v6284
    %v6337 = vpack.c.b16 %v6289, %v6287
    %v6338 = vpack.c.b16 %v6290, %v6288
    %v6339 = vpack.c.b16 %v6293, %v6291
    %v6340 = vpack.c.b16 %v6294, %v6292
    %v6341 = vpack.c.b16 %v6297, %v6295
    %v6342 = vpack.c.b16 %v6298, %v6296
    %v6343 = vpack.c.b16 %v6301, %v6299
    %v6344 = vpack.c.b16 %v6302, %v6300
    %v6345 = vpack.c.b16 %v6305, %v6303
    %v6346 = vpack.c.b16 %v6306, %v6304
    %v6347 = vpack.c.b16 %v6309, %v6307
    %v6348 = vpack.c.b16 %v6310, %v6308
    %v6349 = vpack.c.b16 %v6313, %v6311
    %v6350 = vpack.c.b16 %v6314, %v6312
    %v6351 = vpack.c.b16 %v6317, %v6315
    %v6352 = vpack.c.b16 %v6318, %v6316
    %v6353 = vpack.c.b16 %v6321, %v6319
    %v6354 = vpack.c.b16 %v6322, %v6320
    %6387 = vmatprep.subr.bf16.mxu0 %v6338
    %6388 = vmatpush1.bf16.msra.mxu0 %v6337
    %6389 = vmatprep.subr.bf16.mxu0 %v6336
    %6390 = vmatpush1.bf16.msra.mxu0 %v6335
    %6391 = vmatprep.subr.bf16.mxu0 %v6334
    %6392 = vmatpush1.bf16.msra.mxu0 %v6333
    %6393 = vmatprep.subr.bf16.mxu0 %v6332
    %6394 = vmatpush1.bf16.msra.mxu0 %v6331
    %6395 = vmatprep.subr.bf16.mxu0 %v6330
    %6396 = vmatpush1.bf16.msra.mxu0 %v6329
    %6397 = vmatprep.subr.bf16.mxu0 %v6328
    %6398 = vmatpush1.bf16.msra.mxu0 %v6327
    %6399 = vmatprep.subr.bf16.mxu0 %v6326
    %6400 = vmatpush1.bf16.msra.mxu0 %v6325
    %6401 = vmatprep.subr.bf16.mxu0 %v6324
    %6402 = vmatpush1.bf16.msra.mxu0 %v6323
    %6403 = vmatprep.subr.bf16.mxu0 %v6354
    %6404 = vmatpush2.bf16.msra.mxu0 %v6353
    %6405 = vmatprep.subr.bf16.mxu0 %v6352
    %6406 = vmatpush2.bf16.msra.mxu0 %v6351
    %6407 = vmatprep.subr.bf16.mxu0 %v6350
    %6408 = vmatpush2.bf16.msra.mxu0 %v6349
    %6409 = vmatprep.subr.bf16.mxu0 %v6348
    %6410 = vmatpush2.bf16.msra.mxu0 %v6347
    %6411 = vmatprep.subr.bf16.mxu0 %v6346
    %6412 = vmatpush2.bf16.msra.mxu0 %v6345
    %6413 = vmatprep.subr.bf16.mxu0 %v6344
    %6414 = vmatpush2.bf16.msra.mxu0 %v6343
    %6415 = vmatprep.subr.bf16.mxu0 %v6342
    %6416 = vmatpush2.bf16.msra.mxu0 %v6341
    %6417 = vmatprep.subr.bf16.mxu0 %v6340
    %6418 = vmatpush2.bf16.msra.mxu0 %v6339
    %6419 = vmatprep.mubr.bf16.mxu0 %v1314
    %6420 = vmatmul.mubr.bf16.gmra.mxu0 %v1313
    %v6421 = vpop.f32.mrf.mxu0
    %v6422 = vadd.f32 %v6220, %v6421
    %v6423 = vpop.f32.mrf.mxu0
    %v6424 = vadd.f32 %v6224, %v6423
    %v6425 = vpop.f32.mrf.mxu0
    %v6426 = vpop.f32.mrf.mxu0
    %6427 = vdwg.mxu0
    %v6428 = vmax.f32 %v6422, 0.0
    %v6429 = vmax.f32 %v6424, 0.0
    %v6430 = vpack.c.bf16 %v6428, %v6428
    %v6431 = vpack.c.bf16 %v6429, %v6429
    %s6432 = scalar_lea.vmem [#allocation2], 7936
    %v6433 = vld [vmem:[%s6432] sm:$0xff]
    %v6434 = vld [vmem:[%s6432 + $0x8] sm:$0xff]
    %v6435 = vld [vmem:[%s6432 + $0x10] sm:$0xff]
    %v6436 = vld [vmem:[%s6432 + $0x18] sm:$0xff]
    %v6437 = vld [vmem:[%s6432 + $0x20] sm:$0xff]
    %v6438 = vld [vmem:[%s6432 + $0x28] sm:$0xff]
    %v6439 = vld [vmem:[%s6432 + $0x30] sm:$0xff]
    %v6440 = vld [vmem:[%s6432 + $0x38] sm:$0xff]
    %v6441 = vld [vmem:[%s6432 + $0x40] sm:$0xff]
    %v6442 = vld [vmem:[%s6432 + $0x48] sm:$0xff]
    %v6443 = vld [vmem:[%s6432 + $0x50] sm:$0xff]
    %v6444 = vld [vmem:[%s6432 + $0x58] sm:$0xff]
    %v6445 = vld [vmem:[%s6432 + $0x60] sm:$0xff]
    %v6446 = vld [vmem:[%s6432 + $0x68] sm:$0xff]
    %v6447 = vld [vmem:[%s6432 + $0x70] sm:$0xff]
    %v6448 = vld [vmem:[%s6432 + $0x78] sm:$0xff]
    %v6449 = vld [vmem:[%s6432 + $0x80] sm:$0xff]
    %v6450 = vld [vmem:[%s6432 + $0x88] sm:$0xff]
    %v6451 = vld [vmem:[%s6432 + $0x90] sm:$0xff]
    %v6452 = vld [vmem:[%s6432 + $0x98] sm:$0xff]
    %v6453 = vld [vmem:[%s6432 + $0xa0] sm:$0xff]
    %v6454 = vld [vmem:[%s6432 + $0xa8] sm:$0xff]
    %v6455 = vld [vmem:[%s6432 + $0xb0] sm:$0xff]
    %v6456 = vld [vmem:[%s6432 + $0xb8] sm:$0xff]
    %v6457 = vld [vmem:[%s6432 + $0xc0] sm:$0xff]
    %v6458 = vld [vmem:[%s6432 + $0xc8] sm:$0xff]
    %v6459 = vld [vmem:[%s6432 + $0xd0] sm:$0xff]
    %v6460 = vld [vmem:[%s6432 + $0xd8] sm:$0xff]
    %v6461 = vld [vmem:[%s6432 + $0xe0] sm:$0xff]
    %v6462 = vld [vmem:[%s6432 + $0xe8] sm:$0xff]
    %v6463 = vld [vmem:[%s6432 + $0xf0] sm:$0xff]
    %v6464 = vld [vmem:[%s6432 + $0xf8] sm:$0xff]
    %v6497 = vunpack.c.l.b16 %v6433
    %v6498 = vunpack.c.h.b16 %v6433
    %v6499 = vunpack.c.l.b16 %v6434
    %v6500 = vunpack.c.h.b16 %v6434
    %v6501 = vunpack.c.l.b16 %v6435
    %v6502 = vunpack.c.h.b16 %v6435
    %v6503 = vunpack.c.l.b16 %v6436
    %v6504 = vunpack.c.h.b16 %v6436
    %v6505 = vunpack.c.l.b16 %v6437
    %v6506 = vunpack.c.h.b16 %v6437
    %v6507 = vunpack.c.l.b16 %v6438
    %v6508 = vunpack.c.h.b16 %v6438
    %v6509 = vunpack.c.l.b16 %v6439
    %v6510 = vunpack.c.h.b16 %v6439
    %v6511 = vunpack.c.l.b16 %v6440
    %v6512 = vunpack.c.h.b16 %v6440
    %v6513 = vunpack.c.l.b16 %v6441
    %v6514 = vunpack.c.h.b16 %v6441
    %v6515 = vunpack.c.l.b16 %v6442
    %v6516 = vunpack.c.h.b16 %v6442
    %v6517 = vunpack.c.l.b16 %v6443
    %v6518 = vunpack.c.h.b16 %v6443
    %v6519 = vunpack.c.l.b16 %v6444
    %v6520 = vunpack.c.h.b16 %v6444
    %v6521 = vunpack.c.l.b16 %v6445
    %v6522 = vunpack.c.h.b16 %v6445
    %v6523 = vunpack.c.l.b16 %v6446
    %v6524 = vunpack.c.h.b16 %v6446
    %v6525 = vunpack.c.l.b16 %v6447
    %v6526 = vunpack.c.h.b16 %v6447
    %v6527 = vunpack.c.l.b16 %v6448
    %v6528 = vunpack.c.h.b16 %v6448
    %v6529 = vunpack.c.l.b16 %v6449
    %v6530 = vunpack.c.h.b16 %v6449
    %v6531 = vunpack.c.l.b16 %v6450
    %v6532 = vunpack.c.h.b16 %v6450
    %v6533 = vunpack.c.l.b16 %v6451
    %v6534 = vunpack.c.h.b16 %v6451
    %v6535 = vunpack.c.l.b16 %v6452
    %v6536 = vunpack.c.h.b16 %v6452
    %v6537 = vunpack.c.l.b16 %v6453
    %v6538 = vunpack.c.h.b16 %v6453
    %v6539 = vunpack.c.l.b16 %v6454
    %v6540 = vunpack.c.h.b16 %v6454
    %v6541 = vunpack.c.l.b16 %v6455
    %v6542 = vunpack.c.h.b16 %v6455
    %v6543 = vunpack.c.l.b16 %v6456
    %v6544 = vunpack.c.h.b16 %v6456
    %v6545 = vunpack.c.l.b16 %v6457
    %v6546 = vunpack.c.h.b16 %v6457
    %v6547 = vunpack.c.l.b16 %v6458
    %v6548 = vunpack.c.h.b16 %v6458
    %v6549 = vunpack.c.l.b16 %v6459
    %v6550 = vunpack.c.h.b16 %v6459
    %v6551 = vunpack.c.l.b16 %v6460
    %v6552 = vunpack.c.h.b16 %v6460
    %v6553 = vunpack.c.l.b16 %v6461
    %v6554 = vunpack.c.h.b16 %v6461
    %v6555 = vunpack.c.l.b16 %v6462
    %v6556 = vunpack.c.h.b16 %v6462
    %v6557 = vunpack.c.l.b16 %v6463
    %v6558 = vunpack.c.h.b16 %v6463
    %v6559 = vunpack.c.l.b16 %v6464
    %v6560 = vunpack.c.h.b16 %v6464
    %v6561 = vpack.c.b16 %v6499, %v6497
    %v6562 = vpack.c.b16 %v6500, %v6498
    %v6563 = vpack.c.b16 %v6503, %v6501
    %v6564 = vpack.c.b16 %v6504, %v6502
    %v6565 = vpack.c.b16 %v6507, %v6505
    %v6566 = vpack.c.b16 %v6508, %v6506
    %v6567 = vpack.c.b16 %v6511, %v6509
    %v6568 = vpack.c.b16 %v6512, %v6510
    %v6569 = vpack.c.b16 %v6515, %v6513
    %v6570 = vpack.c.b16 %v6516, %v6514
    %v6571 = vpack.c.b16 %v6519, %v6517
    %v6572 = vpack.c.b16 %v6520, %v6518
    %v6573 = vpack.c.b16 %v6523, %v6521
    %v6574 = vpack.c.b16 %v6524, %v6522
    %v6575 = vpack.c.b16 %v6527, %v6525
    %v6576 = vpack.c.b16 %v6528, %v6526
    %v6577 = vpack.c.b16 %v6531, %v6529
    %v6578 = vpack.c.b16 %v6532, %v6530
    %v6579 = vpack.c.b16 %v6535, %v6533
    %v6580 = vpack.c.b16 %v6536, %v6534
    %v6581 = vpack.c.b16 %v6539, %v6537
    %v6582 = vpack.c.b16 %v6540, %v6538
    %v6583 = vpack.c.b16 %v6543, %v6541
    %v6584 = vpack.c.b16 %v6544, %v6542
    %v6585 = vpack.c.b16 %v6547, %v6545
    %v6586 = vpack.c.b16 %v6548, %v6546
    %v6587 = vpack.c.b16 %v6551, %v6549
    %v6588 = vpack.c.b16 %v6552, %v6550
    %v6589 = vpack.c.b16 %v6555, %v6553
    %v6590 = vpack.c.b16 %v6556, %v6554
    %v6591 = vpack.c.b16 %v6559, %v6557
    %v6592 = vpack.c.b16 %v6560, %v6558
    %6625 = vmatprep.subr.bf16.mxu0 %v6576
    %6626 = vmatpush1.bf16.msra.mxu0 %v6575
    %6627 = vmatprep.subr.bf16.mxu0 %v6574
    %6628 = vmatpush1.bf16.msra.mxu0 %v6573
    %6629 = vmatprep.subr.bf16.mxu0 %v6572
    %6630 = vmatpush1.bf16.msra.mxu0 %v6571
    %6631 = vmatprep.subr.bf16.mxu0 %v6570
    %6632 = vmatpush1.bf16.msra.mxu0 %v6569
    %6633 = vmatprep.subr.bf16.mxu0 %v6568
    %6634 = vmatpush1.bf16.msra.mxu0 %v6567
    %6635 = vmatprep.subr.bf16.mxu0 %v6566
    %6636 = vmatpush1.bf16.msra.mxu0 %v6565
    %6637 = vmatprep.subr.bf16.mxu0 %v6564
    %6638 = vmatpush1.bf16.msra.mxu0 %v6563
    %6639 = vmatprep.subr.bf16.mxu0 %v6562
    %6640 = vmatpush1.bf16.msra.mxu0 %v6561
    %6641 = vmatprep.subr.bf16.mxu0 %v6592
    %6642 = vmatpush2.bf16.msra.mxu0 %v6591
    %6643 = vmatprep.subr.bf16.mxu0 %v6590
    %6644 = vmatpush2.bf16.msra.mxu0 %v6589
    %6645 = vmatprep.subr.bf16.mxu0 %v6588
    %6646 = vmatpush2.bf16.msra.mxu0 %v6587
    %6647 = vmatprep.subr.bf16.mxu0 %v6586
    %6648 = vmatpush2.bf16.msra.mxu0 %v6585
    %6649 = vmatprep.subr.bf16.mxu0 %v6584
    %6650 = vmatpush2.bf16.msra.mxu0 %v6583
    %6651 = vmatprep.subr.bf16.mxu0 %v6582
    %6652 = vmatpush2.bf16.msra.mxu0 %v6581
    %6653 = vmatprep.subr.bf16.mxu0 %v6580
    %6654 = vmatpush2.bf16.msra.mxu0 %v6579
    %6655 = vmatprep.subr.bf16.mxu0 %v6578
    %6656 = vmatpush2.bf16.msra.mxu0 %v6577
    %6657 = vmatprep.mubr.bf16.mxu0 %v6431
    %6658 = vmatmul.mubr.bf16.gmra.mxu0 %v6430
    %v6659 = vpop.f32.mrf.mxu0
    %v6660 = vadd.f32 0.0, %v6659
    %v6661 = vpop.f32.mrf.mxu0
    %v6662 = vadd.f32 0.0, %v6661
    %v6663 = vpop.f32.mrf.mxu0
    %v6664 = vpop.f32.mrf.mxu0
    %6665 = vdwg.mxu0
    %v6666 = vadd.f32 %v6179, %v6660
    %v6667 = vadd.f32 %v6180, %v6662
    %s6668 = scalar_lea.vmem [#allocation2], 4096
    %v6669 = vld [vmem:[%s6668] sm:$0xff]
    %v6670 = vld [vmem:[%s6668 + $0x8] sm:$0xff]
    %v6671 = vld [vmem:[%s6668 + $0x10] sm:$0xff]
    %v6672 = vld [vmem:[%s6668 + $0x18] sm:$0xff]
    %v6673 = vld [vmem:[%s6668 + $0x20] sm:$0xff]
    %v6674 = vld [vmem:[%s6668 + $0x28] sm:$0xff]
    %v6675 = vld [vmem:[%s6668 + $0x30] sm:$0xff]
    %v6676 = vld [vmem:[%s6668 + $0x38] sm:$0xff]
    %v6677 = vld [vmem:[%s6668 + $0x40] sm:$0xff]
    %v6678 = vld [vmem:[%s6668 + $0x48] sm:$0xff]
    %v6679 = vld [vmem:[%s6668 + $0x50] sm:$0xff]
    %v6680 = vld [vmem:[%s6668 + $0x58] sm:$0xff]
    %v6681 = vld [vmem:[%s6668 + $0x60] sm:$0xff]
    %v6682 = vld [vmem:[%s6668 + $0x68] sm:$0xff]
    %v6683 = vld [vmem:[%s6668 + $0x70] sm:$0xff]
    %v6684 = vld [vmem:[%s6668 + $0x78] sm:$0xff]
    %v6685 = vld [vmem:[%s6668 + $0x80] sm:$0xff]
    %v6686 = vld [vmem:[%s6668 + $0x88] sm:$0xff]
    %v6687 = vld [vmem:[%s6668 + $0x90] sm:$0xff]
    %v6688 = vld [vmem:[%s6668 + $0x98] sm:$0xff]
    %v6689 = vld [vmem:[%s6668 + $0xa0] sm:$0xff]
    %v6690 = vld [vmem:[%s6668 + $0xa8] sm:$0xff]
    %v6691 = vld [vmem:[%s6668 + $0xb0] sm:$0xff]
    %v6692 = vld [vmem:[%s6668 + $0xb8] sm:$0xff]
    %v6693 = vld [vmem:[%s6668 + $0xc0] sm:$0xff]
    %v6694 = vld [vmem:[%s6668 + $0xc8] sm:$0xff]
    %v6695 = vld [vmem:[%s6668 + $0xd0] sm:$0xff]
    %v6696 = vld [vmem:[%s6668 + $0xd8] sm:$0xff]
    %v6697 = vld [vmem:[%s6668 + $0xe0] sm:$0xff]
    %v6698 = vld [vmem:[%s6668 + $0xe8] sm:$0xff]
    %v6699 = vld [vmem:[%s6668 + $0xf0] sm:$0xff]
    %v6700 = vld [vmem:[%s6668 + $0xf8] sm:$0xff]
    %s6701 = scalar_lea.vmem [#allocation4], 32
    %v6702 = vld [vmem:[%s6701] ss:$8 sm:$0x3]
    %v6704 = vlaneseq
    %v6705 = vshrl.u32 %v6704, 7
    %v6706 = vsub.s32 0, %v6705
    %v6707 = vrot.slane %v6702, %v6706
    %v6708 = vlaneseq
    %v6709 = vshrl.u32 %v6708, 7
    %v6710 = vsub.s32 1, %v6709
    %v6711 = vrot.slane %v6702, %v6710
    %v6746 = vunpack.c.l.b16 %v6669
    %v6747 = vunpack.c.h.b16 %v6669
    %v6748 = vunpack.c.l.b16 %v6670
    %v6749 = vunpack.c.h.b16 %v6670
    %v6750 = vunpack.c.l.b16 %v6671
    %v6751 = vunpack.c.h.b16 %v6671
    %v6752 = vunpack.c.l.b16 %v6672
    %v6753 = vunpack.c.h.b16 %v6672
    %v6754 = vunpack.c.l.b16 %v6673
    %v6755 = vunpack.c.h.b16 %v6673
    %v6756 = vunpack.c.l.b16 %v6674
    %v6757 = vunpack.c.h.b16 %v6674
    %v6758 = vunpack.c.l.b16 %v6675
    %v6759 = vunpack.c.h.b16 %v6675
    %v6760 = vunpack.c.l.b16 %v6676
    %v6761 = vunpack.c.h.b16 %v6676
    %v6762 = vunpack.c.l.b16 %v6677
    %v6763 = vunpack.c.h.b16 %v6677
    %v6764 = vunpack.c.l.b16 %v6678
    %v6765 = vunpack.c.h.b16 %v6678
    %v6766 = vunpack.c.l.b16 %v6679
    %v6767 = vunpack.c.h.b16 %v6679
    %v6768 = vunpack.c.l.b16 %v6680
    %v6769 = vunpack.c.h.b16 %v6680
    %v6770 = vunpack.c.l.b16 %v6681
    %v6771 = vunpack.c.h.b16 %v6681
    %v6772 = vunpack.c.l.b16 %v6682
    %v6773 = vunpack.c.h.b16 %v6682
    %v6774 = vunpack.c.l.b16 %v6683
    %v6775 = vunpack.c.h.b16 %v6683
    %v6776 = vunpack.c.l.b16 %v6684
    %v6777 = vunpack.c.h.b16 %v6684
    %v6778 = vunpack.c.l.b16 %v6685
    %v6779 = vunpack.c.h.b16 %v6685
    %v6780 = vunpack.c.l.b16 %v6686
    %v6781 = vunpack.c.h.b16 %v6686
    %v6782 = vunpack.c.l.b16 %v6687
    %v6783 = vunpack.c.h.b16 %v6687
    %v6784 = vunpack.c.l.b16 %v6688
    %v6785 = vunpack.c.h.b16 %v6688
    %v6786 = vunpack.c.l.b16 %v6689
    %v6787 = vunpack.c.h.b16 %v6689
    %v6788 = vunpack.c.l.b16 %v6690
    %v6789 = vunpack.c.h.b16 %v6690
    %v6790 = vunpack.c.l.b16 %v6691
    %v6791 = vunpack.c.h.b16 %v6691
    %v6792 = vunpack.c.l.b16 %v6692
    %v6793 = vunpack.c.h.b16 %v6692
    %v6794 = vunpack.c.l.b16 %v6693
    %v6795 = vunpack.c.h.b16 %v6693
    %v6796 = vunpack.c.l.b16 %v6694
    %v6797 = vunpack.c.h.b16 %v6694
    %v6798 = vunpack.c.l.b16 %v6695
    %v6799 = vunpack.c.h.b16 %v6695
    %v6800 = vunpack.c.l.b16 %v6696
    %v6801 = vunpack.c.h.b16 %v6696
    %v6802 = vunpack.c.l.b16 %v6697
    %v6803 = vunpack.c.h.b16 %v6697
    %v6804 = vunpack.c.l.b16 %v6698
    %v6805 = vunpack.c.h.b16 %v6698
    %v6806 = vunpack.c.l.b16 %v6699
    %v6807 = vunpack.c.h.b16 %v6699
    %v6808 = vunpack.c.l.b16 %v6700
    %v6809 = vunpack.c.h.b16 %v6700
    %v6810 = vpack.c.b16 %v6748, %v6746
    %v6811 = vpack.c.b16 %v6749, %v6747
    %v6812 = vpack.c.b16 %v6752, %v6750
    %v6813 = vpack.c.b16 %v6753, %v6751
    %v6814 = vpack.c.b16 %v6756, %v6754
    %v6815 = vpack.c.b16 %v6757, %v6755
    %v6816 = vpack.c.b16 %v6760, %v6758
    %v6817 = vpack.c.b16 %v6761, %v6759
    %v6818 = vpack.c.b16 %v6764, %v6762
    %v6819 = vpack.c.b16 %v6765, %v6763
    %v6820 = vpack.c.b16 %v6768, %v6766
    %v6821 = vpack.c.b16 %v6769, %v6767
    %v6822 = vpack.c.b16 %v6772, %v6770
    %v6823 = vpack.c.b16 %v6773, %v6771
    %v6824 = vpack.c.b16 %v6776, %v6774
    %v6825 = vpack.c.b16 %v6777, %v6775
    %v6826 = vpack.c.b16 %v6780, %v6778
    %v6827 = vpack.c.b16 %v6781, %v6779
    %v6828 = vpack.c.b16 %v6784, %v6782
    %v6829 = vpack.c.b16 %v6785, %v6783
    %v6830 = vpack.c.b16 %v6788, %v6786
    %v6831 = vpack.c.b16 %v6789, %v6787
    %v6832 = vpack.c.b16 %v6792, %v6790
    %v6833 = vpack.c.b16 %v6793, %v6791
    %v6834 = vpack.c.b16 %v6796, %v6794
    %v6835 = vpack.c.b16 %v6797, %v6795
    %v6836 = vpack.c.b16 %v6800, %v6798
    %v6837 = vpack.c.b16 %v6801, %v6799
    %v6838 = vpack.c.b16 %v6804, %v6802
    %v6839 = vpack.c.b16 %v6805, %v6803
    %v6840 = vpack.c.b16 %v6808, %v6806
    %v6841 = vpack.c.b16 %v6809, %v6807
    %6874 = vmatprep.subr.bf16.mxu0 %v6825
    %6875 = vmatpush1.bf16.msra.mxu0 %v6824
    %6876 = vmatprep.subr.bf16.mxu0 %v6823
    %6877 = vmatpush1.bf16.msra.mxu0 %v6822
    %6878 = vmatprep.subr.bf16.mxu0 %v6821
    %6879 = vmatpush1.bf16.msra.mxu0 %v6820
    %6880 = vmatprep.subr.bf16.mxu0 %v6819
    %6881 = vmatpush1.bf16.msra.mxu0 %v6818
    %6882 = vmatprep.subr.bf16.mxu0 %v6817
    %6883 = vmatpush1.bf16.msra.mxu0 %v6816
    %6884 = vmatprep.subr.bf16.mxu0 %v6815
    %6885 = vmatpush1.bf16.msra.mxu0 %v6814
    %6886 = vmatprep.subr.bf16.mxu0 %v6813
    %6887 = vmatpush1.bf16.msra.mxu0 %v6812
    %6888 = vmatprep.subr.bf16.mxu0 %v6811
    %6889 = vmatpush1.bf16.msra.mxu0 %v6810
    %6890 = vmatprep.subr.bf16.mxu0 %v6841
    %6891 = vmatpush2.bf16.msra.mxu0 %v6840
    %6892 = vmatprep.subr.bf16.mxu0 %v6839
    %6893 = vmatpush2.bf16.msra.mxu0 %v6838
    %6894 = vmatprep.subr.bf16.mxu0 %v6837
    %6895 = vmatpush2.bf16.msra.mxu0 %v6836
    %6896 = vmatprep.subr.bf16.mxu0 %v6835
    %6897 = vmatpush2.bf16.msra.mxu0 %v6834
    %6898 = vmatprep.subr.bf16.mxu0 %v6833
    %6899 = vmatpush2.bf16.msra.mxu0 %v6832
    %6900 = vmatprep.subr.bf16.mxu0 %v6831
    %6901 = vmatpush2.bf16.msra.mxu0 %v6830
    %6902 = vmatprep.subr.bf16.mxu0 %v6829
    %6903 = vmatpush2.bf16.msra.mxu0 %v6828
    %6904 = vmatprep.subr.bf16.mxu0 %v6827
    %6905 = vmatpush2.bf16.msra.mxu0 %v6826
    %6906 = vmatprep.mubr.bf16.mxu0 %v1314
    %6907 = vmatmul.mubr.bf16.gmra.mxu0 %v1313
    %v6908 = vpop.f32.mrf.mxu0
    %v6909 = vadd.f32 %v6707, %v6908
    %v6910 = vpop.f32.mrf.mxu0
    %v6911 = vadd.f32 %v6711, %v6910
    %v6912 = vpop.f32.mrf.mxu0
    %v6913 = vpop.f32.mrf.mxu0
    %6914 = vdwg.mxu0
    %v6915 = vmax.f32 %v6909, 0.0
    %v6916 = vmax.f32 %v6911, 0.0
    %v6917 = vpack.c.bf16 %v6915, %v6915
    %v6918 = vpack.c.bf16 %v6916, %v6916
    %s6919 = scalar_lea.vmem [#allocation2], 8192
    %v6920 = vld [vmem:[%s6919] sm:$0xff]
    %v6921 = vld [vmem:[%s6919 + $0x8] sm:$0xff]
    %v6922 = vld [vmem:[%s6919 + $0x10] sm:$0xff]
    %v6923 = vld [vmem:[%s6919 + $0x18] sm:$0xff]
    %v6924 = vld [vmem:[%s6919 + $0x20] sm:$0xff]
    %v6925 = vld [vmem:[%s6919 + $0x28] sm:$0xff]
    %v6926 = vld [vmem:[%s6919 + $0x30] sm:$0xff]
    %v6927 = vld [vmem:[%s6919 + $0x38] sm:$0xff]
    %v6928 = vld [vmem:[%s6919 + $0x40] sm:$0xff]
    %v6929 = vld [vmem:[%s6919 + $0x48] sm:$0xff]
    %v6930 = vld [vmem:[%s6919 + $0x50] sm:$0xff]
    %v6931 = vld [vmem:[%s6919 + $0x58] sm:$0xff]
    %v6932 = vld [vmem:[%s6919 + $0x60] sm:$0xff]
    %v6933 = vld [vmem:[%s6919 + $0x68] sm:$0xff]
    %v6934 = vld [vmem:[%s6919 + $0x70] sm:$0xff]
    %v6935 = vld [vmem:[%s6919 + $0x78] sm:$0xff]
    %v6936 = vld [vmem:[%s6919 + $0x80] sm:$0xff]
    %v6937 = vld [vmem:[%s6919 + $0x88] sm:$0xff]
    %v6938 = vld [vmem:[%s6919 + $0x90] sm:$0xff]
    %v6939 = vld [vmem:[%s6919 + $0x98] sm:$0xff]
    %v6940 = vld [vmem:[%s6919 + $0xa0] sm:$0xff]
    %v6941 = vld [vmem:[%s6919 + $0xa8] sm:$0xff]
    %v6942 = vld [vmem:[%s6919 + $0xb0] sm:$0xff]
    %v6943 = vld [vmem:[%s6919 + $0xb8] sm:$0xff]
    %v6944 = vld [vmem:[%s6919 + $0xc0] sm:$0xff]
    %v6945 = vld [vmem:[%s6919 + $0xc8] sm:$0xff]
    %v6946 = vld [vmem:[%s6919 + $0xd0] sm:$0xff]
    %v6947 = vld [vmem:[%s6919 + $0xd8] sm:$0xff]
    %v6948 = vld [vmem:[%s6919 + $0xe0] sm:$0xff]
    %v6949 = vld [vmem:[%s6919 + $0xe8] sm:$0xff]
    %v6950 = vld [vmem:[%s6919 + $0xf0] sm:$0xff]
    %v6951 = vld [vmem:[%s6919 + $0xf8] sm:$0xff]
    %v6984 = vunpack.c.l.b16 %v6920
    %v6985 = vunpack.c.h.b16 %v6920
    %v6986 = vunpack.c.l.b16 %v6921
    %v6987 = vunpack.c.h.b16 %v6921
    %v6988 = vunpack.c.l.b16 %v6922
    %v6989 = vunpack.c.h.b16 %v6922
    %v6990 = vunpack.c.l.b16 %v6923
    %v6991 = vunpack.c.h.b16 %v6923
    %v6992 = vunpack.c.l.b16 %v6924
    %v6993 = vunpack.c.h.b16 %v6924
    %v6994 = vunpack.c.l.b16 %v6925
    %v6995 = vunpack.c.h.b16 %v6925
    %v6996 = vunpack.c.l.b16 %v6926
    %v6997 = vunpack.c.h.b16 %v6926
    %v6998 = vunpack.c.l.b16 %v6927
    %v6999 = vunpack.c.h.b16 %v6927
    %v7000 = vunpack.c.l.b16 %v6928
    %v7001 = vunpack.c.h.b16 %v6928
    %v7002 = vunpack.c.l.b16 %v6929
    %v7003 = vunpack.c.h.b16 %v6929
    %v7004 = vunpack.c.l.b16 %v6930
    %v7005 = vunpack.c.h.b16 %v6930
    %v7006 = vunpack.c.l.b16 %v6931
    %v7007 = vunpack.c.h.b16 %v6931
    %v7008 = vunpack.c.l.b16 %v6932
    %v7009 = vunpack.c.h.b16 %v6932
    %v7010 = vunpack.c.l.b16 %v6933
    %v7011 = vunpack.c.h.b16 %v6933
    %v7012 = vunpack.c.l.b16 %v6934
    %v7013 = vunpack.c.h.b16 %v6934
    %v7014 = vunpack.c.l.b16 %v6935
    %v7015 = vunpack.c.h.b16 %v6935
    %v7016 = vunpack.c.l.b16 %v6936
    %v7017 = vunpack.c.h.b16 %v6936
    %v7018 = vunpack.c.l.b16 %v6937
    %v7019 = vunpack.c.h.b16 %v6937
    %v7020 = vunpack.c.l.b16 %v6938
    %v7021 = vunpack.c.h.b16 %v6938
    %v7022 = vunpack.c.l.b16 %v6939
    %v7023 = vunpack.c.h.b16 %v6939
    %v7024 = vunpack.c.l.b16 %v6940
    %v7025 = vunpack.c.h.b16 %v6940
    %v7026 = vunpack.c.l.b16 %v6941
    %v7027 = vunpack.c.h.b16 %v6941
    %v7028 = vunpack.c.l.b16 %v6942
    %v7029 = vunpack.c.h.b16 %v6942
    %v7030 = vunpack.c.l.b16 %v6943
    %v7031 = vunpack.c.h.b16 %v6943
    %v7032 = vunpack.c.l.b16 %v6944
    %v7033 = vunpack.c.h.b16 %v6944
    %v7034 = vunpack.c.l.b16 %v6945
    %v7035 = vunpack.c.h.b16 %v6945
    %v7036 = vunpack.c.l.b16 %v6946
    %v7037 = vunpack.c.h.b16 %v6946
    %v7038 = vunpack.c.l.b16 %v6947
    %v7039 = vunpack.c.h.b16 %v6947
    %v7040 = vunpack.c.l.b16 %v6948
    %v7041 = vunpack.c.h.b16 %v6948
    %v7042 = vunpack.c.l.b16 %v6949
    %v7043 = vunpack.c.h.b16 %v6949
    %v7044 = vunpack.c.l.b16 %v6950
    %v7045 = vunpack.c.h.b16 %v6950
    %v7046 = vunpack.c.l.b16 %v6951
    %v7047 = vunpack.c.h.b16 %v6951
    %v7048 = vpack.c.b16 %v6986, %v6984
    %v7049 = vpack.c.b16 %v6987, %v6985
    %v7050 = vpack.c.b16 %v6990, %v6988
    %v7051 = vpack.c.b16 %v6991, %v6989
    %v7052 = vpack.c.b16 %v6994, %v6992
    %v7053 = vpack.c.b16 %v6995, %v6993
    %v7054 = vpack.c.b16 %v6998, %v6996
    %v7055 = vpack.c.b16 %v6999, %v6997
    %v7056 = vpack.c.b16 %v7002, %v7000
    %v7057 = vpack.c.b16 %v7003, %v7001
    %v7058 = vpack.c.b16 %v7006, %v7004
    %v7059 = vpack.c.b16 %v7007, %v7005
    %v7060 = vpack.c.b16 %v7010, %v7008
    %v7061 = vpack.c.b16 %v7011, %v7009
    %v7062 = vpack.c.b16 %v7014, %v7012
    %v7063 = vpack.c.b16 %v7015, %v7013
    %v7064 = vpack.c.b16 %v7018, %v7016
    %v7065 = vpack.c.b16 %v7019, %v7017
    %v7066 = vpack.c.b16 %v7022, %v7020
    %v7067 = vpack.c.b16 %v7023, %v7021
    %v7068 = vpack.c.b16 %v7026, %v7024
    %v7069 = vpack.c.b16 %v7027, %v7025
    %v7070 = vpack.c.b16 %v7030, %v7028
    %v7071 = vpack.c.b16 %v7031, %v7029
    %v7072 = vpack.c.b16 %v7034, %v7032
    %v7073 = vpack.c.b16 %v7035, %v7033
    %v7074 = vpack.c.b16 %v7038, %v7036
    %v7075 = vpack.c.b16 %v7039, %v7037
    %v7076 = vpack.c.b16 %v7042, %v7040
    %v7077 = vpack.c.b16 %v7043, %v7041
    %v7078 = vpack.c.b16 %v7046, %v7044
    %v7079 = vpack.c.b16 %v7047, %v7045
    %7112 = vmatprep.subr.bf16.mxu0 %v7063
    %7113 = vmatpush1.bf16.msra.mxu0 %v7062
    %7114 = vmatprep.subr.bf16.mxu0 %v7061
    %7115 = vmatpush1.bf16.msra.mxu0 %v7060
    %7116 = vmatprep.subr.bf16.mxu0 %v7059
    %7117 = vmatpush1.bf16.msra.mxu0 %v7058
    %7118 = vmatprep.subr.bf16.mxu0 %v7057
    %7119 = vmatpush1.bf16.msra.mxu0 %v7056
    %7120 = vmatprep.subr.bf16.mxu0 %v7055
    %7121 = vmatpush1.bf16.msra.mxu0 %v7054
    %7122 = vmatprep.subr.bf16.mxu0 %v7053
    %7123 = vmatpush1.bf16.msra.mxu0 %v7052
    %7124 = vmatprep.subr.bf16.mxu0 %v7051
    %7125 = vmatpush1.bf16.msra.mxu0 %v7050
    %7126 = vmatprep.subr.bf16.mxu0 %v7049
    %7127 = vmatpush1.bf16.msra.mxu0 %v7048
    %7128 = vmatprep.subr.bf16.mxu0 %v7079
    %7129 = vmatpush2.bf16.msra.mxu0 %v7078
    %7130 = vmatprep.subr.bf16.mxu0 %v7077
    %7131 = vmatpush2.bf16.msra.mxu0 %v7076
    %7132 = vmatprep.subr.bf16.mxu0 %v7075
    %7133 = vmatpush2.bf16.msra.mxu0 %v7074
    %7134 = vmatprep.subr.bf16.mxu0 %v7073
    %7135 = vmatpush2.bf16.msra.mxu0 %v7072
    %7136 = vmatprep.subr.bf16.mxu0 %v7071
    %7137 = vmatpush2.bf16.msra.mxu0 %v7070
    %7138 = vmatprep.subr.bf16.mxu0 %v7069
    %7139 = vmatpush2.bf16.msra.mxu0 %v7068
    %7140 = vmatprep.subr.bf16.mxu0 %v7067
    %7141 = vmatpush2.bf16.msra.mxu0 %v7066
    %7142 = vmatprep.subr.bf16.mxu0 %v7065
    %7143 = vmatpush2.bf16.msra.mxu0 %v7064
    %7144 = vmatprep.mubr.bf16.mxu0 %v6918
    %7145 = vmatmul.mubr.bf16.gmra.mxu0 %v6917
    %v7146 = vpop.f32.mrf.mxu0
    %v7147 = vadd.f32 0.0, %v7146
    %v7148 = vpop.f32.mrf.mxu0
    %v7149 = vadd.f32 0.0, %v7148
    %v7150 = vpop.f32.mrf.mxu0
    %v7151 = vpop.f32.mrf.mxu0
    %7152 = vdwg.mxu0
    %v7153 = vadd.f32 %v6666, %v7147
    %v7154 = vadd.f32 %v6667, %v7149
    %s7155 = scalar_lea.vmem [#allocation2], 4352
    %v7156 = vld [vmem:[%s7155] sm:$0xff]
    %v7157 = vld [vmem:[%s7155 + $0x8] sm:$0xff]
    %v7158 = vld [vmem:[%s7155 + $0x10] sm:$0xff]
    %v7159 = vld [vmem:[%s7155 + $0x18] sm:$0xff]
    %v7160 = vld [vmem:[%s7155 + $0x20] sm:$0xff]
    %v7161 = vld [vmem:[%s7155 + $0x28] sm:$0xff]
    %v7162 = vld [vmem:[%s7155 + $0x30] sm:$0xff]
    %v7163 = vld [vmem:[%s7155 + $0x38] sm:$0xff]
    %v7164 = vld [vmem:[%s7155 + $0x40] sm:$0xff]
    %v7165 = vld [vmem:[%s7155 + $0x48] sm:$0xff]
    %v7166 = vld [vmem:[%s7155 + $0x50] sm:$0xff]
    %v7167 = vld [vmem:[%s7155 + $0x58] sm:$0xff]
    %v7168 = vld [vmem:[%s7155 + $0x60] sm:$0xff]
    %v7169 = vld [vmem:[%s7155 + $0x68] sm:$0xff]
    %v7170 = vld [vmem:[%s7155 + $0x70] sm:$0xff]
    %v7171 = vld [vmem:[%s7155 + $0x78] sm:$0xff]
    %v7172 = vld [vmem:[%s7155 + $0x80] sm:$0xff]
    %v7173 = vld [vmem:[%s7155 + $0x88] sm:$0xff]
    %v7174 = vld [vmem:[%s7155 + $0x90] sm:$0xff]
    %v7175 = vld [vmem:[%s7155 + $0x98] sm:$0xff]
    %v7176 = vld [vmem:[%s7155 + $0xa0] sm:$0xff]
    %v7177 = vld [vmem:[%s7155 + $0xa8] sm:$0xff]
    %v7178 = vld [vmem:[%s7155 + $0xb0] sm:$0xff]
    %v7179 = vld [vmem:[%s7155 + $0xb8] sm:$0xff]
    %v7180 = vld [vmem:[%s7155 + $0xc0] sm:$0xff]
    %v7181 = vld [vmem:[%s7155 + $0xc8] sm:$0xff]
    %v7182 = vld [vmem:[%s7155 + $0xd0] sm:$0xff]
    %v7183 = vld [vmem:[%s7155 + $0xd8] sm:$0xff]
    %v7184 = vld [vmem:[%s7155 + $0xe0] sm:$0xff]
    %v7185 = vld [vmem:[%s7155 + $0xe8] sm:$0xff]
    %v7186 = vld [vmem:[%s7155 + $0xf0] sm:$0xff]
    %v7187 = vld [vmem:[%s7155 + $0xf8] sm:$0xff]
    %s7188 = scalar_lea.vmem [#allocation4], 33
    %v7189 = vld [vmem:[%s7188] ss:$8 sm:$0x3]
    %v7191 = vlaneseq
    %v7192 = vshrl.u32 %v7191, 7
    %v7193 = vsub.s32 0, %v7192
    %v7194 = vrot.slane %v7189, %v7193
    %v7195 = vlaneseq
    %v7196 = vshrl.u32 %v7195, 7
    %v7197 = vsub.s32 1, %v7196
    %v7198 = vrot.slane %v7189, %v7197
    %v7233 = vunpack.c.l.b16 %v7156
    %v7234 = vunpack.c.h.b16 %v7156
    %v7235 = vunpack.c.l.b16 %v7157
    %v7236 = vunpack.c.h.b16 %v7157
    %v7237 = vunpack.c.l.b16 %v7158
    %v7238 = vunpack.c.h.b16 %v7158
    %v7239 = vunpack.c.l.b16 %v7159
    %v7240 = vunpack.c.h.b16 %v7159
    %v7241 = vunpack.c.l.b16 %v7160
    %v7242 = vunpack.c.h.b16 %v7160
    %v7243 = vunpack.c.l.b16 %v7161
    %v7244 = vunpack.c.h.b16 %v7161
    %v7245 = vunpack.c.l.b16 %v7162
    %v7246 = vunpack.c.h.b16 %v7162
    %v7247 = vunpack.c.l.b16 %v7163
    %v7248 = vunpack.c.h.b16 %v7163
    %v7249 = vunpack.c.l.b16 %v7164
    %v7250 = vunpack.c.h.b16 %v7164
    %v7251 = vunpack.c.l.b16 %v7165
    %v7252 = vunpack.c.h.b16 %v7165
    %v7253 = vunpack.c.l.b16 %v7166
    %v7254 = vunpack.c.h.b16 %v7166
    %v7255 = vunpack.c.l.b16 %v7167
    %v7256 = vunpack.c.h.b16 %v7167
    %v7257 = vunpack.c.l.b16 %v7168
    %v7258 = vunpack.c.h.b16 %v7168
    %v7259 = vunpack.c.l.b16 %v7169
    %v7260 = vunpack.c.h.b16 %v7169
    %v7261 = vunpack.c.l.b16 %v7170
    %v7262 = vunpack.c.h.b16 %v7170
    %v7263 = vunpack.c.l.b16 %v7171
    %v7264 = vunpack.c.h.b16 %v7171
    %v7265 = vunpack.c.l.b16 %v7172
    %v7266 = vunpack.c.h.b16 %v7172
    %v7267 = vunpack.c.l.b16 %v7173
    %v7268 = vunpack.c.h.b16 %v7173
    %v7269 = vunpack.c.l.b16 %v7174
    %v7270 = vunpack.c.h.b16 %v7174
    %v7271 = vunpack.c.l.b16 %v7175
    %v7272 = vunpack.c.h.b16 %v7175
    %v7273 = vunpack.c.l.b16 %v7176
    %v7274 = vunpack.c.h.b16 %v7176
    %v7275 = vunpack.c.l.b16 %v7177
    %v7276 = vunpack.c.h.b16 %v7177
    %v7277 = vunpack.c.l.b16 %v7178
    %v7278 = vunpack.c.h.b16 %v7178
    %v7279 = vunpack.c.l.b16 %v7179
    %v7280 = vunpack.c.h.b16 %v7179
    %v7281 = vunpack.c.l.b16 %v7180
    %v7282 = vunpack.c.h.b16 %v7180
    %v7283 = vunpack.c.l.b16 %v7181
    %v7284 = vunpack.c.h.b16 %v7181
    %v7285 = vunpack.c.l.b16 %v7182
    %v7286 = vunpack.c.h.b16 %v7182
    %v7287 = vunpack.c.l.b16 %v7183
    %v7288 = vunpack.c.h.b16 %v7183
    %v7289 = vunpack.c.l.b16 %v7184
    %v7290 = vunpack.c.h.b16 %v7184
    %v7291 = vunpack.c.l.b16 %v7185
    %v7292 = vunpack.c.h.b16 %v7185
    %v7293 = vunpack.c.l.b16 %v7186
    %v7294 = vunpack.c.h.b16 %v7186
    %v7295 = vunpack.c.l.b16 %v7187
    %v7296 = vunpack.c.h.b16 %v7187
    %v7297 = vpack.c.b16 %v7235, %v7233
    %v7298 = vpack.c.b16 %v7236, %v7234
    %v7299 = vpack.c.b16 %v7239, %v7237
    %v7300 = vpack.c.b16 %v7240, %v7238
    %v7301 = vpack.c.b16 %v7243, %v7241
    %v7302 = vpack.c.b16 %v7244, %v7242
    %v7303 = vpack.c.b16 %v7247, %v7245
    %v7304 = vpack.c.b16 %v7248, %v7246
    %v7305 = vpack.c.b16 %v7251, %v7249
    %v7306 = vpack.c.b16 %v7252, %v7250
    %v7307 = vpack.c.b16 %v7255, %v7253
    %v7308 = vpack.c.b16 %v7256, %v7254
    %v7309 = vpack.c.b16 %v7259, %v7257
    %v7310 = vpack.c.b16 %v7260, %v7258
    %v7311 = vpack.c.b16 %v7263, %v7261
    %v7312 = vpack.c.b16 %v7264, %v7262
    %v7313 = vpack.c.b16 %v7267, %v7265
    %v7314 = vpack.c.b16 %v7268, %v7266
    %v7315 = vpack.c.b16 %v7271, %v7269
    %v7316 = vpack.c.b16 %v7272, %v7270
    %v7317 = vpack.c.b16 %v7275, %v7273
    %v7318 = vpack.c.b16 %v7276, %v7274
    %v7319 = vpack.c.b16 %v7279, %v7277
    %v7320 = vpack.c.b16 %v7280, %v7278
    %v7321 = vpack.c.b16 %v7283, %v7281
    %v7322 = vpack.c.b16 %v7284, %v7282
    %v7323 = vpack.c.b16 %v7287, %v7285
    %v7324 = vpack.c.b16 %v7288, %v7286
    %v7325 = vpack.c.b16 %v7291, %v7289
    %v7326 = vpack.c.b16 %v7292, %v7290
    %v7327 = vpack.c.b16 %v7295, %v7293
    %v7328 = vpack.c.b16 %v7296, %v7294
    %7361 = vmatprep.subr.bf16.mxu0 %v7312
    %7362 = vmatpush1.bf16.msra.mxu0 %v7311
    %7363 = vmatprep.subr.bf16.mxu0 %v7310
    %7364 = vmatpush1.bf16.msra.mxu0 %v7309
    %7365 = vmatprep.subr.bf16.mxu0 %v7308
    %7366 = vmatpush1.bf16.msra.mxu0 %v7307
    %7367 = vmatprep.subr.bf16.mxu0 %v7306
    %7368 = vmatpush1.bf16.msra.mxu0 %v7305
    %7369 = vmatprep.subr.bf16.mxu0 %v7304
    %7370 = vmatpush1.bf16.msra.mxu0 %v7303
    %7371 = vmatprep.subr.bf16.mxu0 %v7302
    %7372 = vmatpush1.bf16.msra.mxu0 %v7301
    %7373 = vmatprep.subr.bf16.mxu0 %v7300
    %7374 = vmatpush1.bf16.msra.mxu0 %v7299
    %7375 = vmatprep.subr.bf16.mxu0 %v7298
    %7376 = vmatpush1.bf16.msra.mxu0 %v7297
    %7377 = vmatprep.subr.bf16.mxu0 %v7328
    %7378 = vmatpush2.bf16.msra.mxu0 %v7327
    %7379 = vmatprep.subr.bf16.mxu0 %v7326
    %7380 = vmatpush2.bf16.msra.mxu0 %v7325
    %7381 = vmatprep.subr.bf16.mxu0 %v7324
    %7382 = vmatpush2.bf16.msra.mxu0 %v7323
    %7383 = vmatprep.subr.bf16.mxu0 %v7322
    %7384 = vmatpush2.bf16.msra.mxu0 %v7321
    %7385 = vmatprep.subr.bf16.mxu0 %v7320
    %7386 = vmatpush2.bf16.msra.mxu0 %v7319
    %7387 = vmatprep.subr.bf16.mxu0 %v7318
    %7388 = vmatpush2.bf16.msra.mxu0 %v7317
    %7389 = vmatprep.subr.bf16.mxu0 %v7316
    %7390 = vmatpush2.bf16.msra.mxu0 %v7315
    %7391 = vmatprep.subr.bf16.mxu0 %v7314
    %7392 = vmatpush2.bf16.msra.mxu0 %v7313
    %7393 = vmatprep.mubr.bf16.mxu0 %v1314
    %7394 = vmatmul.mubr.bf16.gmra.mxu0 %v1313
    %v7395 = vpop.f32.mrf.mxu0
    %v7396 = vadd.f32 %v7194, %v7395
    %v7397 = vpop.f32.mrf.mxu0
    %v7398 = vadd.f32 %v7198, %v7397
    %v7399 = vpop.f32.mrf.mxu0
    %v7400 = vpop.f32.mrf.mxu0
    %7401 = vdwg.mxu0
    %v7402 = vmax.f32 %v7396, 0.0
    %v7403 = vmax.f32 %v7398, 0.0
    %v7404 = vpack.c.bf16 %v7402, %v7402
    %v7405 = vpack.c.bf16 %v7403, %v7403
    %s7406 = scalar_lea.vmem [#allocation2], 8448
    %v7407 = vld [vmem:[%s7406] sm:$0xff]
    %v7408 = vld [vmem:[%s7406 + $0x8] sm:$0xff]
    %v7409 = vld [vmem:[%s7406 + $0x10] sm:$0xff]
    %v7410 = vld [vmem:[%s7406 + $0x18] sm:$0xff]
    %v7411 = vld [vmem:[%s7406 + $0x20] sm:$0xff]
    %v7412 = vld [vmem:[%s7406 + $0x28] sm:$0xff]
    %v7413 = vld [vmem:[%s7406 + $0x30] sm:$0xff]
    %v7414 = vld [vmem:[%s7406 + $0x38] sm:$0xff]
    %v7415 = vld [vmem:[%s7406 + $0x40] sm:$0xff]
    %v7416 = vld [vmem:[%s7406 + $0x48] sm:$0xff]
    %v7417 = vld [vmem:[%s7406 + $0x50] sm:$0xff]
    %v7418 = vld [vmem:[%s7406 + $0x58] sm:$0xff]
    %v7419 = vld [vmem:[%s7406 + $0x60] sm:$0xff]
    %v7420 = vld [vmem:[%s7406 + $0x68] sm:$0xff]
    %v7421 = vld [vmem:[%s7406 + $0x70] sm:$0xff]
    %v7422 = vld [vmem:[%s7406 + $0x78] sm:$0xff]
    %v7423 = vld [vmem:[%s7406 + $0x80] sm:$0xff]
    %v7424 = vld [vmem:[%s7406 + $0x88] sm:$0xff]
    %v7425 = vld [vmem:[%s7406 + $0x90] sm:$0xff]
    %v7426 = vld [vmem:[%s7406 + $0x98] sm:$0xff]
    %v7427 = vld [vmem:[%s7406 + $0xa0] sm:$0xff]
    %v7428 = vld [vmem:[%s7406 + $0xa8] sm:$0xff]
    %v7429 = vld [vmem:[%s7406 + $0xb0] sm:$0xff]
    %v7430 = vld [vmem:[%s7406 + $0xb8] sm:$0xff]
    %v7431 = vld [vmem:[%s7406 + $0xc0] sm:$0xff]
    %v7432 = vld [vmem:[%s7406 + $0xc8] sm:$0xff]
    %v7433 = vld [vmem:[%s7406 + $0xd0] sm:$0xff]
    %v7434 = vld [vmem:[%s7406 + $0xd8] sm:$0xff]
    %v7435 = vld [vmem:[%s7406 + $0xe0] sm:$0xff]
    %v7436 = vld [vmem:[%s7406 + $0xe8] sm:$0xff]
    %v7437 = vld [vmem:[%s7406 + $0xf0] sm:$0xff]
    %v7438 = vld [vmem:[%s7406 + $0xf8] sm:$0xff]
    %v7471 = vunpack.c.l.b16 %v7407
    %v7472 = vunpack.c.h.b16 %v7407
    %v7473 = vunpack.c.l.b16 %v7408
    %v7474 = vunpack.c.h.b16 %v7408
    %v7475 = vunpack.c.l.b16 %v7409
    %v7476 = vunpack.c.h.b16 %v7409
    %v7477 = vunpack.c.l.b16 %v7410
    %v7478 = vunpack.c.h.b16 %v7410
    %v7479 = vunpack.c.l.b16 %v7411
    %v7480 = vunpack.c.h.b16 %v7411
    %v7481 = vunpack.c.l.b16 %v7412
    %v7482 = vunpack.c.h.b16 %v7412
    %v7483 = vunpack.c.l.b16 %v7413
    %v7484 = vunpack.c.h.b16 %v7413
    %v7485 = vunpack.c.l.b16 %v7414
    %v7486 = vunpack.c.h.b16 %v7414
    %v7487 = vunpack.c.l.b16 %v7415
    %v7488 = vunpack.c.h.b16 %v7415
    %v7489 = vunpack.c.l.b16 %v7416
    %v7490 = vunpack.c.h.b16 %v7416
    %v7491 = vunpack.c.l.b16 %v7417
    %v7492 = vunpack.c.h.b16 %v7417
    %v7493 = vunpack.c.l.b16 %v7418
    %v7494 = vunpack.c.h.b16 %v7418
    %v7495 = vunpack.c.l.b16 %v7419
    %v7496 = vunpack.c.h.b16 %v7419
    %v7497 = vunpack.c.l.b16 %v7420
    %v7498 = vunpack.c.h.b16 %v7420
    %v7499 = vunpack.c.l.b16 %v7421
    %v7500 = vunpack.c.h.b16 %v7421
    %v7501 = vunpack.c.l.b16 %v7422
    %v7502 = vunpack.c.h.b16 %v7422
    %v7503 = vunpack.c.l.b16 %v7423
    %v7504 = vunpack.c.h.b16 %v7423
    %v7505 = vunpack.c.l.b16 %v7424
    %v7506 = vunpack.c.h.b16 %v7424
    %v7507 = vunpack.c.l.b16 %v7425
    %v7508 = vunpack.c.h.b16 %v7425
    %v7509 = vunpack.c.l.b16 %v7426
    %v7510 = vunpack.c.h.b16 %v7426
    %v7511 = vunpack.c.l.b16 %v7427
    %v7512 = vunpack.c.h.b16 %v7427
    %v7513 = vunpack.c.l.b16 %v7428
    %v7514 = vunpack.c.h.b16 %v7428
    %v7515 = vunpack.c.l.b16 %v7429
    %v7516 = vunpack.c.h.b16 %v7429
    %v7517 = vunpack.c.l.b16 %v7430
    %v7518 = vunpack.c.h.b16 %v7430
    %v7519 = vunpack.c.l.b16 %v7431
    %v7520 = vunpack.c.h.b16 %v7431
    %v7521 = vunpack.c.l.b16 %v7432
    %v7522 = vunpack.c.h.b16 %v7432
    %v7523 = vunpack.c.l.b16 %v7433
    %v7524 = vunpack.c.h.b16 %v7433
    %v7525 = vunpack.c.l.b16 %v7434
    %v7526 = vunpack.c.h.b16 %v7434
    %v7527 = vunpack.c.l.b16 %v7435
    %v7528 = vunpack.c.h.b16 %v7435
    %v7529 = vunpack.c.l.b16 %v7436
    %v7530 = vunpack.c.h.b16 %v7436
    %v7531 = vunpack.c.l.b16 %v7437
    %v7532 = vunpack.c.h.b16 %v7437
    %v7533 = vunpack.c.l.b16 %v7438
    %v7534 = vunpack.c.h.b16 %v7438
    %v7535 = vpack.c.b16 %v7473, %v7471
    %v7536 = vpack.c.b16 %v7474, %v7472
    %v7537 = vpack.c.b16 %v7477, %v7475
    %v7538 = vpack.c.b16 %v7478, %v7476
    %v7539 = vpack.c.b16 %v7481, %v7479
    %v7540 = vpack.c.b16 %v7482, %v7480
    %v7541 = vpack.c.b16 %v7485, %v7483
    %v7542 = vpack.c.b16 %v7486, %v7484
    %v7543 = vpack.c.b16 %v7489, %v7487
    %v7544 = vpack.c.b16 %v7490, %v7488
    %v7545 = vpack.c.b16 %v7493, %v7491
    %v7546 = vpack.c.b16 %v7494, %v7492
    %v7547 = vpack.c.b16 %v7497, %v7495
    %v7548 = vpack.c.b16 %v7498, %v7496
    %v7549 = vpack.c.b16 %v7501, %v7499
    %v7550 = vpack.c.b16 %v7502, %v7500
    %v7551 = vpack.c.b16 %v7505, %v7503
    %v7552 = vpack.c.b16 %v7506, %v7504
    %v7553 = vpack.c.b16 %v7509, %v7507
    %v7554 = vpack.c.b16 %v7510, %v7508
    %v7555 = vpack.c.b16 %v7513, %v7511
    %v7556 = vpack.c.b16 %v7514, %v7512
    %v7557 = vpack.c.b16 %v7517, %v7515
    %v7558 = vpack.c.b16 %v7518, %v7516
    %v7559 = vpack.c.b16 %v7521, %v7519
    %v7560 = vpack.c.b16 %v7522, %v7520
    %v7561 = vpack.c.b16 %v7525, %v7523
    %v7562 = vpack.c.b16 %v7526, %v7524
    %v7563 = vpack.c.b16 %v7529, %v7527
    %v7564 = vpack.c.b16 %v7530, %v7528
    %v7565 = vpack.c.b16 %v7533, %v7531
    %v7566 = vpack.c.b16 %v7534, %v7532
    %7599 = vmatprep.subr.bf16.mxu0 %v7550
    %7600 = vmatpush1.bf16.msra.mxu0 %v7549
    %7601 = vmatprep.subr.bf16.mxu0 %v7548
    %7602 = vmatpush1.bf16.msra.mxu0 %v7547
    %7603 = vmatprep.subr.bf16.mxu0 %v7546
    %7604 = vmatpush1.bf16.msra.mxu0 %v7545
    %7605 = vmatprep.subr.bf16.mxu0 %v7544
    %7606 = vmatpush1.bf16.msra.mxu0 %v7543
    %7607 = vmatprep.subr.bf16.mxu0 %v7542
    %7608 = vmatpush1.bf16.msra.mxu0 %v7541
    %7609 = vmatprep.subr.bf16.mxu0 %v7540
    %7610 = vmatpush1.bf16.msra.mxu0 %v7539
    %7611 = vmatprep.subr.bf16.mxu0 %v7538
    %7612 = vmatpush1.bf16.msra.mxu0 %v7537
    %7613 = vmatprep.subr.bf16.mxu0 %v7536
    %7614 = vmatpush1.bf16.msra.mxu0 %v7535
    %7615 = vmatprep.subr.bf16.mxu0 %v7566
    %7616 = vmatpush2.bf16.msra.mxu0 %v7565
    %7617 = vmatprep.subr.bf16.mxu0 %v7564
    %7618 = vmatpush2.bf16.msra.mxu0 %v7563
    %7619 = vmatprep.subr.bf16.mxu0 %v7562
    %7620 = vmatpush2.bf16.msra.mxu0 %v7561
    %7621 = vmatprep.subr.bf16.mxu0 %v7560
    %7622 = vmatpush2.bf16.msra.mxu0 %v7559
    %7623 = vmatprep.subr.bf16.mxu0 %v7558
    %7624 = vmatpush2.bf16.msra.mxu0 %v7557
    %7625 = vmatprep.subr.bf16.mxu0 %v7556
    %7626 = vmatpush2.bf16.msra.mxu0 %v7555
    %7627 = vmatprep.subr.bf16.mxu0 %v7554
    %7628 = vmatpush2.bf16.msra.mxu0 %v7553
    %7629 = vmatprep.subr.bf16.mxu0 %v7552
    %7630 = vmatpush2.bf16.msra.mxu0 %v7551
    %7631 = vmatprep.mubr.bf16.mxu0 %v7405
    %7632 = vmatmul.mubr.bf16.gmra.mxu0 %v7404
    %v7633 = vpop.f32.mrf.mxu0
    %v7634 = vadd.f32 0.0, %v7633
    %v7635 = vpop.f32.mrf.mxu0
    %v7636 = vadd.f32 0.0, %v7635
    %v7637 = vpop.f32.mrf.mxu0
    %v7638 = vpop.f32.mrf.mxu0
    %7639 = vdwg.mxu0
    %v7640 = vadd.f32 %v7153, %v7634
    %v7641 = vadd.f32 %v7154, %v7636
    %s7642 = scalar_lea.vmem [#allocation2], 4608
    %v7643 = vld [vmem:[%s7642] sm:$0xff]
    %v7644 = vld [vmem:[%s7642 + $0x8] sm:$0xff]
    %v7645 = vld [vmem:[%s7642 + $0x10] sm:$0xff]
    %v7646 = vld [vmem:[%s7642 + $0x18] sm:$0xff]
    %v7647 = vld [vmem:[%s7642 + $0x20] sm:$0xff]
    %v7648 = vld [vmem:[%s7642 + $0x28] sm:$0xff]
    %v7649 = vld [vmem:[%s7642 + $0x30] sm:$0xff]
    %v7650 = vld [vmem:[%s7642 + $0x38] sm:$0xff]
    %v7651 = vld [vmem:[%s7642 + $0x40] sm:$0xff]
    %v7652 = vld [vmem:[%s7642 + $0x48] sm:$0xff]
    %v7653 = vld [vmem:[%s7642 + $0x50] sm:$0xff]
    %v7654 = vld [vmem:[%s7642 + $0x58] sm:$0xff]
    %v7655 = vld [vmem:[%s7642 + $0x60] sm:$0xff]
    %v7656 = vld [vmem:[%s7642 + $0x68] sm:$0xff]
    %v7657 = vld [vmem:[%s7642 + $0x70] sm:$0xff]
    %v7658 = vld [vmem:[%s7642 + $0x78] sm:$0xff]
    %v7659 = vld [vmem:[%s7642 + $0x80] sm:$0xff]
    %v7660 = vld [vmem:[%s7642 + $0x88] sm:$0xff]
    %v7661 = vld [vmem:[%s7642 + $0x90] sm:$0xff]
    %v7662 = vld [vmem:[%s7642 + $0x98] sm:$0xff]
    %v7663 = vld [vmem:[%s7642 + $0xa0] sm:$0xff]
    %v7664 = vld [vmem:[%s7642 + $0xa8] sm:$0xff]
    %v7665 = vld [vmem:[%s7642 + $0xb0] sm:$0xff]
    %v7666 = vld [vmem:[%s7642 + $0xb8] sm:$0xff]
    %v7667 = vld [vmem:[%s7642 + $0xc0] sm:$0xff]
    %v7668 = vld [vmem:[%s7642 + $0xc8] sm:$0xff]
    %v7669 = vld [vmem:[%s7642 + $0xd0] sm:$0xff]
    %v7670 = vld [vmem:[%s7642 + $0xd8] sm:$0xff]
    %v7671 = vld [vmem:[%s7642 + $0xe0] sm:$0xff]
    %v7672 = vld [vmem:[%s7642 + $0xe8] sm:$0xff]
    %v7673 = vld [vmem:[%s7642 + $0xf0] sm:$0xff]
    %v7674 = vld [vmem:[%s7642 + $0xf8] sm:$0xff]
    %s7675 = scalar_lea.vmem [#allocation4], 34
    %v7676 = vld [vmem:[%s7675] ss:$8 sm:$0x3]
    %v7678 = vlaneseq
    %v7679 = vshrl.u32 %v7678, 7
    %v7680 = vsub.s32 0, %v7679
    %v7681 = vrot.slane %v7676, %v7680
    %v7682 = vlaneseq
    %v7683 = vshrl.u32 %v7682, 7
    %v7684 = vsub.s32 1, %v7683
    %v7685 = vrot.slane %v7676, %v7684
    %v7720 = vunpack.c.l.b16 %v7643
    %v7721 = vunpack.c.h.b16 %v7643
    %v7722 = vunpack.c.l.b16 %v7644
    %v7723 = vunpack.c.h.b16 %v7644
    %v7724 = vunpack.c.l.b16 %v7645
    %v7725 = vunpack.c.h.b16 %v7645
    %v7726 = vunpack.c.l.b16 %v7646
    %v7727 = vunpack.c.h.b16 %v7646
    %v7728 = vunpack.c.l.b16 %v7647
    %v7729 = vunpack.c.h.b16 %v7647
    %v7730 = vunpack.c.l.b16 %v7648
    %v7731 = vunpack.c.h.b16 %v7648
    %v7732 = vunpack.c.l.b16 %v7649
    %v7733 = vunpack.c.h.b16 %v7649
    %v7734 = vunpack.c.l.b16 %v7650
    %v7735 = vunpack.c.h.b16 %v7650
    %v7736 = vunpack.c.l.b16 %v7651
    %v7737 = vunpack.c.h.b16 %v7651
    %v7738 = vunpack.c.l.b16 %v7652
    %v7739 = vunpack.c.h.b16 %v7652
    %v7740 = vunpack.c.l.b16 %v7653
    %v7741 = vunpack.c.h.b16 %v7653
    %v7742 = vunpack.c.l.b16 %v7654
    %v7743 = vunpack.c.h.b16 %v7654
    %v7744 = vunpack.c.l.b16 %v7655
    %v7745 = vunpack.c.h.b16 %v7655
    %v7746 = vunpack.c.l.b16 %v7656
    %v7747 = vunpack.c.h.b16 %v7656
    %v7748 = vunpack.c.l.b16 %v7657
    %v7749 = vunpack.c.h.b16 %v7657
    %v7750 = vunpack.c.l.b16 %v7658
    %v7751 = vunpack.c.h.b16 %v7658
    %v7752 = vunpack.c.l.b16 %v7659
    %v7753 = vunpack.c.h.b16 %v7659
    %v7754 = vunpack.c.l.b16 %v7660
    %v7755 = vunpack.c.h.b16 %v7660
    %v7756 = vunpack.c.l.b16 %v7661
    %v7757 = vunpack.c.h.b16 %v7661
    %v7758 = vunpack.c.l.b16 %v7662
    %v7759 = vunpack.c.h.b16 %v7662
    %v7760 = vunpack.c.l.b16 %v7663
    %v7761 = vunpack.c.h.b16 %v7663
    %v7762 = vunpack.c.l.b16 %v7664
    %v7763 = vunpack.c.h.b16 %v7664
    %v7764 = vunpack.c.l.b16 %v7665
    %v7765 = vunpack.c.h.b16 %v7665
    %v7766 = vunpack.c.l.b16 %v7666
    %v7767 = vunpack.c.h.b16 %v7666
    %v7768 = vunpack.c.l.b16 %v7667
    %v7769 = vunpack.c.h.b16 %v7667
    %v7770 = vunpack.c.l.b16 %v7668
    %v7771 = vunpack.c.h.b16 %v7668
    %v7772 = vunpack.c.l.b16 %v7669
    %v7773 = vunpack.c.h.b16 %v7669
    %v7774 = vunpack.c.l.b16 %v7670
    %v7775 = vunpack.c.h.b16 %v7670
    %v7776 = vunpack.c.l.b16 %v7671
    %v7777 = vunpack.c.h.b16 %v7671
    %v7778 = vunpack.c.l.b16 %v7672
    %v7779 = vunpack.c.h.b16 %v7672
    %v7780 = vunpack.c.l.b16 %v7673
    %v7781 = vunpack.c.h.b16 %v7673
    %v7782 = vunpack.c.l.b16 %v7674
    %v7783 = vunpack.c.h.b16 %v7674
    %v7784 = vpack.c.b16 %v7722, %v7720
    %v7785 = vpack.c.b16 %v7723, %v7721
    %v7786 = vpack.c.b16 %v7726, %v7724
    %v7787 = vpack.c.b16 %v7727, %v7725
    %v7788 = vpack.c.b16 %v7730, %v7728
    %v7789 = vpack.c.b16 %v7731, %v7729
    %v7790 = vpack.c.b16 %v7734, %v7732
    %v7791 = vpack.c.b16 %v7735, %v7733
    %v7792 = vpack.c.b16 %v7738, %v7736
    %v7793 = vpack.c.b16 %v7739, %v7737
    %v7794 = vpack.c.b16 %v7742, %v7740
    %v7795 = vpack.c.b16 %v7743, %v7741
    %v7796 = vpack.c.b16 %v7746, %v7744
    %v7797 = vpack.c.b16 %v7747, %v7745
    %v7798 = vpack.c.b16 %v7750, %v7748
    %v7799 = vpack.c.b16 %v7751, %v7749
    %v7800 = vpack.c.b16 %v7754, %v7752
    %v7801 = vpack.c.b16 %v7755, %v7753
    %v7802 = vpack.c.b16 %v7758, %v7756
    %v7803 = vpack.c.b16 %v7759, %v7757
    %v7804 = vpack.c.b16 %v7762, %v7760
    %v7805 = vpack.c.b16 %v7763, %v7761
    %v7806 = vpack.c.b16 %v7766, %v7764
    %v7807 = vpack.c.b16 %v7767, %v7765
    %v7808 = vpack.c.b16 %v7770, %v7768
    %v7809 = vpack.c.b16 %v7771, %v7769
    %v7810 = vpack.c.b16 %v7774, %v7772
    %v7811 = vpack.c.b16 %v7775, %v7773
    %v7812 = vpack.c.b16 %v7778, %v7776
    %v7813 = vpack.c.b16 %v7779, %v7777
    %v7814 = vpack.c.b16 %v7782, %v7780
    %v7815 = vpack.c.b16 %v7783, %v7781
    %7848 = vmatprep.subr.bf16.mxu0 %v7799
    %7849 = vmatpush1.bf16.msra.mxu0 %v7798
    %7850 = vmatprep.subr.bf16.mxu0 %v7797
    %7851 = vmatpush1.bf16.msra.mxu0 %v7796
    %7852 = vmatprep.subr.bf16.mxu0 %v7795
    %7853 = vmatpush1.bf16.msra.mxu0 %v7794
    %7854 = vmatprep.subr.bf16.mxu0 %v7793
    %7855 = vmatpush1.bf16.msra.mxu0 %v7792
    %7856 = vmatprep.subr.bf16.mxu0 %v7791
    %7857 = vmatpush1.bf16.msra.mxu0 %v7790
    %7858 = vmatprep.subr.bf16.mxu0 %v7789
    %7859 = vmatpush1.bf16.msra.mxu0 %v7788
    %7860 = vmatprep.subr.bf16.mxu0 %v7787
    %7861 = vmatpush1.bf16.msra.mxu0 %v7786
    %7862 = vmatprep.subr.bf16.mxu0 %v7785
    %7863 = vmatpush1.bf16.msra.mxu0 %v7784
    %7864 = vmatprep.subr.bf16.mxu0 %v7815
    %7865 = vmatpush2.bf16.msra.mxu0 %v7814
    %7866 = vmatprep.subr.bf16.mxu0 %v7813
    %7867 = vmatpush2.bf16.msra.mxu0 %v7812
    %7868 = vmatprep.subr.bf16.mxu0 %v7811
    %7869 = vmatpush2.bf16.msra.mxu0 %v7810
    %7870 = vmatprep.subr.bf16.mxu0 %v7809
    %7871 = vmatpush2.bf16.msra.mxu0 %v7808
    %7872 = vmatprep.subr.bf16.mxu0 %v7807
    %7873 = vmatpush2.bf16.msra.mxu0 %v7806
    %7874 = vmatprep.subr.bf16.mxu0 %v7805
    %7875 = vmatpush2.bf16.msra.mxu0 %v7804
    %7876 = vmatprep.subr.bf16.mxu0 %v7803
    %7877 = vmatpush2.bf16.msra.mxu0 %v7802
    %7878 = vmatprep.subr.bf16.mxu0 %v7801
    %7879 = vmatpush2.bf16.msra.mxu0 %v7800
    %7880 = vmatprep.mubr.bf16.mxu0 %v1314
    %7881 = vmatmul.mubr.bf16.gmra.mxu0 %v1313
    %v7882 = vpop.f32.mrf.mxu0
    %v7883 = vadd.f32 %v7681, %v7882
    %v7884 = vpop.f32.mrf.mxu0
    %v7885 = vadd.f32 %v7685, %v7884
    %v7886 = vpop.f32.mrf.mxu0
    %v7887 = vpop.f32.mrf.mxu0
    %7888 = vdwg.mxu0
    %v7889 = vmax.f32 %v7883, 0.0
    %v7890 = vmax.f32 %v7885, 0.0
    %v7891 = vpack.c.bf16 %v7889, %v7889
    %v7892 = vpack.c.bf16 %v7890, %v7890
    %s7893 = scalar_lea.vmem [#allocation2], 8704
    %v7894 = vld [vmem:[%s7893] sm:$0xff]
    %v7895 = vld [vmem:[%s7893 + $0x8] sm:$0xff]
    %v7896 = vld [vmem:[%s7893 + $0x10] sm:$0xff]
    %v7897 = vld [vmem:[%s7893 + $0x18] sm:$0xff]
    %v7898 = vld [vmem:[%s7893 + $0x20] sm:$0xff]
    %v7899 = vld [vmem:[%s7893 + $0x28] sm:$0xff]
    %v7900 = vld [vmem:[%s7893 + $0x30] sm:$0xff]
    %v7901 = vld [vmem:[%s7893 + $0x38] sm:$0xff]
    %v7902 = vld [vmem:[%s7893 + $0x40] sm:$0xff]
    %v7903 = vld [vmem:[%s7893 + $0x48] sm:$0xff]
    %v7904 = vld [vmem:[%s7893 + $0x50] sm:$0xff]
    %v7905 = vld [vmem:[%s7893 + $0x58] sm:$0xff]
    %v7906 = vld [vmem:[%s7893 + $0x60] sm:$0xff]
    %v7907 = vld [vmem:[%s7893 + $0x68] sm:$0xff]
    %v7908 = vld [vmem:[%s7893 + $0x70] sm:$0xff]
    %v7909 = vld [vmem:[%s7893 + $0x78] sm:$0xff]
    %v7910 = vld [vmem:[%s7893 + $0x80] sm:$0xff]
    %v7911 = vld [vmem:[%s7893 + $0x88] sm:$0xff]
    %v7912 = vld [vmem:[%s7893 + $0x90] sm:$0xff]
    %v7913 = vld [vmem:[%s7893 + $0x98] sm:$0xff]
    %v7914 = vld [vmem:[%s7893 + $0xa0] sm:$0xff]
    %v7915 = vld [vmem:[%s7893 + $0xa8] sm:$0xff]
    %v7916 = vld [vmem:[%s7893 + $0xb0] sm:$0xff]
    %v7917 = vld [vmem:[%s7893 + $0xb8] sm:$0xff]
    %v7918 = vld [vmem:[%s7893 + $0xc0] sm:$0xff]
    %v7919 = vld [vmem:[%s7893 + $0xc8] sm:$0xff]
    %v7920 = vld [vmem:[%s7893 + $0xd0] sm:$0xff]
    %v7921 = vld [vmem:[%s7893 + $0xd8] sm:$0xff]
    %v7922 = vld [vmem:[%s7893 + $0xe0] sm:$0xff]
    %v7923 = vld [vmem:[%s7893 + $0xe8] sm:$0xff]
    %v7924 = vld [vmem:[%s7893 + $0xf0] sm:$0xff]
    %v7925 = vld [vmem:[%s7893 + $0xf8] sm:$0xff]
    %v7958 = vunpack.c.l.b16 %v7894
    %v7959 = vunpack.c.h.b16 %v7894
    %v7960 = vunpack.c.l.b16 %v7895
    %v7961 = vunpack.c.h.b16 %v7895
    %v7962 = vunpack.c.l.b16 %v7896
    %v7963 = vunpack.c.h.b16 %v7896
    %v7964 = vunpack.c.l.b16 %v7897
    %v7965 = vunpack.c.h.b16 %v7897
    %v7966 = vunpack.c.l.b16 %v7898
    %v7967 = vunpack.c.h.b16 %v7898
    %v7968 = vunpack.c.l.b16 %v7899
    %v7969 = vunpack.c.h.b16 %v7899
    %v7970 = vunpack.c.l.b16 %v7900
    %v7971 = vunpack.c.h.b16 %v7900
    %v7972 = vunpack.c.l.b16 %v7901
    %v7973 = vunpack.c.h.b16 %v7901
    %v7974 = vunpack.c.l.b16 %v7902
    %v7975 = vunpack.c.h.b16 %v7902
    %v7976 = vunpack.c.l.b16 %v7903
    %v7977 = vunpack.c.h.b16 %v7903
    %v7978 = vunpack.c.l.b16 %v7904
    %v7979 = vunpack.c.h.b16 %v7904
    %v7980 = vunpack.c.l.b16 %v7905
    %v7981 = vunpack.c.h.b16 %v7905
    %v7982 = vunpack.c.l.b16 %v7906
    %v7983 = vunpack.c.h.b16 %v7906
    %v7984 = vunpack.c.l.b16 %v7907
    %v7985 = vunpack.c.h.b16 %v7907
    %v7986 = vunpack.c.l.b16 %v7908
    %v7987 = vunpack.c.h.b16 %v7908
    %v7988 = vunpack.c.l.b16 %v7909
    %v7989 = vunpack.c.h.b16 %v7909
    %v7990 = vunpack.c.l.b16 %v7910
    %v7991 = vunpack.c.h.b16 %v7910
    %v7992 = vunpack.c.l.b16 %v7911
    %v7993 = vunpack.c.h.b16 %v7911
    %v7994 = vunpack.c.l.b16 %v7912
    %v7995 = vunpack.c.h.b16 %v7912
    %v7996 = vunpack.c.l.b16 %v7913
    %v7997 = vunpack.c.h.b16 %v7913
    %v7998 = vunpack.c.l.b16 %v7914
    %v7999 = vunpack.c.h.b16 %v7914
    %v8000 = vunpack.c.l.b16 %v7915
    %v8001 = vunpack.c.h.b16 %v7915
    %v8002 = vunpack.c.l.b16 %v7916
    %v8003 = vunpack.c.h.b16 %v7916
    %v8004 = vunpack.c.l.b16 %v7917
    %v8005 = vunpack.c.h.b16 %v7917
    %v8006 = vunpack.c.l.b16 %v7918
    %v8007 = vunpack.c.h.b16 %v7918
    %v8008 = vunpack.c.l.b16 %v7919
    %v8009 = vunpack.c.h.b16 %v7919
    %v8010 = vunpack.c.l.b16 %v7920
    %v8011 = vunpack.c.h.b16 %v7920
    %v8012 = vunpack.c.l.b16 %v7921
    %v8013 = vunpack.c.h.b16 %v7921
    %v8014 = vunpack.c.l.b16 %v7922
    %v8015 = vunpack.c.h.b16 %v7922
    %v8016 = vunpack.c.l.b16 %v7923
    %v8017 = vunpack.c.h.b16 %v7923
    %v8018 = vunpack.c.l.b16 %v7924
    %v8019 = vunpack.c.h.b16 %v7924
    %v8020 = vunpack.c.l.b16 %v7925
    %v8021 = vunpack.c.h.b16 %v7925
    %v8022 = vpack.c.b16 %v7960, %v7958
    %v8023 = vpack.c.b16 %v7961, %v7959
    %v8024 = vpack.c.b16 %v7964, %v7962
    %v8025 = vpack.c.b16 %v7965, %v7963
    %v8026 = vpack.c.b16 %v7968, %v7966
    %v8027 = vpack.c.b16 %v7969, %v7967
    %v8028 = vpack.c.b16 %v7972, %v7970
    %v8029 = vpack.c.b16 %v7973, %v7971
    %v8030 = vpack.c.b16 %v7976, %v7974
    %v8031 = vpack.c.b16 %v7977, %v7975
    %v8032 = vpack.c.b16 %v7980, %v7978
    %v8033 = vpack.c.b16 %v7981, %v7979
    %v8034 = vpack.c.b16 %v7984, %v7982
    %v8035 = vpack.c.b16 %v7985, %v7983
    %v8036 = vpack.c.b16 %v7988, %v7986
    %v8037 = vpack.c.b16 %v7989, %v7987
    %v8038 = vpack.c.b16 %v7992, %v7990
    %v8039 = vpack.c.b16 %v7993, %v7991
    %v8040 = vpack.c.b16 %v7996, %v7994
    %v8041 = vpack.c.b16 %v7997, %v7995
    %v8042 = vpack.c.b16 %v8000, %v7998
    %v8043 = vpack.c.b16 %v8001, %v7999
    %v8044 = vpack.c.b16 %v8004, %v8002
    %v8045 = vpack.c.b16 %v8005, %v8003
    %v8046 = vpack.c.b16 %v8008, %v8006
    %v8047 = vpack.c.b16 %v8009, %v8007
    %v8048 = vpack.c.b16 %v8012, %v8010
    %v8049 = vpack.c.b16 %v8013, %v8011
    %v8050 = vpack.c.b16 %v8016, %v8014
    %v8051 = vpack.c.b16 %v8017, %v8015
    %v8052 = vpack.c.b16 %v8020, %v8018
    %v8053 = vpack.c.b16 %v8021, %v8019
    %8086 = vmatprep.subr.bf16.mxu0 %v8037
    %8087 = vmatpush1.bf16.msra.mxu0 %v8036
    %8088 = vmatprep.subr.bf16.mxu0 %v8035
    %8089 = vmatpush1.bf16.msra.mxu0 %v8034
    %8090 = vmatprep.subr.bf16.mxu0 %v8033
    %8091 = vmatpush1.bf16.msra.mxu0 %v8032
    %8092 = vmatprep.subr.bf16.mxu0 %v8031
    %8093 = vmatpush1.bf16.msra.mxu0 %v8030
    %8094 = vmatprep.subr.bf16.mxu0 %v8029
    %8095 = vmatpush1.bf16.msra.mxu0 %v8028
    %8096 = vmatprep.subr.bf16.mxu0 %v8027
    %8097 = vmatpush1.bf16.msra.mxu0 %v8026
    %8098 = vmatprep.subr.bf16.mxu0 %v8025
    %8099 = vmatpush1.bf16.msra.mxu0 %v8024
    %8100 = vmatprep.subr.bf16.mxu0 %v8023
    %8101 = vmatpush1.bf16.msra.mxu0 %v8022
    %8102 = vmatprep.subr.bf16.mxu0 %v8053
    %8103 = vmatpush2.bf16.msra.mxu0 %v8052
    %8104 = vmatprep.subr.bf16.mxu0 %v8051
    %8105 = vmatpush2.bf16.msra.mxu0 %v8050
    %8106 = vmatprep.subr.bf16.mxu0 %v8049
    %8107 = vmatpush2.bf16.msra.mxu0 %v8048
    %8108 = vmatprep.subr.bf16.mxu0 %v8047
    %8109 = vmatpush2.bf16.msra.mxu0 %v8046
    %8110 = vmatprep.subr.bf16.mxu0 %v8045
    %8111 = vmatpush2.bf16.msra.mxu0 %v8044
    %8112 = vmatprep.subr.bf16.mxu0 %v8043
    %8113 = vmatpush2.bf16.msra.mxu0 %v8042
    %8114 = vmatprep.subr.bf16.mxu0 %v8041
    %8115 = vmatpush2.bf16.msra.mxu0 %v8040
    %8116 = vmatprep.subr.bf16.mxu0 %v8039
    %8117 = vmatpush2.bf16.msra.mxu0 %v8038
    %8118 = vmatprep.mubr.bf16.mxu0 %v7892
    %8119 = vmatmul.mubr.bf16.gmra.mxu0 %v7891
    %v8120 = vpop.f32.mrf.mxu0
    %v8121 = vadd.f32 0.0, %v8120
    %v8122 = vpop.f32.mrf.mxu0
    %v8123 = vadd.f32 0.0, %v8122
    %v8124 = vpop.f32.mrf.mxu0
    %v8125 = vpop.f32.mrf.mxu0
    %8126 = vdwg.mxu0
    %v8127 = vadd.f32 %v7640, %v8121
    %v8128 = vadd.f32 %v7641, %v8123
    %s8129 = scalar_lea.vmem [#allocation2], 4864
    %v8130 = vld [vmem:[%s8129] sm:$0xff]
    %v8131 = vld [vmem:[%s8129 + $0x8] sm:$0xff]
    %v8132 = vld [vmem:[%s8129 + $0x10] sm:$0xff]
    %v8133 = vld [vmem:[%s8129 + $0x18] sm:$0xff]
    %v8134 = vld [vmem:[%s8129 + $0x20] sm:$0xff]
    %v8135 = vld [vmem:[%s8129 + $0x28] sm:$0xff]
    %v8136 = vld [vmem:[%s8129 + $0x30] sm:$0xff]
    %v8137 = vld [vmem:[%s8129 + $0x38] sm:$0xff]
    %v8138 = vld [vmem:[%s8129 + $0x40] sm:$0xff]
    %v8139 = vld [vmem:[%s8129 + $0x48] sm:$0xff]
    %v8140 = vld [vmem:[%s8129 + $0x50] sm:$0xff]
    %v8141 = vld [vmem:[%s8129 + $0x58] sm:$0xff]
    %v8142 = vld [vmem:[%s8129 + $0x60] sm:$0xff]
    %v8143 = vld [vmem:[%s8129 + $0x68] sm:$0xff]
    %v8144 = vld [vmem:[%s8129 + $0x70] sm:$0xff]
    %v8145 = vld [vmem:[%s8129 + $0x78] sm:$0xff]
    %v8146 = vld [vmem:[%s8129 + $0x80] sm:$0xff]
    %v8147 = vld [vmem:[%s8129 + $0x88] sm:$0xff]
    %v8148 = vld [vmem:[%s8129 + $0x90] sm:$0xff]
    %v8149 = vld [vmem:[%s8129 + $0x98] sm:$0xff]
    %v8150 = vld [vmem:[%s8129 + $0xa0] sm:$0xff]
    %v8151 = vld [vmem:[%s8129 + $0xa8] sm:$0xff]
    %v8152 = vld [vmem:[%s8129 + $0xb0] sm:$0xff]
    %v8153 = vld [vmem:[%s8129 + $0xb8] sm:$0xff]
    %v8154 = vld [vmem:[%s8129 + $0xc0] sm:$0xff]
    %v8155 = vld [vmem:[%s8129 + $0xc8] sm:$0xff]
    %v8156 = vld [vmem:[%s8129 + $0xd0] sm:$0xff]
    %v8157 = vld [vmem:[%s8129 + $0xd8] sm:$0xff]
    %v8158 = vld [vmem:[%s8129 + $0xe0] sm:$0xff]
    %v8159 = vld [vmem:[%s8129 + $0xe8] sm:$0xff]
    %v8160 = vld [vmem:[%s8129 + $0xf0] sm:$0xff]
    %v8161 = vld [vmem:[%s8129 + $0xf8] sm:$0xff]
    %s8162 = scalar_lea.vmem [#allocation4], 35
    %v8163 = vld [vmem:[%s8162] ss:$8 sm:$0x3]
    %v8165 = vlaneseq
    %v8166 = vshrl.u32 %v8165, 7
    %v8167 = vsub.s32 0, %v8166
    %v8168 = vrot.slane %v8163, %v8167
    %v8169 = vlaneseq
    %v8170 = vshrl.u32 %v8169, 7
    %v8171 = vsub.s32 1, %v8170
    %v8172 = vrot.slane %v8163, %v8171
    %v8207 = vunpack.c.l.b16 %v8130
    %v8208 = vunpack.c.h.b16 %v8130
    %v8209 = vunpack.c.l.b16 %v8131
    %v8210 = vunpack.c.h.b16 %v8131
    %v8211 = vunpack.c.l.b16 %v8132
    %v8212 = vunpack.c.h.b16 %v8132
    %v8213 = vunpack.c.l.b16 %v8133
    %v8214 = vunpack.c.h.b16 %v8133
    %v8215 = vunpack.c.l.b16 %v8134
    %v8216 = vunpack.c.h.b16 %v8134
    %v8217 = vunpack.c.l.b16 %v8135
    %v8218 = vunpack.c.h.b16 %v8135
    %v8219 = vunpack.c.l.b16 %v8136
    %v8220 = vunpack.c.h.b16 %v8136
    %v8221 = vunpack.c.l.b16 %v8137
    %v8222 = vunpack.c.h.b16 %v8137
    %v8223 = vunpack.c.l.b16 %v8138
    %v8224 = vunpack.c.h.b16 %v8138
    %v8225 = vunpack.c.l.b16 %v8139
    %v8226 = vunpack.c.h.b16 %v8139
    %v8227 = vunpack.c.l.b16 %v8140
    %v8228 = vunpack.c.h.b16 %v8140
    %v8229 = vunpack.c.l.b16 %v8141
    %v8230 = vunpack.c.h.b16 %v8141
    %v8231 = vunpack.c.l.b16 %v8142
    %v8232 = vunpack.c.h.b16 %v8142
    %v8233 = vunpack.c.l.b16 %v8143
    %v8234 = vunpack.c.h.b16 %v8143
    %v8235 = vunpack.c.l.b16 %v8144
    %v8236 = vunpack.c.h.b16 %v8144
    %v8237 = vunpack.c.l.b16 %v8145
    %v8238 = vunpack.c.h.b16 %v8145
    %v8239 = vunpack.c.l.b16 %v8146
    %v8240 = vunpack.c.h.b16 %v8146
    %v8241 = vunpack.c.l.b16 %v8147
    %v8242 = vunpack.c.h.b16 %v8147
    %v8243 = vunpack.c.l.b16 %v8148
    %v8244 = vunpack.c.h.b16 %v8148
    %v8245 = vunpack.c.l.b16 %v8149
    %v8246 = vunpack.c.h.b16 %v8149
    %v8247 = vunpack.c.l.b16 %v8150
    %v8248 = vunpack.c.h.b16 %v8150
    %v8249 = vunpack.c.l.b16 %v8151
    %v8250 = vunpack.c.h.b16 %v8151
    %v8251 = vunpack.c.l.b16 %v8152
    %v8252 = vunpack.c.h.b16 %v8152
    %v8253 = vunpack.c.l.b16 %v8153
    %v8254 = vunpack.c.h.b16 %v8153
    %v8255 = vunpack.c.l.b16 %v8154
    %v8256 = vunpack.c.h.b16 %v8154
    %v8257 = vunpack.c.l.b16 %v8155
    %v8258 = vunpack.c.h.b16 %v8155
    %v8259 = vunpack.c.l.b16 %v8156
    %v8260 = vunpack.c.h.b16 %v8156
    %v8261 = vunpack.c.l.b16 %v8157
    %v8262 = vunpack.c.h.b16 %v8157
    %v8263 = vunpack.c.l.b16 %v8158
    %v8264 = vunpack.c.h.b16 %v8158
    %v8265 = vunpack.c.l.b16 %v8159
    %v8266 = vunpack.c.h.b16 %v8159
    %v8267 = vunpack.c.l.b16 %v8160
    %v8268 = vunpack.c.h.b16 %v8160
    %v8269 = vunpack.c.l.b16 %v8161
    %v8270 = vunpack.c.h.b16 %v8161
    %v8271 = vpack.c.b16 %v8209, %v8207
    %v8272 = vpack.c.b16 %v8210, %v8208
    %v8273 = vpack.c.b16 %v8213, %v8211
    %v8274 = vpack.c.b16 %v8214, %v8212
    %v8275 = vpack.c.b16 %v8217, %v8215
    %v8276 = vpack.c.b16 %v8218, %v8216
    %v8277 = vpack.c.b16 %v8221, %v8219
    %v8278 = vpack.c.b16 %v8222, %v8220
    %v8279 = vpack.c.b16 %v8225, %v8223
    %v8280 = vpack.c.b16 %v8226, %v8224
    %v8281 = vpack.c.b16 %v8229, %v8227
    %v8282 = vpack.c.b16 %v8230, %v8228
    %v8283 = vpack.c.b16 %v8233, %v8231
    %v8284 = vpack.c.b16 %v8234, %v8232
    %v8285 = vpack.c.b16 %v8237, %v8235
    %v8286 = vpack.c.b16 %v8238, %v8236
    %v8287 = vpack.c.b16 %v8241, %v8239
    %v8288 = vpack.c.b16 %v8242, %v8240
    %v8289 = vpack.c.b16 %v8245, %v8243
    %v8290 = vpack.c.b16 %v8246, %v8244
    %v8291 = vpack.c.b16 %v8249, %v8247
    %v8292 = vpack.c.b16 %v8250, %v8248
    %v8293 = vpack.c.b16 %v8253, %v8251
    %v8294 = vpack.c.b16 %v8254, %v8252
    %v8295 = vpack.c.b16 %v8257, %v8255
    %v8296 = vpack.c.b16 %v8258, %v8256
    %v8297 = vpack.c.b16 %v8261, %v8259
    %v8298 = vpack.c.b16 %v8262, %v8260
    %v8299 = vpack.c.b16 %v8265, %v8263
    %v8300 = vpack.c.b16 %v8266, %v8264
    %v8301 = vpack.c.b16 %v8269, %v8267
    %v8302 = vpack.c.b16 %v8270, %v8268
    %8335 = vmatprep.subr.bf16.mxu0 %v8286
    %8336 = vmatpush1.bf16.msra.mxu0 %v8285
    %8337 = vmatprep.subr.bf16.mxu0 %v8284
    %8338 = vmatpush1.bf16.msra.mxu0 %v8283
    %8339 = vmatprep.subr.bf16.mxu0 %v8282
    %8340 = vmatpush1.bf16.msra.mxu0 %v8281
    %8341 = vmatprep.subr.bf16.mxu0 %v8280
    %8342 = vmatpush1.bf16.msra.mxu0 %v8279
    %8343 = vmatprep.subr.bf16.mxu0 %v8278
    %8344 = vmatpush1.bf16.msra.mxu0 %v8277
    %8345 = vmatprep.subr.bf16.mxu0 %v8276
    %8346 = vmatpush1.bf16.msra.mxu0 %v8275
    %8347 = vmatprep.subr.bf16.mxu0 %v8274
    %8348 = vmatpush1.bf16.msra.mxu0 %v8273
    %8349 = vmatprep.subr.bf16.mxu0 %v8272
    %8350 = vmatpush1.bf16.msra.mxu0 %v8271
    %8351 = vmatprep.subr.bf16.mxu0 %v8302
    %8352 = vmatpush2.bf16.msra.mxu0 %v8301
    %8353 = vmatprep.subr.bf16.mxu0 %v8300
    %8354 = vmatpush2.bf16.msra.mxu0 %v8299
    %8355 = vmatprep.subr.bf16.mxu0 %v8298
    %8356 = vmatpush2.bf16.msra.mxu0 %v8297
    %8357 = vmatprep.subr.bf16.mxu0 %v8296
    %8358 = vmatpush2.bf16.msra.mxu0 %v8295
    %8359 = vmatprep.subr.bf16.mxu0 %v8294
    %8360 = vmatpush2.bf16.msra.mxu0 %v8293
    %8361 = vmatprep.subr.bf16.mxu0 %v8292
    %8362 = vmatpush2.bf16.msra.mxu0 %v8291
    %8363 = vmatprep.subr.bf16.mxu0 %v8290
    %8364 = vmatpush2.bf16.msra.mxu0 %v8289
    %8365 = vmatprep.subr.bf16.mxu0 %v8288
    %8366 = vmatpush2.bf16.msra.mxu0 %v8287
    %8367 = vmatprep.mubr.bf16.mxu0 %v1314
    %8368 = vmatmul.mubr.bf16.gmra.mxu0 %v1313
    %v8369 = vpop.f32.mrf.mxu0
    %v8370 = vadd.f32 %v8168, %v8369
    %v8371 = vpop.f32.mrf.mxu0
    %v8372 = vadd.f32 %v8172, %v8371
    %v8373 = vpop.f32.mrf.mxu0
    %v8374 = vpop.f32.mrf.mxu0
    %8375 = vdwg.mxu0
    %v8376 = vmax.f32 %v8370, 0.0
    %v8377 = vmax.f32 %v8372, 0.0
    %v8378 = vpack.c.bf16 %v8376, %v8376
    %v8379 = vpack.c.bf16 %v8377, %v8377
    %s8380 = scalar_lea.vmem [#allocation2], 8960
    %v8381 = vld [vmem:[%s8380] sm:$0xff]
    %v8382 = vld [vmem:[%s8380 + $0x8] sm:$0xff]
    %v8383 = vld [vmem:[%s8380 + $0x10] sm:$0xff]
    %v8384 = vld [vmem:[%s8380 + $0x18] sm:$0xff]
    %v8385 = vld [vmem:[%s8380 + $0x20] sm:$0xff]
    %v8386 = vld [vmem:[%s8380 + $0x28] sm:$0xff]
    %v8387 = vld [vmem:[%s8380 + $0x30] sm:$0xff]
    %v8388 = vld [vmem:[%s8380 + $0x38] sm:$0xff]
    %v8389 = vld [vmem:[%s8380 + $0x40] sm:$0xff]
    %v8390 = vld [vmem:[%s8380 + $0x48] sm:$0xff]
    %v8391 = vld [vmem:[%s8380 + $0x50] sm:$0xff]
    %v8392 = vld [vmem:[%s8380 + $0x58] sm:$0xff]
    %v8393 = vld [vmem:[%s8380 + $0x60] sm:$0xff]
    %v8394 = vld [vmem:[%s8380 + $0x68] sm:$0xff]
    %v8395 = vld [vmem:[%s8380 + $0x70] sm:$0xff]
    %v8396 = vld [vmem:[%s8380 + $0x78] sm:$0xff]
    %v8397 = vld [vmem:[%s8380 + $0x80] sm:$0xff]
    %v8398 = vld [vmem:[%s8380 + $0x88] sm:$0xff]
    %v8399 = vld [vmem:[%s8380 + $0x90] sm:$0xff]
    %v8400 = vld [vmem:[%s8380 + $0x98] sm:$0xff]
    %v8401 = vld [vmem:[%s8380 + $0xa0] sm:$0xff]
    %v8402 = vld [vmem:[%s8380 + $0xa8] sm:$0xff]
    %v8403 = vld [vmem:[%s8380 + $0xb0] sm:$0xff]
    %v8404 = vld [vmem:[%s8380 + $0xb8] sm:$0xff]
    %v8405 = vld [vmem:[%s8380 + $0xc0] sm:$0xff]
    %v8406 = vld [vmem:[%s8380 + $0xc8] sm:$0xff]
    %v8407 = vld [vmem:[%s8380 + $0xd0] sm:$0xff]
    %v8408 = vld [vmem:[%s8380 + $0xd8] sm:$0xff]
    %v8409 = vld [vmem:[%s8380 + $0xe0] sm:$0xff]
    %v8410 = vld [vmem:[%s8380 + $0xe8] sm:$0xff]
    %v8411 = vld [vmem:[%s8380 + $0xf0] sm:$0xff]
    %v8412 = vld [vmem:[%s8380 + $0xf8] sm:$0xff]
    %v8445 = vunpack.c.l.b16 %v8381
    %v8446 = vunpack.c.h.b16 %v8381
    %v8447 = vunpack.c.l.b16 %v8382
    %v8448 = vunpack.c.h.b16 %v8382
    %v8449 = vunpack.c.l.b16 %v8383
    %v8450 = vunpack.c.h.b16 %v8383
    %v8451 = vunpack.c.l.b16 %v8384
    %v8452 = vunpack.c.h.b16 %v8384
    %v8453 = vunpack.c.l.b16 %v8385
    %v8454 = vunpack.c.h.b16 %v8385
    %v8455 = vunpack.c.l.b16 %v8386
    %v8456 = vunpack.c.h.b16 %v8386
    %v8457 = vunpack.c.l.b16 %v8387
    %v8458 = vunpack.c.h.b16 %v8387
    %v8459 = vunpack.c.l.b16 %v8388
    %v8460 = vunpack.c.h.b16 %v8388
    %v8461 = vunpack.c.l.b16 %v8389
    %v8462 = vunpack.c.h.b16 %v8389
    %v8463 = vunpack.c.l.b16 %v8390
    %v8464 = vunpack.c.h.b16 %v8390
    %v8465 = vunpack.c.l.b16 %v8391
    %v8466 = vunpack.c.h.b16 %v8391
    %v8467 = vunpack.c.l.b16 %v8392
    %v8468 = vunpack.c.h.b16 %v8392
    %v8469 = vunpack.c.l.b16 %v8393
    %v8470 = vunpack.c.h.b16 %v8393
    %v8471 = vunpack.c.l.b16 %v8394
    %v8472 = vunpack.c.h.b16 %v8394
    %v8473 = vunpack.c.l.b16 %v8395
    %v8474 = vunpack.c.h.b16 %v8395
    %v8475 = vunpack.c.l.b16 %v8396
    %v8476 = vunpack.c.h.b16 %v8396
    %v8477 = vunpack.c.l.b16 %v8397
    %v8478 = vunpack.c.h.b16 %v8397
    %v8479 = vunpack.c.l.b16 %v8398
    %v8480 = vunpack.c.h.b16 %v8398
    %v8481 = vunpack.c.l.b16 %v8399
    %v8482 = vunpack.c.h.b16 %v8399
    %v8483 = vunpack.c.l.b16 %v8400
    %v8484 = vunpack.c.h.b16 %v8400
    %v8485 = vunpack.c.l.b16 %v8401
    %v8486 = vunpack.c.h.b16 %v8401
    %v8487 = vunpack.c.l.b16 %v8402
    %v8488 = vunpack.c.h.b16 %v8402
    %v8489 = vunpack.c.l.b16 %v8403
    %v8490 = vunpack.c.h.b16 %v8403
    %v8491 = vunpack.c.l.b16 %v8404
    %v8492 = vunpack.c.h.b16 %v8404
    %v8493 = vunpack.c.l.b16 %v8405
    %v8494 = vunpack.c.h.b16 %v8405
    %v8495 = vunpack.c.l.b16 %v8406
    %v8496 = vunpack.c.h.b16 %v8406
    %v8497 = vunpack.c.l.b16 %v8407
    %v8498 = vunpack.c.h.b16 %v8407
    %v8499 = vunpack.c.l.b16 %v8408
    %v8500 = vunpack.c.h.b16 %v8408
    %v8501 = vunpack.c.l.b16 %v8409
    %v8502 = vunpack.c.h.b16 %v8409
    %v8503 = vunpack.c.l.b16 %v8410
    %v8504 = vunpack.c.h.b16 %v8410
    %v8505 = vunpack.c.l.b16 %v8411
    %v8506 = vunpack.c.h.b16 %v8411
    %v8507 = vunpack.c.l.b16 %v8412
    %v8508 = vunpack.c.h.b16 %v8412
    %v8509 = vpack.c.b16 %v8447, %v8445
    %v8510 = vpack.c.b16 %v8448, %v8446
    %v8511 = vpack.c.b16 %v8451, %v8449
    %v8512 = vpack.c.b16 %v8452, %v8450
    %v8513 = vpack.c.b16 %v8455, %v8453
    %v8514 = vpack.c.b16 %v8456, %v8454
    %v8515 = vpack.c.b16 %v8459, %v8457
    %v8516 = vpack.c.b16 %v8460, %v8458
    %v8517 = vpack.c.b16 %v8463, %v8461
    %v8518 = vpack.c.b16 %v8464, %v8462
    %v8519 = vpack.c.b16 %v8467, %v8465
    %v8520 = vpack.c.b16 %v8468, %v8466
    %v8521 = vpack.c.b16 %v8471, %v8469
    %v8522 = vpack.c.b16 %v8472, %v8470
    %v8523 = vpack.c.b16 %v8475, %v8473
    %v8524 = vpack.c.b16 %v8476, %v8474
    %v8525 = vpack.c.b16 %v8479, %v8477
    %v8526 = vpack.c.b16 %v8480, %v8478
    %v8527 = vpack.c.b16 %v8483, %v8481
    %v8528 = vpack.c.b16 %v8484, %v8482
    %v8529 = vpack.c.b16 %v8487, %v8485
    %v8530 = vpack.c.b16 %v8488, %v8486
    %v8531 = vpack.c.b16 %v8491, %v8489
    %v8532 = vpack.c.b16 %v8492, %v8490
    %v8533 = vpack.c.b16 %v8495, %v8493
    %v8534 = vpack.c.b16 %v8496, %v8494
    %v8535 = vpack.c.b16 %v8499, %v8497
    %v8536 = vpack.c.b16 %v8500, %v8498
    %v8537 = vpack.c.b16 %v8503, %v8501
    %v8538 = vpack.c.b16 %v8504, %v8502
    %v8539 = vpack.c.b16 %v8507, %v8505
    %v8540 = vpack.c.b16 %v8508, %v8506
    %8573 = vmatprep.subr.bf16.mxu0 %v8524
    %8574 = vmatpush1.bf16.msra.mxu0 %v8523
    %8575 = vmatprep.subr.bf16.mxu0 %v8522
    %8576 = vmatpush1.bf16.msra.mxu0 %v8521
    %8577 = vmatprep.subr.bf16.mxu0 %v8520
    %8578 = vmatpush1.bf16.msra.mxu0 %v8519
    %8579 = vmatprep.subr.bf16.mxu0 %v8518
    %8580 = vmatpush1.bf16.msra.mxu0 %v8517
    %8581 = vmatprep.subr.bf16.mxu0 %v8516
    %8582 = vmatpush1.bf16.msra.mxu0 %v8515
    %8583 = vmatprep.subr.bf16.mxu0 %v8514
    %8584 = vmatpush1.bf16.msra.mxu0 %v8513
    %8585 = vmatprep.subr.bf16.mxu0 %v8512
    %8586 = vmatpush1.bf16.msra.mxu0 %v8511
    %8587 = vmatprep.subr.bf16.mxu0 %v8510
    %8588 = vmatpush1.bf16.msra.mxu0 %v8509
    %8589 = vmatprep.subr.bf16.mxu0 %v8540
    %8590 = vmatpush2.bf16.msra.mxu0 %v8539
    %8591 = vmatprep.subr.bf16.mxu0 %v8538
    %8592 = vmatpush2.bf16.msra.mxu0 %v8537
    %8593 = vmatprep.subr.bf16.mxu0 %v8536
    %8594 = vmatpush2.bf16.msra.mxu0 %v8535
    %8595 = vmatprep.subr.bf16.mxu0 %v8534
    %8596 = vmatpush2.bf16.msra.mxu0 %v8533
    %8597 = vmatprep.subr.bf16.mxu0 %v8532
    %8598 = vmatpush2.bf16.msra.mxu0 %v8531
    %8599 = vmatprep.subr.bf16.mxu0 %v8530
    %8600 = vmatpush2.bf16.msra.mxu0 %v8529
    %8601 = vmatprep.subr.bf16.mxu0 %v8528
    %8602 = vmatpush2.bf16.msra.mxu0 %v8527
    %8603 = vmatprep.subr.bf16.mxu0 %v8526
    %8604 = vmatpush2.bf16.msra.mxu0 %v8525
    %8605 = vmatprep.mubr.bf16.mxu0 %v8379
    %8606 = vmatmul.mubr.bf16.gmra.mxu0 %v8378
    %v8607 = vpop.f32.mrf.mxu0
    %v8608 = vadd.f32 0.0, %v8607
    %v8609 = vpop.f32.mrf.mxu0
    %v8610 = vadd.f32 0.0, %v8609
    %v8611 = vpop.f32.mrf.mxu0
    %v8612 = vpop.f32.mrf.mxu0
    %8613 = vdwg.mxu0
    %v8614 = vadd.f32 %v8127, %v8608
    %v8615 = vadd.f32 %v8128, %v8610
    %s8616 = scalar_lea.vmem [#allocation2], 5120
    %v8617 = vld [vmem:[%s8616] sm:$0xff]
    %v8618 = vld [vmem:[%s8616 + $0x8] sm:$0xff]
    %v8619 = vld [vmem:[%s8616 + $0x10] sm:$0xff]
    %v8620 = vld [vmem:[%s8616 + $0x18] sm:$0xff]
    %v8621 = vld [vmem:[%s8616 + $0x20] sm:$0xff]
    %v8622 = vld [vmem:[%s8616 + $0x28] sm:$0xff]
    %v8623 = vld [vmem:[%s8616 + $0x30] sm:$0xff]
    %v8624 = vld [vmem:[%s8616 + $0x38] sm:$0xff]
    %v8625 = vld [vmem:[%s8616 + $0x40] sm:$0xff]
    %v8626 = vld [vmem:[%s8616 + $0x48] sm:$0xff]
    %v8627 = vld [vmem:[%s8616 + $0x50] sm:$0xff]
    %v8628 = vld [vmem:[%s8616 + $0x58] sm:$0xff]
    %v8629 = vld [vmem:[%s8616 + $0x60] sm:$0xff]
    %v8630 = vld [vmem:[%s8616 + $0x68] sm:$0xff]
    %v8631 = vld [vmem:[%s8616 + $0x70] sm:$0xff]
    %v8632 = vld [vmem:[%s8616 + $0x78] sm:$0xff]
    %v8633 = vld [vmem:[%s8616 + $0x80] sm:$0xff]
    %v8634 = vld [vmem:[%s8616 + $0x88] sm:$0xff]
    %v8635 = vld [vmem:[%s8616 + $0x90] sm:$0xff]
    %v8636 = vld [vmem:[%s8616 + $0x98] sm:$0xff]
    %v8637 = vld [vmem:[%s8616 + $0xa0] sm:$0xff]
    %v8638 = vld [vmem:[%s8616 + $0xa8] sm:$0xff]
    %v8639 = vld [vmem:[%s8616 + $0xb0] sm:$0xff]
    %v8640 = vld [vmem:[%s8616 + $0xb8] sm:$0xff]
    %v8641 = vld [vmem:[%s8616 + $0xc0] sm:$0xff]
    %v8642 = vld [vmem:[%s8616 + $0xc8] sm:$0xff]
    %v8643 = vld [vmem:[%s8616 + $0xd0] sm:$0xff]
    %v8644 = vld [vmem:[%s8616 + $0xd8] sm:$0xff]
    %v8645 = vld [vmem:[%s8616 + $0xe0] sm:$0xff]
    %v8646 = vld [vmem:[%s8616 + $0xe8] sm:$0xff]
    %v8647 = vld [vmem:[%s8616 + $0xf0] sm:$0xff]
    %v8648 = vld [vmem:[%s8616 + $0xf8] sm:$0xff]
    %s8649 = scalar_lea.vmem [#allocation4], 36
    %v8650 = vld [vmem:[%s8649] ss:$8 sm:$0x3]
    %v8652 = vlaneseq
    %v8653 = vshrl.u32 %v8652, 7
    %v8654 = vsub.s32 0, %v8653
    %v8655 = vrot.slane %v8650, %v8654
    %v8656 = vlaneseq
    %v8657 = vshrl.u32 %v8656, 7
    %v8658 = vsub.s32 1, %v8657
    %v8659 = vrot.slane %v8650, %v8658
    %v8694 = vunpack.c.l.b16 %v8617
    %v8695 = vunpack.c.h.b16 %v8617
    %v8696 = vunpack.c.l.b16 %v8618
    %v8697 = vunpack.c.h.b16 %v8618
    %v8698 = vunpack.c.l.b16 %v8619
    %v8699 = vunpack.c.h.b16 %v8619
    %v8700 = vunpack.c.l.b16 %v8620
    %v8701 = vunpack.c.h.b16 %v8620
    %v8702 = vunpack.c.l.b16 %v8621
    %v8703 = vunpack.c.h.b16 %v8621
    %v8704 = vunpack.c.l.b16 %v8622
    %v8705 = vunpack.c.h.b16 %v8622
    %v8706 = vunpack.c.l.b16 %v8623
    %v8707 = vunpack.c.h.b16 %v8623
    %v8708 = vunpack.c.l.b16 %v8624
    %v8709 = vunpack.c.h.b16 %v8624
    %v8710 = vunpack.c.l.b16 %v8625
    %v8711 = vunpack.c.h.b16 %v8625
    %v8712 = vunpack.c.l.b16 %v8626
    %v8713 = vunpack.c.h.b16 %v8626
    %v8714 = vunpack.c.l.b16 %v8627
    %v8715 = vunpack.c.h.b16 %v8627
    %v8716 = vunpack.c.l.b16 %v8628
    %v8717 = vunpack.c.h.b16 %v8628
    %v8718 = vunpack.c.l.b16 %v8629
    %v8719 = vunpack.c.h.b16 %v8629
    %v8720 = vunpack.c.l.b16 %v8630
    %v8721 = vunpack.c.h.b16 %v8630
    %v8722 = vunpack.c.l.b16 %v8631
    %v8723 = vunpack.c.h.b16 %v8631
    %v8724 = vunpack.c.l.b16 %v8632
    %v8725 = vunpack.c.h.b16 %v8632
    %v8726 = vunpack.c.l.b16 %v8633
    %v8727 = vunpack.c.h.b16 %v8633
    %v8728 = vunpack.c.l.b16 %v8634
    %v8729 = vunpack.c.h.b16 %v8634
    %v8730 = vunpack.c.l.b16 %v8635
    %v8731 = vunpack.c.h.b16 %v8635
    %v8732 = vunpack.c.l.b16 %v8636
    %v8733 = vunpack.c.h.b16 %v8636
    %v8734 = vunpack.c.l.b16 %v8637
    %v8735 = vunpack.c.h.b16 %v8637
    %v8736 = vunpack.c.l.b16 %v8638
    %v8737 = vunpack.c.h.b16 %v8638
    %v8738 = vunpack.c.l.b16 %v8639
    %v8739 = vunpack.c.h.b16 %v8639
    %v8740 = vunpack.c.l.b16 %v8640
    %v8741 = vunpack.c.h.b16 %v8640
    %v8742 = vunpack.c.l.b16 %v8641
    %v8743 = vunpack.c.h.b16 %v8641
    %v8744 = vunpack.c.l.b16 %v8642
    %v8745 = vunpack.c.h.b16 %v8642
    %v8746 = vunpack.c.l.b16 %v8643
    %v8747 = vunpack.c.h.b16 %v8643
    %v8748 = vunpack.c.l.b16 %v8644
    %v8749 = vunpack.c.h.b16 %v8644
    %v8750 = vunpack.c.l.b16 %v8645
    %v8751 = vunpack.c.h.b16 %v8645
    %v8752 = vunpack.c.l.b16 %v8646
    %v8753 = vunpack.c.h.b16 %v8646
    %v8754 = vunpack.c.l.b16 %v8647
    %v8755 = vunpack.c.h.b16 %v8647
    %v8756 = vunpack.c.l.b16 %v8648
    %v8757 = vunpack.c.h.b16 %v8648
    %v8758 = vpack.c.b16 %v8696, %v8694
    %v8759 = vpack.c.b16 %v8697, %v8695
    %v8760 = vpack.c.b16 %v8700, %v8698
    %v8761 = vpack.c.b16 %v8701, %v8699
    %v8762 = vpack.c.b16 %v8704, %v8702
    %v8763 = vpack.c.b16 %v8705, %v8703
    %v8764 = vpack.c.b16 %v8708, %v8706
    %v8765 = vpack.c.b16 %v8709, %v8707
    %v8766 = vpack.c.b16 %v8712, %v8710
    %v8767 = vpack.c.b16 %v8713, %v8711
    %v8768 = vpack.c.b16 %v8716, %v8714
    %v8769 = vpack.c.b16 %v8717, %v8715
    %v8770 = vpack.c.b16 %v8720, %v8718
    %v8771 = vpack.c.b16 %v8721, %v8719
    %v8772 = vpack.c.b16 %v8724, %v8722
    %v8773 = vpack.c.b16 %v8725, %v8723
    %v8774 = vpack.c.b16 %v8728, %v8726
    %v8775 = vpack.c.b16 %v8729, %v8727
    %v8776 = vpack.c.b16 %v8732, %v8730
    %v8777 = vpack.c.b16 %v8733, %v8731
    %v8778 = vpack.c.b16 %v8736, %v8734
    %v8779 = vpack.c.b16 %v8737, %v8735
    %v8780 = vpack.c.b16 %v8740, %v8738
    %v8781 = vpack.c.b16 %v8741, %v8739
    %v8782 = vpack.c.b16 %v8744, %v8742
    %v8783 = vpack.c.b16 %v8745, %v8743
    %v8784 = vpack.c.b16 %v8748, %v8746
    %v8785 = vpack.c.b16 %v8749, %v8747
    %v8786 = vpack.c.b16 %v8752, %v8750
    %v8787 = vpack.c.b16 %v8753, %v8751
    %v8788 = vpack.c.b16 %v8756, %v8754
    %v8789 = vpack.c.b16 %v8757, %v8755
    %8822 = vmatprep.subr.bf16.mxu0 %v8773
    %8823 = vmatpush1.bf16.msra.mxu0 %v8772
    %8824 = vmatprep.subr.bf16.mxu0 %v8771
    %8825 = vmatpush1.bf16.msra.mxu0 %v8770
    %8826 = vmatprep.subr.bf16.mxu0 %v8769
    %8827 = vmatpush1.bf16.msra.mxu0 %v8768
    %8828 = vmatprep.subr.bf16.mxu0 %v8767
    %8829 = vmatpush1.bf16.msra.mxu0 %v8766
    %8830 = vmatprep.subr.bf16.mxu0 %v8765
    %8831 = vmatpush1.bf16.msra.mxu0 %v8764
    %8832 = vmatprep.subr.bf16.mxu0 %v8763
    %8833 = vmatpush1.bf16.msra.mxu0 %v8762
    %8834 = vmatprep.subr.bf16.mxu0 %v8761
    %8835 = vmatpush1.bf16.msra.mxu0 %v8760
    %8836 = vmatprep.subr.bf16.mxu0 %v8759
    %8837 = vmatpush1.bf16.msra.mxu0 %v8758
    %8838 = vmatprep.subr.bf16.mxu0 %v8789
    %8839 = vmatpush2.bf16.msra.mxu0 %v8788
    %8840 = vmatprep.subr.bf16.mxu0 %v8787
    %8841 = vmatpush2.bf16.msra.mxu0 %v8786
    %8842 = vmatprep.subr.bf16.mxu0 %v8785
    %8843 = vmatpush2.bf16.msra.mxu0 %v8784
    %8844 = vmatprep.subr.bf16.mxu0 %v8783
    %8845 = vmatpush2.bf16.msra.mxu0 %v8782
    %8846 = vmatprep.subr.bf16.mxu0 %v8781
    %8847 = vmatpush2.bf16.msra.mxu0 %v8780
    %8848 = vmatprep.subr.bf16.mxu0 %v8779
    %8849 = vmatpush2.bf16.msra.mxu0 %v8778
    %8850 = vmatprep.subr.bf16.mxu0 %v8777
    %8851 = vmatpush2.bf16.msra.mxu0 %v8776
    %8852 = vmatprep.subr.bf16.mxu0 %v8775
    %8853 = vmatpush2.bf16.msra.mxu0 %v8774
    %8854 = vmatprep.mubr.bf16.mxu0 %v1314
    %8855 = vmatmul.mubr.bf16.gmra.mxu0 %v1313
    %v8856 = vpop.f32.mrf.mxu0
    %v8857 = vadd.f32 %v8655, %v8856
    %v8858 = vpop.f32.mrf.mxu0
    %v8859 = vadd.f32 %v8659, %v8858
    %v8860 = vpop.f32.mrf.mxu0
    %v8861 = vpop.f32.mrf.mxu0
    %8862 = vdwg.mxu0
    %v8863 = vmax.f32 %v8857, 0.0
    %v8864 = vmax.f32 %v8859, 0.0
    %v8865 = vpack.c.bf16 %v8863, %v8863
    %v8866 = vpack.c.bf16 %v8864, %v8864
    %s8867 = scalar_lea.vmem [#allocation2], 9216
    %v8868 = vld [vmem:[%s8867] sm:$0xff]
    %v8869 = vld [vmem:[%s8867 + $0x8] sm:$0xff]
    %v8870 = vld [vmem:[%s8867 + $0x10] sm:$0xff]
    %v8871 = vld [vmem:[%s8867 + $0x18] sm:$0xff]
    %v8872 = vld [vmem:[%s8867 + $0x20] sm:$0xff]
    %v8873 = vld [vmem:[%s8867 + $0x28] sm:$0xff]
    %v8874 = vld [vmem:[%s8867 + $0x30] sm:$0xff]
    %v8875 = vld [vmem:[%s8867 + $0x38] sm:$0xff]
    %v8876 = vld [vmem:[%s8867 + $0x40] sm:$0xff]
    %v8877 = vld [vmem:[%s8867 + $0x48] sm:$0xff]
    %v8878 = vld [vmem:[%s8867 + $0x50] sm:$0xff]
    %v8879 = vld [vmem:[%s8867 + $0x58] sm:$0xff]
    %v8880 = vld [vmem:[%s8867 + $0x60] sm:$0xff]
    %v8881 = vld [vmem:[%s8867 + $0x68] sm:$0xff]
    %v8882 = vld [vmem:[%s8867 + $0x70] sm:$0xff]
    %v8883 = vld [vmem:[%s8867 + $0x78] sm:$0xff]
    %v8884 = vld [vmem:[%s8867 + $0x80] sm:$0xff]
    %v8885 = vld [vmem:[%s8867 + $0x88] sm:$0xff]
    %v8886 = vld [vmem:[%s8867 + $0x90] sm:$0xff]
    %v8887 = vld [vmem:[%s8867 + $0x98] sm:$0xff]
    %v8888 = vld [vmem:[%s8867 + $0xa0] sm:$0xff]
    %v8889 = vld [vmem:[%s8867 + $0xa8] sm:$0xff]
    %v8890 = vld [vmem:[%s8867 + $0xb0] sm:$0xff]
    %v8891 = vld [vmem:[%s8867 + $0xb8] sm:$0xff]
    %v8892 = vld [vmem:[%s8867 + $0xc0] sm:$0xff]
    %v8893 = vld [vmem:[%s8867 + $0xc8] sm:$0xff]
    %v8894 = vld [vmem:[%s8867 + $0xd0] sm:$0xff]
    %v8895 = vld [vmem:[%s8867 + $0xd8] sm:$0xff]
    %v8896 = vld [vmem:[%s8867 + $0xe0] sm:$0xff]
    %v8897 = vld [vmem:[%s8867 + $0xe8] sm:$0xff]
    %v8898 = vld [vmem:[%s8867 + $0xf0] sm:$0xff]
    %v8899 = vld [vmem:[%s8867 + $0xf8] sm:$0xff]
    %v8932 = vunpack.c.l.b16 %v8868
    %v8933 = vunpack.c.h.b16 %v8868
    %v8934 = vunpack.c.l.b16 %v8869
    %v8935 = vunpack.c.h.b16 %v8869
    %v8936 = vunpack.c.l.b16 %v8870
    %v8937 = vunpack.c.h.b16 %v8870
    %v8938 = vunpack.c.l.b16 %v8871
    %v8939 = vunpack.c.h.b16 %v8871
    %v8940 = vunpack.c.l.b16 %v8872
    %v8941 = vunpack.c.h.b16 %v8872
    %v8942 = vunpack.c.l.b16 %v8873
    %v8943 = vunpack.c.h.b16 %v8873
    %v8944 = vunpack.c.l.b16 %v8874
    %v8945 = vunpack.c.h.b16 %v8874
    %v8946 = vunpack.c.l.b16 %v8875
    %v8947 = vunpack.c.h.b16 %v8875
    %v8948 = vunpack.c.l.b16 %v8876
    %v8949 = vunpack.c.h.b16 %v8876
    %v8950 = vunpack.c.l.b16 %v8877
    %v8951 = vunpack.c.h.b16 %v8877
    %v8952 = vunpack.c.l.b16 %v8878
    %v8953 = vunpack.c.h.b16 %v8878
    %v8954 = vunpack.c.l.b16 %v8879
    %v8955 = vunpack.c.h.b16 %v8879
    %v8956 = vunpack.c.l.b16 %v8880
    %v8957 = vunpack.c.h.b16 %v8880
    %v8958 = vunpack.c.l.b16 %v8881
    %v8959 = vunpack.c.h.b16 %v8881
    %v8960 = vunpack.c.l.b16 %v8882
    %v8961 = vunpack.c.h.b16 %v8882
    %v8962 = vunpack.c.l.b16 %v8883
    %v8963 = vunpack.c.h.b16 %v8883
    %v8964 = vunpack.c.l.b16 %v8884
    %v8965 = vunpack.c.h.b16 %v8884
    %v8966 = vunpack.c.l.b16 %v8885
    %v8967 = vunpack.c.h.b16 %v8885
    %v8968 = vunpack.c.l.b16 %v8886
    %v8969 = vunpack.c.h.b16 %v8886
    %v8970 = vunpack.c.l.b16 %v8887
    %v8971 = vunpack.c.h.b16 %v8887
    %v8972 = vunpack.c.l.b16 %v8888
    %v8973 = vunpack.c.h.b16 %v8888
    %v8974 = vunpack.c.l.b16 %v8889
    %v8975 = vunpack.c.h.b16 %v8889
    %v8976 = vunpack.c.l.b16 %v8890
    %v8977 = vunpack.c.h.b16 %v8890
    %v8978 = vunpack.c.l.b16 %v8891
    %v8979 = vunpack.c.h.b16 %v8891
    %v8980 = vunpack.c.l.b16 %v8892
    %v8981 = vunpack.c.h.b16 %v8892
    %v8982 = vunpack.c.l.b16 %v8893
    %v8983 = vunpack.c.h.b16 %v8893
    %v8984 = vunpack.c.l.b16 %v8894
    %v8985 = vunpack.c.h.b16 %v8894
    %v8986 = vunpack.c.l.b16 %v8895
    %v8987 = vunpack.c.h.b16 %v8895
    %v8988 = vunpack.c.l.b16 %v8896
    %v8989 = vunpack.c.h.b16 %v8896
    %v8990 = vunpack.c.l.b16 %v8897
    %v8991 = vunpack.c.h.b16 %v8897
    %v8992 = vunpack.c.l.b16 %v8898
    %v8993 = vunpack.c.h.b16 %v8898
    %v8994 = vunpack.c.l.b16 %v8899
    %v8995 = vunpack.c.h.b16 %v8899
    %v8996 = vpack.c.b16 %v8934, %v8932
    %v8997 = vpack.c.b16 %v8935, %v8933
    %v8998 = vpack.c.b16 %v8938, %v8936
    %v8999 = vpack.c.b16 %v8939, %v8937
    %v9000 = vpack.c.b16 %v8942, %v8940
    %v9001 = vpack.c.b16 %v8943, %v8941
    %v9002 = vpack.c.b16 %v8946, %v8944
    %v9003 = vpack.c.b16 %v8947, %v8945
    %v9004 = vpack.c.b16 %v8950, %v8948
    %v9005 = vpack.c.b16 %v8951, %v8949
    %v9006 = vpack.c.b16 %v8954, %v8952
    %v9007 = vpack.c.b16 %v8955, %v8953
    %v9008 = vpack.c.b16 %v8958, %v8956
    %v9009 = vpack.c.b16 %v8959, %v8957
    %v9010 = vpack.c.b16 %v8962, %v8960
    %v9011 = vpack.c.b16 %v8963, %v8961
    %v9012 = vpack.c.b16 %v8966, %v8964
    %v9013 = vpack.c.b16 %v8967, %v8965
    %v9014 = vpack.c.b16 %v8970, %v8968
    %v9015 = vpack.c.b16 %v8971, %v8969
    %v9016 = vpack.c.b16 %v8974, %v8972
    %v9017 = vpack.c.b16 %v8975, %v8973
    %v9018 = vpack.c.b16 %v8978, %v8976
    %v9019 = vpack.c.b16 %v8979, %v8977
    %v9020 = vpack.c.b16 %v8982, %v8980
    %v9021 = vpack.c.b16 %v8983, %v8981
    %v9022 = vpack.c.b16 %v8986, %v8984
    %v9023 = vpack.c.b16 %v8987, %v8985
    %v9024 = vpack.c.b16 %v8990, %v8988
    %v9025 = vpack.c.b16 %v8991, %v8989
    %v9026 = vpack.c.b16 %v8994, %v8992
    %v9027 = vpack.c.b16 %v8995, %v8993
    %9060 = vmatprep.subr.bf16.mxu0 %v9011
    %9061 = vmatpush1.bf16.msra.mxu0 %v9010
    %9062 = vmatprep.subr.bf16.mxu0 %v9009
    %9063 = vmatpush1.bf16.msra.mxu0 %v9008
    %9064 = vmatprep.subr.bf16.mxu0 %v9007
    %9065 = vmatpush1.bf16.msra.mxu0 %v9006
    %9066 = vmatprep.subr.bf16.mxu0 %v9005
    %9067 = vmatpush1.bf16.msra.mxu0 %v9004
    %9068 = vmatprep.subr.bf16.mxu0 %v9003
    %9069 = vmatpush1.bf16.msra.mxu0 %v9002
    %9070 = vmatprep.subr.bf16.mxu0 %v9001
    %9071 = vmatpush1.bf16.msra.mxu0 %v9000
    %9072 = vmatprep.subr.bf16.mxu0 %v8999
    %9073 = vmatpush1.bf16.msra.mxu0 %v8998
    %9074 = vmatprep.subr.bf16.mxu0 %v8997
    %9075 = vmatpush1.bf16.msra.mxu0 %v8996
    %9076 = vmatprep.subr.bf16.mxu0 %v9027
    %9077 = vmatpush2.bf16.msra.mxu0 %v9026
    %9078 = vmatprep.subr.bf16.mxu0 %v9025
    %9079 = vmatpush2.bf16.msra.mxu0 %v9024
    %9080 = vmatprep.subr.bf16.mxu0 %v9023
    %9081 = vmatpush2.bf16.msra.mxu0 %v9022
    %9082 = vmatprep.subr.bf16.mxu0 %v9021
    %9083 = vmatpush2.bf16.msra.mxu0 %v9020
    %9084 = vmatprep.subr.bf16.mxu0 %v9019
    %9085 = vmatpush2.bf16.msra.mxu0 %v9018
    %9086 = vmatprep.subr.bf16.mxu0 %v9017
    %9087 = vmatpush2.bf16.msra.mxu0 %v9016
    %9088 = vmatprep.subr.bf16.mxu0 %v9015
    %9089 = vmatpush2.bf16.msra.mxu0 %v9014
    %9090 = vmatprep.subr.bf16.mxu0 %v9013
    %9091 = vmatpush2.bf16.msra.mxu0 %v9012
    %9092 = vmatprep.mubr.bf16.mxu0 %v8866
    %9093 = vmatmul.mubr.bf16.gmra.mxu0 %v8865
    %v9094 = vpop.f32.mrf.mxu0
    %v9095 = vadd.f32 0.0, %v9094
    %v9096 = vpop.f32.mrf.mxu0
    %v9097 = vadd.f32 0.0, %v9096
    %v9098 = vpop.f32.mrf.mxu0
    %v9099 = vpop.f32.mrf.mxu0
    %9100 = vdwg.mxu0
    %v9101 = vadd.f32 %v8614, %v9095
    %v9102 = vadd.f32 %v8615, %v9097
    %s9103 = scalar_lea.vmem [#allocation4], 37
    %v9104 = vld [vmem:[%s9103] ss:$8 sm:$0x3]
    %v9106 = vlaneseq
    %v9107 = vshrl.u32 %v9106, 7
    %v9108 = vsub.s32 0, %v9107
    %v9109 = vrot.slane %v9104, %v9108
    %v9110 = vlaneseq
    %v9111 = vshrl.u32 %v9110, 7
    %v9112 = vsub.s32 1, %v9111
    %v9113 = vrot.slane %v9104, %v9112
    %v9116 = vadd.f32 %v9101, %v9109
    %v9117 = vadd.f32 %v9102, %v9113
    %v9118 = vmax.f32 %v9116, 0.0
    %v9119 = vmax.f32 %v9117, 0.0
    %v9120 = vmul.f32 %v1060, %v9118
    %v9121 = vmul.f32 %v1061, %v9119
    %v9122 = vpack.c.bf16 %v1060, %v1060
    %v9123 = vpack.c.bf16 %v1061, %v1061
    %s9124 = scalar_lea.vmem [#allocation2], 9472
    %v9125 = vld [vmem:[%s9124] sm:$0xff]
    %v9126 = vld [vmem:[%s9124 + $0x8] sm:$0xff]
    %v9127 = vld [vmem:[%s9124 + $0x10] sm:$0xff]
    %v9128 = vld [vmem:[%s9124 + $0x18] sm:$0xff]
    %v9129 = vld [vmem:[%s9124 + $0x20] sm:$0xff]
    %v9130 = vld [vmem:[%s9124 + $0x28] sm:$0xff]
    %v9131 = vld [vmem:[%s9124 + $0x30] sm:$0xff]
    %v9132 = vld [vmem:[%s9124 + $0x38] sm:$0xff]
    %v9133 = vld [vmem:[%s9124 + $0x40] sm:$0xff]
    %v9134 = vld [vmem:[%s9124 + $0x48] sm:$0xff]
    %v9135 = vld [vmem:[%s9124 + $0x50] sm:$0xff]
    %v9136 = vld [vmem:[%s9124 + $0x58] sm:$0xff]
    %v9137 = vld [vmem:[%s9124 + $0x60] sm:$0xff]
    %v9138 = vld [vmem:[%s9124 + $0x68] sm:$0xff]
    %v9139 = vld [vmem:[%s9124 + $0x70] sm:$0xff]
    %v9140 = vld [vmem:[%s9124 + $0x78] sm:$0xff]
    %v9141 = vld [vmem:[%s9124 + $0x80] sm:$0xff]
    %v9142 = vld [vmem:[%s9124 + $0x88] sm:$0xff]
    %v9143 = vld [vmem:[%s9124 + $0x90] sm:$0xff]
    %v9144 = vld [vmem:[%s9124 + $0x98] sm:$0xff]
    %v9145 = vld [vmem:[%s9124 + $0xa0] sm:$0xff]
    %v9146 = vld [vmem:[%s9124 + $0xa8] sm:$0xff]
    %v9147 = vld [vmem:[%s9124 + $0xb0] sm:$0xff]
    %v9148 = vld [vmem:[%s9124 + $0xb8] sm:$0xff]
    %v9149 = vld [vmem:[%s9124 + $0xc0] sm:$0xff]
    %v9150 = vld [vmem:[%s9124 + $0xc8] sm:$0xff]
    %v9151 = vld [vmem:[%s9124 + $0xd0] sm:$0xff]
    %v9152 = vld [vmem:[%s9124 + $0xd8] sm:$0xff]
    %v9153 = vld [vmem:[%s9124 + $0xe0] sm:$0xff]
    %v9154 = vld [vmem:[%s9124 + $0xe8] sm:$0xff]
    %v9155 = vld [vmem:[%s9124 + $0xf0] sm:$0xff]
    %v9156 = vld [vmem:[%s9124 + $0xf8] sm:$0xff]
    %s9157 = scalar_lea.vmem [#allocation4], 38
    %v9158 = vld [vmem:[%s9157] ss:$8 sm:$0x3]
    %v9160 = vlaneseq
    %v9161 = vshrl.u32 %v9160, 7
    %v9162 = vsub.s32 0, %v9161
    %v9163 = vrot.slane %v9158, %v9162
    %v9164 = vlaneseq
    %v9165 = vshrl.u32 %v9164, 7
    %v9166 = vsub.s32 1, %v9165
    %v9167 = vrot.slane %v9158, %v9166
    %v9202 = vunpack.c.l.b16 %v9125
    %v9203 = vunpack.c.h.b16 %v9125
    %v9204 = vunpack.c.l.b16 %v9126
    %v9205 = vunpack.c.h.b16 %v9126
    %v9206 = vunpack.c.l.b16 %v9127
    %v9207 = vunpack.c.h.b16 %v9127
    %v9208 = vunpack.c.l.b16 %v9128
    %v9209 = vunpack.c.h.b16 %v9128
    %v9210 = vunpack.c.l.b16 %v9129
    %v9211 = vunpack.c.h.b16 %v9129
    %v9212 = vunpack.c.l.b16 %v9130
    %v9213 = vunpack.c.h.b16 %v9130
    %v9214 = vunpack.c.l.b16 %v9131
    %v9215 = vunpack.c.h.b16 %v9131
    %v9216 = vunpack.c.l.b16 %v9132
    %v9217 = vunpack.c.h.b16 %v9132
    %v9218 = vunpack.c.l.b16 %v9133
    %v9219 = vunpack.c.h.b16 %v9133
    %v9220 = vunpack.c.l.b16 %v9134
    %v9221 = vunpack.c.h.b16 %v9134
    %v9222 = vunpack.c.l.b16 %v9135
    %v9223 = vunpack.c.h.b16 %v9135
    %v9224 = vunpack.c.l.b16 %v9136
    %v9225 = vunpack.c.h.b16 %v9136
    %v9226 = vunpack.c.l.b16 %v9137
    %v9227 = vunpack.c.h.b16 %v9137
    %v9228 = vunpack.c.l.b16 %v9138
    %v9229 = vunpack.c.h.b16 %v9138
    %v9230 = vunpack.c.l.b16 %v9139
    %v9231 = vunpack.c.h.b16 %v9139
    %v9232 = vunpack.c.l.b16 %v9140
    %v9233 = vunpack.c.h.b16 %v9140
    %v9234 = vunpack.c.l.b16 %v9141
    %v9235 = vunpack.c.h.b16 %v9141
    %v9236 = vunpack.c.l.b16 %v9142
    %v9237 = vunpack.c.h.b16 %v9142
    %v9238 = vunpack.c.l.b16 %v9143
    %v9239 = vunpack.c.h.b16 %v9143
    %v9240 = vunpack.c.l.b16 %v9144
    %v9241 = vunpack.c.h.b16 %v9144
    %v9242 = vunpack.c.l.b16 %v9145
    %v9243 = vunpack.c.h.b16 %v9145
    %v9244 = vunpack.c.l.b16 %v9146
    %v9245 = vunpack.c.h.b16 %v9146
    %v9246 = vunpack.c.l.b16 %v9147
    %v9247 = vunpack.c.h.b16 %v9147
    %v9248 = vunpack.c.l.b16 %v9148
    %v9249 = vunpack.c.h.b16 %v9148
    %v9250 = vunpack.c.l.b16 %v9149
    %v9251 = vunpack.c.h.b16 %v9149
    %v9252 = vunpack.c.l.b16 %v9150
    %v9253 = vunpack.c.h.b16 %v9150
    %v9254 = vunpack.c.l.b16 %v9151
    %v9255 = vunpack.c.h.b16 %v9151
    %v9256 = vunpack.c.l.b16 %v9152
    %v9257 = vunpack.c.h.b16 %v9152
    %v9258 = vunpack.c.l.b16 %v9153
    %v9259 = vunpack.c.h.b16 %v9153
    %v9260 = vunpack.c.l.b16 %v9154
    %v9261 = vunpack.c.h.b16 %v9154
    %v9262 = vunpack.c.l.b16 %v9155
    %v9263 = vunpack.c.h.b16 %v9155
    %v9264 = vunpack.c.l.b16 %v9156
    %v9265 = vunpack.c.h.b16 %v9156
    %v9266 = vpack.c.b16 %v9204, %v9202
    %v9267 = vpack.c.b16 %v9205, %v9203
    %v9268 = vpack.c.b16 %v9208, %v9206
    %v9269 = vpack.c.b16 %v9209, %v9207
    %v9270 = vpack.c.b16 %v9212, %v9210
    %v9271 = vpack.c.b16 %v9213, %v9211
    %v9272 = vpack.c.b16 %v9216, %v9214
    %v9273 = vpack.c.b16 %v9217, %v9215
    %v9274 = vpack.c.b16 %v9220, %v9218
    %v9275 = vpack.c.b16 %v9221, %v9219
    %v9276 = vpack.c.b16 %v9224, %v9222
    %v9277 = vpack.c.b16 %v9225, %v9223
    %v9278 = vpack.c.b16 %v9228, %v9226
    %v9279 = vpack.c.b16 %v9229, %v9227
    %v9280 = vpack.c.b16 %v9232, %v9230
    %v9281 = vpack.c.b16 %v9233, %v9231
    %v9282 = vpack.c.b16 %v9236, %v9234
    %v9283 = vpack.c.b16 %v9237, %v9235
    %v9284 = vpack.c.b16 %v9240, %v9238
    %v9285 = vpack.c.b16 %v9241, %v9239
    %v9286 = vpack.c.b16 %v9244, %v9242
    %v9287 = vpack.c.b16 %v9245, %v9243
    %v9288 = vpack.c.b16 %v9248, %v9246
    %v9289 = vpack.c.b16 %v9249, %v9247
    %v9290 = vpack.c.b16 %v9252, %v9250
    %v9291 = vpack.c.b16 %v9253, %v9251
    %v9292 = vpack.c.b16 %v9256, %v9254
    %v9293 = vpack.c.b16 %v9257, %v9255
    %v9294 = vpack.c.b16 %v9260, %v9258
    %v9295 = vpack.c.b16 %v9261, %v9259
    %v9296 = vpack.c.b16 %v9264, %v9262
    %v9297 = vpack.c.b16 %v9265, %v9263
    %9330 = vmatprep.subr.bf16.mxu0 %v9281
    %9331 = vmatpush1.bf16.msra.mxu0 %v9280
    %9332 = vmatprep.subr.bf16.mxu0 %v9279
    %9333 = vmatpush1.bf16.msra.mxu0 %v9278
    %9334 = vmatprep.subr.bf16.mxu0 %v9277
    %9335 = vmatpush1.bf16.msra.mxu0 %v9276
    %9336 = vmatprep.subr.bf16.mxu0 %v9275
    %9337 = vmatpush1.bf16.msra.mxu0 %v9274
    %9338 = vmatprep.subr.bf16.mxu0 %v9273
    %9339 = vmatpush1.bf16.msra.mxu0 %v9272
    %9340 = vmatprep.subr.bf16.mxu0 %v9271
    %9341 = vmatpush1.bf16.msra.mxu0 %v9270
    %9342 = vmatprep.subr.bf16.mxu0 %v9269
    %9343 = vmatpush1.bf16.msra.mxu0 %v9268
    %9344 = vmatprep.subr.bf16.mxu0 %v9267
    %9345 = vmatpush1.bf16.msra.mxu0 %v9266
    %9346 = vmatprep.subr.bf16.mxu0 %v9297
    %9347 = vmatpush2.bf16.msra.mxu0 %v9296
    %9348 = vmatprep.subr.bf16.mxu0 %v9295
    %9349 = vmatpush2.bf16.msra.mxu0 %v9294
    %9350 = vmatprep.subr.bf16.mxu0 %v9293
    %9351 = vmatpush2.bf16.msra.mxu0 %v9292
    %9352 = vmatprep.subr.bf16.mxu0 %v9291
    %9353 = vmatpush2.bf16.msra.mxu0 %v9290
    %9354 = vmatprep.subr.bf16.mxu0 %v9289
    %9355 = vmatpush2.bf16.msra.mxu0 %v9288
    %9356 = vmatprep.subr.bf16.mxu0 %v9287
    %9357 = vmatpush2.bf16.msra.mxu0 %v9286
    %9358 = vmatprep.subr.bf16.mxu0 %v9285
    %9359 = vmatpush2.bf16.msra.mxu0 %v9284
    %9360 = vmatprep.subr.bf16.mxu0 %v9283
    %9361 = vmatpush2.bf16.msra.mxu0 %v9282
    %9362 = vmatprep.mubr.bf16.mxu0 %v9123
    %9363 = vmatmul.mubr.bf16.gmra.mxu0 %v9122
    %v9364 = vpop.f32.mrf.mxu0
    %v9365 = vadd.f32 %v9163, %v9364
    %v9366 = vpop.f32.mrf.mxu0
    %v9367 = vadd.f32 %v9167, %v9366
    %v9368 = vpop.f32.mrf.mxu0
    %v9369 = vpop.f32.mrf.mxu0
    %9370 = vdwg.mxu0
    %v9371 = vmax.f32 %v9365, 0.0
    %v9372 = vmax.f32 %v9367, 0.0
    %v9373 = vpack.c.bf16 %v9371, %v9371
    %v9374 = vpack.c.bf16 %v9372, %v9372
    %s9375 = scalar_lea.vmem [#allocation2], 9984
    %v9376 = vld [vmem:[%s9375] sm:$0xff]
    %v9377 = vld [vmem:[%s9375 + $0x8] sm:$0xff]
    %v9378 = vld [vmem:[%s9375 + $0x10] sm:$0xff]
    %v9379 = vld [vmem:[%s9375 + $0x18] sm:$0xff]
    %v9380 = vld [vmem:[%s9375 + $0x20] sm:$0xff]
    %v9381 = vld [vmem:[%s9375 + $0x28] sm:$0xff]
    %v9382 = vld [vmem:[%s9375 + $0x30] sm:$0xff]
    %v9383 = vld [vmem:[%s9375 + $0x38] sm:$0xff]
    %v9384 = vld [vmem:[%s9375 + $0x40] sm:$0xff]
    %v9385 = vld [vmem:[%s9375 + $0x48] sm:$0xff]
    %v9386 = vld [vmem:[%s9375 + $0x50] sm:$0xff]
    %v9387 = vld [vmem:[%s9375 + $0x58] sm:$0xff]
    %v9388 = vld [vmem:[%s9375 + $0x60] sm:$0xff]
    %v9389 = vld [vmem:[%s9375 + $0x68] sm:$0xff]
    %v9390 = vld [vmem:[%s9375 + $0x70] sm:$0xff]
    %v9391 = vld [vmem:[%s9375 + $0x78] sm:$0xff]
    %v9392 = vld [vmem:[%s9375 + $0x80] sm:$0xff]
    %v9393 = vld [vmem:[%s9375 + $0x88] sm:$0xff]
    %v9394 = vld [vmem:[%s9375 + $0x90] sm:$0xff]
    %v9395 = vld [vmem:[%s9375 + $0x98] sm:$0xff]
    %v9396 = vld [vmem:[%s9375 + $0xa0] sm:$0xff]
    %v9397 = vld [vmem:[%s9375 + $0xa8] sm:$0xff]
    %v9398 = vld [vmem:[%s9375 + $0xb0] sm:$0xff]
    %v9399 = vld [vmem:[%s9375 + $0xb8] sm:$0xff]
    %v9400 = vld [vmem:[%s9375 + $0xc0] sm:$0xff]
    %v9401 = vld [vmem:[%s9375 + $0xc8] sm:$0xff]
    %v9402 = vld [vmem:[%s9375 + $0xd0] sm:$0xff]
    %v9403 = vld [vmem:[%s9375 + $0xd8] sm:$0xff]
    %v9404 = vld [vmem:[%s9375 + $0xe0] sm:$0xff]
    %v9405 = vld [vmem:[%s9375 + $0xe8] sm:$0xff]
    %v9406 = vld [vmem:[%s9375 + $0xf0] sm:$0xff]
    %v9407 = vld [vmem:[%s9375 + $0xf8] sm:$0xff]
    %s9408 = scalar_lea.vmem [#allocation4], 48
    %v9409 = vld [vmem:[%s9408] ss:$8 sm:$0x3]
    %v9411 = vlaneseq
    %v9412 = vshrl.u32 %v9411, 7
    %v9413 = vsub.s32 0, %v9412
    %v9414 = vrot.slane %v9409, %v9413
    %v9415 = vlaneseq
    %v9416 = vshrl.u32 %v9415, 7
    %v9417 = vsub.s32 1, %v9416
    %v9418 = vrot.slane %v9409, %v9417
    %v9453 = vunpack.c.l.b16 %v9376
    %v9454 = vunpack.c.h.b16 %v9376
    %v9455 = vunpack.c.l.b16 %v9377
    %v9456 = vunpack.c.h.b16 %v9377
    %v9457 = vunpack.c.l.b16 %v9378
    %v9458 = vunpack.c.h.b16 %v9378
    %v9459 = vunpack.c.l.b16 %v9379
    %v9460 = vunpack.c.h.b16 %v9379
    %v9461 = vunpack.c.l.b16 %v9380
    %v9462 = vunpack.c.h.b16 %v9380
    %v9463 = vunpack.c.l.b16 %v9381
    %v9464 = vunpack.c.h.b16 %v9381
    %v9465 = vunpack.c.l.b16 %v9382
    %v9466 = vunpack.c.h.b16 %v9382
    %v9467 = vunpack.c.l.b16 %v9383
    %v9468 = vunpack.c.h.b16 %v9383
    %v9469 = vunpack.c.l.b16 %v9384
    %v9470 = vunpack.c.h.b16 %v9384
    %v9471 = vunpack.c.l.b16 %v9385
    %v9472 = vunpack.c.h.b16 %v9385
    %v9473 = vunpack.c.l.b16 %v9386
    %v9474 = vunpack.c.h.b16 %v9386
    %v9475 = vunpack.c.l.b16 %v9387
    %v9476 = vunpack.c.h.b16 %v9387
    %v9477 = vunpack.c.l.b16 %v9388
    %v9478 = vunpack.c.h.b16 %v9388
    %v9479 = vunpack.c.l.b16 %v9389
    %v9480 = vunpack.c.h.b16 %v9389
    %v9481 = vunpack.c.l.b16 %v9390
    %v9482 = vunpack.c.h.b16 %v9390
    %v9483 = vunpack.c.l.b16 %v9391
    %v9484 = vunpack.c.h.b16 %v9391
    %v9485 = vunpack.c.l.b16 %v9392
    %v9486 = vunpack.c.h.b16 %v9392
    %v9487 = vunpack.c.l.b16 %v9393
    %v9488 = vunpack.c.h.b16 %v9393
    %v9489 = vunpack.c.l.b16 %v9394
    %v9490 = vunpack.c.h.b16 %v9394
    %v9491 = vunpack.c.l.b16 %v9395
    %v9492 = vunpack.c.h.b16 %v9395
    %v9493 = vunpack.c.l.b16 %v9396
    %v9494 = vunpack.c.h.b16 %v9396
    %v9495 = vunpack.c.l.b16 %v9397
    %v9496 = vunpack.c.h.b16 %v9397
    %v9497 = vunpack.c.l.b16 %v9398
    %v9498 = vunpack.c.h.b16 %v9398
    %v9499 = vunpack.c.l.b16 %v9399
    %v9500 = vunpack.c.h.b16 %v9399
    %v9501 = vunpack.c.l.b16 %v9400
    %v9502 = vunpack.c.h.b16 %v9400
    %v9503 = vunpack.c.l.b16 %v9401
    %v9504 = vunpack.c.h.b16 %v9401
    %v9505 = vunpack.c.l.b16 %v9402
    %v9506 = vunpack.c.h.b16 %v9402
    %v9507 = vunpack.c.l.b16 %v9403
    %v9508 = vunpack.c.h.b16 %v9403
    %v9509 = vunpack.c.l.b16 %v9404
    %v9510 = vunpack.c.h.b16 %v9404
    %v9511 = vunpack.c.l.b16 %v9405
    %v9512 = vunpack.c.h.b16 %v9405
    %v9513 = vunpack.c.l.b16 %v9406
    %v9514 = vunpack.c.h.b16 %v9406
    %v9515 = vunpack.c.l.b16 %v9407
    %v9516 = vunpack.c.h.b16 %v9407
    %v9517 = vpack.c.b16 %v9455, %v9453
    %v9518 = vpack.c.b16 %v9456, %v9454
    %v9519 = vpack.c.b16 %v9459, %v9457
    %v9520 = vpack.c.b16 %v9460, %v9458
    %v9521 = vpack.c.b16 %v9463, %v9461
    %v9522 = vpack.c.b16 %v9464, %v9462
    %v9523 = vpack.c.b16 %v9467, %v9465
    %v9524 = vpack.c.b16 %v9468, %v9466
    %v9525 = vpack.c.b16 %v9471, %v9469
    %v9526 = vpack.c.b16 %v9472, %v9470
    %v9527 = vpack.c.b16 %v9475, %v9473
    %v9528 = vpack.c.b16 %v9476, %v9474
    %v9529 = vpack.c.b16 %v9479, %v9477
    %v9530 = vpack.c.b16 %v9480, %v9478
    %v9531 = vpack.c.b16 %v9483, %v9481
    %v9532 = vpack.c.b16 %v9484, %v9482
    %v9533 = vpack.c.b16 %v9487, %v9485
    %v9534 = vpack.c.b16 %v9488, %v9486
    %v9535 = vpack.c.b16 %v9491, %v9489
    %v9536 = vpack.c.b16 %v9492, %v9490
    %v9537 = vpack.c.b16 %v9495, %v9493
    %v9538 = vpack.c.b16 %v9496, %v9494
    %v9539 = vpack.c.b16 %v9499, %v9497
    %v9540 = vpack.c.b16 %v9500, %v9498
    %v9541 = vpack.c.b16 %v9503, %v9501
    %v9542 = vpack.c.b16 %v9504, %v9502
    %v9543 = vpack.c.b16 %v9507, %v9505
    %v9544 = vpack.c.b16 %v9508, %v9506
    %v9545 = vpack.c.b16 %v9511, %v9509
    %v9546 = vpack.c.b16 %v9512, %v9510
    %v9547 = vpack.c.b16 %v9515, %v9513
    %v9548 = vpack.c.b16 %v9516, %v9514
    %9581 = vmatprep.subr.bf16.mxu0 %v9532
    %9582 = vmatpush1.bf16.msra.mxu0 %v9531
    %9583 = vmatprep.subr.bf16.mxu0 %v9530
    %9584 = vmatpush1.bf16.msra.mxu0 %v9529
    %9585 = vmatprep.subr.bf16.mxu0 %v9528
    %9586 = vmatpush1.bf16.msra.mxu0 %v9527
    %9587 = vmatprep.subr.bf16.mxu0 %v9526
    %9588 = vmatpush1.bf16.msra.mxu0 %v9525
    %9589 = vmatprep.subr.bf16.mxu0 %v9524
    %9590 = vmatpush1.bf16.msra.mxu0 %v9523
    %9591 = vmatprep.subr.bf16.mxu0 %v9522
    %9592 = vmatpush1.bf16.msra.mxu0 %v9521
    %9593 = vmatprep.subr.bf16.mxu0 %v9520
    %9594 = vmatpush1.bf16.msra.mxu0 %v9519
    %9595 = vmatprep.subr.bf16.mxu0 %v9518
    %9596 = vmatpush1.bf16.msra.mxu0 %v9517
    %9597 = vmatprep.subr.bf16.mxu0 %v9548
    %9598 = vmatpush2.bf16.msra.mxu0 %v9547
    %9599 = vmatprep.subr.bf16.mxu0 %v9546
    %9600 = vmatpush2.bf16.msra.mxu0 %v9545
    %9601 = vmatprep.subr.bf16.mxu0 %v9544
    %9602 = vmatpush2.bf16.msra.mxu0 %v9543
    %9603 = vmatprep.subr.bf16.mxu0 %v9542
    %9604 = vmatpush2.bf16.msra.mxu0 %v9541
    %9605 = vmatprep.subr.bf16.mxu0 %v9540
    %9606 = vmatpush2.bf16.msra.mxu0 %v9539
    %9607 = vmatprep.subr.bf16.mxu0 %v9538
    %9608 = vmatpush2.bf16.msra.mxu0 %v9537
    %9609 = vmatprep.subr.bf16.mxu0 %v9536
    %9610 = vmatpush2.bf16.msra.mxu0 %v9535
    %9611 = vmatprep.subr.bf16.mxu0 %v9534
    %9612 = vmatpush2.bf16.msra.mxu0 %v9533
    %9613 = vmatprep.mubr.bf16.mxu0 %v9374
    %9614 = vmatmul.mubr.bf16.gmra.mxu0 %v9373
    %v9615 = vpop.f32.mrf.mxu0
    %v9616 = vadd.f32 %v9414, %v9615
    %v9617 = vpop.f32.mrf.mxu0
    %v9618 = vadd.f32 %v9418, %v9617
    %v9619 = vpop.f32.mrf.mxu0
    %v9620 = vpop.f32.mrf.mxu0
    %9621 = vdwg.mxu0
    %v9622 = vxor.u32 %v9616, 2147483648
    %v9623 = vxor.u32 %v9618, 2147483648
    %v9624 = vmul.f32 %v9622, 1.442695
    %v9625 = vpow.pop %v9624
    %v9626 = vmul.f32 %v9623, 1.442695
    %v9627 = vpow.pop %v9626
    %v9628 = vadd.f32 %v9625, 1.0
    %v9629 = vadd.f32 %v9627, 1.0
    %v9630 = vrcp.pop %v9628
    %v9631 = vmul.f32 1.0, %v9630
    %v9632 = vrcp.pop %v9629
    %v9633 = vmul.f32 1.0, %v9632
    %s9634 = scalar_lea.vmem [#allocation2], 9728
    %v9635 = vld [vmem:[%s9634] sm:$0xff]
    %v9636 = vld [vmem:[%s9634 + $0x8] sm:$0xff]
    %v9637 = vld [vmem:[%s9634 + $0x10] sm:$0xff]
    %v9638 = vld [vmem:[%s9634 + $0x18] sm:$0xff]
    %v9639 = vld [vmem:[%s9634 + $0x20] sm:$0xff]
    %v9640 = vld [vmem:[%s9634 + $0x28] sm:$0xff]
    %v9641 = vld [vmem:[%s9634 + $0x30] sm:$0xff]
    %v9642 = vld [vmem:[%s9634 + $0x38] sm:$0xff]
    %v9643 = vld [vmem:[%s9634 + $0x40] sm:$0xff]
    %v9644 = vld [vmem:[%s9634 + $0x48] sm:$0xff]
    %v9645 = vld [vmem:[%s9634 + $0x50] sm:$0xff]
    %v9646 = vld [vmem:[%s9634 + $0x58] sm:$0xff]
    %v9647 = vld [vmem:[%s9634 + $0x60] sm:$0xff]
    %v9648 = vld [vmem:[%s9634 + $0x68] sm:$0xff]
    %v9649 = vld [vmem:[%s9634 + $0x70] sm:$0xff]
    %v9650 = vld [vmem:[%s9634 + $0x78] sm:$0xff]
    %v9651 = vld [vmem:[%s9634 + $0x80] sm:$0xff]
    %v9652 = vld [vmem:[%s9634 + $0x88] sm:$0xff]
    %v9653 = vld [vmem:[%s9634 + $0x90] sm:$0xff]
    %v9654 = vld [vmem:[%s9634 + $0x98] sm:$0xff]
    %v9655 = vld [vmem:[%s9634 + $0xa0] sm:$0xff]
    %v9656 = vld [vmem:[%s9634 + $0xa8] sm:$0xff]
    %v9657 = vld [vmem:[%s9634 + $0xb0] sm:$0xff]
    %v9658 = vld [vmem:[%s9634 + $0xb8] sm:$0xff]
    %v9659 = vld [vmem:[%s9634 + $0xc0] sm:$0xff]
    %v9660 = vld [vmem:[%s9634 + $0xc8] sm:$0xff]
    %v9661 = vld [vmem:[%s9634 + $0xd0] sm:$0xff]
    %v9662 = vld [vmem:[%s9634 + $0xd8] sm:$0xff]
    %v9663 = vld [vmem:[%s9634 + $0xe0] sm:$0xff]
    %v9664 = vld [vmem:[%s9634 + $0xe8] sm:$0xff]
    %v9665 = vld [vmem:[%s9634 + $0xf0] sm:$0xff]
    %v9666 = vld [vmem:[%s9634 + $0xf8] sm:$0xff]
    %s9667 = scalar_lea.vmem [#allocation4], 39
    %v9668 = vld [vmem:[%s9667] ss:$8 sm:$0x3]
    %v9670 = vlaneseq
    %v9671 = vshrl.u32 %v9670, 7
    %v9672 = vsub.s32 0, %v9671
    %v9673 = vrot.slane %v9668, %v9672
    %v9674 = vlaneseq
    %v9675 = vshrl.u32 %v9674, 7
    %v9676 = vsub.s32 1, %v9675
    %v9677 = vrot.slane %v9668, %v9676
    %v9712 = vunpack.c.l.b16 %v9635
    %v9713 = vunpack.c.h.b16 %v9635
    %v9714 = vunpack.c.l.b16 %v9636
    %v9715 = vunpack.c.h.b16 %v9636
    %v9716 = vunpack.c.l.b16 %v9637
    %v9717 = vunpack.c.h.b16 %v9637
    %v9718 = vunpack.c.l.b16 %v9638
    %v9719 = vunpack.c.h.b16 %v9638
    %v9720 = vunpack.c.l.b16 %v9639
    %v9721 = vunpack.c.h.b16 %v9639
    %v9722 = vunpack.c.l.b16 %v9640
    %v9723 = vunpack.c.h.b16 %v9640
    %v9724 = vunpack.c.l.b16 %v9641
    %v9725 = vunpack.c.h.b16 %v9641
    %v9726 = vunpack.c.l.b16 %v9642
    %v9727 = vunpack.c.h.b16 %v9642
    %v9728 = vunpack.c.l.b16 %v9643
    %v9729 = vunpack.c.h.b16 %v9643
    %v9730 = vunpack.c.l.b16 %v9644
    %v9731 = vunpack.c.h.b16 %v9644
    %v9732 = vunpack.c.l.b16 %v9645
    %v9733 = vunpack.c.h.b16 %v9645
    %v9734 = vunpack.c.l.b16 %v9646
    %v9735 = vunpack.c.h.b16 %v9646
    %v9736 = vunpack.c.l.b16 %v9647
    %v9737 = vunpack.c.h.b16 %v9647
    %v9738 = vunpack.c.l.b16 %v9648
    %v9739 = vunpack.c.h.b16 %v9648
    %v9740 = vunpack.c.l.b16 %v9649
    %v9741 = vunpack.c.h.b16 %v9649
    %v9742 = vunpack.c.l.b16 %v9650
    %v9743 = vunpack.c.h.b16 %v9650
    %v9744 = vunpack.c.l.b16 %v9651
    %v9745 = vunpack.c.h.b16 %v9651
    %v9746 = vunpack.c.l.b16 %v9652
    %v9747 = vunpack.c.h.b16 %v9652
    %v9748 = vunpack.c.l.b16 %v9653
    %v9749 = vunpack.c.h.b16 %v9653
    %v9750 = vunpack.c.l.b16 %v9654
    %v9751 = vunpack.c.h.b16 %v9654
    %v9752 = vunpack.c.l.b16 %v9655
    %v9753 = vunpack.c.h.b16 %v9655
    %v9754 = vunpack.c.l.b16 %v9656
    %v9755 = vunpack.c.h.b16 %v9656
    %v9756 = vunpack.c.l.b16 %v9657
    %v9757 = vunpack.c.h.b16 %v9657
    %v9758 = vunpack.c.l.b16 %v9658
    %v9759 = vunpack.c.h.b16 %v9658
    %v9760 = vunpack.c.l.b16 %v9659
    %v9761 = vunpack.c.h.b16 %v9659
    %v9762 = vunpack.c.l.b16 %v9660
    %v9763 = vunpack.c.h.b16 %v9660
    %v9764 = vunpack.c.l.b16 %v9661
    %v9765 = vunpack.c.h.b16 %v9661
    %v9766 = vunpack.c.l.b16 %v9662
    %v9767 = vunpack.c.h.b16 %v9662
    %v9768 = vunpack.c.l.b16 %v9663
    %v9769 = vunpack.c.h.b16 %v9663
    %v9770 = vunpack.c.l.b16 %v9664
    %v9771 = vunpack.c.h.b16 %v9664
    %v9772 = vunpack.c.l.b16 %v9665
    %v9773 = vunpack.c.h.b16 %v9665
    %v9774 = vunpack.c.l.b16 %v9666
    %v9775 = vunpack.c.h.b16 %v9666
    %v9776 = vpack.c.b16 %v9714, %v9712
    %v9777 = vpack.c.b16 %v9715, %v9713
    %v9778 = vpack.c.b16 %v9718, %v9716
    %v9779 = vpack.c.b16 %v9719, %v9717
    %v9780 = vpack.c.b16 %v9722, %v9720
    %v9781 = vpack.c.b16 %v9723, %v9721
    %v9782 = vpack.c.b16 %v9726, %v9724
    %v9783 = vpack.c.b16 %v9727, %v9725
    %v9784 = vpack.c.b16 %v9730, %v9728
    %v9785 = vpack.c.b16 %v9731, %v9729
    %v9786 = vpack.c.b16 %v9734, %v9732
    %v9787 = vpack.c.b16 %v9735, %v9733
    %v9788 = vpack.c.b16 %v9738, %v9736
    %v9789 = vpack.c.b16 %v9739, %v9737
    %v9790 = vpack.c.b16 %v9742, %v9740
    %v9791 = vpack.c.b16 %v9743, %v9741
    %v9792 = vpack.c.b16 %v9746, %v9744
    %v9793 = vpack.c.b16 %v9747, %v9745
    %v9794 = vpack.c.b16 %v9750, %v9748
    %v9795 = vpack.c.b16 %v9751, %v9749
    %v9796 = vpack.c.b16 %v9754, %v9752
    %v9797 = vpack.c.b16 %v9755, %v9753
    %v9798 = vpack.c.b16 %v9758, %v9756
    %v9799 = vpack.c.b16 %v9759, %v9757
    %v9800 = vpack.c.b16 %v9762, %v9760
    %v9801 = vpack.c.b16 %v9763, %v9761
    %v9802 = vpack.c.b16 %v9766, %v9764
    %v9803 = vpack.c.b16 %v9767, %v9765
    %v9804 = vpack.c.b16 %v9770, %v9768
    %v9805 = vpack.c.b16 %v9771, %v9769
    %v9806 = vpack.c.b16 %v9774, %v9772
    %v9807 = vpack.c.b16 %v9775, %v9773
    %9840 = vmatprep.subr.bf16.mxu0 %v9791
    %9841 = vmatpush1.bf16.msra.mxu0 %v9790
    %9842 = vmatprep.subr.bf16.mxu0 %v9789
    %9843 = vmatpush1.bf16.msra.mxu0 %v9788
    %9844 = vmatprep.subr.bf16.mxu0 %v9787
    %9845 = vmatpush1.bf16.msra.mxu0 %v9786
    %9846 = vmatprep.subr.bf16.mxu0 %v9785
    %9847 = vmatpush1.bf16.msra.mxu0 %v9784
    %9848 = vmatprep.subr.bf16.mxu0 %v9783
    %9849 = vmatpush1.bf16.msra.mxu0 %v9782
    %9850 = vmatprep.subr.bf16.mxu0 %v9781
    %9851 = vmatpush1.bf16.msra.mxu0 %v9780
    %9852 = vmatprep.subr.bf16.mxu0 %v9779
    %9853 = vmatpush1.bf16.msra.mxu0 %v9778
    %9854 = vmatprep.subr.bf16.mxu0 %v9777
    %9855 = vmatpush1.bf16.msra.mxu0 %v9776
    %9856 = vmatprep.subr.bf16.mxu0 %v9807
    %9857 = vmatpush2.bf16.msra.mxu0 %v9806
    %9858 = vmatprep.subr.bf16.mxu0 %v9805
    %9859 = vmatpush2.bf16.msra.mxu0 %v9804
    %9860 = vmatprep.subr.bf16.mxu0 %v9803
    %9861 = vmatpush2.bf16.msra.mxu0 %v9802
    %9862 = vmatprep.subr.bf16.mxu0 %v9801
    %9863 = vmatpush2.bf16.msra.mxu0 %v9800
    %9864 = vmatprep.subr.bf16.mxu0 %v9799
    %9865 = vmatpush2.bf16.msra.mxu0 %v9798
    %9866 = vmatprep.subr.bf16.mxu0 %v9797
    %9867 = vmatpush2.bf16.msra.mxu0 %v9796
    %9868 = vmatprep.subr.bf16.mxu0 %v9795
    %9869 = vmatpush2.bf16.msra.mxu0 %v9794
    %9870 = vmatprep.subr.bf16.mxu0 %v9793
    %9871 = vmatpush2.bf16.msra.mxu0 %v9792
    %9872 = vmatprep.mubr.bf16.mxu0 %v9123
    %9873 = vmatmul.mubr.bf16.gmra.mxu0 %v9122
    %v9874 = vpop.f32.mrf.mxu0
    %v9875 = vadd.f32 %v9673, %v9874
    %v9876 = vpop.f32.mrf.mxu0
    %v9877 = vadd.f32 %v9677, %v9876
    %v9878 = vpop.f32.mrf.mxu0
    %v9879 = vpop.f32.mrf.mxu0
    %9880 = vdwg.mxu0
    %v9881 = vmax.f32 %v9875, 0.0
    %v9882 = vmax.f32 %v9877, 0.0
    %v9883 = vpack.c.bf16 %v9881, %v9881
    %v9884 = vpack.c.bf16 %v9882, %v9882
    %s9885 = scalar_lea.vmem [#allocation2], 10240
    %v9886 = vld [vmem:[%s9885] sm:$0xff]
    %v9887 = vld [vmem:[%s9885 + $0x8] sm:$0xff]
    %v9888 = vld [vmem:[%s9885 + $0x10] sm:$0xff]
    %v9889 = vld [vmem:[%s9885 + $0x18] sm:$0xff]
    %v9890 = vld [vmem:[%s9885 + $0x20] sm:$0xff]
    %v9891 = vld [vmem:[%s9885 + $0x28] sm:$0xff]
    %v9892 = vld [vmem:[%s9885 + $0x30] sm:$0xff]
    %v9893 = vld [vmem:[%s9885 + $0x38] sm:$0xff]
    %v9894 = vld [vmem:[%s9885 + $0x40] sm:$0xff]
    %v9895 = vld [vmem:[%s9885 + $0x48] sm:$0xff]
    %v9896 = vld [vmem:[%s9885 + $0x50] sm:$0xff]
    %v9897 = vld [vmem:[%s9885 + $0x58] sm:$0xff]
    %v9898 = vld [vmem:[%s9885 + $0x60] sm:$0xff]
    %v9899 = vld [vmem:[%s9885 + $0x68] sm:$0xff]
    %v9900 = vld [vmem:[%s9885 + $0x70] sm:$0xff]
    %v9901 = vld [vmem:[%s9885 + $0x78] sm:$0xff]
    %v9902 = vld [vmem:[%s9885 + $0x80] sm:$0xff]
    %v9903 = vld [vmem:[%s9885 + $0x88] sm:$0xff]
    %v9904 = vld [vmem:[%s9885 + $0x90] sm:$0xff]
    %v9905 = vld [vmem:[%s9885 + $0x98] sm:$0xff]
    %v9906 = vld [vmem:[%s9885 + $0xa0] sm:$0xff]
    %v9907 = vld [vmem:[%s9885 + $0xa8] sm:$0xff]
    %v9908 = vld [vmem:[%s9885 + $0xb0] sm:$0xff]
    %v9909 = vld [vmem:[%s9885 + $0xb8] sm:$0xff]
    %v9910 = vld [vmem:[%s9885 + $0xc0] sm:$0xff]
    %v9911 = vld [vmem:[%s9885 + $0xc8] sm:$0xff]
    %v9912 = vld [vmem:[%s9885 + $0xd0] sm:$0xff]
    %v9913 = vld [vmem:[%s9885 + $0xd8] sm:$0xff]
    %v9914 = vld [vmem:[%s9885 + $0xe0] sm:$0xff]
    %v9915 = vld [vmem:[%s9885 + $0xe8] sm:$0xff]
    %v9916 = vld [vmem:[%s9885 + $0xf0] sm:$0xff]
    %v9917 = vld [vmem:[%s9885 + $0xf8] sm:$0xff]
    %s9918 = scalar_lea.vmem [#allocation4], 49
    %v9919 = vld [vmem:[%s9918] ss:$8 sm:$0x3]
    %v9921 = vlaneseq
    %v9922 = vshrl.u32 %v9921, 7
    %v9923 = vsub.s32 0, %v9922
    %v9924 = vrot.slane %v9919, %v9923
    %v9925 = vlaneseq
    %v9926 = vshrl.u32 %v9925, 7
    %v9927 = vsub.s32 1, %v9926
    %v9928 = vrot.slane %v9919, %v9927
    %v9963 = vunpack.c.l.b16 %v9886
    %v9964 = vunpack.c.h.b16 %v9886
    %v9965 = vunpack.c.l.b16 %v9887
    %v9966 = vunpack.c.h.b16 %v9887
    %v9967 = vunpack.c.l.b16 %v9888
    %v9968 = vunpack.c.h.b16 %v9888
    %v9969 = vunpack.c.l.b16 %v9889
    %v9970 = vunpack.c.h.b16 %v9889
    %v9971 = vunpack.c.l.b16 %v9890
    %v9972 = vunpack.c.h.b16 %v9890
    %v9973 = vunpack.c.l.b16 %v9891
    %v9974 = vunpack.c.h.b16 %v9891
    %v9975 = vunpack.c.l.b16 %v9892
    %v9976 = vunpack.c.h.b16 %v9892
    %v9977 = vunpack.c.l.b16 %v9893
    %v9978 = vunpack.c.h.b16 %v9893
    %v9979 = vunpack.c.l.b16 %v9894
    %v9980 = vunpack.c.h.b16 %v9894
    %v9981 = vunpack.c.l.b16 %v9895
    %v9982 = vunpack.c.h.b16 %v9895
    %v9983 = vunpack.c.l.b16 %v9896
    %v9984 = vunpack.c.h.b16 %v9896
    %v9985 = vunpack.c.l.b16 %v9897
    %v9986 = vunpack.c.h.b16 %v9897
    %v9987 = vunpack.c.l.b16 %v9898
    %v9988 = vunpack.c.h.b16 %v9898
    %v9989 = vunpack.c.l.b16 %v9899
    %v9990 = vunpack.c.h.b16 %v9899
    %v9991 = vunpack.c.l.b16 %v9900
    %v9992 = vunpack.c.h.b16 %v9900
    %v9993 = vunpack.c.l.b16 %v9901
    %v9994 = vunpack.c.h.b16 %v9901
    %v9995 = vunpack.c.l.b16 %v9902
    %v9996 = vunpack.c.h.b16 %v9902
    %v9997 = vunpack.c.l.b16 %v9903
    %v9998 = vunpack.c.h.b16 %v9903
    %v9999 = vunpack.c.l.b16 %v9904
    %v10000 = vunpack.c.h.b16 %v9904
    %v10001 = vunpack.c.l.b16 %v9905
    %v10002 = vunpack.c.h.b16 %v9905
    %v10003 = vunpack.c.l.b16 %v9906
    %v10004 = vunpack.c.h.b16 %v9906
    %v10005 = vunpack.c.l.b16 %v9907
    %v10006 = vunpack.c.h.b16 %v9907
    %v10007 = vunpack.c.l.b16 %v9908
    %v10008 = vunpack.c.h.b16 %v9908
    %v10009 = vunpack.c.l.b16 %v9909
    %v10010 = vunpack.c.h.b16 %v9909
    %v10011 = vunpack.c.l.b16 %v9910
    %v10012 = vunpack.c.h.b16 %v9910
    %v10013 = vunpack.c.l.b16 %v9911
    %v10014 = vunpack.c.h.b16 %v9911
    %v10015 = vunpack.c.l.b16 %v9912
    %v10016 = vunpack.c.h.b16 %v9912
    %v10017 = vunpack.c.l.b16 %v9913
    %v10018 = vunpack.c.h.b16 %v9913
    %v10019 = vunpack.c.l.b16 %v9914
    %v10020 = vunpack.c.h.b16 %v9914
    %v10021 = vunpack.c.l.b16 %v9915
    %v10022 = vunpack.c.h.b16 %v9915
    %v10023 = vunpack.c.l.b16 %v9916
    %v10024 = vunpack.c.h.b16 %v9916
    %v10025 = vunpack.c.l.b16 %v9917
    %v10026 = vunpack.c.h.b16 %v9917
    %v10027 = vpack.c.b16 %v9965, %v9963
    %v10028 = vpack.c.b16 %v9966, %v9964
    %v10029 = vpack.c.b16 %v9969, %v9967
    %v10030 = vpack.c.b16 %v9970, %v9968
    %v10031 = vpack.c.b16 %v9973, %v9971
    %v10032 = vpack.c.b16 %v9974, %v9972
    %v10033 = vpack.c.b16 %v9977, %v9975
    %v10034 = vpack.c.b16 %v9978, %v9976
    %v10035 = vpack.c.b16 %v9981, %v9979
    %v10036 = vpack.c.b16 %v9982, %v9980
    %v10037 = vpack.c.b16 %v9985, %v9983
    %v10038 = vpack.c.b16 %v9986, %v9984
    %v10039 = vpack.c.b16 %v9989, %v9987
    %v10040 = vpack.c.b16 %v9990, %v9988
    %v10041 = vpack.c.b16 %v9993, %v9991
    %v10042 = vpack.c.b16 %v9994, %v9992
    %v10043 = vpack.c.b16 %v9997, %v9995
    %v10044 = vpack.c.b16 %v9998, %v9996
    %v10045 = vpack.c.b16 %v10001, %v9999
    %v10046 = vpack.c.b16 %v10002, %v10000
    %v10047 = vpack.c.b16 %v10005, %v10003
    %v10048 = vpack.c.b16 %v10006, %v10004
    %v10049 = vpack.c.b16 %v10009, %v10007
    %v10050 = vpack.c.b16 %v10010, %v10008
    %v10051 = vpack.c.b16 %v10013, %v10011
    %v10052 = vpack.c.b16 %v10014, %v10012
    %v10053 = vpack.c.b16 %v10017, %v10015
    %v10054 = vpack.c.b16 %v10018, %v10016
    %v10055 = vpack.c.b16 %v10021, %v10019
    %v10056 = vpack.c.b16 %v10022, %v10020
    %v10057 = vpack.c.b16 %v10025, %v10023
    %v10058 = vpack.c.b16 %v10026, %v10024
    %10091 = vmatprep.subr.bf16.mxu0 %v10042
    %10092 = vmatpush1.bf16.msra.mxu0 %v10041
    %10093 = vmatprep.subr.bf16.mxu0 %v10040
    %10094 = vmatpush1.bf16.msra.mxu0 %v10039
    %10095 = vmatprep.subr.bf16.mxu0 %v10038
    %10096 = vmatpush1.bf16.msra.mxu0 %v10037
    %10097 = vmatprep.subr.bf16.mxu0 %v10036
    %10098 = vmatpush1.bf16.msra.mxu0 %v10035
    %10099 = vmatprep.subr.bf16.mxu0 %v10034
    %10100 = vmatpush1.bf16.msra.mxu0 %v10033
    %10101 = vmatprep.subr.bf16.mxu0 %v10032
    %10102 = vmatpush1.bf16.msra.mxu0 %v10031
    %10103 = vmatprep.subr.bf16.mxu0 %v10030
    %10104 = vmatpush1.bf16.msra.mxu0 %v10029
    %10105 = vmatprep.subr.bf16.mxu0 %v10028
    %10106 = vmatpush1.bf16.msra.mxu0 %v10027
    %10107 = vmatprep.subr.bf16.mxu0 %v10058
    %10108 = vmatpush2.bf16.msra.mxu0 %v10057
    %10109 = vmatprep.subr.bf16.mxu0 %v10056
    %10110 = vmatpush2.bf16.msra.mxu0 %v10055
    %10111 = vmatprep.subr.bf16.mxu0 %v10054
    %10112 = vmatpush2.bf16.msra.mxu0 %v10053
    %10113 = vmatprep.subr.bf16.mxu0 %v10052
    %10114 = vmatpush2.bf16.msra.mxu0 %v10051
    %10115 = vmatprep.subr.bf16.mxu0 %v10050
    %10116 = vmatpush2.bf16.msra.mxu0 %v10049
    %10117 = vmatprep.subr.bf16.mxu0 %v10048
    %10118 = vmatpush2.bf16.msra.mxu0 %v10047
    %10119 = vmatprep.subr.bf16.mxu0 %v10046
    %10120 = vmatpush2.bf16.msra.mxu0 %v10045
    %10121 = vmatprep.subr.bf16.mxu0 %v10044
    %10122 = vmatpush2.bf16.msra.mxu0 %v10043
    %10123 = vmatprep.mubr.bf16.mxu0 %v9884
    %10124 = vmatmul.mubr.bf16.gmra.mxu0 %v9883
    %v10125 = vpop.f32.mrf.mxu0
    %v10126 = vadd.f32 %v9924, %v10125
    %v10127 = vpop.f32.mrf.mxu0
    %v10128 = vadd.f32 %v9928, %v10127
    %v10129 = vpop.f32.mrf.mxu0
    %v10130 = vpop.f32.mrf.mxu0
    %10131 = vdwg.mxu0
    %v10132 = vmax.f32 %v10126, 0.0
    %v10133 = vmax.f32 %v10128, 0.0
    %v10134 = vpack.c.bf16 %v9120, %v9120
    %v10135 = vpack.c.bf16 %v9121, %v9121
    %s10136 = scalar_lea.vmem [#allocation2], 10496
    %v10137 = vld [vmem:[%s10136] sm:$0xff]
    %v10138 = vld [vmem:[%s10136 + $0x8] sm:$0xff]
    %v10139 = vld [vmem:[%s10136 + $0x10] sm:$0xff]
    %v10140 = vld [vmem:[%s10136 + $0x18] sm:$0xff]
    %v10141 = vld [vmem:[%s10136 + $0x20] sm:$0xff]
    %v10142 = vld [vmem:[%s10136 + $0x28] sm:$0xff]
    %v10143 = vld [vmem:[%s10136 + $0x30] sm:$0xff]
    %v10144 = vld [vmem:[%s10136 + $0x38] sm:$0xff]
    %v10145 = vld [vmem:[%s10136 + $0x40] sm:$0xff]
    %v10146 = vld [vmem:[%s10136 + $0x48] sm:$0xff]
    %v10147 = vld [vmem:[%s10136 + $0x50] sm:$0xff]
    %v10148 = vld [vmem:[%s10136 + $0x58] sm:$0xff]
    %v10149 = vld [vmem:[%s10136 + $0x60] sm:$0xff]
    %v10150 = vld [vmem:[%s10136 + $0x68] sm:$0xff]
    %v10151 = vld [vmem:[%s10136 + $0x70] sm:$0xff]
    %v10152 = vld [vmem:[%s10136 + $0x78] sm:$0xff]
    %v10153 = vld [vmem:[%s10136 + $0x80] sm:$0xff]
    %v10154 = vld [vmem:[%s10136 + $0x88] sm:$0xff]
    %v10155 = vld [vmem:[%s10136 + $0x90] sm:$0xff]
    %v10156 = vld [vmem:[%s10136 + $0x98] sm:$0xff]
    %v10157 = vld [vmem:[%s10136 + $0xa0] sm:$0xff]
    %v10158 = vld [vmem:[%s10136 + $0xa8] sm:$0xff]
    %v10159 = vld [vmem:[%s10136 + $0xb0] sm:$0xff]
    %v10160 = vld [vmem:[%s10136 + $0xb8] sm:$0xff]
    %v10161 = vld [vmem:[%s10136 + $0xc0] sm:$0xff]
    %v10162 = vld [vmem:[%s10136 + $0xc8] sm:$0xff]
    %v10163 = vld [vmem:[%s10136 + $0xd0] sm:$0xff]
    %v10164 = vld [vmem:[%s10136 + $0xd8] sm:$0xff]
    %v10165 = vld [vmem:[%s10136 + $0xe0] sm:$0xff]
    %v10166 = vld [vmem:[%s10136 + $0xe8] sm:$0xff]
    %v10167 = vld [vmem:[%s10136 + $0xf0] sm:$0xff]
    %v10168 = vld [vmem:[%s10136 + $0xf8] sm:$0xff]
    %s10169 = scalar_lea.vmem [#allocation4], 50
    %v10170 = vld [vmem:[%s10169] ss:$8 sm:$0x3]
    %v10172 = vlaneseq
    %v10173 = vshrl.u32 %v10172, 7
    %v10174 = vsub.s32 0, %v10173
    %v10175 = vrot.slane %v10170, %v10174
    %v10176 = vlaneseq
    %v10177 = vshrl.u32 %v10176, 7
    %v10178 = vsub.s32 1, %v10177
    %v10179 = vrot.slane %v10170, %v10178
    %v10214 = vunpack.c.l.b16 %v10137
    %v10215 = vunpack.c.h.b16 %v10137
    %v10216 = vunpack.c.l.b16 %v10138
    %v10217 = vunpack.c.h.b16 %v10138
    %v10218 = vunpack.c.l.b16 %v10139
    %v10219 = vunpack.c.h.b16 %v10139
    %v10220 = vunpack.c.l.b16 %v10140
    %v10221 = vunpack.c.h.b16 %v10140
    %v10222 = vunpack.c.l.b16 %v10141
    %v10223 = vunpack.c.h.b16 %v10141
    %v10224 = vunpack.c.l.b16 %v10142
    %v10225 = vunpack.c.h.b16 %v10142
    %v10226 = vunpack.c.l.b16 %v10143
    %v10227 = vunpack.c.h.b16 %v10143
    %v10228 = vunpack.c.l.b16 %v10144
    %v10229 = vunpack.c.h.b16 %v10144
    %v10230 = vunpack.c.l.b16 %v10145
    %v10231 = vunpack.c.h.b16 %v10145
    %v10232 = vunpack.c.l.b16 %v10146
    %v10233 = vunpack.c.h.b16 %v10146
    %v10234 = vunpack.c.l.b16 %v10147
    %v10235 = vunpack.c.h.b16 %v10147
    %v10236 = vunpack.c.l.b16 %v10148
    %v10237 = vunpack.c.h.b16 %v10148
    %v10238 = vunpack.c.l.b16 %v10149
    %v10239 = vunpack.c.h.b16 %v10149
    %v10240 = vunpack.c.l.b16 %v10150
    %v10241 = vunpack.c.h.b16 %v10150
    %v10242 = vunpack.c.l.b16 %v10151
    %v10243 = vunpack.c.h.b16 %v10151
    %v10244 = vunpack.c.l.b16 %v10152
    %v10245 = vunpack.c.h.b16 %v10152
    %v10246 = vunpack.c.l.b16 %v10153
    %v10247 = vunpack.c.h.b16 %v10153
    %v10248 = vunpack.c.l.b16 %v10154
    %v10249 = vunpack.c.h.b16 %v10154
    %v10250 = vunpack.c.l.b16 %v10155
    %v10251 = vunpack.c.h.b16 %v10155
    %v10252 = vunpack.c.l.b16 %v10156
    %v10253 = vunpack.c.h.b16 %v10156
    %v10254 = vunpack.c.l.b16 %v10157
    %v10255 = vunpack.c.h.b16 %v10157
    %v10256 = vunpack.c.l.b16 %v10158
    %v10257 = vunpack.c.h.b16 %v10158
    %v10258 = vunpack.c.l.b16 %v10159
    %v10259 = vunpack.c.h.b16 %v10159
    %v10260 = vunpack.c.l.b16 %v10160
    %v10261 = vunpack.c.h.b16 %v10160
    %v10262 = vunpack.c.l.b16 %v10161
    %v10263 = vunpack.c.h.b16 %v10161
    %v10264 = vunpack.c.l.b16 %v10162
    %v10265 = vunpack.c.h.b16 %v10162
    %v10266 = vunpack.c.l.b16 %v10163
    %v10267 = vunpack.c.h.b16 %v10163
    %v10268 = vunpack.c.l.b16 %v10164
    %v10269 = vunpack.c.h.b16 %v10164
    %v10270 = vunpack.c.l.b16 %v10165
    %v10271 = vunpack.c.h.b16 %v10165
    %v10272 = vunpack.c.l.b16 %v10166
    %v10273 = vunpack.c.h.b16 %v10166
    %v10274 = vunpack.c.l.b16 %v10167
    %v10275 = vunpack.c.h.b16 %v10167
    %v10276 = vunpack.c.l.b16 %v10168
    %v10277 = vunpack.c.h.b16 %v10168
    %v10278 = vpack.c.b16 %v10216, %v10214
    %v10279 = vpack.c.b16 %v10217, %v10215
    %v10280 = vpack.c.b16 %v10220, %v10218
    %v10281 = vpack.c.b16 %v10221, %v10219
    %v10282 = vpack.c.b16 %v10224, %v10222
    %v10283 = vpack.c.b16 %v10225, %v10223
    %v10284 = vpack.c.b16 %v10228, %v10226
    %v10285 = vpack.c.b16 %v10229, %v10227
    %v10286 = vpack.c.b16 %v10232, %v10230
    %v10287 = vpack.c.b16 %v10233, %v10231
    %v10288 = vpack.c.b16 %v10236, %v10234
    %v10289 = vpack.c.b16 %v10237, %v10235
    %v10290 = vpack.c.b16 %v10240, %v10238
    %v10291 = vpack.c.b16 %v10241, %v10239
    %v10292 = vpack.c.b16 %v10244, %v10242
    %v10293 = vpack.c.b16 %v10245, %v10243
    %v10294 = vpack.c.b16 %v10248, %v10246
    %v10295 = vpack.c.b16 %v10249, %v10247
    %v10296 = vpack.c.b16 %v10252, %v10250
    %v10297 = vpack.c.b16 %v10253, %v10251
    %v10298 = vpack.c.b16 %v10256, %v10254
    %v10299 = vpack.c.b16 %v10257, %v10255
    %v10300 = vpack.c.b16 %v10260, %v10258
    %v10301 = vpack.c.b16 %v10261, %v10259
    %v10302 = vpack.c.b16 %v10264, %v10262
    %v10303 = vpack.c.b16 %v10265, %v10263
    %v10304 = vpack.c.b16 %v10268, %v10266
    %v10305 = vpack.c.b16 %v10269, %v10267
    %v10306 = vpack.c.b16 %v10272, %v10270
    %v10307 = vpack.c.b16 %v10273, %v10271
    %v10308 = vpack.c.b16 %v10276, %v10274
    %v10309 = vpack.c.b16 %v10277, %v10275
    %10342 = vmatprep.subr.bf16.mxu0 %v10293
    %10343 = vmatpush1.bf16.msra.mxu0 %v10292
    %10344 = vmatprep.subr.bf16.mxu0 %v10291
    %10345 = vmatpush1.bf16.msra.mxu0 %v10290
    %10346 = vmatprep.subr.bf16.mxu0 %v10289
    %10347 = vmatpush1.bf16.msra.mxu0 %v10288
    %10348 = vmatprep.subr.bf16.mxu0 %v10287
    %10349 = vmatpush1.bf16.msra.mxu0 %v10286
    %10350 = vmatprep.subr.bf16.mxu0 %v10285
    %10351 = vmatpush1.bf16.msra.mxu0 %v10284
    %10352 = vmatprep.subr.bf16.mxu0 %v10283
    %10353 = vmatpush1.bf16.msra.mxu0 %v10282
    %10354 = vmatprep.subr.bf16.mxu0 %v10281
    %10355 = vmatpush1.bf16.msra.mxu0 %v10280
    %10356 = vmatprep.subr.bf16.mxu0 %v10279
    %10357 = vmatpush1.bf16.msra.mxu0 %v10278
    %10358 = vmatprep.subr.bf16.mxu0 %v10309
    %10359 = vmatpush2.bf16.msra.mxu0 %v10308
    %10360 = vmatprep.subr.bf16.mxu0 %v10307
    %10361 = vmatpush2.bf16.msra.mxu0 %v10306
    %10362 = vmatprep.subr.bf16.mxu0 %v10305
    %10363 = vmatpush2.bf16.msra.mxu0 %v10304
    %10364 = vmatprep.subr.bf16.mxu0 %v10303
    %10365 = vmatpush2.bf16.msra.mxu0 %v10302
    %10366 = vmatprep.subr.bf16.mxu0 %v10301
    %10367 = vmatpush2.bf16.msra.mxu0 %v10300
    %10368 = vmatprep.subr.bf16.mxu0 %v10299
    %10369 = vmatpush2.bf16.msra.mxu0 %v10298
    %10370 = vmatprep.subr.bf16.mxu0 %v10297
    %10371 = vmatpush2.bf16.msra.mxu0 %v10296
    %10372 = vmatprep.subr.bf16.mxu0 %v10295
    %10373 = vmatpush2.bf16.msra.mxu0 %v10294
    %10374 = vmatprep.mubr.bf16.mxu0 %v10135
    %10375 = vmatmul.mubr.bf16.gmra.mxu0 %v10134
    %v10376 = vpop.f32.mrf.mxu0
    %v10377 = vadd.f32 %v10175, %v10376
    %v10378 = vpop.f32.mrf.mxu0
    %v10379 = vadd.f32 %v10179, %v10378
    %v10380 = vpop.f32.mrf.mxu0
    %v10381 = vpop.f32.mrf.mxu0
    %10382 = vdwg.mxu0
    %v10383 = vmax.f32 %v10377, 0.0
    %v10384 = vmax.f32 %v10379, 0.0
    %v10385 = vpack.c.bf16 %v10383, %v10383
    %v10386 = vpack.c.bf16 %v10384, %v10384
    %s10387 = scalar_lea.vmem [#allocation2], 10752
    %v10388 = vld [vmem:[%s10387] sm:$0xff]
    %v10389 = vld [vmem:[%s10387 + $0x8] sm:$0xff]
    %v10390 = vld [vmem:[%s10387 + $0x10] sm:$0xff]
    %v10391 = vld [vmem:[%s10387 + $0x18] sm:$0xff]
    %v10392 = vld [vmem:[%s10387 + $0x20] sm:$0xff]
    %v10393 = vld [vmem:[%s10387 + $0x28] sm:$0xff]
    %v10394 = vld [vmem:[%s10387 + $0x30] sm:$0xff]
    %v10395 = vld [vmem:[%s10387 + $0x38] sm:$0xff]
    %v10396 = vld [vmem:[%s10387 + $0x40] sm:$0xff]
    %v10397 = vld [vmem:[%s10387 + $0x48] sm:$0xff]
    %v10398 = vld [vmem:[%s10387 + $0x50] sm:$0xff]
    %v10399 = vld [vmem:[%s10387 + $0x58] sm:$0xff]
    %v10400 = vld [vmem:[%s10387 + $0x60] sm:$0xff]
    %v10401 = vld [vmem:[%s10387 + $0x68] sm:$0xff]
    %v10402 = vld [vmem:[%s10387 + $0x70] sm:$0xff]
    %v10403 = vld [vmem:[%s10387 + $0x78] sm:$0xff]
    %v10404 = vld [vmem:[%s10387 + $0x80] sm:$0xff]
    %v10405 = vld [vmem:[%s10387 + $0x88] sm:$0xff]
    %v10406 = vld [vmem:[%s10387 + $0x90] sm:$0xff]
    %v10407 = vld [vmem:[%s10387 + $0x98] sm:$0xff]
    %v10408 = vld [vmem:[%s10387 + $0xa0] sm:$0xff]
    %v10409 = vld [vmem:[%s10387 + $0xa8] sm:$0xff]
    %v10410 = vld [vmem:[%s10387 + $0xb0] sm:$0xff]
    %v10411 = vld [vmem:[%s10387 + $0xb8] sm:$0xff]
    %v10412 = vld [vmem:[%s10387 + $0xc0] sm:$0xff]
    %v10413 = vld [vmem:[%s10387 + $0xc8] sm:$0xff]
    %v10414 = vld [vmem:[%s10387 + $0xd0] sm:$0xff]
    %v10415 = vld [vmem:[%s10387 + $0xd8] sm:$0xff]
    %v10416 = vld [vmem:[%s10387 + $0xe0] sm:$0xff]
    %v10417 = vld [vmem:[%s10387 + $0xe8] sm:$0xff]
    %v10418 = vld [vmem:[%s10387 + $0xf0] sm:$0xff]
    %v10419 = vld [vmem:[%s10387 + $0xf8] sm:$0xff]
    %s10420 = scalar_lea.vmem [#allocation4], 51
    %v10421 = vld [vmem:[%s10420] ss:$8 sm:$0x3]
    %v10423 = vlaneseq
    %v10424 = vshrl.u32 %v10423, 7
    %v10425 = vsub.s32 0, %v10424
    %v10426 = vrot.slane %v10421, %v10425
    %v10427 = vlaneseq
    %v10428 = vshrl.u32 %v10427, 7
    %v10429 = vsub.s32 1, %v10428
    %v10430 = vrot.slane %v10421, %v10429
    %v10465 = vunpack.c.l.b16 %v10388
    %v10466 = vunpack.c.h.b16 %v10388
    %v10467 = vunpack.c.l.b16 %v10389
    %v10468 = vunpack.c.h.b16 %v10389
    %v10469 = vunpack.c.l.b16 %v10390
    %v10470 = vunpack.c.h.b16 %v10390
    %v10471 = vunpack.c.l.b16 %v10391
    %v10472 = vunpack.c.h.b16 %v10391
    %v10473 = vunpack.c.l.b16 %v10392
    %v10474 = vunpack.c.h.b16 %v10392
    %v10475 = vunpack.c.l.b16 %v10393
    %v10476 = vunpack.c.h.b16 %v10393
    %v10477 = vunpack.c.l.b16 %v10394
    %v10478 = vunpack.c.h.b16 %v10394
    %v10479 = vunpack.c.l.b16 %v10395
    %v10480 = vunpack.c.h.b16 %v10395
    %v10481 = vunpack.c.l.b16 %v10396
    %v10482 = vunpack.c.h.b16 %v10396
    %v10483 = vunpack.c.l.b16 %v10397
    %v10484 = vunpack.c.h.b16 %v10397
    %v10485 = vunpack.c.l.b16 %v10398
    %v10486 = vunpack.c.h.b16 %v10398
    %v10487 = vunpack.c.l.b16 %v10399
    %v10488 = vunpack.c.h.b16 %v10399
    %v10489 = vunpack.c.l.b16 %v10400
    %v10490 = vunpack.c.h.b16 %v10400
    %v10491 = vunpack.c.l.b16 %v10401
    %v10492 = vunpack.c.h.b16 %v10401
    %v10493 = vunpack.c.l.b16 %v10402
    %v10494 = vunpack.c.h.b16 %v10402
    %v10495 = vunpack.c.l.b16 %v10403
    %v10496 = vunpack.c.h.b16 %v10403
    %v10497 = vunpack.c.l.b16 %v10404
    %v10498 = vunpack.c.h.b16 %v10404
    %v10499 = vunpack.c.l.b16 %v10405
    %v10500 = vunpack.c.h.b16 %v10405
    %v10501 = vunpack.c.l.b16 %v10406
    %v10502 = vunpack.c.h.b16 %v10406
    %v10503 = vunpack.c.l.b16 %v10407
    %v10504 = vunpack.c.h.b16 %v10407
    %v10505 = vunpack.c.l.b16 %v10408
    %v10506 = vunpack.c.h.b16 %v10408
    %v10507 = vunpack.c.l.b16 %v10409
    %v10508 = vunpack.c.h.b16 %v10409
    %v10509 = vunpack.c.l.b16 %v10410
    %v10510 = vunpack.c.h.b16 %v10410
    %v10511 = vunpack.c.l.b16 %v10411
    %v10512 = vunpack.c.h.b16 %v10411
    %v10513 = vunpack.c.l.b16 %v10412
    %v10514 = vunpack.c.h.b16 %v10412
    %v10515 = vunpack.c.l.b16 %v10413
    %v10516 = vunpack.c.h.b16 %v10413
    %v10517 = vunpack.c.l.b16 %v10414
    %v10518 = vunpack.c.h.b16 %v10414
    %v10519 = vunpack.c.l.b16 %v10415
    %v10520 = vunpack.c.h.b16 %v10415
    %v10521 = vunpack.c.l.b16 %v10416
    %v10522 = vunpack.c.h.b16 %v10416
    %v10523 = vunpack.c.l.b16 %v10417
    %v10524 = vunpack.c.h.b16 %v10417
    %v10525 = vunpack.c.l.b16 %v10418
    %v10526 = vunpack.c.h.b16 %v10418
    %v10527 = vunpack.c.l.b16 %v10419
    %v10528 = vunpack.c.h.b16 %v10419
    %v10529 = vpack.c.b16 %v10467, %v10465
    %v10530 = vpack.c.b16 %v10468, %v10466
    %v10531 = vpack.c.b16 %v10471, %v10469
    %v10532 = vpack.c.b16 %v10472, %v10470
    %v10533 = vpack.c.b16 %v10475, %v10473
    %v10534 = vpack.c.b16 %v10476, %v10474
    %v10535 = vpack.c.b16 %v10479, %v10477
    %v10536 = vpack.c.b16 %v10480, %v10478
    %v10537 = vpack.c.b16 %v10483, %v10481
    %v10538 = vpack.c.b16 %v10484, %v10482
    %v10539 = vpack.c.b16 %v10487, %v10485
    %v10540 = vpack.c.b16 %v10488, %v10486
    %v10541 = vpack.c.b16 %v10491, %v10489
    %v10542 = vpack.c.b16 %v10492, %v10490
    %v10543 = vpack.c.b16 %v10495, %v10493
    %v10544 = vpack.c.b16 %v10496, %v10494
    %v10545 = vpack.c.b16 %v10499, %v10497
    %v10546 = vpack.c.b16 %v10500, %v10498
    %v10547 = vpack.c.b16 %v10503, %v10501
    %v10548 = vpack.c.b16 %v10504, %v10502
    %v10549 = vpack.c.b16 %v10507, %v10505
    %v10550 = vpack.c.b16 %v10508, %v10506
    %v10551 = vpack.c.b16 %v10511, %v10509
    %v10552 = vpack.c.b16 %v10512, %v10510
    %v10553 = vpack.c.b16 %v10515, %v10513
    %v10554 = vpack.c.b16 %v10516, %v10514
    %v10555 = vpack.c.b16 %v10519, %v10517
    %v10556 = vpack.c.b16 %v10520, %v10518
    %v10557 = vpack.c.b16 %v10523, %v10521
    %v10558 = vpack.c.b16 %v10524, %v10522
    %v10559 = vpack.c.b16 %v10527, %v10525
    %v10560 = vpack.c.b16 %v10528, %v10526
    %10593 = vmatprep.subr.bf16.mxu0 %v10544
    %10594 = vmatpush1.bf16.msra.mxu0 %v10543
    %10595 = vmatprep.subr.bf16.mxu0 %v10542
    %10596 = vmatpush1.bf16.msra.mxu0 %v10541
    %10597 = vmatprep.subr.bf16.mxu0 %v10540
    %10598 = vmatpush1.bf16.msra.mxu0 %v10539
    %10599 = vmatprep.subr.bf16.mxu0 %v10538
    %10600 = vmatpush1.bf16.msra.mxu0 %v10537
    %10601 = vmatprep.subr.bf16.mxu0 %v10536
    %10602 = vmatpush1.bf16.msra.mxu0 %v10535
    %10603 = vmatprep.subr.bf16.mxu0 %v10534
    %10604 = vmatpush1.bf16.msra.mxu0 %v10533
    %10605 = vmatprep.subr.bf16.mxu0 %v10532
    %10606 = vmatpush1.bf16.msra.mxu0 %v10531
    %10607 = vmatprep.subr.bf16.mxu0 %v10530
    %10608 = vmatpush1.bf16.msra.mxu0 %v10529
    %10609 = vmatprep.subr.bf16.mxu0 %v10560
    %10610 = vmatpush2.bf16.msra.mxu0 %v10559
    %10611 = vmatprep.subr.bf16.mxu0 %v10558
    %10612 = vmatpush2.bf16.msra.mxu0 %v10557
    %10613 = vmatprep.subr.bf16.mxu0 %v10556
    %10614 = vmatpush2.bf16.msra.mxu0 %v10555
    %10615 = vmatprep.subr.bf16.mxu0 %v10554
    %10616 = vmatpush2.bf16.msra.mxu0 %v10553
    %10617 = vmatprep.subr.bf16.mxu0 %v10552
    %10618 = vmatpush2.bf16.msra.mxu0 %v10551
    %10619 = vmatprep.subr.bf16.mxu0 %v10550
    %10620 = vmatpush2.bf16.msra.mxu0 %v10549
    %10621 = vmatprep.subr.bf16.mxu0 %v10548
    %10622 = vmatpush2.bf16.msra.mxu0 %v10547
    %10623 = vmatprep.subr.bf16.mxu0 %v10546
    %10624 = vmatpush2.bf16.msra.mxu0 %v10545
    %10625 = vmatprep.mubr.bf16.mxu0 %v10386
    %10626 = vmatmul.mubr.bf16.gmra.mxu0 %v10385
    %v10627 = vpop.f32.mrf.mxu0
    %v10628 = vadd.f32 %v10426, %v10627
    %v10629 = vpop.f32.mrf.mxu0
    %v10630 = vadd.f32 %v10430, %v10629
    %v10631 = vpop.f32.mrf.mxu0
    %v10632 = vpop.f32.mrf.mxu0
    %10633 = vdwg.mxu0
    %v10634 = vxor.u32 %v10628, 2147483648
    %v10635 = vxor.u32 %v10630, 2147483648
    %v10636 = vmul.f32 %v10634, 1.442695
    %v10637 = vpow.pop %v10636
    %v10638 = vmul.f32 %v10635, 1.442695
    %v10639 = vpow.pop %v10638
    %v10640 = vadd.f32 %v10637, 1.0
    %v10641 = vadd.f32 %v10639, 1.0
    %v10642 = vrcp.pop %v10640
    %v10643 = vmul.f32 1.0, %v10642
    %v10644 = vrcp.pop %v10641
    %v10645 = vmul.f32 1.0, %v10644
    %v10646 = vpack.c.bf16 %v10643, %v10643
    %v10647 = vpack.c.bf16 %v10645, %v10645
    %s10648 = scalar_lea.vmem [#allocation2], 11008
    %v10649 = vld [vmem:[%s10648] sm:$0xff]
    %v10650 = vld [vmem:[%s10648 + $0x8] sm:$0xff]
    %v10651 = vld [vmem:[%s10648 + $0x10] sm:$0xff]
    %v10652 = vld [vmem:[%s10648 + $0x18] sm:$0xff]
    %v10653 = vld [vmem:[%s10648 + $0x20] sm:$0xff]
    %v10654 = vld [vmem:[%s10648 + $0x28] sm:$0xff]
    %v10655 = vld [vmem:[%s10648 + $0x30] sm:$0xff]
    %v10656 = vld [vmem:[%s10648 + $0x38] sm:$0xff]
    %v10657 = vld [vmem:[%s10648 + $0x40] sm:$0xff]
    %v10658 = vld [vmem:[%s10648 + $0x48] sm:$0xff]
    %v10659 = vld [vmem:[%s10648 + $0x50] sm:$0xff]
    %v10660 = vld [vmem:[%s10648 + $0x58] sm:$0xff]
    %v10661 = vld [vmem:[%s10648 + $0x60] sm:$0xff]
    %v10662 = vld [vmem:[%s10648 + $0x68] sm:$0xff]
    %v10663 = vld [vmem:[%s10648 + $0x70] sm:$0xff]
    %v10664 = vld [vmem:[%s10648 + $0x78] sm:$0xff]
    %v10665 = vld [vmem:[%s10648 + $0x80] sm:$0xff]
    %v10666 = vld [vmem:[%s10648 + $0x88] sm:$0xff]
    %v10667 = vld [vmem:[%s10648 + $0x90] sm:$0xff]
    %v10668 = vld [vmem:[%s10648 + $0x98] sm:$0xff]
    %v10669 = vld [vmem:[%s10648 + $0xa0] sm:$0xff]
    %v10670 = vld [vmem:[%s10648 + $0xa8] sm:$0xff]
    %v10671 = vld [vmem:[%s10648 + $0xb0] sm:$0xff]
    %v10672 = vld [vmem:[%s10648 + $0xb8] sm:$0xff]
    %v10673 = vld [vmem:[%s10648 + $0xc0] sm:$0xff]
    %v10674 = vld [vmem:[%s10648 + $0xc8] sm:$0xff]
    %v10675 = vld [vmem:[%s10648 + $0xd0] sm:$0xff]
    %v10676 = vld [vmem:[%s10648 + $0xd8] sm:$0xff]
    %v10677 = vld [vmem:[%s10648 + $0xe0] sm:$0xff]
    %v10678 = vld [vmem:[%s10648 + $0xe8] sm:$0xff]
    %v10679 = vld [vmem:[%s10648 + $0xf0] sm:$0xff]
    %v10680 = vld [vmem:[%s10648 + $0xf8] sm:$0xff]
    %s10681 = scalar_lea.vmem [#allocation4], 52
    %v10682 = vld [vmem:[%s10681] ss:$8 sm:$0x3]
    %v10684 = vlaneseq
    %v10685 = vshrl.u32 %v10684, 7
    %v10686 = vsub.s32 0, %v10685
    %v10687 = vrot.slane %v10682, %v10686
    %v10688 = vlaneseq
    %v10689 = vshrl.u32 %v10688, 7
    %v10690 = vsub.s32 1, %v10689
    %v10691 = vrot.slane %v10682, %v10690
    %v10726 = vunpack.c.l.b16 %v10649
    %v10727 = vunpack.c.h.b16 %v10649
    %v10728 = vunpack.c.l.b16 %v10650
    %v10729 = vunpack.c.h.b16 %v10650
    %v10730 = vunpack.c.l.b16 %v10651
    %v10731 = vunpack.c.h.b16 %v10651
    %v10732 = vunpack.c.l.b16 %v10652
    %v10733 = vunpack.c.h.b16 %v10652
    %v10734 = vunpack.c.l.b16 %v10653
    %v10735 = vunpack.c.h.b16 %v10653
    %v10736 = vunpack.c.l.b16 %v10654
    %v10737 = vunpack.c.h.b16 %v10654
    %v10738 = vunpack.c.l.b16 %v10655
    %v10739 = vunpack.c.h.b16 %v10655
    %v10740 = vunpack.c.l.b16 %v10656
    %v10741 = vunpack.c.h.b16 %v10656
    %v10742 = vunpack.c.l.b16 %v10657
    %v10743 = vunpack.c.h.b16 %v10657
    %v10744 = vunpack.c.l.b16 %v10658
    %v10745 = vunpack.c.h.b16 %v10658
    %v10746 = vunpack.c.l.b16 %v10659
    %v10747 = vunpack.c.h.b16 %v10659
    %v10748 = vunpack.c.l.b16 %v10660
    %v10749 = vunpack.c.h.b16 %v10660
    %v10750 = vunpack.c.l.b16 %v10661
    %v10751 = vunpack.c.h.b16 %v10661
    %v10752 = vunpack.c.l.b16 %v10662
    %v10753 = vunpack.c.h.b16 %v10662
    %v10754 = vunpack.c.l.b16 %v10663
    %v10755 = vunpack.c.h.b16 %v10663
    %v10756 = vunpack.c.l.b16 %v10664
    %v10757 = vunpack.c.h.b16 %v10664
    %v10758 = vunpack.c.l.b16 %v10665
    %v10759 = vunpack.c.h.b16 %v10665
    %v10760 = vunpack.c.l.b16 %v10666
    %v10761 = vunpack.c.h.b16 %v10666
    %v10762 = vunpack.c.l.b16 %v10667
    %v10763 = vunpack.c.h.b16 %v10667
    %v10764 = vunpack.c.l.b16 %v10668
    %v10765 = vunpack.c.h.b16 %v10668
    %v10766 = vunpack.c.l.b16 %v10669
    %v10767 = vunpack.c.h.b16 %v10669
    %v10768 = vunpack.c.l.b16 %v10670
    %v10769 = vunpack.c.h.b16 %v10670
    %v10770 = vunpack.c.l.b16 %v10671
    %v10771 = vunpack.c.h.b16 %v10671
    %v10772 = vunpack.c.l.b16 %v10672
    %v10773 = vunpack.c.h.b16 %v10672
    %v10774 = vunpack.c.l.b16 %v10673
    %v10775 = vunpack.c.h.b16 %v10673
    %v10776 = vunpack.c.l.b16 %v10674
    %v10777 = vunpack.c.h.b16 %v10674
    %v10778 = vunpack.c.l.b16 %v10675
    %v10779 = vunpack.c.h.b16 %v10675
    %v10780 = vunpack.c.l.b16 %v10676
    %v10781 = vunpack.c.h.b16 %v10676
    %v10782 = vunpack.c.l.b16 %v10677
    %v10783 = vunpack.c.h.b16 %v10677
    %v10784 = vunpack.c.l.b16 %v10678
    %v10785 = vunpack.c.h.b16 %v10678
    %v10786 = vunpack.c.l.b16 %v10679
    %v10787 = vunpack.c.h.b16 %v10679
    %v10788 = vunpack.c.l.b16 %v10680
    %v10789 = vunpack.c.h.b16 %v10680
    %v10790 = vpack.c.b16 %v10728, %v10726
    %v10791 = vpack.c.b16 %v10729, %v10727
    %v10792 = vpack.c.b16 %v10732, %v10730
    %v10793 = vpack.c.b16 %v10733, %v10731
    %v10794 = vpack.c.b16 %v10736, %v10734
    %v10795 = vpack.c.b16 %v10737, %v10735
    %v10796 = vpack.c.b16 %v10740, %v10738
    %v10797 = vpack.c.b16 %v10741, %v10739
    %v10798 = vpack.c.b16 %v10744, %v10742
    %v10799 = vpack.c.b16 %v10745, %v10743
    %v10800 = vpack.c.b16 %v10748, %v10746
    %v10801 = vpack.c.b16 %v10749, %v10747
    %v10802 = vpack.c.b16 %v10752, %v10750
    %v10803 = vpack.c.b16 %v10753, %v10751
    %v10804 = vpack.c.b16 %v10756, %v10754
    %v10805 = vpack.c.b16 %v10757, %v10755
    %v10806 = vpack.c.b16 %v10760, %v10758
    %v10807 = vpack.c.b16 %v10761, %v10759
    %v10808 = vpack.c.b16 %v10764, %v10762
    %v10809 = vpack.c.b16 %v10765, %v10763
    %v10810 = vpack.c.b16 %v10768, %v10766
    %v10811 = vpack.c.b16 %v10769, %v10767
    %v10812 = vpack.c.b16 %v10772, %v10770
    %v10813 = vpack.c.b16 %v10773, %v10771
    %v10814 = vpack.c.b16 %v10776, %v10774
    %v10815 = vpack.c.b16 %v10777, %v10775
    %v10816 = vpack.c.b16 %v10780, %v10778
    %v10817 = vpack.c.b16 %v10781, %v10779
    %v10818 = vpack.c.b16 %v10784, %v10782
    %v10819 = vpack.c.b16 %v10785, %v10783
    %v10820 = vpack.c.b16 %v10788, %v10786
    %v10821 = vpack.c.b16 %v10789, %v10787
    %10854 = vmatprep.subr.bf16.mxu0 %v10805
    %10855 = vmatpush1.bf16.msra.mxu0 %v10804
    %10856 = vmatprep.subr.bf16.mxu0 %v10803
    %10857 = vmatpush1.bf16.msra.mxu0 %v10802
    %10858 = vmatprep.subr.bf16.mxu0 %v10801
    %10859 = vmatpush1.bf16.msra.mxu0 %v10800
    %10860 = vmatprep.subr.bf16.mxu0 %v10799
    %10861 = vmatpush1.bf16.msra.mxu0 %v10798
    %10862 = vmatprep.subr.bf16.mxu0 %v10797
    %10863 = vmatpush1.bf16.msra.mxu0 %v10796
    %10864 = vmatprep.subr.bf16.mxu0 %v10795
    %10865 = vmatpush1.bf16.msra.mxu0 %v10794
    %10866 = vmatprep.subr.bf16.mxu0 %v10793
    %10867 = vmatpush1.bf16.msra.mxu0 %v10792
    %10868 = vmatprep.subr.bf16.mxu0 %v10791
    %10869 = vmatpush1.bf16.msra.mxu0 %v10790
    %10870 = vmatprep.subr.bf16.mxu0 %v10821
    %10871 = vmatpush2.bf16.msra.mxu0 %v10820
    %10872 = vmatprep.subr.bf16.mxu0 %v10819
    %10873 = vmatpush2.bf16.msra.mxu0 %v10818
    %10874 = vmatprep.subr.bf16.mxu0 %v10817
    %10875 = vmatpush2.bf16.msra.mxu0 %v10816
    %10876 = vmatprep.subr.bf16.mxu0 %v10815
    %10877 = vmatpush2.bf16.msra.mxu0 %v10814
    %10878 = vmatprep.subr.bf16.mxu0 %v10813
    %10879 = vmatpush2.bf16.msra.mxu0 %v10812
    %10880 = vmatprep.subr.bf16.mxu0 %v10811
    %10881 = vmatpush2.bf16.msra.mxu0 %v10810
    %10882 = vmatprep.subr.bf16.mxu0 %v10809
    %10883 = vmatpush2.bf16.msra.mxu0 %v10808
    %10884 = vmatprep.subr.bf16.mxu0 %v10807
    %10885 = vmatpush2.bf16.msra.mxu0 %v10806
    %10886 = vmatprep.mubr.bf16.mxu0 %v10647
    %10887 = vmatmul.mubr.bf16.gmra.mxu0 %v10646
    %v10888 = vpop.f32.mrf.mxu0
    %v10889 = vadd.f32 %v10687, %v10888
    %v10890 = vpop.f32.mrf.mxu0
    %v10891 = vadd.f32 %v10691, %v10890
    %v10892 = vpop.f32.mrf.mxu0
    %v10893 = vpop.f32.mrf.mxu0
    %10894 = vdwg.mxu0
    %v10895 = vmax.f32 %v10889, 0.0
    %v10896 = vmax.f32 %v10891, 0.0
    %v10897 = vpack.c.bf16 %v10895, %v10895
    %v10898 = vpack.c.bf16 %v10896, %v10896
    %s10899 = scalar_lea.vmem [#allocation2], 11264
    %v10900 = vld [vmem:[%s10899] sm:$0xff]
    %v10901 = vld [vmem:[%s10899 + $0x8] sm:$0xff]
    %v10902 = vld [vmem:[%s10899 + $0x10] sm:$0xff]
    %v10903 = vld [vmem:[%s10899 + $0x18] sm:$0xff]
    %v10904 = vld [vmem:[%s10899 + $0x20] sm:$0xff]
    %v10905 = vld [vmem:[%s10899 + $0x28] sm:$0xff]
    %v10906 = vld [vmem:[%s10899 + $0x30] sm:$0xff]
    %v10907 = vld [vmem:[%s10899 + $0x38] sm:$0xff]
    %v10908 = vld [vmem:[%s10899 + $0x40] sm:$0xff]
    %v10909 = vld [vmem:[%s10899 + $0x48] sm:$0xff]
    %v10910 = vld [vmem:[%s10899 + $0x50] sm:$0xff]
    %v10911 = vld [vmem:[%s10899 + $0x58] sm:$0xff]
    %v10912 = vld [vmem:[%s10899 + $0x60] sm:$0xff]
    %v10913 = vld [vmem:[%s10899 + $0x68] sm:$0xff]
    %v10914 = vld [vmem:[%s10899 + $0x70] sm:$0xff]
    %v10915 = vld [vmem:[%s10899 + $0x78] sm:$0xff]
    %v10916 = vld [vmem:[%s10899 + $0x80] sm:$0xff]
    %v10917 = vld [vmem:[%s10899 + $0x88] sm:$0xff]
    %v10918 = vld [vmem:[%s10899 + $0x90] sm:$0xff]
    %v10919 = vld [vmem:[%s10899 + $0x98] sm:$0xff]
    %v10920 = vld [vmem:[%s10899 + $0xa0] sm:$0xff]
    %v10921 = vld [vmem:[%s10899 + $0xa8] sm:$0xff]
    %v10922 = vld [vmem:[%s10899 + $0xb0] sm:$0xff]
    %v10923 = vld [vmem:[%s10899 + $0xb8] sm:$0xff]
    %v10924 = vld [vmem:[%s10899 + $0xc0] sm:$0xff]
    %v10925 = vld [vmem:[%s10899 + $0xc8] sm:$0xff]
    %v10926 = vld [vmem:[%s10899 + $0xd0] sm:$0xff]
    %v10927 = vld [vmem:[%s10899 + $0xd8] sm:$0xff]
    %v10928 = vld [vmem:[%s10899 + $0xe0] sm:$0xff]
    %v10929 = vld [vmem:[%s10899 + $0xe8] sm:$0xff]
    %v10930 = vld [vmem:[%s10899 + $0xf0] sm:$0xff]
    %v10931 = vld [vmem:[%s10899 + $0xf8] sm:$0xff]
    %s10932 = scalar_lea.vmem [#allocation4], 53
    %v10933 = vld [vmem:[%s10932] ss:$8 sm:$0x3]
    %v10935 = vlaneseq
    %v10936 = vshrl.u32 %v10935, 7
    %v10937 = vsub.s32 0, %v10936
    %v10938 = vrot.slane %v10933, %v10937
    %v10939 = vlaneseq
    %v10940 = vshrl.u32 %v10939, 7
    %v10941 = vsub.s32 1, %v10940
    %v10942 = vrot.slane %v10933, %v10941
    %v10977 = vunpack.c.l.b16 %v10900
    %v10978 = vunpack.c.h.b16 %v10900
    %v10979 = vunpack.c.l.b16 %v10901
    %v10980 = vunpack.c.h.b16 %v10901
    %v10981 = vunpack.c.l.b16 %v10902
    %v10982 = vunpack.c.h.b16 %v10902
    %v10983 = vunpack.c.l.b16 %v10903
    %v10984 = vunpack.c.h.b16 %v10903
    %v10985 = vunpack.c.l.b16 %v10904
    %v10986 = vunpack.c.h.b16 %v10904
    %v10987 = vunpack.c.l.b16 %v10905
    %v10988 = vunpack.c.h.b16 %v10905
    %v10989 = vunpack.c.l.b16 %v10906
    %v10990 = vunpack.c.h.b16 %v10906
    %v10991 = vunpack.c.l.b16 %v10907
    %v10992 = vunpack.c.h.b16 %v10907
    %v10993 = vunpack.c.l.b16 %v10908
    %v10994 = vunpack.c.h.b16 %v10908
    %v10995 = vunpack.c.l.b16 %v10909
    %v10996 = vunpack.c.h.b16 %v10909
    %v10997 = vunpack.c.l.b16 %v10910
    %v10998 = vunpack.c.h.b16 %v10910
    %v10999 = vunpack.c.l.b16 %v10911
    %v11000 = vunpack.c.h.b16 %v10911
    %v11001 = vunpack.c.l.b16 %v10912
    %v11002 = vunpack.c.h.b16 %v10912
    %v11003 = vunpack.c.l.b16 %v10913
    %v11004 = vunpack.c.h.b16 %v10913
    %v11005 = vunpack.c.l.b16 %v10914
    %v11006 = vunpack.c.h.b16 %v10914
    %v11007 = vunpack.c.l.b16 %v10915
    %v11008 = vunpack.c.h.b16 %v10915
    %v11009 = vunpack.c.l.b16 %v10916
    %v11010 = vunpack.c.h.b16 %v10916
    %v11011 = vunpack.c.l.b16 %v10917
    %v11012 = vunpack.c.h.b16 %v10917
    %v11013 = vunpack.c.l.b16 %v10918
    %v11014 = vunpack.c.h.b16 %v10918
    %v11015 = vunpack.c.l.b16 %v10919
    %v11016 = vunpack.c.h.b16 %v10919
    %v11017 = vunpack.c.l.b16 %v10920
    %v11018 = vunpack.c.h.b16 %v10920
    %v11019 = vunpack.c.l.b16 %v10921
    %v11020 = vunpack.c.h.b16 %v10921
    %v11021 = vunpack.c.l.b16 %v10922
    %v11022 = vunpack.c.h.b16 %v10922
    %v11023 = vunpack.c.l.b16 %v10923
    %v11024 = vunpack.c.h.b16 %v10923
    %v11025 = vunpack.c.l.b16 %v10924
    %v11026 = vunpack.c.h.b16 %v10924
    %v11027 = vunpack.c.l.b16 %v10925
    %v11028 = vunpack.c.h.b16 %v10925
    %v11029 = vunpack.c.l.b16 %v10926
    %v11030 = vunpack.c.h.b16 %v10926
    %v11031 = vunpack.c.l.b16 %v10927
    %v11032 = vunpack.c.h.b16 %v10927
    %v11033 = vunpack.c.l.b16 %v10928
    %v11034 = vunpack.c.h.b16 %v10928
    %v11035 = vunpack.c.l.b16 %v10929
    %v11036 = vunpack.c.h.b16 %v10929
    %v11037 = vunpack.c.l.b16 %v10930
    %v11038 = vunpack.c.h.b16 %v10930
    %v11039 = vunpack.c.l.b16 %v10931
    %v11040 = vunpack.c.h.b16 %v10931
    %v11041 = vpack.c.b16 %v10979, %v10977
    %v11042 = vpack.c.b16 %v10980, %v10978
    %v11043 = vpack.c.b16 %v10983, %v10981
    %v11044 = vpack.c.b16 %v10984, %v10982
    %v11045 = vpack.c.b16 %v10987, %v10985
    %v11046 = vpack.c.b16 %v10988, %v10986
    %v11047 = vpack.c.b16 %v10991, %v10989
    %v11048 = vpack.c.b16 %v10992, %v10990
    %v11049 = vpack.c.b16 %v10995, %v10993
    %v11050 = vpack.c.b16 %v10996, %v10994
    %v11051 = vpack.c.b16 %v10999, %v10997
    %v11052 = vpack.c.b16 %v11000, %v10998
    %v11053 = vpack.c.b16 %v11003, %v11001
    %v11054 = vpack.c.b16 %v11004, %v11002
    %v11055 = vpack.c.b16 %v11007, %v11005
    %v11056 = vpack.c.b16 %v11008, %v11006
    %v11057 = vpack.c.b16 %v11011, %v11009
    %v11058 = vpack.c.b16 %v11012, %v11010
    %v11059 = vpack.c.b16 %v11015, %v11013
    %v11060 = vpack.c.b16 %v11016, %v11014
    %v11061 = vpack.c.b16 %v11019, %v11017
    %v11062 = vpack.c.b16 %v11020, %v11018
    %v11063 = vpack.c.b16 %v11023, %v11021
    %v11064 = vpack.c.b16 %v11024, %v11022
    %v11065 = vpack.c.b16 %v11027, %v11025
    %v11066 = vpack.c.b16 %v11028, %v11026
    %v11067 = vpack.c.b16 %v11031, %v11029
    %v11068 = vpack.c.b16 %v11032, %v11030
    %v11069 = vpack.c.b16 %v11035, %v11033
    %v11070 = vpack.c.b16 %v11036, %v11034
    %v11071 = vpack.c.b16 %v11039, %v11037
    %v11072 = vpack.c.b16 %v11040, %v11038
    %11105 = vmatprep.subr.bf16.mxu0 %v11056
    %11106 = vmatpush1.bf16.msra.mxu0 %v11055
    %11107 = vmatprep.subr.bf16.mxu0 %v11054
    %11108 = vmatpush1.bf16.msra.mxu0 %v11053
    %11109 = vmatprep.subr.bf16.mxu0 %v11052
    %11110 = vmatpush1.bf16.msra.mxu0 %v11051
    %11111 = vmatprep.subr.bf16.mxu0 %v11050
    %11112 = vmatpush1.bf16.msra.mxu0 %v11049
    %11113 = vmatprep.subr.bf16.mxu0 %v11048
    %11114 = vmatpush1.bf16.msra.mxu0 %v11047
    %11115 = vmatprep.subr.bf16.mxu0 %v11046
    %11116 = vmatpush1.bf16.msra.mxu0 %v11045
    %11117 = vmatprep.subr.bf16.mxu0 %v11044
    %11118 = vmatpush1.bf16.msra.mxu0 %v11043
    %11119 = vmatprep.subr.bf16.mxu0 %v11042
    %11120 = vmatpush1.bf16.msra.mxu0 %v11041
    %11121 = vmatprep.subr.bf16.mxu0 %v11072
    %11122 = vmatpush2.bf16.msra.mxu0 %v11071
    %11123 = vmatprep.subr.bf16.mxu0 %v11070
    %11124 = vmatpush2.bf16.msra.mxu0 %v11069
    %11125 = vmatprep.subr.bf16.mxu0 %v11068
    %11126 = vmatpush2.bf16.msra.mxu0 %v11067
    %11127 = vmatprep.subr.bf16.mxu0 %v11066
    %11128 = vmatpush2.bf16.msra.mxu0 %v11065
    %11129 = vmatprep.subr.bf16.mxu0 %v11064
    %11130 = vmatpush2.bf16.msra.mxu0 %v11063
    %11131 = vmatprep.subr.bf16.mxu0 %v11062
    %11132 = vmatpush2.bf16.msra.mxu0 %v11061
    %11133 = vmatprep.subr.bf16.mxu0 %v11060
    %11134 = vmatpush2.bf16.msra.mxu0 %v11059
    %11135 = vmatprep.subr.bf16.mxu0 %v11058
    %11136 = vmatpush2.bf16.msra.mxu0 %v11057
    %11137 = vmatprep.mubr.bf16.mxu0 %v10898
    %11138 = vmatmul.mubr.bf16.gmra.mxu0 %v10897
    %v11139 = vpop.f32.mrf.mxu0
    %v11140 = vadd.f32 %v10938, %v11139
    %v11141 = vpop.f32.mrf.mxu0
    %v11142 = vadd.f32 %v10942, %v11141
    %v11143 = vpop.f32.mrf.mxu0
    %v11144 = vpop.f32.mrf.mxu0
    %11145 = vdwg.mxu0
    %11146 = vst [vmem:[%s5] sm:$0xff] %v9631
    %11147 = vst [vmem:[%s5 + $0x8] sm:$0xff] %v9633
    %11148 = vst [vmem:[%s6] sm:$0xff] %v10643
    %11149 = vst [vmem:[%s6 + $0x8] sm:$0xff] %v10645
    %11150 = vst [vmem:[%s7] sm:$0xff] %v10132
    %11151 = vst [vmem:[%s7 + $0x8] sm:$0xff] %v10133
    %11152 = vst [vmem:[%s8] sm:$0xff] %v11140
    %11153 = vst [vmem:[%s8 + $0x8] sm:$0xff] %v11142
    // Predicated region
    $region30: #{cgg_mlp_forward.1} parent=1 // pred_check
      _
    $region31: #{cgg_mlp_forward.1} parent=1 // pred_check_branch
      %11155 = sbr.rel (0) target = $region33
    $region32: #{cgg_mlp_forward.1} parent=1 // pred_region
      _
    $region33: #{cgg_mlp_forward.1} parent=1 // pred_fallthru
      _
    // Predicated region
    $region34: #{cgg_mlp_forward.1} parent=1 // pred_check
      _
    $region35: #{cgg_mlp_forward.1} parent=1 // pred_check_branch
      %11157 = sbr.rel (0) target = $region37
    $region36: #{cgg_mlp_forward.1} parent=1 // pred_region
      _
    $region37: #{cgg_mlp_forward.1} parent=1 // pred_fallthru
      _
    // Predicated region
    $region38: #{cgg_mlp_forward.1} parent=1 // pred_check
      _
    $region39: #{cgg_mlp_forward.1} parent=1 // pred_check_branch
      %11159 = sbr.rel (0) target = $region41
    $region40: #{cgg_mlp_forward.1} parent=1 // pred_region
      _
    $region41: #{cgg_mlp_forward.1} parent=1 // pred_fallthru
      _
    // Predicated region
    $region42: #{cgg_mlp_forward.1} parent=1 // pred_check
      _
    $region43: #{cgg_mlp_forward.1} parent=1 // pred_check_branch
      %11161 = sbr.rel (0) target = $region45
    $region44: #{cgg_mlp_forward.1} parent=1 // pred_region
      _
    $region45: #{cgg_mlp_forward.1} parent=1 // pred_fallthru
      _
    // Predicated region
    $region46: #{cgg_mlp_forward.1} parent=1 // pred_check
      _
    $region47: #{cgg_mlp_forward.1} parent=1 // pred_check_branch
      %11163 = sbr.rel (0) target = $region49
    $region48: #{cgg_mlp_forward.1} parent=1 // pred_region
      _
    $region49: #{cgg_mlp_forward.1} parent=1 // pred_fallthru
      _
    // Predicated region
    $region50: #{cgg_mlp_forward.1} parent=1 // pred_check
      _
    $region51: #{cgg_mlp_forward.1} parent=1 // pred_check_branch
      %11165 = sbr.rel (0) target = $region53
    $region52: #{cgg_mlp_forward.1} parent=1 // pred_region
      _
    $region53: #{cgg_mlp_forward.1} parent=1 // pred_fallthru
      _
    // Predicated region
    $region54: #{cgg_mlp_forward.1} parent=1 // pred_check
      _
    $region55: #{cgg_mlp_forward.1} parent=1 // pred_check_branch
      %11167 = sbr.rel (0) target = $region57
    $region56: #{cgg_mlp_forward.1} parent=1 // pred_region
      _
    $region57: #{cgg_mlp_forward.1} parent=1 // pred_fallthru
      _
    // Predicated region
    $region58: #{cgg_mlp_forward.1} parent=1 // pred_check
      _
    $region59: #{cgg_mlp_forward.1} parent=1 // pred_check_branch
      %11169 = sbr.rel (0) target = $region61
    $region60: #{cgg_mlp_forward.1} parent=1 // pred_region
      _
    $region61: #{cgg_mlp_forward.1} parent=1 // pred_fallthru
      _
    %11170 = vsyncpa [#allocation3], 1
    %11171 = vsyncpa [#allocation5], 1

</llo_original>
